<compile_context>
chip_gen: v7x
topology: tpu7x:2x2x1
jax: 0.10.0
libtpu: 0.0.40
codegen_flags: <defaults>
</compile_context>

<pallas_src>
import functools
import math

import jax
import jax.numpy as jnp
from jax.experimental import pallas as pl
from jax.experimental.pallas import tpu as pltpu


# ----------------------------- kernel helpers ------------------------------

def _layernorm(x, gamma, beta, eps=1e-6):
    # PyTorch LayerNorm: biased variance over last dim, eps inside sqrt.
    mean = jnp.mean(x, axis=-1, keepdims=True)
    var = jnp.mean((x - mean) ** 2, axis=-1, keepdims=True)
    return (x - mean) * jax.lax.rsqrt(var + eps) * gamma + beta


def _mha(q_rows, kv_rows, wq_ref, wk_ref, wv_ref, bq_ref, bk_ref, bv_ref,
         wo_ref, bo_ref, mask, *, num_heads, cd, approx_recip):
    """Multi-head attention on row-flattened activations (all batches folded).

    q_rows:  (Rq, E)  f32,  kv_rows: (Rkv, E) f32.
    mask:    (Rq, Rkv) f32 additive block-diagonal mask (off-diagonal -1e9, so the
             batches folded into one score matmul stay independent).
    Weights arrive head-major from the wrapper: wq/wk/wv (H, E, hd) with 1/sqrt(hd)
    already folded into wq/bq; wo (H, hd, E).  Per-head context is accumulated
    straight into the (Rq, E) output, so no ctx scratch / lane slicing is needed.
    """
    n_q = q_rows.shape[0]
    e_out = wo_ref.shape[-1]
    q_in = q_rows.astype(cd)
    kv_in = kv_rows.astype(cd)

    out = jnp.zeros((n_q, e_out), jnp.float32)
    for h in range(num_heads):          # static, small; heads are separate softmaxes
        qh = jnp.dot(q_in, wq_ref[h], preferred_element_type=jnp.float32) + bq_ref[h]
        kh = jnp.dot(kv_in, wk_ref[h], preferred_element_type=jnp.float32) + bk_ref[h]
        vh = jnp.dot(kv_in, wv_ref[h], preferred_element_type=jnp.float32) + bv_ref[h]
        # One (Rq, Rkv) score matmul per head across *all* batches in the block;
        # 'qd,kd->qk' contracts the head dim without materializing k.T.
        s = jnp.einsum("qd,kd->qk", qh.astype(cd), kh.astype(cd),
                       preferred_element_type=jnp.float32) + mask
        s = s - jnp.max(s, axis=-1, keepdims=True)
        p = jnp.exp(s)
        denom = jnp.sum(p, axis=-1, keepdims=True)
        if approx_recip:                 # perf path (bf16 operands): EUP vrcp
            p = p * pl.reciprocal(denom, approx=True)
        else:                            # parity path (f32): exact division
            p = p / denom
        ctx = jnp.dot(p.astype(cd), vh.astype(cd), preferred_element_type=jnp.float32)
        # Fold this head into the output projection immediately:
        #   sum_h ctx_h @ Wo_h == concat_h(ctx_h) @ Wo^T   (no concat, no scratch).
        out = out + jnp.dot(ctx.astype(cd), wo_ref[h],
                            preferred_element_type=jnp.float32)
    return out + bo_ref[...]


# ------------------------------- the kernel --------------------------------

def decoder_block_kernel(
    x_ref, enc_ref, tgt_mask_ref, src_mask_ref,
    sa_wq, sa_wk, sa_wv, sa_bq, sa_bk, sa_bv, sa_wo, sa_bo,
    ca_wq, ca_wk, ca_wv, ca_bq, ca_bk, ca_bv, ca_wo, ca_bo,
    ffn_w1, ffn_b1, ffn_w2, ffn_b2,
    ln1_g, ln1_b, ln2_g, ln2_b,
    out_ref, *, num_heads, cd, approx_recip,
):
    # Activations arrive pre-flattened from the wrapper: (block_b*T, E) / (block_b*S, E).
    x2 = x_ref[...].astype(jnp.float32)
    enc2 = enc_ref[...].astype(jnp.float32)

    # --- self attention + residual + LN1 (dropout_1 identity in eval) ---
    sa = _mha(x2, x2, sa_wq, sa_wk, sa_wv, sa_bq, sa_bk, sa_bv, sa_wo, sa_bo,
              tgt_mask_ref[...], num_heads=num_heads, cd=cd,
              approx_recip=approx_recip)
    out1 = _layernorm(x2 + sa, ln1_g[...], ln1_b[...])

    # --- cross attention + residual + LN2 (dropout_2 identity) ---
    ca = _mha(out1, enc2, ca_wq, ca_wk, ca_wv, ca_bq, ca_bk, ca_bv, ca_wo, ca_bo,
              src_mask_ref[...], num_heads=num_heads, cd=cd,
              approx_recip=approx_recip)
    out2 = _layernorm(out1 + ca, ln2_g[...], ln2_b[...])

    # --- FFN + residual + (re-used) LN2, exactly as the PyTorch forward ---
    # At production sizes (E~1024, FF=4E) this hidden slab would be tiled over FF
    # with an inner fori_loop (or the FFN weights kept in pl.ANY and pipelined
    # manually) to respect v7x's 64 MiB VMEM; unnecessary at these shapes.
    hid = jnp.maximum(
        jnp.dot(out2.astype(cd), ffn_w1[...], preferred_element_type=jnp.float32)
        + ffn_b1[...], 0.0)
    ff = jnp.dot(hid.astype(cd), ffn_w2[...],
                 preferred_element_type=jnp.float32) + ffn_b2[...]
    out3 = _layernorm(out2 + ff, ln2_g[...], ln2_b[...])

    # Lane-dense store: (block_b*T, E) with E >= 128 -> unmasked full-lane vst.
    out_ref[...] = out3.astype(out_ref.dtype)


# -------------------------------- wrapper -----------------------------------

def transformer_decoder_block(x, enc_output, src_mask, tgt_mask, params, num_heads,
                              *, block_b=None, compute_dtype=jnp.bfloat16,
                              approx_recip=None):
    B, T, E = x.shape
    _, S, _ = enc_output.shape
    assert E % num_heads == 0
    hd = E // num_heads
    if block_b is None:
        # Keep grid >= 2 so the "parallel" batch axis can shard across both v7x
        # TensorCores (single-TC v5e/v6e unaffected).  At real sizes also keep
        # block_b*T >= ~256 rows per grid step.
        block_b = B // 2 if (B % 2 == 0 and B >= 2) else B
    assert B % block_b == 0, "batch must be divisible by block_b"
    if approx_recip is None:
        approx_recip = (compute_dtype != jnp.float32)
    cd = compute_dtype
    scale = 1.0 / math.sqrt(hd)
    FF = params["ffn_w1"].shape[0]

    def row2d(v):                          # (N,) -> (1, N) f32 (biases / LN params)
        return v.reshape(1, -1).astype(jnp.float32)

    def head_major_in(w_packed, b_packed):
        # nn.MultiheadAttention packed in_proj (3E, E)/(3E,) in PyTorch (out, in)
        # layout.  Split q/k/v and re-lay per head: W_h (E, hd) so q_h = x @ W_h,
        # with 1/sqrt(hd) folded into Wq / bq.  All host-side, free XLA work.
        ws = [w_packed[i * E:(i + 1) * E] for i in range(3)]
        bs = [b_packed[i * E:(i + 1) * E] for i in range(3)]
        scales = (scale, 1.0, 1.0)          # scale only q
        w_hm = tuple((w.reshape(num_heads, hd, E).transpose(0, 2, 1) * s).astype(cd)
                     for w, s in zip(ws, scales))
        b_hm = tuple((b.reshape(num_heads, 1, hd) * s).astype(jnp.float32)
                     for b, s in zip(bs, scales))
        return w_hm + b_hm                  # (wq, wk, wv, bq, bk, bv)

    def head_major_out(w_out):
        # out_proj weight (E, E) in (out, in) layout -> per-head (H, hd, E) so that
        # sum_h ctx_h @ Wo_h == concat_h(ctx_h) @ Wo^T.
        return w_out.reshape(E, num_heads, hd).transpose(1, 2, 0).astype(cd)

    sa = head_major_in(params["sa_in_w"], params["sa_in_b"])
    ca = head_major_in(params["ca_in_w"], params["ca_in_b"])

    weight_args = (
        *sa, head_major_out(params["sa_out_w"]), row2d(params["sa_out_b"]),
        *ca, head_major_out(params["ca_out_w"]), row2d(params["ca_out_b"]),
        params["ffn_w1"].T.astype(cd), row2d(params["ffn_b1"]),
        params["ffn_w2"].T.astype(cd), row2d(params["ffn_b2"]),
        row2d(params["ln1_w"]), row2d(params["ln1_b"]),
        row2d(params["ln2_w"]), row2d(params["ln2_b"]),
    )

    # Block-diagonal additive masks: diagonal blocks carry the user mask, the
    # off-diagonal blocks are -1e9 (finite, f32, applied before the row-max
    # subtraction) so the batches folded into one score matmul stay independent.
    def block_diag(mask2d, nb):
        tq, tk = mask2d.shape
        eye = jnp.eye(nb, dtype=bool)[:, None, :, None]
        big = jnp.where(eye, mask2d[None, :, None, :].astype(jnp.float32),
                        jnp.float32(-1e9))
        return big.reshape(nb * tq, nb * tk)

    tgt_big = block_diag(tgt_mask, block_b)          # (block_b*T, block_b*T)
    src_big = block_diag(src_mask, block_b)          # (block_b*T, block_b*S)

    # Pre-flatten activations on the host (leading-dim collapse, free) so the
    # kernel never reshapes and every HBM-facing access is 2-D and lane-dense
    # (E >= 128).  For E < 128 one would expose a (B, T*E) output slab instead.
    x2d = x.reshape(B * T, E)
    enc2d = enc_output.reshape(B * S, E)

    def rep(arr):                          # full-array block, grid-invariant
        nd = arr.ndim
        return pl.BlockSpec(arr.shape, lambda b, nd=nd: (0,) * nd)

    in_specs = [
        pl.BlockSpec((block_b * T, E), lambda b: (b, 0)),     # x rows
        pl.BlockSpec((block_b * S, E), lambda b: (b, 0)),     # enc rows
        rep(tgt_big), rep(src_big),
    ] + [rep(w) for w in weight_args]
    # NOTE: on VMEM-tight chips at real sizes the grid-invariant weights above
    # could be single-buffered via pipeline_mode=pl.Buffered(1).

    # Advisory cost estimate so XLA schedules the surrounding graph sensibly.
    flops = int(
        3 * 2 * B * T * E * E + 4 * B * T * T * E + 2 * B * T * E * E      # self-attn
        + 2 * B * T * E * E + 4 * B * S * E * E + 4 * B * T * S * E        # cross-attn
        + 2 * B * T * E * E
        + 4 * B * T * E * FF                                               # FFN
    )
    transcendentals = int(B * num_heads * T * (T + S))
    bytes_accessed = int(
        sum(int(a.size) * a.dtype.itemsize
            for a in (x2d, enc2d, tgt_big, src_big) + weight_args)
        + int(x2d.size) * x.dtype.itemsize)

    kernel = functools.partial(decoder_block_kernel, num_heads=num_heads,
                               cd=cd, approx_recip=approx_recip)

    out2d = pl.pallas_call(
        kernel,
        out_shape=jax.ShapeDtypeStruct((B * T, E), x.dtype),
        grid=(B // block_b,),
        in_specs=in_specs,
        out_specs=pl.BlockSpec((block_b * T, E), lambda b: (b, 0)),
        compiler_params=pltpu.CompilerParams(
            dimension_semantics=("parallel",),      # batch blocks are independent
            vmem_limit_bytes=32 * 1024 * 1024,      # explicit budget, fits every gen
        ),
        cost_estimate=pl.CostEstimate(flops=flops, transcendentals=transcendentals,
                                      bytes_accessed=bytes_accessed),
    )(x2d, enc2d, tgt_big, src_big, *weight_args)
    return out2d.reshape(B, T, E)


# --------------------------- pure-JAX reference ------------------------------

def reference_block(x, enc, src_mask, tgt_mask, p, num_heads):
    def ln(v, g, b, eps=1e-6):
        m = jnp.mean(v, axis=-1, keepdims=True)
        var = jnp.mean((v - m) ** 2, axis=-1, keepdims=True)
        return (v - m) / jnp.sqrt(var + eps) * g + b

    def mha(q_in, kv_in, w_in, b_in, w_out, b_out, mask):
        E = q_in.shape[-1]
        hd = E // num_heads
        wq, wk, wv = w_in[:E], w_in[E:2 * E], w_in[2 * E:]
        bq, bk, bv = b_in[:E], b_in[E:2 * E], b_in[2 * E:]
        q = q_in @ wq.T + bq
        k = kv_in @ wk.T + bk
        v = kv_in @ wv.T + bv
        B_, Tq, _ = q.shape
        Tk = k.shape[1]
        qh = q.reshape(B_, Tq, num_heads, hd).transpose(0, 2, 1, 3)
        kh = k.reshape(B_, Tk, num_heads, hd).transpose(0, 2, 1, 3)
        vh = v.reshape(B_, Tk, num_heads, hd).transpose(0, 2, 1, 3)
        s = jnp.einsum("bhtd,bhsd->bhts", qh, kh) / jnp.sqrt(jnp.float32(hd)) + mask
        a = jax.nn.softmax(s, axis=-1)
        ctx = jnp.einsum("bhts,bhsd->bhtd", a, vh).transpose(0, 2, 1, 3)
        return ctx.reshape(B_, Tq, E) @ w_out.T + b_out

    sa = mha(x, x, p["sa_in_w"], p["sa_in_b"], p["sa_out_w"], p["sa_out_b"], tgt_mask)
    out1 = ln(x + sa, p["ln1_w"], p["ln1_b"])
    ca = mha(out1, enc, p["ca_in_w"], p["ca_in_b"], p["ca_out_w"], p["ca_out_b"], src_mask)
    out2 = ln(out1 + ca, p["ln2_w"], p["ln2_b"])
    h = jax.nn.relu(out2 @ p["ffn_w1"].T + p["ffn_b1"])
    ff = h @ p["ffn_w2"].T + p["ffn_b2"]
    # PyTorch forward re-uses layernorm_2 for the final residual (layernorm_3 unused).
    return ln(out2 + ff, p["ln2_w"], p["ln2_b"])


# ----------------------------------- main ------------------------------------

if __name__ == "__main__":
    # Lane-aligned toy sizes (E = 128 = one full lane group; hd = 32).
    B, T, S, E, H, FF = 4, 8, 16, 128, 4, 256

    key = jax.random.PRNGKey(0)
    keys = jax.random.split(key, 20)

    def init(k, shape, scale=0.1):
        return scale * jax.random.normal(k, shape, dtype=jnp.float32)

    params = {
        # self-attention: packed in_proj (3E, E)/(3E,) + out_proj (E, E)/(E,)
        "sa_in_w": init(keys[0], (3 * E, E)),
        "sa_in_b": init(keys[1], (3 * E,)),
        "sa_out_w": init(keys[2], (E, E)),
        "sa_out_b": init(keys[3], (E,)),
        # cross-attention
        "ca_in_w": init(keys[4], (3 * E, E)),
        "ca_in_b": init(keys[5], (3 * E,)),
        "ca_out_w": init(keys[6], (E, E)),
        "ca_out_b": init(keys[7], (E,)),
        # FFN
        "ffn_w1": init(keys[8], (FF, E)),
        "ffn_b1": init(keys[9], (FF,)),
        "ffn_w2": init(keys[10], (E, FF)),
        "ffn_b2": init(keys[11], (E,)),
        # LayerNorms (affine).  layernorm_3 / dropout_3 exist in __init__ but are
        # never used by forward, so they are intentionally absent here.
        "ln1_w": 1.0 + init(keys[14], (E,)),
        "ln1_b": init(keys[15], (E,)),
        "ln2_w": 1.0 + init(keys[16], (E,)),
        "ln2_b": init(keys[17], (E,)),
    }

    x = init(keys[12], (B, T, E), scale=1.0)
    enc_output = init(keys[13], (B, S, E), scale=1.0)

    # causal additive tgt_mask, all-zero src_mask (float masks, PyTorch-style)
    tgt_mask = jnp.where(
        jnp.tril(jnp.ones((T, T), jnp.bool_)), 0.0, -1e9).astype(jnp.float32)
    src_mask = jnp.zeros((T, S), jnp.float32)

    ref = reference_block(x, enc_output, src_mask, tgt_mask, params, H)

    # f32 parity path (exact softmax division; matches the PyTorch module)
    out_f32 = transformer_decoder_block(x, enc_output, src_mask, tgt_mask, params, H,
                                        compute_dtype=jnp.float32)
    out_f32 = jax.block_until_ready(out_f32)
    assert out_f32.shape == (B, T, E)
    assert bool(jnp.all(jnp.isfinite(out_f32)))
    assert jnp.allclose(out_f32, ref, atol=1e-3, rtol=1e-3), "f32 kernel mismatch vs reference"

    # default bf16 MXU-operand perf path (f32 accumulation / softmax / LayerNorm)
    out_bf16 = transformer_decoder_block(x, enc_output, src_mask, tgt_mask, params, H)
    out_bf16 = jax.block_until_ready(out_bf16)
    assert out_bf16.shape == (B, T, E)
    assert bool(jnp.all(jnp.isfinite(out_bf16)))
    assert float(jnp.max(jnp.abs(out_bf16 - ref))) < 0.1, "bf16 kernel diverged"

    print("KERNEL_OK")
</pallas_src>

<mosaic_0001>
module attributes {stable_mosaic.version = 11 : i64} {
  func.func @decoder_block_kernel(%arg0: i32, %arg1: memref<16x128xf32, #tpu.memory_space<vmem>>, %arg2: memref<32x128xf32, #tpu.memory_space<vmem>>, %arg3: memref<16x16xf32, #tpu.memory_space<vmem>>, %arg4: memref<16x32xf32, #tpu.memory_space<vmem>>, %arg5: memref<4x128x32xf32, #tpu.memory_space<vmem>>, %arg6: memref<4x128x32xf32, #tpu.memory_space<vmem>>, %arg7: memref<4x128x32xf32, #tpu.memory_space<vmem>>, %arg8: memref<4x1x32xf32, #tpu.memory_space<vmem>>, %arg9: memref<4x1x32xf32, #tpu.memory_space<vmem>>, %arg10: memref<4x1x32xf32, #tpu.memory_space<vmem>>, %arg11: memref<4x32x128xf32, #tpu.memory_space<vmem>>, %arg12: memref<1x128xf32, #tpu.memory_space<vmem>>, %arg13: memref<4x128x32xf32, #tpu.memory_space<vmem>>, %arg14: memref<4x128x32xf32, #tpu.memory_space<vmem>>, %arg15: memref<4x128x32xf32, #tpu.memory_space<vmem>>, %arg16: memref<4x1x32xf32, #tpu.memory_space<vmem>>, %arg17: memref<4x1x32xf32, #tpu.memory_space<vmem>>, %arg18: memref<4x1x32xf32, #tpu.memory_space<vmem>>, %arg19: memref<4x32x128xf32, #tpu.memory_space<vmem>>, %arg20: memref<1x128xf32, #tpu.memory_space<vmem>>, %arg21: memref<128x256xf32, #tpu.memory_space<vmem>>, %arg22: memref<1x256xf32, #tpu.memory_space<vmem>>, %arg23: memref<256x128xf32, #tpu.memory_space<vmem>>, %arg24: memref<1x128xf32, #tpu.memory_space<vmem>>, %arg25: memref<1x128xf32, #tpu.memory_space<vmem>>, %arg26: memref<1x128xf32, #tpu.memory_space<vmem>>, %arg27: memref<1x128xf32, #tpu.memory_space<vmem>>, %arg28: memref<1x128xf32, #tpu.memory_space<vmem>>, %arg29: memref<16x128xf32, #tpu.memory_space<vmem>>) attributes {dimension_semantics = [#tpu.dimension_semantics<parallel>], iteration_bounds = array<i64: 2>, scalar_prefetch = 0 : i64, scratch_operands = 0 : i64, tpu.core_type = #tpu.core_type<tc>, window_params = [{transform_indices = @transform_0, window_bounds = array<i64: 16, 128>}, {transform_indices = @transform_1, window_bounds = array<i64: 32, 128>}, {pipeline_mode = #tpu.pipeline_mode<synchronous>, transform_indices = @transform_2, window_bounds = array<i64: 16, 16>}, {pipeline_mode = #tpu.pipeline_mode<synchronous>, transform_indices = @transform_3, window_bounds = array<i64: 16, 32>}, {pipeline_mode = #tpu.pipeline_mode<synchronous>, transform_indices = @transform_4, window_bounds = array<i64: 4, 128, 32>}, {pipeline_mode = #tpu.pipeline_mode<synchronous>, transform_indices = @transform_5, window_bounds = array<i64: 4, 128, 32>}, {pipeline_mode = #tpu.pipeline_mode<synchronous>, transform_indices = @transform_6, window_bounds = array<i64: 4, 128, 32>}, {pipeline_mode = #tpu.pipeline_mode<synchronous>, transform_indices = @transform_7, window_bounds = array<i64: 4, 1, 32>}, {pipeline_mode = #tpu.pipeline_mode<synchronous>, transform_indices = @transform_8, window_bounds = array<i64: 4, 1, 32>}, {pipeline_mode = #tpu.pipeline_mode<synchronous>, transform_indices = @transform_9, window_bounds = array<i64: 4, 1, 32>}, {pipeline_mode = #tpu.pipeline_mode<synchronous>, transform_indices = @transform_10, window_bounds = array<i64: 4, 32, 128>}, {pipeline_mode = #tpu.pipeline_mode<synchronous>, transform_indices = @transform_11, window_bounds = array<i64: 1, 128>}, {pipeline_mode = #tpu.pipeline_mode<synchronous>, transform_indices = @transform_12, window_bounds = array<i64: 4, 128, 32>}, {pipeline_mode = #tpu.pipeline_mode<synchronous>, transform_indices = @transform_13, window_bounds = array<i64: 4, 128, 32>}, {pipeline_mode = #tpu.pipeline_mode<synchronous>, transform_indices = @transform_14, window_bounds = array<i64: 4, 128, 32>}, {pipeline_mode = #tpu.pipeline_mode<synchronous>, transform_indices = @transform_15, window_bounds = array<i64: 4, 1, 32>}, {pipeline_mode = #tpu.pipeline_mode<synchronous>, transform_indices = @transform_16, window_bounds = array<i64: 4, 1, 32>}, {pipeline_mode = #tpu.pipeline_mode<synchronous>, transform_indices = @transform_17, window_bounds = array<i64: 4, 1, 32>}, {pipeline_mode = #tpu.pipeline_mode<synchronous>, transform_indices = @transform_18, window_bounds = array<i64: 4, 32, 128>}, {pipeline_mode = #tpu.pipeline_mode<synchronous>, transform_indices = @transform_19, window_bounds = array<i64: 1, 128>}, {pipeline_mode = #tpu.pipeline_mode<synchronous>, transform_indices = @transform_20, window_bounds = array<i64: 128, 256>}, {pipeline_mode = #tpu.pipeline_mode<synchronous>, transform_indices = @transform_21, window_bounds = array<i64: 1, 256>}, {pipeline_mode = #tpu.pipeline_mode<synchronous>, transform_indices = @transform_22, window_bounds = array<i64: 256, 128>}, {pipeline_mode = #tpu.pipeline_mode<synchronous>, transform_indices = @transform_23, window_bounds = array<i64: 1, 128>}, {pipeline_mode = #tpu.pipeline_mode<synchronous>, transform_indices = @transform_24, window_bounds = array<i64: 1, 128>}, {pipeline_mode = #tpu.pipeline_mode<synchronous>, transform_indices = @transform_25, window_bounds = array<i64: 1, 128>}, {pipeline_mode = #tpu.pipeline_mode<synchronous>, transform_indices = @transform_26, window_bounds = array<i64: 1, 128>}, {pipeline_mode = #tpu.pipeline_mode<synchronous>, transform_indices = @transform_27, window_bounds = array<i64: 1, 128>}, {transform_indices = @transform_28, window_bounds = array<i64: 16, 128>}]} {
    %c0 = arith.constant 0 : index
    %c0_0 = arith.constant 0 : index
    %0 = vector.load %arg1[%c0, %c0_0] : memref<16x128xf32, #tpu.memory_space<vmem>>, vector<16x128xf32>
    %c0_1 = arith.constant 0 : index
    %c0_2 = arith.constant 0 : index
    %1 = vector.load %arg2[%c0_1, %c0_2] : memref<32x128xf32, #tpu.memory_space<vmem>>, vector<32x128xf32>
    %c0_3 = arith.constant 0 : index
    %c0_4 = arith.constant 0 : index
    %2 = vector.load %arg3[%c0_3, %c0_4] : memref<16x16xf32, #tpu.memory_space<vmem>>, vector<16x16xf32>
    %cst = arith.constant 0.000000e+00 : f32
    %3 = vector.broadcast %cst : f32 to vector<16x128xf32>
    %c0_5 = arith.constant 0 : index
    %c0_6 = arith.constant 0 : index
    %c0_7 = arith.constant 0 : index
    %4 = vector.load %arg5[%c0_5, %c0_6, %c0_7] : memref<4x128x32xf32, #tpu.memory_space<vmem>>, vector<1x128x32xf32>
    %5 = vector.shape_cast %4 : vector<1x128x32xf32> to vector<128x32xf32>
    %cst_8 = arith.constant dense<0.000000e+00> : vector<16x32xf32>
    %6 = tpu.matmul %0, %5, %cst_8 {dimension_numbers = #tpu.dot_dimension_numbers<[1], [0], [0], [1], [0, 0, 1, 1], [], []>} : vector<16x128xf32>, vector<128x32xf32>, vector<16x32xf32> -> vector<16x32xf32>
    %c0_9 = arith.constant 0 : index
    %c0_10 = arith.constant 0 : index
    %c0_11 = arith.constant 0 : index
    %7 = vector.load %arg8[%c0_9, %c0_10, %c0_11] : memref<4x1x32xf32, #tpu.memory_space<vmem>>, vector<1x1x32xf32>
    %8 = vector.shape_cast %7 : vector<1x1x32xf32> to vector<1x32xf32>
    %9 = vector.broadcast %8 : vector<1x32xf32> to vector<16x32xf32>
    %10 = arith.addf %6, %9 : vector<16x32xf32>
    %c0_12 = arith.constant 0 : index
    %c0_13 = arith.constant 0 : index
    %c0_14 = arith.constant 0 : index
    %11 = vector.load %arg6[%c0_12, %c0_13, %c0_14] : memref<4x128x32xf32, #tpu.memory_space<vmem>>, vector<1x128x32xf32>
    %12 = vector.shape_cast %11 : vector<1x128x32xf32> to vector<128x32xf32>
    %cst_15 = arith.constant dense<0.000000e+00> : vector<16x32xf32>
    %13 = tpu.matmul %0, %12, %cst_15 {dimension_numbers = #tpu.dot_dimension_numbers<[1], [0], [0], [1], [0, 0, 1, 1], [], []>} : vector<16x128xf32>, vector<128x32xf32>, vector<16x32xf32> -> vector<16x32xf32>
    %c0_16 = arith.constant 0 : index
    %c0_17 = arith.constant 0 : index
    %c0_18 = arith.constant 0 : index
    %14 = vector.load %arg9[%c0_16, %c0_17, %c0_18] : memref<4x1x32xf32, #tpu.memory_space<vmem>>, vector<1x1x32xf32>
    %15 = vector.shape_cast %14 : vector<1x1x32xf32> to vector<1x32xf32>
    %16 = vector.broadcast %15 : vector<1x32xf32> to vector<16x32xf32>
    %17 = arith.addf %13, %16 : vector<16x32xf32>
    %c0_19 = arith.constant 0 : index
    %c0_20 = arith.constant 0 : index
    %c0_21 = arith.constant 0 : index
    %18 = vector.load %arg7[%c0_19, %c0_20, %c0_21] : memref<4x128x32xf32, #tpu.memory_space<vmem>>, vector<1x128x32xf32>
    %19 = vector.shape_cast %18 : vector<1x128x32xf32> to vector<128x32xf32>
    %cst_22 = arith.constant dense<0.000000e+00> : vector<16x32xf32>
    %20 = tpu.matmul %0, %19, %cst_22 {dimension_numbers = #tpu.dot_dimension_numbers<[1], [0], [0], [1], [0, 0, 1, 1], [], []>} : vector<16x128xf32>, vector<128x32xf32>, vector<16x32xf32> -> vector<16x32xf32>
    %c0_23 = arith.constant 0 : index
    %c0_24 = arith.constant 0 : index
    %c0_25 = arith.constant 0 : index
    %21 = vector.load %arg10[%c0_23, %c0_24, %c0_25] : memref<4x1x32xf32, #tpu.memory_space<vmem>>, vector<1x1x32xf32>
    %22 = vector.shape_cast %21 : vector<1x1x32xf32> to vector<1x32xf32>
    %23 = vector.broadcast %22 : vector<1x32xf32> to vector<16x32xf32>
    %24 = arith.addf %20, %23 : vector<16x32xf32>
    "tpu.trace_start"() <{level = 10 : i32, message = "qd,kd->qk"}> : () -> ()
    %cst_26 = arith.constant dense<0.000000e+00> : vector<16x16xf32>
    %25 = tpu.matmul %10, %17, %cst_26 {dimension_numbers = #tpu.dot_dimension_numbers<[1], [1], [0], [0], [0, 0, 1, 0], [], []>} : vector<16x32xf32>, vector<16x32xf32>, vector<16x16xf32> -> vector<16x16xf32>
    "tpu.trace_stop"() : () -> ()
    %26 = arith.addf %25, %2 : vector<16x16xf32>
    %cst_27 = arith.constant dense<0xFF800000> : vector<16xf32>
    %27 = vector.multi_reduction <maximumf>, %26, %cst_27 [1] : vector<16x16xf32> to vector<16xf32>
    %28 = vector.shape_cast %27 : vector<16xf32> to vector<16x1xf32>
    %29 = vector.broadcast %28 : vector<16x1xf32> to vector<16x16xf32>
    %30 = arith.subf %26, %29 : vector<16x16xf32>
    %31 = math.exp %30 : vector<16x16xf32>
    %cst_28 = arith.constant dense<0.000000e+00> : vector<16xf32>
    %32 = vector.multi_reduction <add>, %31, %cst_28 [1] : vector<16x16xf32> to vector<16xf32>
    %33 = vector.shape_cast %32 : vector<16xf32> to vector<16x1xf32>
    %34 = vector.broadcast %33 : vector<16x1xf32> to vector<16x16xf32>
    %35 = arith.divf %31, %34 : vector<16x16xf32>
    %cst_29 = arith.constant dense<0.000000e+00> : vector<16x32xf32>
    %36 = tpu.matmul %35, %24, %cst_29 {dimension_numbers = #tpu.dot_dimension_numbers<[1], [0], [0], [1], [0, 0, 1, 1], [], []>} : vector<16x16xf32>, vector<16x32xf32>, vector<16x32xf32> -> vector<16x32xf32>
    %c0_30 = arith.constant 0 : index
    %c0_31 = arith.constant 0 : index
    %c0_32 = arith.constant 0 : index
    %37 = vector.load %arg11[%c0_30, %c0_31, %c0_32] : memref<4x32x128xf32, #tpu.memory_space<vmem>>, vector<1x32x128xf32>
    %38 = vector.shape_cast %37 : vector<1x32x128xf32> to vector<32x128xf32>
    %cst_33 = arith.constant dense<0.000000e+00> : vector<16x128xf32>
    %39 = tpu.matmul %36, %38, %cst_33 {dimension_numbers = #tpu.dot_dimension_numbers<[1], [0], [0], [1], [0, 0, 1, 1], [], []>} : vector<16x32xf32>, vector<32x128xf32>, vector<16x128xf32> -> vector<16x128xf32>
    %40 = arith.addf %3, %39 : vector<16x128xf32>
    %c1 = arith.constant 1 : index
    %c0_34 = arith.constant 0 : index
    %c0_35 = arith.constant 0 : index
    %41 = vector.load %arg5[%c1, %c0_34, %c0_35] : memref<4x128x32xf32, #tpu.memory_space<vmem>>, vector<1x128x32xf32>
    %42 = vector.shape_cast %41 : vector<1x128x32xf32> to vector<128x32xf32>
    %cst_36 = arith.constant dense<0.000000e+00> : vector<16x32xf32>
    %43 = tpu.matmul %0, %42, %cst_36 {dimension_numbers = #tpu.dot_dimension_numbers<[1], [0], [0], [1], [0, 0, 1, 1], [], []>} : vector<16x128xf32>, vector<128x32xf32>, vector<16x32xf32> -> vector<16x32xf32>
    %c1_37 = arith.constant 1 : index
    %c0_38 = arith.constant 0 : index
    %c0_39 = arith.constant 0 : index
    %44 = vector.load %arg8[%c1_37, %c0_38, %c0_39] : memref<4x1x32xf32, #tpu.memory_space<vmem>>, vector<1x1x32xf32>
    %45 = vector.shape_cast %44 : vector<1x1x32xf32> to vector<1x32xf32>
    %46 = vector.broadcast %45 : vector<1x32xf32> to vector<16x32xf32>
    %47 = arith.addf %43, %46 : vector<16x32xf32>
    %c1_40 = arith.constant 1 : index
    %c0_41 = arith.constant 0 : index
    %c0_42 = arith.constant 0 : index
    %48 = vector.load %arg6[%c1_40, %c0_41, %c0_42] : memref<4x128x32xf32, #tpu.memory_space<vmem>>, vector<1x128x32xf32>
    %49 = vector.shape_cast %48 : vector<1x128x32xf32> to vector<128x32xf32>
    %cst_43 = arith.constant dense<0.000000e+00> : vector<16x32xf32>
    %50 = tpu.matmul %0, %49, %cst_43 {dimension_numbers = #tpu.dot_dimension_numbers<[1], [0], [0], [1], [0, 0, 1, 1], [], []>} : vector<16x128xf32>, vector<128x32xf32>, vector<16x32xf32> -> vector<16x32xf32>
    %c1_44 = arith.constant 1 : index
    %c0_45 = arith.constant 0 : index
    %c0_46 = arith.constant 0 : index
    %51 = vector.load %arg9[%c1_44, %c0_45, %c0_46] : memref<4x1x32xf32, #tpu.memory_space<vmem>>, vector<1x1x32xf32>
    %52 = vector.shape_cast %51 : vector<1x1x32xf32> to vector<1x32xf32>
    %53 = vector.broadcast %52 : vector<1x32xf32> to vector<16x32xf32>
    %54 = arith.addf %50, %53 : vector<16x32xf32>
    %c1_47 = arith.constant 1 : index
    %c0_48 = arith.constant 0 : index
    %c0_49 = arith.constant 0 : index
    %55 = vector.load %arg7[%c1_47, %c0_48, %c0_49] : memref<4x128x32xf32, #tpu.memory_space<vmem>>, vector<1x128x32xf32>
    %56 = vector.shape_cast %55 : vector<1x128x32xf32> to vector<128x32xf32>
    %cst_50 = arith.constant dense<0.000000e+00> : vector<16x32xf32>
    %57 = tpu.matmul %0, %56, %cst_50 {dimension_numbers = #tpu.dot_dimension_numbers<[1], [0], [0], [1], [0, 0, 1, 1], [], []>} : vector<16x128xf32>, vector<128x32xf32>, vector<16x32xf32> -> vector<16x32xf32>
    %c1_51 = arith.constant 1 : index
    %c0_52 = arith.constant 0 : index
    %c0_53 = arith.constant 0 : index
    %58 = vector.load %arg10[%c1_51, %c0_52, %c0_53] : memref<4x1x32xf32, #tpu.memory_space<vmem>>, vector<1x1x32xf32>
    %59 = vector.shape_cast %58 : vector<1x1x32xf32> to vector<1x32xf32>
    %60 = vector.broadcast %59 : vector<1x32xf32> to vector<16x32xf32>
    %61 = arith.addf %57, %60 : vector<16x32xf32>
    "tpu.trace_start"() <{level = 10 : i32, message = "qd,kd->qk"}> : () -> ()
    %cst_54 = arith.constant dense<0.000000e+00> : vector<16x16xf32>
    %62 = tpu.matmul %47, %54, %cst_54 {dimension_numbers = #tpu.dot_dimension_numbers<[1], [1], [0], [0], [0, 0, 1, 0], [], []>} : vector<16x32xf32>, vector<16x32xf32>, vector<16x16xf32> -> vector<16x16xf32>
    "tpu.trace_stop"() : () -> ()
    %63 = arith.addf %62, %2 : vector<16x16xf32>
    %cst_55 = arith.constant dense<0xFF800000> : vector<16xf32>
    %64 = vector.multi_reduction <maximumf>, %63, %cst_55 [1] : vector<16x16xf32> to vector<16xf32>
    %65 = vector.shape_cast %64 : vector<16xf32> to vector<16x1xf32>
    %66 = vector.broadcast %65 : vector<16x1xf32> to vector<16x16xf32>
    %67 = arith.subf %63, %66 : vector<16x16xf32>
    %68 = math.exp %67 : vector<16x16xf32>
    %cst_56 = arith.constant dense<0.000000e+00> : vector<16xf32>
    %69 = vector.multi_reduction <add>, %68, %cst_56 [1] : vector<16x16xf32> to vector<16xf32>
    %70 = vector.shape_cast %69 : vector<16xf32> to vector<16x1xf32>
    %71 = vector.broadcast %70 : vector<16x1xf32> to vector<16x16xf32>
    %72 = arith.divf %68, %71 : vector<16x16xf32>
    %cst_57 = arith.constant dense<0.000000e+00> : vector<16x32xf32>
    %73 = tpu.matmul %72, %61, %cst_57 {dimension_numbers = #tpu.dot_dimension_numbers<[1], [0], [0], [1], [0, 0, 1, 1], [], []>} : vector<16x16xf32>, vector<16x32xf32>, vector<16x32xf32> -> vector<16x32xf32>
    %c1_58 = arith.constant 1 : index
    %c0_59 = arith.constant 0 : index
    %c0_60 = arith.constant 0 : index
    %74 = vector.load %arg11[%c1_58, %c0_59, %c0_60] : memref<4x32x128xf32, #tpu.memory_space<vmem>>, vector<1x32x128xf32>
    %75 = vector.shape_cast %74 : vector<1x32x128xf32> to vector<32x128xf32>
    %cst_61 = arith.constant dense<0.000000e+00> : vector<16x128xf32>
    %76 = tpu.matmul %73, %75, %cst_61 {dimension_numbers = #tpu.dot_dimension_numbers<[1], [0], [0], [1], [0, 0, 1, 1], [], []>} : vector<16x32xf32>, vector<32x128xf32>, vector<16x128xf32> -> vector<16x128xf32>
    %77 = arith.addf %40, %76 : vector<16x128xf32>
    %c2 = arith.constant 2 : index
    %c0_62 = arith.constant 0 : index
    %c0_63 = arith.constant 0 : index
    %78 = vector.load %arg5[%c2, %c0_62, %c0_63] : memref<4x128x32xf32, #tpu.memory_space<vmem>>, vector<1x128x32xf32>
    %79 = vector.shape_cast %78 : vector<1x128x32xf32> to vector<128x32xf32>
    %cst_64 = arith.constant dense<0.000000e+00> : vector<16x32xf32>
    %80 = tpu.matmul %0, %79, %cst_64 {dimension_numbers = #tpu.dot_dimension_numbers<[1], [0], [0], [1], [0, 0, 1, 1], [], []>} : vector<16x128xf32>, vector<128x32xf32>, vector<16x32xf32> -> vector<16x32xf32>
    %c2_65 = arith.constant 2 : index
    %c0_66 = arith.constant 0 : index
    %c0_67 = arith.constant 0 : index
    %81 = vector.load %arg8[%c2_65, %c0_66, %c0_67] : memref<4x1x32xf32, #tpu.memory_space<vmem>>, vector<1x1x32xf32>
    %82 = vector.shape_cast %81 : vector<1x1x32xf32> to vector<1x32xf32>
    %83 = vector.broadcast %82 : vector<1x32xf32> to vector<16x32xf32>
    %84 = arith.addf %80, %83 : vector<16x32xf32>
    %c2_68 = arith.constant 2 : index
    %c0_69 = arith.constant 0 : index
    %c0_70 = arith.constant 0 : index
    %85 = vector.load %arg6[%c2_68, %c0_69, %c0_70] : memref<4x128x32xf32, #tpu.memory_space<vmem>>, vector<1x128x32xf32>
    %86 = vector.shape_cast %85 : vector<1x128x32xf32> to vector<128x32xf32>
    %cst_71 = arith.constant dense<0.000000e+00> : vector<16x32xf32>
    %87 = tpu.matmul %0, %86, %cst_71 {dimension_numbers = #tpu.dot_dimension_numbers<[1], [0], [0], [1], [0, 0, 1, 1], [], []>} : vector<16x128xf32>, vector<128x32xf32>, vector<16x32xf32> -> vector<16x32xf32>
    %c2_72 = arith.constant 2 : index
    %c0_73 = arith.constant 0 : index
    %c0_74 = arith.constant 0 : index
    %88 = vector.load %arg9[%c2_72, %c0_73, %c0_74] : memref<4x1x32xf32, #tpu.memory_space<vmem>>, vector<1x1x32xf32>
    %89 = vector.shape_cast %88 : vector<1x1x32xf32> to vector<1x32xf32>
    %90 = vector.broadcast %89 : vector<1x32xf32> to vector<16x32xf32>
    %91 = arith.addf %87, %90 : vector<16x32xf32>
    %c2_75 = arith.constant 2 : index
    %c0_76 = arith.constant 0 : index
    %c0_77 = arith.constant 0 : index
    %92 = vector.load %arg7[%c2_75, %c0_76, %c0_77] : memref<4x128x32xf32, #tpu.memory_space<vmem>>, vector<1x128x32xf32>
    %93 = vector.shape_cast %92 : vector<1x128x32xf32> to vector<128x32xf32>
    %cst_78 = arith.constant dense<0.000000e+00> : vector<16x32xf32>
    %94 = tpu.matmul %0, %93, %cst_78 {dimension_numbers = #tpu.dot_dimension_numbers<[1], [0], [0], [1], [0, 0, 1, 1], [], []>} : vector<16x128xf32>, vector<128x32xf32>, vector<16x32xf32> -> vector<16x32xf32>
    %c2_79 = arith.constant 2 : index
    %c0_80 = arith.constant 0 : index
    %c0_81 = arith.constant 0 : index
    %95 = vector.load %arg10[%c2_79, %c0_80, %c0_81] : memref<4x1x32xf32, #tpu.memory_space<vmem>>, vector<1x1x32xf32>
    %96 = vector.shape_cast %95 : vector<1x1x32xf32> to vector<1x32xf32>
    %97 = vector.broadcast %96 : vector<1x32xf32> to vector<16x32xf32>
    %98 = arith.addf %94, %97 : vector<16x32xf32>
    "tpu.trace_start"() <{level = 10 : i32, message = "qd,kd->qk"}> : () -> ()
    %cst_82 = arith.constant dense<0.000000e+00> : vector<16x16xf32>
    %99 = tpu.matmul %84, %91, %cst_82 {dimension_numbers = #tpu.dot_dimension_numbers<[1], [1], [0], [0], [0, 0, 1, 0], [], []>} : vector<16x32xf32>, vector<16x32xf32>, vector<16x16xf32> -> vector<16x16xf32>
    "tpu.trace_stop"() : () -> ()
    %100 = arith.addf %99, %2 : vector<16x16xf32>
    %cst_83 = arith.constant dense<0xFF800000> : vector<16xf32>
    %101 = vector.multi_reduction <maximumf>, %100, %cst_83 [1] : vector<16x16xf32> to vector<16xf32>
    %102 = vector.shape_cast %101 : vector<16xf32> to vector<16x1xf32>
    %103 = vector.broadcast %102 : vector<16x1xf32> to vector<16x16xf32>
    %104 = arith.subf %100, %103 : vector<16x16xf32>
    %105 = math.exp %104 : vector<16x16xf32>
    %cst_84 = arith.constant dense<0.000000e+00> : vector<16xf32>
    %106 = vector.multi_reduction <add>, %105, %cst_84 [1] : vector<16x16xf32> to vector<16xf32>
    %107 = vector.shape_cast %106 : vector<16xf32> to vector<16x1xf32>
    %108 = vector.broadcast %107 : vector<16x1xf32> to vector<16x16xf32>
    %109 = arith.divf %105, %108 : vector<16x16xf32>
    %cst_85 = arith.constant dense<0.000000e+00> : vector<16x32xf32>
    %110 = tpu.matmul %109, %98, %cst_85 {dimension_numbers = #tpu.dot_dimension_numbers<[1], [0], [0], [1], [0, 0, 1, 1], [], []>} : vector<16x16xf32>, vector<16x32xf32>, vector<16x32xf32> -> vector<16x32xf32>
    %c2_86 = arith.constant 2 : index
    %c0_87 = arith.constant 0 : index
    %c0_88 = arith.constant 0 : index
    %111 = vector.load %arg11[%c2_86, %c0_87, %c0_88] : memref<4x32x128xf32, #tpu.memory_space<vmem>>, vector<1x32x128xf32>
    %112 = vector.shape_cast %111 : vector<1x32x128xf32> to vector<32x128xf32>
    %cst_89 = arith.constant dense<0.000000e+00> : vector<16x128xf32>
    %113 = tpu.matmul %110, %112, %cst_89 {dimension_numbers = #tpu.dot_dimension_numbers<[1], [0], [0], [1], [0, 0, 1, 1], [], []>} : vector<16x32xf32>, vector<32x128xf32>, vector<16x128xf32> -> vector<16x128xf32>
    %114 = arith.addf %77, %113 : vector<16x128xf32>
    %c3 = arith.constant 3 : index
    %c0_90 = arith.constant 0 : index
    %c0_91 = arith.constant 0 : index
    %115 = vector.load %arg5[%c3, %c0_90, %c0_91] : memref<4x128x32xf32, #tpu.memory_space<vmem>>, vector<1x128x32xf32>
    %116 = vector.shape_cast %115 : vector<1x128x32xf32> to vector<128x32xf32>
    %cst_92 = arith.constant dense<0.000000e+00> : vector<16x32xf32>
    %117 = tpu.matmul %0, %116, %cst_92 {dimension_numbers = #tpu.dot_dimension_numbers<[1], [0], [0], [1], [0, 0, 1, 1], [], []>} : vector<16x128xf32>, vector<128x32xf32>, vector<16x32xf32> -> vector<16x32xf32>
    %c3_93 = arith.constant 3 : index
    %c0_94 = arith.constant 0 : index
    %c0_95 = arith.constant 0 : index
    %118 = vector.load %arg8[%c3_93, %c0_94, %c0_95] : memref<4x1x32xf32, #tpu.memory_space<vmem>>, vector<1x1x32xf32>
    %119 = vector.shape_cast %118 : vector<1x1x32xf32> to vector<1x32xf32>
    %120 = vector.broadcast %119 : vector<1x32xf32> to vector<16x32xf32>
    %121 = arith.addf %117, %120 : vector<16x32xf32>
    %c3_96 = arith.constant 3 : index
    %c0_97 = arith.constant 0 : index
    %c0_98 = arith.constant 0 : index
    %122 = vector.load %arg6[%c3_96, %c0_97, %c0_98] : memref<4x128x32xf32, #tpu.memory_space<vmem>>, vector<1x128x32xf32>
    %123 = vector.shape_cast %122 : vector<1x128x32xf32> to vector<128x32xf32>
    %cst_99 = arith.constant dense<0.000000e+00> : vector<16x32xf32>
    %124 = tpu.matmul %0, %123, %cst_99 {dimension_numbers = #tpu.dot_dimension_numbers<[1], [0], [0], [1], [0, 0, 1, 1], [], []>} : vector<16x128xf32>, vector<128x32xf32>, vector<16x32xf32> -> vector<16x32xf32>
    %c3_100 = arith.constant 3 : index
    %c0_101 = arith.constant 0 : index
    %c0_102 = arith.constant 0 : index
    %125 = vector.load %arg9[%c3_100, %c0_101, %c0_102] : memref<4x1x32xf32, #tpu.memory_space<vmem>>, vector<1x1x32xf32>
    %126 = vector.shape_cast %125 : vector<1x1x32xf32> to vector<1x32xf32>
    %127 = vector.broadcast %126 : vector<1x32xf32> to vector<16x32xf32>
    %128 = arith.addf %124, %127 : vector<16x32xf32>
    %c3_103 = arith.constant 3 : index
    %c0_104 = arith.constant 0 : index
    %c0_105 = arith.constant 0 : index
    %129 = vector.load %arg7[%c3_103, %c0_104, %c0_105] : memref<4x128x32xf32, #tpu.memory_space<vmem>>, vector<1x128x32xf32>
    %130 = vector.shape_cast %129 : vector<1x128x32xf32> to vector<128x32xf32>
    %cst_106 = arith.constant dense<0.000000e+00> : vector<16x32xf32>
    %131 = tpu.matmul %0, %130, %cst_106 {dimension_numbers = #tpu.dot_dimension_numbers<[1], [0], [0], [1], [0, 0, 1, 1], [], []>} : vector<16x128xf32>, vector<128x32xf32>, vector<16x32xf32> -> vector<16x32xf32>
    %c3_107 = arith.constant 3 : index
    %c0_108 = arith.constant 0 : index
    %c0_109 = arith.constant 0 : index
    %132 = vector.load %arg10[%c3_107, %c0_108, %c0_109] : memref<4x1x32xf32, #tpu.memory_space<vmem>>, vector<1x1x32xf32>
    %133 = vector.shape_cast %132 : vector<1x1x32xf32> to vector<1x32xf32>
    %134 = vector.broadcast %133 : vector<1x32xf32> to vector<16x32xf32>
    %135 = arith.addf %131, %134 : vector<16x32xf32>
    "tpu.trace_start"() <{level = 10 : i32, message = "qd,kd->qk"}> : () -> ()
    %cst_110 = arith.constant dense<0.000000e+00> : vector<16x16xf32>
    %136 = tpu.matmul %121, %128, %cst_110 {dimension_numbers = #tpu.dot_dimension_numbers<[1], [1], [0], [0], [0, 0, 1, 0], [], []>} : vector<16x32xf32>, vector<16x32xf32>, vector<16x16xf32> -> vector<16x16xf32>
    "tpu.trace_stop"() : () -> ()
    %137 = arith.addf %136, %2 : vector<16x16xf32>
    %cst_111 = arith.constant dense<0xFF800000> : vector<16xf32>
    %138 = vector.multi_reduction <maximumf>, %137, %cst_111 [1] : vector<16x16xf32> to vector<16xf32>
    %139 = vector.shape_cast %138 : vector<16xf32> to vector<16x1xf32>
    %140 = vector.broadcast %139 : vector<16x1xf32> to vector<16x16xf32>
    %141 = arith.subf %137, %140 : vector<16x16xf32>
    %142 = math.exp %141 : vector<16x16xf32>
    %cst_112 = arith.constant dense<0.000000e+00> : vector<16xf32>
    %143 = vector.multi_reduction <add>, %142, %cst_112 [1] : vector<16x16xf32> to vector<16xf32>
    %144 = vector.shape_cast %143 : vector<16xf32> to vector<16x1xf32>
    %145 = vector.broadcast %144 : vector<16x1xf32> to vector<16x16xf32>
    %146 = arith.divf %142, %145 : vector<16x16xf32>
    %cst_113 = arith.constant dense<0.000000e+00> : vector<16x32xf32>
    %147 = tpu.matmul %146, %135, %cst_113 {dimension_numbers = #tpu.dot_dimension_numbers<[1], [0], [0], [1], [0, 0, 1, 1], [], []>} : vector<16x16xf32>, vector<16x32xf32>, vector<16x32xf32> -> vector<16x32xf32>
    %c3_114 = arith.constant 3 : index
    %c0_115 = arith.constant 0 : index
    %c0_116 = arith.constant 0 : index
    %148 = vector.load %arg11[%c3_114, %c0_115, %c0_116] : memref<4x32x128xf32, #tpu.memory_space<vmem>>, vector<1x32x128xf32>
    %149 = vector.shape_cast %148 : vector<1x32x128xf32> to vector<32x128xf32>
    %cst_117 = arith.constant dense<0.000000e+00> : vector<16x128xf32>
    %150 = tpu.matmul %147, %149, %cst_117 {dimension_numbers = #tpu.dot_dimension_numbers<[1], [0], [0], [1], [0, 0, 1, 1], [], []>} : vector<16x32xf32>, vector<32x128xf32>, vector<16x128xf32> -> vector<16x128xf32>
    %151 = arith.addf %114, %150 : vector<16x128xf32>
    %c0_118 = arith.constant 0 : index
    %c0_119 = arith.constant 0 : index
    %152 = vector.load %arg12[%c0_118, %c0_119] : memref<1x128xf32, #tpu.memory_space<vmem>>, vector<1x128xf32>
    %153 = vector.broadcast %152 : vector<1x128xf32> to vector<16x128xf32>
    %154 = arith.addf %151, %153 : vector<16x128xf32>
    %155 = arith.addf %0, %154 : vector<16x128xf32>
    %c0_120 = arith.constant 0 : index
    %c0_121 = arith.constant 0 : index
    %156 = vector.load %arg25[%c0_120, %c0_121] : memref<1x128xf32, #tpu.memory_space<vmem>>, vector<1x128xf32>
    %c0_122 = arith.constant 0 : index
    %c0_123 = arith.constant 0 : index
    %157 = vector.load %arg26[%c0_122, %c0_123] : memref<1x128xf32, #tpu.memory_space<vmem>>, vector<1x128xf32>
    %cst_124 = arith.constant dense<0.000000e+00> : vector<16xf32>
    %158 = vector.multi_reduction <add>, %155, %cst_124 [1] : vector<16x128xf32> to vector<16xf32>
    %159 = vector.shape_cast %158 : vector<16xf32> to vector<16x1xf32>
    %cst_125 = arith.constant 1.280000e+02 : f32
    %160 = vector.broadcast %cst_125 : f32 to vector<16x1xf32>
    %161 = arith.divf %159, %160 : vector<16x1xf32>
    %162 = vector.broadcast %161 : vector<16x1xf32> to vector<16x128xf32>
    %163 = arith.subf %155, %162 : vector<16x128xf32>
    %164 = arith.mulf %163, %163 : vector<16x128xf32>
    %cst_126 = arith.constant dense<0.000000e+00> : vector<16xf32>
    %165 = vector.multi_reduction <add>, %164, %cst_126 [1] : vector<16x128xf32> to vector<16xf32>
    %166 = vector.shape_cast %165 : vector<16xf32> to vector<16x1xf32>
    %cst_127 = arith.constant 1.280000e+02 : f32
    %167 = vector.broadcast %cst_127 : f32 to vector<16x1xf32>
    %168 = arith.divf %166, %167 : vector<16x1xf32>
    %169 = vector.broadcast %161 : vector<16x1xf32> to vector<16x128xf32>
    %170 = arith.subf %155, %169 : vector<16x128xf32>
    %cst_128 = arith.constant 9.99999997E-7 : f32
    %171 = vector.broadcast %cst_128 : f32 to vector<16x1xf32>
    %172 = arith.addf %168, %171 : vector<16x1xf32>
    %173 = math.rsqrt %172 : vector<16x1xf32>
    %174 = vector.broadcast %173 : vector<16x1xf32> to vector<16x128xf32>
    %175 = arith.mulf %170, %174 : vector<16x128xf32>
    %176 = vector.broadcast %156 : vector<1x128xf32> to vector<16x128xf32>
    %177 = arith.mulf %175, %176 : vector<16x128xf32>
    %178 = vector.broadcast %157 : vector<1x128xf32> to vector<16x128xf32>
    %179 = arith.addf %177, %178 : vector<16x128xf32>
    %c0_129 = arith.constant 0 : index
    %c0_130 = arith.constant 0 : index
    %180 = vector.load %arg4[%c0_129, %c0_130] : memref<16x32xf32, #tpu.memory_space<vmem>>, vector<16x32xf32>
    %cst_131 = arith.constant 0.000000e+00 : f32
    %181 = vector.broadcast %cst_131 : f32 to vector<16x128xf32>
    %c0_132 = arith.constant 0 : index
    %c0_133 = arith.constant 0 : index
    %c0_134 = arith.constant 0 : index
    %182 = vector.load %arg13[%c0_132, %c0_133, %c0_134] : memref<4x128x32xf32, #tpu.memory_space<vmem>>, vector<1x128x32xf32>
    %183 = vector.shape_cast %182 : vector<1x128x32xf32> to vector<128x32xf32>
    %cst_135 = arith.constant dense<0.000000e+00> : vector<16x32xf32>
    %184 = tpu.matmul %179, %183, %cst_135 {dimension_numbers = #tpu.dot_dimension_numbers<[1], [0], [0], [1], [0, 0, 1, 1], [], []>} : vector<16x128xf32>, vector<128x32xf32>, vector<16x32xf32> -> vector<16x32xf32>
    %c0_136 = arith.constant 0 : index
    %c0_137 = arith.constant 0 : index
    %c0_138 = arith.constant 0 : index
    %185 = vector.load %arg16[%c0_136, %c0_137, %c0_138] : memref<4x1x32xf32, #tpu.memory_space<vmem>>, vector<1x1x32xf32>
    %186 = vector.shape_cast %185 : vector<1x1x32xf32> to vector<1x32xf32>
    %187 = vector.broadcast %186 : vector<1x32xf32> to vector<16x32xf32>
    %188 = arith.addf %184, %187 : vector<16x32xf32>
    %c0_139 = arith.constant 0 : index
    %c0_140 = arith.constant 0 : index
    %c0_141 = arith.constant 0 : index
    %189 = vector.load %arg14[%c0_139, %c0_140, %c0_141] : memref<4x128x32xf32, #tpu.memory_space<vmem>>, vector<1x128x32xf32>
    %190 = vector.shape_cast %189 : vector<1x128x32xf32> to vector<128x32xf32>
    %cst_142 = arith.constant dense<0.000000e+00> : vector<32x32xf32>
    %191 = tpu.matmul %1, %190, %cst_142 {dimension_numbers = #tpu.dot_dimension_numbers<[1], [0], [0], [1], [0, 0, 1, 1], [], []>} : vector<32x128xf32>, vector<128x32xf32>, vector<32x32xf32> -> vector<32x32xf32>
    %c0_143 = arith.constant 0 : index
    %c0_144 = arith.constant 0 : index
    %c0_145 = arith.constant 0 : index
    %192 = vector.load %arg17[%c0_143, %c0_144, %c0_145] : memref<4x1x32xf32, #tpu.memory_space<vmem>>, vector<1x1x32xf32>
    %193 = vector.shape_cast %192 : vector<1x1x32xf32> to vector<1x32xf32>
    %194 = vector.broadcast %193 : vector<1x32xf32> to vector<32x32xf32>
    %195 = arith.addf %191, %194 : vector<32x32xf32>
    %c0_146 = arith.constant 0 : index
    %c0_147 = arith.constant 0 : index
    %c0_148 = arith.constant 0 : index
    %196 = vector.load %arg15[%c0_146, %c0_147, %c0_148] : memref<4x128x32xf32, #tpu.memory_space<vmem>>, vector<1x128x32xf32>
    %197 = vector.shape_cast %196 : vector<1x128x32xf32> to vector<128x32xf32>
    %cst_149 = arith.constant dense<0.000000e+00> : vector<32x32xf32>
    %198 = tpu.matmul %1, %197, %cst_149 {dimension_numbers = #tpu.dot_dimension_numbers<[1], [0], [0], [1], [0, 0, 1, 1], [], []>} : vector<32x128xf32>, vector<128x32xf32>, vector<32x32xf32> -> vector<32x32xf32>
    %c0_150 = arith.constant 0 : index
    %c0_151 = arith.constant 0 : index
    %c0_152 = arith.constant 0 : index
    %199 = vector.load %arg18[%c0_150, %c0_151, %c0_152] : memref<4x1x32xf32, #tpu.memory_space<vmem>>, vector<1x1x32xf32>
    %200 = vector.shape_cast %199 : vector<1x1x32xf32> to vector<1x32xf32>
    %201 = vector.broadcast %200 : vector<1x32xf32> to vector<32x32xf32>
    %202 = arith.addf %198, %201 : vector<32x32xf32>
    "tpu.trace_start"() <{level = 10 : i32, message = "qd,kd->qk"}> : () -> ()
    %cst_153 = arith.constant dense<0.000000e+00> : vector<16x32xf32>
    %203 = tpu.matmul %188, %195, %cst_153 {dimension_numbers = #tpu.dot_dimension_numbers<[1], [1], [0], [0], [0, 0, 1, 0], [], []>} : vector<16x32xf32>, vector<32x32xf32>, vector<16x32xf32> -> vector<16x32xf32>
    "tpu.trace_stop"() : () -> ()
    %204 = arith.addf %203, %180 : vector<16x32xf32>
    %cst_154 = arith.constant dense<0xFF800000> : vector<16xf32>
    %205 = vector.multi_reduction <maximumf>, %204, %cst_154 [1] : vector<16x32xf32> to vector<16xf32>
    %206 = vector.shape_cast %205 : vector<16xf32> to vector<16x1xf32>
    %207 = vector.broadcast %206 : vector<16x1xf32> to vector<16x32xf32>
    %208 = arith.subf %204, %207 : vector<16x32xf32>
    %209 = math.exp %208 : vector<16x32xf32>
    %cst_155 = arith.constant dense<0.000000e+00> : vector<16xf32>
    %210 = vector.multi_reduction <add>, %209, %cst_155 [1] : vector<16x32xf32> to vector<16xf32>
    %211 = vector.shape_cast %210 : vector<16xf32> to vector<16x1xf32>
    %212 = vector.broadcast %211 : vector<16x1xf32> to vector<16x32xf32>
    %213 = arith.divf %209, %212 : vector<16x32xf32>
    %cst_156 = arith.constant dense<0.000000e+00> : vector<16x32xf32>
    %214 = tpu.matmul %213, %202, %cst_156 {dimension_numbers = #tpu.dot_dimension_numbers<[1], [0], [0], [1], [0, 0, 1, 1], [], []>} : vector<16x32xf32>, vector<32x32xf32>, vector<16x32xf32> -> vector<16x32xf32>
    %c0_157 = arith.constant 0 : index
    %c0_158 = arith.constant 0 : index
    %c0_159 = arith.constant 0 : index
    %215 = vector.load %arg19[%c0_157, %c0_158, %c0_159] : memref<4x32x128xf32, #tpu.memory_space<vmem>>, vector<1x32x128xf32>
    %216 = vector.shape_cast %215 : vector<1x32x128xf32> to vector<32x128xf32>
    %cst_160 = arith.constant dense<0.000000e+00> : vector<16x128xf32>
    %217 = tpu.matmul %214, %216, %cst_160 {dimension_numbers = #tpu.dot_dimension_numbers<[1], [0], [0], [1], [0, 0, 1, 1], [], []>} : vector<16x32xf32>, vector<32x128xf32>, vector<16x128xf32> -> vector<16x128xf32>
    %218 = arith.addf %181, %217 : vector<16x128xf32>
    %c1_161 = arith.constant 1 : index
    %c0_162 = arith.constant 0 : index
    %c0_163 = arith.constant 0 : index
    %219 = vector.load %arg13[%c1_161, %c0_162, %c0_163] : memref<4x128x32xf32, #tpu.memory_space<vmem>>, vector<1x128x32xf32>
    %220 = vector.shape_cast %219 : vector<1x128x32xf32> to vector<128x32xf32>
    %cst_164 = arith.constant dense<0.000000e+00> : vector<16x32xf32>
    %221 = tpu.matmul %179, %220, %cst_164 {dimension_numbers = #tpu.dot_dimension_numbers<[1], [0], [0], [1], [0, 0, 1, 1], [], []>} : vector<16x128xf32>, vector<128x32xf32>, vector<16x32xf32> -> vector<16x32xf32>
    %c1_165 = arith.constant 1 : index
    %c0_166 = arith.constant 0 : index
    %c0_167 = arith.constant 0 : index
    %222 = vector.load %arg16[%c1_165, %c0_166, %c0_167] : memref<4x1x32xf32, #tpu.memory_space<vmem>>, vector<1x1x32xf32>
    %223 = vector.shape_cast %222 : vector<1x1x32xf32> to vector<1x32xf32>
    %224 = vector.broadcast %223 : vector<1x32xf32> to vector<16x32xf32>
    %225 = arith.addf %221, %224 : vector<16x32xf32>
    %c1_168 = arith.constant 1 : index
    %c0_169 = arith.constant 0 : index
    %c0_170 = arith.constant 0 : index
    %226 = vector.load %arg14[%c1_168, %c0_169, %c0_170] : memref<4x128x32xf32, #tpu.memory_space<vmem>>, vector<1x128x32xf32>
    %227 = vector.shape_cast %226 : vector<1x128x32xf32> to vector<128x32xf32>
    %cst_171 = arith.constant dense<0.000000e+00> : vector<32x32xf32>
    %228 = tpu.matmul %1, %227, %cst_171 {dimension_numbers = #tpu.dot_dimension_numbers<[1], [0], [0], [1], [0, 0, 1, 1], [], []>} : vector<32x128xf32>, vector<128x32xf32>, vector<32x32xf32> -> vector<32x32xf32>
    %c1_172 = arith.constant 1 : index
    %c0_173 = arith.constant 0 : index
    %c0_174 = arith.constant 0 : index
    %229 = vector.load %arg17[%c1_172, %c0_173, %c0_174] : memref<4x1x32xf32, #tpu.memory_space<vmem>>, vector<1x1x32xf32>
    %230 = vector.shape_cast %229 : vector<1x1x32xf32> to vector<1x32xf32>
    %231 = vector.broadcast %230 : vector<1x32xf32> to vector<32x32xf32>
    %232 = arith.addf %228, %231 : vector<32x32xf32>
    %c1_175 = arith.constant 1 : index
    %c0_176 = arith.constant 0 : index
    %c0_177 = arith.constant 0 : index
    %233 = vector.load %arg15[%c1_175, %c0_176, %c0_177] : memref<4x128x32xf32, #tpu.memory_space<vmem>>, vector<1x128x32xf32>
    %234 = vector.shape_cast %233 : vector<1x128x32xf32> to vector<128x32xf32>
    %cst_178 = arith.constant dense<0.000000e+00> : vector<32x32xf32>
    %235 = tpu.matmul %1, %234, %cst_178 {dimension_numbers = #tpu.dot_dimension_numbers<[1], [0], [0], [1], [0, 0, 1, 1], [], []>} : vector<32x128xf32>, vector<128x32xf32>, vector<32x32xf32> -> vector<32x32xf32>
    %c1_179 = arith.constant 1 : index
    %c0_180 = arith.constant 0 : index
    %c0_181 = arith.constant 0 : index
    %236 = vector.load %arg18[%c1_179, %c0_180, %c0_181] : memref<4x1x32xf32, #tpu.memory_space<vmem>>, vector<1x1x32xf32>
    %237 = vector.shape_cast %236 : vector<1x1x32xf32> to vector<1x32xf32>
    %238 = vector.broadcast %237 : vector<1x32xf32> to vector<32x32xf32>
    %239 = arith.addf %235, %238 : vector<32x32xf32>
    "tpu.trace_start"() <{level = 10 : i32, message = "qd,kd->qk"}> : () -> ()
    %cst_182 = arith.constant dense<0.000000e+00> : vector<16x32xf32>
    %240 = tpu.matmul %225, %232, %cst_182 {dimension_numbers = #tpu.dot_dimension_numbers<[1], [1], [0], [0], [0, 0, 1, 0], [], []>} : vector<16x32xf32>, vector<32x32xf32>, vector<16x32xf32> -> vector<16x32xf32>
    "tpu.trace_stop"() : () -> ()
    %241 = arith.addf %240, %180 : vector<16x32xf32>
    %cst_183 = arith.constant dense<0xFF800000> : vector<16xf32>
    %242 = vector.multi_reduction <maximumf>, %241, %cst_183 [1] : vector<16x32xf32> to vector<16xf32>
    %243 = vector.shape_cast %242 : vector<16xf32> to vector<16x1xf32>
    %244 = vector.broadcast %243 : vector<16x1xf32> to vector<16x32xf32>
    %245 = arith.subf %241, %244 : vector<16x32xf32>
    %246 = math.exp %245 : vector<16x32xf32>
    %cst_184 = arith.constant dense<0.000000e+00> : vector<16xf32>
    %247 = vector.multi_reduction <add>, %246, %cst_184 [1] : vector<16x32xf32> to vector<16xf32>
    %248 = vector.shape_cast %247 : vector<16xf32> to vector<16x1xf32>
    %249 = vector.broadcast %248 : vector<16x1xf32> to vector<16x32xf32>
    %250 = arith.divf %246, %249 : vector<16x32xf32>
    %cst_185 = arith.constant dense<0.000000e+00> : vector<16x32xf32>
    %251 = tpu.matmul %250, %239, %cst_185 {dimension_numbers = #tpu.dot_dimension_numbers<[1], [0], [0], [1], [0, 0, 1, 1], [], []>} : vector<16x32xf32>, vector<32x32xf32>, vector<16x32xf32> -> vector<16x32xf32>
    %c1_186 = arith.constant 1 : index
    %c0_187 = arith.constant 0 : index
    %c0_188 = arith.constant 0 : index
    %252 = vector.load %arg19[%c1_186, %c0_187, %c0_188] : memref<4x32x128xf32, #tpu.memory_space<vmem>>, vector<1x32x128xf32>
    %253 = vector.shape_cast %252 : vector<1x32x128xf32> to vector<32x128xf32>
    %cst_189 = arith.constant dense<0.000000e+00> : vector<16x128xf32>
    %254 = tpu.matmul %251, %253, %cst_189 {dimension_numbers = #tpu.dot_dimension_numbers<[1], [0], [0], [1], [0, 0, 1, 1], [], []>} : vector<16x32xf32>, vector<32x128xf32>, vector<16x128xf32> -> vector<16x128xf32>
    %255 = arith.addf %218, %254 : vector<16x128xf32>
    %c2_190 = arith.constant 2 : index
    %c0_191 = arith.constant 0 : index
    %c0_192 = arith.constant 0 : index
    %256 = vector.load %arg13[%c2_190, %c0_191, %c0_192] : memref<4x128x32xf32, #tpu.memory_space<vmem>>, vector<1x128x32xf32>
    %257 = vector.shape_cast %256 : vector<1x128x32xf32> to vector<128x32xf32>
    %cst_193 = arith.constant dense<0.000000e+00> : vector<16x32xf32>
    %258 = tpu.matmul %179, %257, %cst_193 {dimension_numbers = #tpu.dot_dimension_numbers<[1], [0], [0], [1], [0, 0, 1, 1], [], []>} : vector<16x128xf32>, vector<128x32xf32>, vector<16x32xf32> -> vector<16x32xf32>
    %c2_194 = arith.constant 2 : index
    %c0_195 = arith.constant 0 : index
    %c0_196 = arith.constant 0 : index
    %259 = vector.load %arg16[%c2_194, %c0_195, %c0_196] : memref<4x1x32xf32, #tpu.memory_space<vmem>>, vector<1x1x32xf32>
    %260 = vector.shape_cast %259 : vector<1x1x32xf32> to vector<1x32xf32>
    %261 = vector.broadcast %260 : vector<1x32xf32> to vector<16x32xf32>
    %262 = arith.addf %258, %261 : vector<16x32xf32>
    %c2_197 = arith.constant 2 : index
    %c0_198 = arith.constant 0 : index
    %c0_199 = arith.constant 0 : index
    %263 = vector.load %arg14[%c2_197, %c0_198, %c0_199] : memref<4x128x32xf32, #tpu.memory_space<vmem>>, vector<1x128x32xf32>
    %264 = vector.shape_cast %263 : vector<1x128x32xf32> to vector<128x32xf32>
    %cst_200 = arith.constant dense<0.000000e+00> : vector<32x32xf32>
    %265 = tpu.matmul %1, %264, %cst_200 {dimension_numbers = #tpu.dot_dimension_numbers<[1], [0], [0], [1], [0, 0, 1, 1], [], []>} : vector<32x128xf32>, vector<128x32xf32>, vector<32x32xf32> -> vector<32x32xf32>
    %c2_201 = arith.constant 2 : index
    %c0_202 = arith.constant 0 : index
    %c0_203 = arith.constant 0 : index
    %266 = vector.load %arg17[%c2_201, %c0_202, %c0_203] : memref<4x1x32xf32, #tpu.memory_space<vmem>>, vector<1x1x32xf32>
    %267 = vector.shape_cast %266 : vector<1x1x32xf32> to vector<1x32xf32>
    %268 = vector.broadcast %267 : vector<1x32xf32> to vector<32x32xf32>
    %269 = arith.addf %265, %268 : vector<32x32xf32>
    %c2_204 = arith.constant 2 : index
    %c0_205 = arith.constant 0 : index
    %c0_206 = arith.constant 0 : index
    %270 = vector.load %arg15[%c2_204, %c0_205, %c0_206] : memref<4x128x32xf32, #tpu.memory_space<vmem>>, vector<1x128x32xf32>
    %271 = vector.shape_cast %270 : vector<1x128x32xf32> to vector<128x32xf32>
    %cst_207 = arith.constant dense<0.000000e+00> : vector<32x32xf32>
    %272 = tpu.matmul %1, %271, %cst_207 {dimension_numbers = #tpu.dot_dimension_numbers<[1], [0], [0], [1], [0, 0, 1, 1], [], []>} : vector<32x128xf32>, vector<128x32xf32>, vector<32x32xf32> -> vector<32x32xf32>
    %c2_208 = arith.constant 2 : index
    %c0_209 = arith.constant 0 : index
    %c0_210 = arith.constant 0 : index
    %273 = vector.load %arg18[%c2_208, %c0_209, %c0_210] : memref<4x1x32xf32, #tpu.memory_space<vmem>>, vector<1x1x32xf32>
    %274 = vector.shape_cast %273 : vector<1x1x32xf32> to vector<1x32xf32>
    %275 = vector.broadcast %274 : vector<1x32xf32> to vector<32x32xf32>
    %276 = arith.addf %272, %275 : vector<32x32xf32>
    "tpu.trace_start"() <{level = 10 : i32, message = "qd,kd->qk"}> : () -> ()
    %cst_211 = arith.constant dense<0.000000e+00> : vector<16x32xf32>
    %277 = tpu.matmul %262, %269, %cst_211 {dimension_numbers = #tpu.dot_dimension_numbers<[1], [1], [0], [0], [0, 0, 1, 0], [], []>} : vector<16x32xf32>, vector<32x32xf32>, vector<16x32xf32> -> vector<16x32xf32>
    "tpu.trace_stop"() : () -> ()
    %278 = arith.addf %277, %180 : vector<16x32xf32>
    %cst_212 = arith.constant dense<0xFF800000> : vector<16xf32>
    %279 = vector.multi_reduction <maximumf>, %278, %cst_212 [1] : vector<16x32xf32> to vector<16xf32>
    %280 = vector.shape_cast %279 : vector<16xf32> to vector<16x1xf32>
    %281 = vector.broadcast %280 : vector<16x1xf32> to vector<16x32xf32>
    %282 = arith.subf %278, %281 : vector<16x32xf32>
    %283 = math.exp %282 : vector<16x32xf32>
    %cst_213 = arith.constant dense<0.000000e+00> : vector<16xf32>
    %284 = vector.multi_reduction <add>, %283, %cst_213 [1] : vector<16x32xf32> to vector<16xf32>
    %285 = vector.shape_cast %284 : vector<16xf32> to vector<16x1xf32>
    %286 = vector.broadcast %285 : vector<16x1xf32> to vector<16x32xf32>
    %287 = arith.divf %283, %286 : vector<16x32xf32>
    %cst_214 = arith.constant dense<0.000000e+00> : vector<16x32xf32>
    %288 = tpu.matmul %287, %276, %cst_214 {dimension_numbers = #tpu.dot_dimension_numbers<[1], [0], [0], [1], [0, 0, 1, 1], [], []>} : vector<16x32xf32>, vector<32x32xf32>, vector<16x32xf32> -> vector<16x32xf32>
    %c2_215 = arith.constant 2 : index
    %c0_216 = arith.constant 0 : index
    %c0_217 = arith.constant 0 : index
    %289 = vector.load %arg19[%c2_215, %c0_216, %c0_217] : memref<4x32x128xf32, #tpu.memory_space<vmem>>, vector<1x32x128xf32>
    %290 = vector.shape_cast %289 : vector<1x32x128xf32> to vector<32x128xf32>
    %cst_218 = arith.constant dense<0.000000e+00> : vector<16x128xf32>
    %291 = tpu.matmul %288, %290, %cst_218 {dimension_numbers = #tpu.dot_dimension_numbers<[1], [0], [0], [1], [0, 0, 1, 1], [], []>} : vector<16x32xf32>, vector<32x128xf32>, vector<16x128xf32> -> vector<16x128xf32>
    %292 = arith.addf %255, %291 : vector<16x128xf32>
    %c3_219 = arith.constant 3 : index
    %c0_220 = arith.constant 0 : index
    %c0_221 = arith.constant 0 : index
    %293 = vector.load %arg13[%c3_219, %c0_220, %c0_221] : memref<4x128x32xf32, #tpu.memory_space<vmem>>, vector<1x128x32xf32>
    %294 = vector.shape_cast %293 : vector<1x128x32xf32> to vector<128x32xf32>
    %cst_222 = arith.constant dense<0.000000e+00> : vector<16x32xf32>
    %295 = tpu.matmul %179, %294, %cst_222 {dimension_numbers = #tpu.dot_dimension_numbers<[1], [0], [0], [1], [0, 0, 1, 1], [], []>} : vector<16x128xf32>, vector<128x32xf32>, vector<16x32xf32> -> vector<16x32xf32>
    %c3_223 = arith.constant 3 : index
    %c0_224 = arith.constant 0 : index
    %c0_225 = arith.constant 0 : index
    %296 = vector.load %arg16[%c3_223, %c0_224, %c0_225] : memref<4x1x32xf32, #tpu.memory_space<vmem>>, vector<1x1x32xf32>
    %297 = vector.shape_cast %296 : vector<1x1x32xf32> to vector<1x32xf32>
    %298 = vector.broadcast %297 : vector<1x32xf32> to vector<16x32xf32>
    %299 = arith.addf %295, %298 : vector<16x32xf32>
    %c3_226 = arith.constant 3 : index
    %c0_227 = arith.constant 0 : index
    %c0_228 = arith.constant 0 : index
    %300 = vector.load %arg14[%c3_226, %c0_227, %c0_228] : memref<4x128x32xf32, #tpu.memory_space<vmem>>, vector<1x128x32xf32>
    %301 = vector.shape_cast %300 : vector<1x128x32xf32> to vector<128x32xf32>
    %cst_229 = arith.constant dense<0.000000e+00> : vector<32x32xf32>
    %302 = tpu.matmul %1, %301, %cst_229 {dimension_numbers = #tpu.dot_dimension_numbers<[1], [0], [0], [1], [0, 0, 1, 1], [], []>} : vector<32x128xf32>, vector<128x32xf32>, vector<32x32xf32> -> vector<32x32xf32>
    %c3_230 = arith.constant 3 : index
    %c0_231 = arith.constant 0 : index
    %c0_232 = arith.constant 0 : index
    %303 = vector.load %arg17[%c3_230, %c0_231, %c0_232] : memref<4x1x32xf32, #tpu.memory_space<vmem>>, vector<1x1x32xf32>
    %304 = vector.shape_cast %303 : vector<1x1x32xf32> to vector<1x32xf32>
    %305 = vector.broadcast %304 : vector<1x32xf32> to vector<32x32xf32>
    %306 = arith.addf %302, %305 : vector<32x32xf32>
    %c3_233 = arith.constant 3 : index
    %c0_234 = arith.constant 0 : index
    %c0_235 = arith.constant 0 : index
    %307 = vector.load %arg15[%c3_233, %c0_234, %c0_235] : memref<4x128x32xf32, #tpu.memory_space<vmem>>, vector<1x128x32xf32>
    %308 = vector.shape_cast %307 : vector<1x128x32xf32> to vector<128x32xf32>
    %cst_236 = arith.constant dense<0.000000e+00> : vector<32x32xf32>
    %309 = tpu.matmul %1, %308, %cst_236 {dimension_numbers = #tpu.dot_dimension_numbers<[1], [0], [0], [1], [0, 0, 1, 1], [], []>} : vector<32x128xf32>, vector<128x32xf32>, vector<32x32xf32> -> vector<32x32xf32>
    %c3_237 = arith.constant 3 : index
    %c0_238 = arith.constant 0 : index
    %c0_239 = arith.constant 0 : index
    %310 = vector.load %arg18[%c3_237, %c0_238, %c0_239] : memref<4x1x32xf32, #tpu.memory_space<vmem>>, vector<1x1x32xf32>
    %311 = vector.shape_cast %310 : vector<1x1x32xf32> to vector<1x32xf32>
    %312 = vector.broadcast %311 : vector<1x32xf32> to vector<32x32xf32>
    %313 = arith.addf %309, %312 : vector<32x32xf32>
    "tpu.trace_start"() <{level = 10 : i32, message = "qd,kd->qk"}> : () -> ()
    %cst_240 = arith.constant dense<0.000000e+00> : vector<16x32xf32>
    %314 = tpu.matmul %299, %306, %cst_240 {dimension_numbers = #tpu.dot_dimension_numbers<[1], [1], [0], [0], [0, 0, 1, 0], [], []>} : vector<16x32xf32>, vector<32x32xf32>, vector<16x32xf32> -> vector<16x32xf32>
    "tpu.trace_stop"() : () -> ()
    %315 = arith.addf %314, %180 : vector<16x32xf32>
    %cst_241 = arith.constant dense<0xFF800000> : vector<16xf32>
    %316 = vector.multi_reduction <maximumf>, %315, %cst_241 [1] : vector<16x32xf32> to vector<16xf32>
    %317 = vector.shape_cast %316 : vector<16xf32> to vector<16x1xf32>
    %318 = vector.broadcast %317 : vector<16x1xf32> to vector<16x32xf32>
    %319 = arith.subf %315, %318 : vector<16x32xf32>
    %320 = math.exp %319 : vector<16x32xf32>
    %cst_242 = arith.constant dense<0.000000e+00> : vector<16xf32>
    %321 = vector.multi_reduction <add>, %320, %cst_242 [1] : vector<16x32xf32> to vector<16xf32>
    %322 = vector.shape_cast %321 : vector<16xf32> to vector<16x1xf32>
    %323 = vector.broadcast %322 : vector<16x1xf32> to vector<16x32xf32>
    %324 = arith.divf %320, %323 : vector<16x32xf32>
    %cst_243 = arith.constant dense<0.000000e+00> : vector<16x32xf32>
    %325 = tpu.matmul %324, %313, %cst_243 {dimension_numbers = #tpu.dot_dimension_numbers<[1], [0], [0], [1], [0, 0, 1, 1], [], []>} : vector<16x32xf32>, vector<32x32xf32>, vector<16x32xf32> -> vector<16x32xf32>
    %c3_244 = arith.constant 3 : index
    %c0_245 = arith.constant 0 : index
    %c0_246 = arith.constant 0 : index
    %326 = vector.load %arg19[%c3_244, %c0_245, %c0_246] : memref<4x32x128xf32, #tpu.memory_space<vmem>>, vector<1x32x128xf32>
    %327 = vector.shape_cast %326 : vector<1x32x128xf32> to vector<32x128xf32>
    %cst_247 = arith.constant dense<0.000000e+00> : vector<16x128xf32>
    %328 = tpu.matmul %325, %327, %cst_247 {dimension_numbers = #tpu.dot_dimension_numbers<[1], [0], [0], [1], [0, 0, 1, 1], [], []>} : vector<16x32xf32>, vector<32x128xf32>, vector<16x128xf32> -> vector<16x128xf32>
    %329 = arith.addf %292, %328 : vector<16x128xf32>
    %c0_248 = arith.constant 0 : index
    %c0_249 = arith.constant 0 : index
    %330 = vector.load %arg20[%c0_248, %c0_249] : memref<1x128xf32, #tpu.memory_space<vmem>>, vector<1x128xf32>
    %331 = vector.broadcast %330 : vector<1x128xf32> to vector<16x128xf32>
    %332 = arith.addf %329, %331 : vector<16x128xf32>
    %333 = arith.addf %179, %332 : vector<16x128xf32>
    %c0_250 = arith.constant 0 : index
    %c0_251 = arith.constant 0 : index
    %334 = vector.load %arg27[%c0_250, %c0_251] : memref<1x128xf32, #tpu.memory_space<vmem>>, vector<1x128xf32>
    %c0_252 = arith.constant 0 : index
    %c0_253 = arith.constant 0 : index
    %335 = vector.load %arg28[%c0_252, %c0_253] : memref<1x128xf32, #tpu.memory_space<vmem>>, vector<1x128xf32>
    %cst_254 = arith.constant dense<0.000000e+00> : vector<16xf32>
    %336 = vector.multi_reduction <add>, %333, %cst_254 [1] : vector<16x128xf32> to vector<16xf32>
    %337 = vector.shape_cast %336 : vector<16xf32> to vector<16x1xf32>
    %cst_255 = arith.constant 1.280000e+02 : f32
    %338 = vector.broadcast %cst_255 : f32 to vector<16x1xf32>
    %339 = arith.divf %337, %338 : vector<16x1xf32>
    %340 = vector.broadcast %339 : vector<16x1xf32> to vector<16x128xf32>
    %341 = arith.subf %333, %340 : vector<16x128xf32>
    %342 = arith.mulf %341, %341 : vector<16x128xf32>
    %cst_256 = arith.constant dense<0.000000e+00> : vector<16xf32>
    %343 = vector.multi_reduction <add>, %342, %cst_256 [1] : vector<16x128xf32> to vector<16xf32>
    %344 = vector.shape_cast %343 : vector<16xf32> to vector<16x1xf32>
    %cst_257 = arith.constant 1.280000e+02 : f32
    %345 = vector.broadcast %cst_257 : f32 to vector<16x1xf32>
    %346 = arith.divf %344, %345 : vector<16x1xf32>
    %347 = vector.broadcast %339 : vector<16x1xf32> to vector<16x128xf32>
    %348 = arith.subf %333, %347 : vector<16x128xf32>
    %cst_258 = arith.constant 9.99999997E-7 : f32
    %349 = vector.broadcast %cst_258 : f32 to vector<16x1xf32>
    %350 = arith.addf %346, %349 : vector<16x1xf32>
    %351 = math.rsqrt %350 : vector<16x1xf32>
    %352 = vector.broadcast %351 : vector<16x1xf32> to vector<16x128xf32>
    %353 = arith.mulf %348, %352 : vector<16x128xf32>
    %354 = vector.broadcast %334 : vector<1x128xf32> to vector<16x128xf32>
    %355 = arith.mulf %353, %354 : vector<16x128xf32>
    %356 = vector.broadcast %335 : vector<1x128xf32> to vector<16x128xf32>
    %357 = arith.addf %355, %356 : vector<16x128xf32>
    %c0_259 = arith.constant 0 : index
    %c0_260 = arith.constant 0 : index
    %358 = vector.load %arg21[%c0_259, %c0_260] : memref<128x256xf32, #tpu.memory_space<vmem>>, vector<128x256xf32>
    %cst_261 = arith.constant dense<0.000000e+00> : vector<16x256xf32>
    %359 = tpu.matmul %357, %358, %cst_261 {dimension_numbers = #tpu.dot_dimension_numbers<[1], [0], [0], [1], [0, 0, 1, 1], [], []>} : vector<16x128xf32>, vector<128x256xf32>, vector<16x256xf32> -> vector<16x256xf32>
    %c0_262 = arith.constant 0 : index
    %c0_263 = arith.constant 0 : index
    %360 = vector.load %arg22[%c0_262, %c0_263] : memref<1x256xf32, #tpu.memory_space<vmem>>, vector<1x256xf32>
    %361 = vector.broadcast %360 : vector<1x256xf32> to vector<16x256xf32>
    %362 = arith.addf %359, %361 : vector<16x256xf32>
    %cst_264 = arith.constant 0.000000e+00 : f32
    %363 = vector.broadcast %cst_264 : f32 to vector<16x256xf32>
    %364 = arith.maximumf %362, %363 : vector<16x256xf32>
    %c0_265 = arith.constant 0 : index
    %c0_266 = arith.constant 0 : index
    %365 = vector.load %arg23[%c0_265, %c0_266] : memref<256x128xf32, #tpu.memory_space<vmem>>, vector<256x128xf32>
    %cst_267 = arith.constant dense<0.000000e+00> : vector<16x128xf32>
    %366 = tpu.matmul %364, %365, %cst_267 {dimension_numbers = #tpu.dot_dimension_numbers<[1], [0], [0], [1], [0, 0, 1, 1], [], []>} : vector<16x256xf32>, vector<256x128xf32>, vector<16x128xf32> -> vector<16x128xf32>
    %c0_268 = arith.constant 0 : index
    %c0_269 = arith.constant 0 : index
    %367 = vector.load %arg24[%c0_268, %c0_269] : memref<1x128xf32, #tpu.memory_space<vmem>>, vector<1x128xf32>
    %368 = vector.broadcast %367 : vector<1x128xf32> to vector<16x128xf32>
    %369 = arith.addf %366, %368 : vector<16x128xf32>
    %370 = arith.addf %357, %369 : vector<16x128xf32>
    %c0_270 = arith.constant 0 : index
    %c0_271 = arith.constant 0 : index
    %371 = vector.load %arg27[%c0_270, %c0_271] : memref<1x128xf32, #tpu.memory_space<vmem>>, vector<1x128xf32>
    %c0_272 = arith.constant 0 : index
    %c0_273 = arith.constant 0 : index
    %372 = vector.load %arg28[%c0_272, %c0_273] : memref<1x128xf32, #tpu.memory_space<vmem>>, vector<1x128xf32>
    %cst_274 = arith.constant dense<0.000000e+00> : vector<16xf32>
    %373 = vector.multi_reduction <add>, %370, %cst_274 [1] : vector<16x128xf32> to vector<16xf32>
    %374 = vector.shape_cast %373 : vector<16xf32> to vector<16x1xf32>
    %cst_275 = arith.constant 1.280000e+02 : f32
    %375 = vector.broadcast %cst_275 : f32 to vector<16x1xf32>
    %376 = arith.divf %374, %375 : vector<16x1xf32>
    %377 = vector.broadcast %376 : vector<16x1xf32> to vector<16x128xf32>
    %378 = arith.subf %370, %377 : vector<16x128xf32>
    %379 = arith.mulf %378, %378 : vector<16x128xf32>
    %cst_276 = arith.constant dense<0.000000e+00> : vector<16xf32>
    %380 = vector.multi_reduction <add>, %379, %cst_276 [1] : vector<16x128xf32> to vector<16xf32>
    %381 = vector.shape_cast %380 : vector<16xf32> to vector<16x1xf32>
    %cst_277 = arith.constant 1.280000e+02 : f32
    %382 = vector.broadcast %cst_277 : f32 to vector<16x1xf32>
    %383 = arith.divf %381, %382 : vector<16x1xf32>
    %384 = vector.broadcast %376 : vector<16x1xf32> to vector<16x128xf32>
    %385 = arith.subf %370, %384 : vector<16x128xf32>
    %cst_278 = arith.constant 9.99999997E-7 : f32
    %386 = vector.broadcast %cst_278 : f32 to vector<16x1xf32>
    %387 = arith.addf %383, %386 : vector<16x1xf32>
    %388 = math.rsqrt %387 : vector<16x1xf32>
    %389 = vector.broadcast %388 : vector<16x1xf32> to vector<16x128xf32>
    %390 = arith.mulf %385, %389 : vector<16x128xf32>
    %391 = vector.broadcast %371 : vector<1x128xf32> to vector<16x128xf32>
    %392 = arith.mulf %390, %391 : vector<16x128xf32>
    %393 = vector.broadcast %372 : vector<1x128xf32> to vector<16x128xf32>
    %394 = arith.addf %392, %393 : vector<16x128xf32>
    %c0_279 = arith.constant 0 : index
    %c0_280 = arith.constant 0 : index
    %395 = vector.load %arg29[%c0_279, %c0_280] : memref<16x128xf32, #tpu.memory_space<vmem>>, vector<16x128xf32>
    tpu.vector_store %arg29[%c0_279, %c0_280], %394 {strides = array<i32>} : memref<16x128xf32, #tpu.memory_space<vmem>>, vector<16x128xf32>,
    return
  }
  func.func @transform_0(%arg0: i32) -> (i32, i32) {
    %c0_i32 = arith.constant 0 : i32
    %c0_i32_0 = arith.constant 0 : i32
    return %arg0, %c0_i32 : i32, i32
  }
  func.func @transform_1(%arg0: i32) -> (i32, i32) {
    %c0_i32 = arith.constant 0 : i32
    %c0_i32_0 = arith.constant 0 : i32
    return %arg0, %c0_i32 : i32, i32
  }
  func.func @transform_2(%arg0: i32) -> (i32, i32) {
    %c0_i32 = arith.constant 0 : i32
    %c0_i32_0 = arith.constant 0 : i32
    %c0_i32_1 = arith.constant 0 : i32
    return %c0_i32, %c0_i32_0 : i32, i32
  }
  func.func @transform_3(%arg0: i32) -> (i32, i32) {
    %c0_i32 = arith.constant 0 : i32
    %c0_i32_0 = arith.constant 0 : i32
    %c0_i32_1 = arith.constant 0 : i32
    return %c0_i32, %c0_i32_0 : i32, i32
  }
  func.func @transform_4(%arg0: i32) -> (i32, i32, i32) {
    %c0_i32 = arith.constant 0 : i32
    %c0_i32_0 = arith.constant 0 : i32
    %c0_i32_1 = arith.constant 0 : i32
    %c0_i32_2 = arith.constant 0 : i32
    return %c0_i32, %c0_i32_0, %c0_i32_1 : i32, i32, i32
  }
  func.func @transform_5(%arg0: i32) -> (i32, i32, i32) {
    %c0_i32 = arith.constant 0 : i32
    %c0_i32_0 = arith.constant 0 : i32
    %c0_i32_1 = arith.constant 0 : i32
    %c0_i32_2 = arith.constant 0 : i32
    return %c0_i32, %c0_i32_0, %c0_i32_1 : i32, i32, i32
  }
  func.func @transform_6(%arg0: i32) -> (i32, i32, i32) {
    %c0_i32 = arith.constant 0 : i32
    %c0_i32_0 = arith.constant 0 : i32
    %c0_i32_1 = arith.constant 0 : i32
    %c0_i32_2 = arith.constant 0 : i32
    return %c0_i32, %c0_i32_0, %c0_i32_1 : i32, i32, i32
  }
  func.func @transform_7(%arg0: i32) -> (i32, i32, i32) {
    %c0_i32 = arith.constant 0 : i32
    %c0_i32_0 = arith.constant 0 : i32
    %c0_i32_1 = arith.constant 0 : i32
    %c0_i32_2 = arith.constant 0 : i32
    return %c0_i32, %c0_i32_0, %c0_i32_1 : i32, i32, i32
  }
  func.func @transform_8(%arg0: i32) -> (i32, i32, i32) {
    %c0_i32 = arith.constant 0 : i32
    %c0_i32_0 = arith.constant 0 : i32
    %c0_i32_1 = arith.constant 0 : i32
    %c0_i32_2 = arith.constant 0 : i32
    return %c0_i32, %c0_i32_0, %c0_i32_1 : i32, i32, i32
  }
  func.func @transform_9(%arg0: i32) -> (i32, i32, i32) {
    %c0_i32 = arith.constant 0 : i32
    %c0_i32_0 = arith.constant 0 : i32
    %c0_i32_1 = arith.constant 0 : i32
    %c0_i32_2 = arith.constant 0 : i32
    return %c0_i32, %c0_i32_0, %c0_i32_1 : i32, i32, i32
  }
  func.func @transform_10(%arg0: i32) -> (i32, i32, i32) {
    %c0_i32 = arith.constant 0 : i32
    %c0_i32_0 = arith.constant 0 : i32
    %c0_i32_1 = arith.constant 0 : i32
    %c0_i32_2 = arith.constant 0 : i32
    return %c0_i32, %c0_i32_0, %c0_i32_1 : i32, i32, i32
  }
  func.func @transform_11(%arg0: i32) -> (i32, i32) {
    %c0_i32 = arith.constant 0 : i32
    %c0_i32_0 = arith.constant 0 : i32
    %c0_i32_1 = arith.constant 0 : i32
    return %c0_i32, %c0_i32_0 : i32, i32
  }
  func.func @transform_12(%arg0: i32) -> (i32, i32, i32) {
    %c0_i32 = arith.constant 0 : i32
    %c0_i32_0 = arith.constant 0 : i32
    %c0_i32_1 = arith.constant 0 : i32
    %c0_i32_2 = arith.constant 0 : i32
    return %c0_i32, %c0_i32_0, %c0_i32_1 : i32, i32, i32
  }
  func.func @transform_13(%arg0: i32) -> (i32, i32, i32) {
    %c0_i32 = arith.constant 0 : i32
    %c0_i32_0 = arith.constant 0 : i32
    %c0_i32_1 = arith.constant 0 : i32
    %c0_i32_2 = arith.constant 0 : i32
    return %c0_i32, %c0_i32_0, %c0_i32_1 : i32, i32, i32
  }
  func.func @transform_14(%arg0: i32) -> (i32, i32, i32) {
    %c0_i32 = arith.constant 0 : i32
    %c0_i32_0 = arith.constant 0 : i32
    %c0_i32_1 = arith.constant 0 : i32
    %c0_i32_2 = arith.constant 0 : i32
    return %c0_i32, %c0_i32_0, %c0_i32_1 : i32, i32, i32
  }
  func.func @transform_15(%arg0: i32) -> (i32, i32, i32) {
    %c0_i32 = arith.constant 0 : i32
    %c0_i32_0 = arith.constant 0 : i32
    %c0_i32_1 = arith.constant 0 : i32
    %c0_i32_2 = arith.constant 0 : i32
    return %c0_i32, %c0_i32_0, %c0_i32_1 : i32, i32, i32
  }
  func.func @transform_16(%arg0: i32) -> (i32, i32, i32) {
    %c0_i32 = arith.constant 0 : i32
    %c0_i32_0 = arith.constant 0 : i32
    %c0_i32_1 = arith.constant 0 : i32
    %c0_i32_2 = arith.constant 0 : i32
    return %c0_i32, %c0_i32_0, %c0_i32_1 : i32, i32, i32
  }
  func.func @transform_17(%arg0: i32) -> (i32, i32, i32) {
    %c0_i32 = arith.constant 0 : i32
    %c0_i32_0 = arith.constant 0 : i32
    %c0_i32_1 = arith.constant 0 : i32
    %c0_i32_2 = arith.constant 0 : i32
    return %c0_i32, %c0_i32_0, %c0_i32_1 : i32, i32, i32
  }
  func.func @transform_18(%arg0: i32) -> (i32, i32, i32) {
    %c0_i32 = arith.constant 0 : i32
    %c0_i32_0 = arith.constant 0 : i32
    %c0_i32_1 = arith.constant 0 : i32
    %c0_i32_2 = arith.constant 0 : i32
    return %c0_i32, %c0_i32_0, %c0_i32_1 : i32, i32, i32
  }
  func.func @transform_19(%arg0: i32) -> (i32, i32) {
    %c0_i32 = arith.constant 0 : i32
    %c0_i32_0 = arith.constant 0 : i32
    %c0_i32_1 = arith.constant 0 : i32
    return %c0_i32, %c0_i32_0 : i32, i32
  }
  func.func @transform_20(%arg0: i32) -> (i32, i32) {
    %c0_i32 = arith.constant 0 : i32
    %c0_i32_0 = arith.constant 0 : i32
    %c0_i32_1 = arith.constant 0 : i32
    return %c0_i32, %c0_i32_0 : i32, i32
  }
  func.func @transform_21(%arg0: i32) -> (i32, i32) {
    %c0_i32 = arith.constant 0 : i32
    %c0_i32_0 = arith.constant 0 : i32
    %c0_i32_1 = arith.constant 0 : i32
    return %c0_i32, %c0_i32_0 : i32, i32
  }
  func.func @transform_22(%arg0: i32) -> (i32, i32) {
    %c0_i32 = arith.constant 0 : i32
    %c0_i32_0 = arith.constant 0 : i32
    %c0_i32_1 = arith.constant 0 : i32
    return %c0_i32, %c0_i32_0 : i32, i32
  }
  func.func @transform_23(%arg0: i32) -> (i32, i32) {
    %c0_i32 = arith.constant 0 : i32
    %c0_i32_0 = arith.constant 0 : i32
    %c0_i32_1 = arith.constant 0 : i32
    return %c0_i32, %c0_i32_0 : i32, i32
  }
  func.func @transform_24(%arg0: i32) -> (i32, i32) {
    %c0_i32 = arith.constant 0 : i32
    %c0_i32_0 = arith.constant 0 : i32
    %c0_i32_1 = arith.constant 0 : i32
    return %c0_i32, %c0_i32_0 : i32, i32
  }
  func.func @transform_25(%arg0: i32) -> (i32, i32) {
    %c0_i32 = arith.constant 0 : i32
    %c0_i32_0 = arith.constant 0 : i32
    %c0_i32_1 = arith.constant 0 : i32
    return %c0_i32, %c0_i32_0 : i32, i32
  }
  func.func @transform_26(%arg0: i32) -> (i32, i32) {
    %c0_i32 = arith.constant 0 : i32
    %c0_i32_0 = arith.constant 0 : i32
    %c0_i32_1 = arith.constant 0 : i32
    return %c0_i32, %c0_i32_0 : i32, i32
  }
  func.func @transform_27(%arg0: i32) -> (i32, i32) {
    %c0_i32 = arith.constant 0 : i32
    %c0_i32_0 = arith.constant 0 : i32
    %c0_i32_1 = arith.constant 0 : i32
    return %c0_i32, %c0_i32_0 : i32, i32
  }
  func.func @transform_28(%arg0: i32) -> (i32, i32) {
    %c0_i32 = arith.constant 0 : i32
    %c0_i32_0 = arith.constant 0 : i32
    return %arg0, %c0_i32 : i32, i32
  }
}

</mosaic_0001>

<llo_original>
// kernel: tpu_custom_call.1
$region0: #{tpu_custom_call.1}
  #allocation0 [shape = 'u32[]', space=smem, size = 0x4, offset = 0x4, fixed_abs, tag = 'smem constant byte address 0x4 - core index']
  #allocation1 [shape = 'u32[144,128]{1,0:T(1,128)}', space=vmem, size = 0x12000, scoped, tag = 'internal scratch']
  %s0 = inlined_call_operand.vmem [shape: f32[32,128], index: 0, kind: input, shape index: {}]
  %s1 = inlined_call_operand.vmem [shape: f32[64,128], index: 1, kind: input, shape index: {}]
  %s2 = inlined_call_operand.vmem [shape: f32[16,16], index: 2, kind: input, shape index: {}]
  %s3 = inlined_call_operand.vmem [shape: f32[16,32], index: 3, kind: input, shape index: {}]
  %s4 = inlined_call_operand.vmem [shape: f32[4,128,32], index: 4, kind: input, shape index: {}]
  %s5 = inlined_call_operand.vmem [shape: f32[4,128,32], index: 5, kind: input, shape index: {}]
  %s6 = inlined_call_operand.vmem [shape: f32[4,128,32], index: 6, kind: input, shape index: {}]
  %s7 = inlined_call_operand.vmem [shape: f32[4,1,32], index: 7, kind: input, shape index: {}]
  %s8 = inlined_call_operand.vmem [shape: f32[4,1,32], index: 8, kind: input, shape index: {}]
  %s9 = inlined_call_operand.vmem [shape: f32[4,1,32], index: 9, kind: input, shape index: {}]
  %s10 = inlined_call_operand.vmem [shape: f32[4,32,128], index: 10, kind: input, shape index: {}]
  %s11 = inlined_call_operand.vmem [shape: f32[1,128], index: 11, kind: input, shape index: {}]
  %s12 = inlined_call_operand.vmem [shape: f32[4,128,32], index: 12, kind: input, shape index: {}]
  %s13 = inlined_call_operand.vmem [shape: f32[4,128,32], index: 13, kind: input, shape index: {}]
  %s14 = inlined_call_operand.vmem [shape: f32[4,128,32], index: 14, kind: input, shape index: {}]
  %s15 = inlined_call_operand.vmem [shape: f32[4,1,32], index: 15, kind: input, shape index: {}]
  %s16 = inlined_call_operand.vmem [shape: f32[4,1,32], index: 16, kind: input, shape index: {}]
  %s17 = inlined_call_operand.vmem [shape: f32[4,1,32], index: 17, kind: input, shape index: {}]
  %s18 = inlined_call_operand.vmem [shape: f32[4,32,128], index: 18, kind: input, shape index: {}]
  %s19 = inlined_call_operand.vmem [shape: f32[1,128], index: 19, kind: input, shape index: {}]
  %s20 = inlined_call_operand.vmem [shape: f32[128,256], index: 20, kind: input, shape index: {}]
  %s21 = inlined_call_operand.vmem [shape: f32[1,256], index: 21, kind: input, shape index: {}]
  %s22 = inlined_call_operand.vmem [shape: f32[256,128], index: 22, kind: input, shape index: {}]
  %s23 = inlined_call_operand.vmem [shape: f32[1,128], index: 23, kind: input, shape index: {}]
  %s24 = inlined_call_operand.vmem [shape: f32[1,128], index: 24, kind: input, shape index: {}]
  %s25 = inlined_call_operand.vmem [shape: f32[1,128], index: 25, kind: input, shape index: {}]
  %s26 = inlined_call_operand.vmem [shape: f32[1,128], index: 26, kind: input, shape index: {}]
  %s27 = inlined_call_operand.vmem [shape: f32[1,128], index: 27, kind: input, shape index: {}]
  %s28 = inlined_call_operand.hbm [shape: f32[32,128], index: 28, kind: output, shape index: {}]
  %s29 = sld [smem:[#allocation0]]
  $region145: #{tpu_custom_call.1} parent=0
    _
  %s31 = ssub.s32 1, %s29
  %s32 = scalar_select 0, %s31, %s29
  $region1: #{tpu_custom_call.1} parent=0
    #allocation2 [shape = 'u8[16384]{0}', space=vmem, size = 0x4000, scoped, tag = 'output window, operand 0']
    #allocation3 [shape = 's32[2]{0}', space=sflag, size = 0x8, scoped, tag = 'scoped memory for tpu_custom_call.1']
    %33 = vsyncpa [#allocation3], 0
    %s34 = scalar_lea.sflag [#allocation3], 1
    %35 = vsyncpa %s34, 0
    loop: start=0, step=1, limit=4
    $region2: #{tpu_custom_call.1} parent=1 // loop_pre_header
      _
    $region3: #{tpu_custom_call.1} parent=1 // loop_header
      %s37 = sphi 0, %s41
      %p38 = scmp.ge.s32.totalorder %s37, 4
      %s47 = sphi 0, %s49
      %s50 = sphi 0, %s47
      %s51 = sphi 0, %s50
      %s67 = sphi 0, %s51
      %s73 = sphi 0, %s75
      %s76 = sphi 0, %s73
      %s77 = sphi 0, %s76
      %s93 = sphi 0, %s77
      %s97 = sphi 0, %s97
      %s99 = sphi 0, %s97
      %s100 = sphi 0, %s99
      %s114 = sphi 0, %s100
      %s118 = sphi 0, %s118
      %s120 = sphi 0, %s118
      %s121 = sphi 0, %s120
      %s135 = sphi 0, %s121
      %s139 = sphi 0, %s139
      %s141 = sphi 0, %s139
      %s142 = sphi 0, %s141
      %s156 = sphi 0, %s142
      %s160 = sphi 0, %s160
      %s162 = sphi 0, %s160
      %s163 = sphi 0, %s162
      %s177 = sphi 0, %s163
      %s181 = sphi 0, %s181
      %s183 = sphi 0, %s181
      %s184 = sphi 0, %s183
      %s198 = sphi 0, %s184
      %s202 = sphi 0, %s202
      %s204 = sphi 0, %s202
      %s205 = sphi 0, %s204
      %s219 = sphi 0, %s205
      %s223 = sphi 0, %s223
      %s225 = sphi 0, %s223
      %s226 = sphi 0, %s225
      %s240 = sphi 0, %s226
      %s244 = sphi 0, %s244
      %s246 = sphi 0, %s244
      %s247 = sphi 0, %s246
      %s261 = sphi 0, %s247
      %s265 = sphi 0, %s265
      %s267 = sphi 0, %s265
      %s268 = sphi 0, %s267
      %s282 = sphi 0, %s268
      %s286 = sphi 0, %s286
      %s288 = sphi 0, %s286
      %s289 = sphi 0, %s288
      %s303 = sphi 0, %s289
      %s307 = sphi 0, %s307
      %s309 = sphi 0, %s307
      %s310 = sphi 0, %s309
      %s324 = sphi 0, %s310
      %s328 = sphi 0, %s328
      %s330 = sphi 0, %s328
      %s331 = sphi 0, %s330
      %s345 = sphi 0, %s331
      %s349 = sphi 0, %s349
      %s351 = sphi 0, %s349
      %s352 = sphi 0, %s351
      %s366 = sphi 0, %s352
      %s370 = sphi 0, %s370
      %s372 = sphi 0, %s370
      %s373 = sphi 0, %s372
      %s387 = sphi 0, %s373
      %s391 = sphi 0, %s391
      %s393 = sphi 0, %s391
      %s394 = sphi 0, %s393
      %s408 = sphi 0, %s394
      %s412 = sphi 0, %s412
      %s414 = sphi 0, %s412
      %s415 = sphi 0, %s414
      %s429 = sphi 0, %s415
      %s433 = sphi 0, %s433
      %s435 = sphi 0, %s433
      %s436 = sphi 0, %s435
      %s450 = sphi 0, %s436
      %s454 = sphi 0, %s454
      %s456 = sphi 0, %s454
      %s457 = sphi 0, %s456
      %s471 = sphi 0, %s457
      %s475 = sphi 0, %s475
      %s477 = sphi 0, %s475
      %s478 = sphi 0, %s477
      %s492 = sphi 0, %s478
      %s496 = sphi 0, %s496
      %s498 = sphi 0, %s496
      %s499 = sphi 0, %s498
      %s513 = sphi 0, %s499
      %s517 = sphi 0, %s517
      %s519 = sphi 0, %s517
      %s520 = sphi 0, %s519
      %s534 = sphi 0, %s520
      %s538 = sphi 0, %s538
      %s540 = sphi 0, %s538
      %s541 = sphi 0, %s540
      %s555 = sphi 0, %s541
      %s559 = sphi 0, %s559
      %s561 = sphi 0, %s559
      %s562 = sphi 0, %s561
      %s576 = sphi 0, %s562
      %s580 = sphi 0, %s580
      %s582 = sphi 0, %s580
      %s583 = sphi 0, %s582
      %s597 = sphi 0, %s583
      %s601 = sphi 0, %s601
      %s603 = sphi 0, %s601
      %s604 = sphi 0, %s603
      %s618 = sphi 0, %s604
      %s622 = sphi 0, %s622
      %s624 = sphi 0, %s622
      %s625 = sphi 0, %s624
      %s639 = sphi 0, %s625
      %s645 = sphi 0, %s647
      %s648 = sphi 0, %s645
      %s649 = sphi 0, %s648
      %s665 = sphi 0, %s649
    $region4: #{tpu_custom_call.1} parent=1 // loop_header_branch
      %40 = sbr.rel (%p38) target = $region8
    $region5: #{tpu_custom_call.1} parent=1 // loop_body
      %s42 = ssub.s32 %s37, 1
      %s43 = ssub.s32 %s37, 2
      %s44 = sadd.s32 %s37, 1
      %s45 = ssub.s32 %s37, %s44
      %p46 = scmp.eq.s32.totalorder %s45, 0
      %s48 = sadd.s32 %s47, 1
      %s49 = scalar_select %p46, %s47, %s48
      %p52 = pneg %p46
      %p53 = scmp.eq.s32.totalorder %s37, 1
      %p54 = por %p52, %p53
      %p55 = scmp.ne.s32.totalorder %s47, %s50
      %p56 = scmp.eq.s32.totalorder %s37, 0
      %p57 = por %p55, %p56
      %p58 = scmp.ne.s32.totalorder %s47, %s50
      %p59 = scmp.eq.s32.totalorder %s42, 1
      %p60 = por %p58, %p59
      %p61 = scmp.ne.s32.totalorder %s50, %s51
      %p62 = scmp.eq.s32.totalorder %s42, 0
      %p63 = por %p61, %p62
      %p64 = scmp.ne.s32.totalorder %s50, %s51
      %p65 = scmp.eq.s32.totalorder %s43, 1
      %p66 = por %p64, %p65
      %p68 = scmp.ne.s32.totalorder %s51, %s67
      %p69 = scmp.eq.s32.totalorder %s43, 0
      %p70 = por %p68, %p69
      %s71 = ssub.s32 %s37, %s44
      %p72 = scmp.eq.s32.totalorder %s71, 0
      %s74 = sadd.s32 %s73, 1
      %s75 = scalar_select %p72, %s73, %s74
      %p78 = pneg %p72
      %p79 = scmp.eq.s32.totalorder %s37, 1
      %p80 = por %p78, %p79
      %p81 = scmp.ne.s32.totalorder %s73, %s76
      %p82 = scmp.eq.s32.totalorder %s37, 0
      %p83 = por %p81, %p82
      %p84 = scmp.ne.s32.totalorder %s73, %s76
      %p85 = scmp.eq.s32.totalorder %s42, 1
      %p86 = por %p84, %p85
      %p87 = scmp.ne.s32.totalorder %s76, %s77
      %p88 = scmp.eq.s32.totalorder %s42, 0
      %p89 = por %p87, %p88
      %p90 = scmp.ne.s32.totalorder %s76, %s77
      %p91 = scmp.eq.s32.totalorder %s43, 1
      %p92 = por %p90, %p91
      %p94 = scmp.ne.s32.totalorder %s77, %s93
      %p95 = scmp.eq.s32.totalorder %s43, 0
      %p96 = por %p94, %p95
      %s98 = sadd.s32 %s97, 1
      %p101 = scmp.eq.s32.totalorder %s37, 1
      %p102 = scmp.ne.s32.totalorder %s97, %s99
      %p103 = scmp.eq.s32.totalorder %s37, 0
      %p104 = por %p102, %p103
      %p105 = scmp.ne.s32.totalorder %s97, %s99
      %p106 = scmp.eq.s32.totalorder %s42, 1
      %p107 = por %p105, %p106
      %p108 = scmp.ne.s32.totalorder %s99, %s100
      %p109 = scmp.eq.s32.totalorder %s42, 0
      %p110 = por %p108, %p109
      %p111 = scmp.ne.s32.totalorder %s99, %s100
      %p112 = scmp.eq.s32.totalorder %s43, 1
      %p113 = por %p111, %p112
      %p115 = scmp.ne.s32.totalorder %s100, %s114
      %p116 = scmp.eq.s32.totalorder %s43, 0
      %p117 = por %p115, %p116
      %s119 = sadd.s32 %s118, 1
      %p122 = scmp.eq.s32.totalorder %s37, 1
      %p123 = scmp.ne.s32.totalorder %s118, %s120
      %p124 = scmp.eq.s32.totalorder %s37, 0
      %p125 = por %p123, %p124
      %p126 = scmp.ne.s32.totalorder %s118, %s120
      %p127 = scmp.eq.s32.totalorder %s42, 1
      %p128 = por %p126, %p127
      %p129 = scmp.ne.s32.totalorder %s120, %s121
      %p130 = scmp.eq.s32.totalorder %s42, 0
      %p131 = por %p129, %p130
      %p132 = scmp.ne.s32.totalorder %s120, %s121
      %p133 = scmp.eq.s32.totalorder %s43, 1
      %p134 = por %p132, %p133
      %p136 = scmp.ne.s32.totalorder %s121, %s135
      %p137 = scmp.eq.s32.totalorder %s43, 0
      %p138 = por %p136, %p137
      %s140 = sadd.s32 %s139, 1
      %p143 = scmp.eq.s32.totalorder %s37, 1
      %p144 = scmp.ne.s32.totalorder %s139, %s141
      %p145 = scmp.eq.s32.totalorder %s37, 0
      %p146 = por %p144, %p145
      %p147 = scmp.ne.s32.totalorder %s139, %s141
      %p148 = scmp.eq.s32.totalorder %s42, 1
      %p149 = por %p147, %p148
      %p150 = scmp.ne.s32.totalorder %s141, %s142
      %p151 = scmp.eq.s32.totalorder %s42, 0
      %p152 = por %p150, %p151
      %p153 = scmp.ne.s32.totalorder %s141, %s142
      %p154 = scmp.eq.s32.totalorder %s43, 1
      %p155 = por %p153, %p154
      %p157 = scmp.ne.s32.totalorder %s142, %s156
      %p158 = scmp.eq.s32.totalorder %s43, 0
      %p159 = por %p157, %p158
      %s161 = sadd.s32 %s160, 1
      %p164 = scmp.eq.s32.totalorder %s37, 1
      %p165 = scmp.ne.s32.totalorder %s160, %s162
      %p166 = scmp.eq.s32.totalorder %s37, 0
      %p167 = por %p165, %p166
      %p168 = scmp.ne.s32.totalorder %s160, %s162
      %p169 = scmp.eq.s32.totalorder %s42, 1
      %p170 = por %p168, %p169
      %p171 = scmp.ne.s32.totalorder %s162, %s163
      %p172 = scmp.eq.s32.totalorder %s42, 0
      %p173 = por %p171, %p172
      %p174 = scmp.ne.s32.totalorder %s162, %s163
      %p175 = scmp.eq.s32.totalorder %s43, 1
      %p176 = por %p174, %p175
      %p178 = scmp.ne.s32.totalorder %s163, %s177
      %p179 = scmp.eq.s32.totalorder %s43, 0
      %p180 = por %p178, %p179
      %s182 = sadd.s32 %s181, 1
      %p185 = scmp.eq.s32.totalorder %s37, 1
      %p186 = scmp.ne.s32.totalorder %s181, %s183
      %p187 = scmp.eq.s32.totalorder %s37, 0
      %p188 = por %p186, %p187
      %p189 = scmp.ne.s32.totalorder %s181, %s183
      %p190 = scmp.eq.s32.totalorder %s42, 1
      %p191 = por %p189, %p190
      %p192 = scmp.ne.s32.totalorder %s183, %s184
      %p193 = scmp.eq.s32.totalorder %s42, 0
      %p194 = por %p192, %p193
      %p195 = scmp.ne.s32.totalorder %s183, %s184
      %p196 = scmp.eq.s32.totalorder %s43, 1
      %p197 = por %p195, %p196
      %p199 = scmp.ne.s32.totalorder %s184, %s198
      %p200 = scmp.eq.s32.totalorder %s43, 0
      %p201 = por %p199, %p200
      %s203 = sadd.s32 %s202, 1
      %p206 = scmp.eq.s32.totalorder %s37, 1
      %p207 = scmp.ne.s32.totalorder %s202, %s204
      %p208 = scmp.eq.s32.totalorder %s37, 0
      %p209 = por %p207, %p208
      %p210 = scmp.ne.s32.totalorder %s202, %s204
      %p211 = scmp.eq.s32.totalorder %s42, 1
      %p212 = por %p210, %p211
      %p213 = scmp.ne.s32.totalorder %s204, %s205
      %p214 = scmp.eq.s32.totalorder %s42, 0
      %p215 = por %p213, %p214
      %p216 = scmp.ne.s32.totalorder %s204, %s205
      %p217 = scmp.eq.s32.totalorder %s43, 1
      %p218 = por %p216, %p217
      %p220 = scmp.ne.s32.totalorder %s205, %s219
      %p221 = scmp.eq.s32.totalorder %s43, 0
      %p222 = por %p220, %p221
      %s224 = sadd.s32 %s223, 1
      %p227 = scmp.eq.s32.totalorder %s37, 1
      %p228 = scmp.ne.s32.totalorder %s223, %s225
      %p229 = scmp.eq.s32.totalorder %s37, 0
      %p230 = por %p228, %p229
      %p231 = scmp.ne.s32.totalorder %s223, %s225
      %p232 = scmp.eq.s32.totalorder %s42, 1
      %p233 = por %p231, %p232
      %p234 = scmp.ne.s32.totalorder %s225, %s226
      %p235 = scmp.eq.s32.totalorder %s42, 0
      %p236 = por %p234, %p235
      %p237 = scmp.ne.s32.totalorder %s225, %s226
      %p238 = scmp.eq.s32.totalorder %s43, 1
      %p239 = por %p237, %p238
      %p241 = scmp.ne.s32.totalorder %s226, %s240
      %p242 = scmp.eq.s32.totalorder %s43, 0
      %p243 = por %p241, %p242
      %s245 = sadd.s32 %s244, 1
      %p248 = scmp.eq.s32.totalorder %s37, 1
      %p249 = scmp.ne.s32.totalorder %s244, %s246
      %p250 = scmp.eq.s32.totalorder %s37, 0
      %p251 = por %p249, %p250
      %p252 = scmp.ne.s32.totalorder %s244, %s246
      %p253 = scmp.eq.s32.totalorder %s42, 1
      %p254 = por %p252, %p253
      %p255 = scmp.ne.s32.totalorder %s246, %s247
      %p256 = scmp.eq.s32.totalorder %s42, 0
      %p257 = por %p255, %p256
      %p258 = scmp.ne.s32.totalorder %s246, %s247
      %p259 = scmp.eq.s32.totalorder %s43, 1
      %p260 = por %p258, %p259
      %p262 = scmp.ne.s32.totalorder %s247, %s261
      %p263 = scmp.eq.s32.totalorder %s43, 0
      %p264 = por %p262, %p263
      %s266 = sadd.s32 %s265, 1
      %p269 = scmp.eq.s32.totalorder %s37, 1
      %p270 = scmp.ne.s32.totalorder %s265, %s267
      %p271 = scmp.eq.s32.totalorder %s37, 0
      %p272 = por %p270, %p271
      %p273 = scmp.ne.s32.totalorder %s265, %s267
      %p274 = scmp.eq.s32.totalorder %s42, 1
      %p275 = por %p273, %p274
      %p276 = scmp.ne.s32.totalorder %s267, %s268
      %p277 = scmp.eq.s32.totalorder %s42, 0
      %p278 = por %p276, %p277
      %p279 = scmp.ne.s32.totalorder %s267, %s268
      %p280 = scmp.eq.s32.totalorder %s43, 1
      %p281 = por %p279, %p280
      %p283 = scmp.ne.s32.totalorder %s268, %s282
      %p284 = scmp.eq.s32.totalorder %s43, 0
      %p285 = por %p283, %p284
      %s287 = sadd.s32 %s286, 1
      %p290 = scmp.eq.s32.totalorder %s37, 1
      %p291 = scmp.ne.s32.totalorder %s286, %s288
      %p292 = scmp.eq.s32.totalorder %s37, 0
      %p293 = por %p291, %p292
      %p294 = scmp.ne.s32.totalorder %s286, %s288
      %p295 = scmp.eq.s32.totalorder %s42, 1
      %p296 = por %p294, %p295
      %p297 = scmp.ne.s32.totalorder %s288, %s289
      %p298 = scmp.eq.s32.totalorder %s42, 0
      %p299 = por %p297, %p298
      %p300 = scmp.ne.s32.totalorder %s288, %s289
      %p301 = scmp.eq.s32.totalorder %s43, 1
      %p302 = por %p300, %p301
      %p304 = scmp.ne.s32.totalorder %s289, %s303
      %p305 = scmp.eq.s32.totalorder %s43, 0
      %p306 = por %p304, %p305
      %s308 = sadd.s32 %s307, 1
      %p311 = scmp.eq.s32.totalorder %s37, 1
      %p312 = scmp.ne.s32.totalorder %s307, %s309
      %p313 = scmp.eq.s32.totalorder %s37, 0
      %p314 = por %p312, %p313
      %p315 = scmp.ne.s32.totalorder %s307, %s309
      %p316 = scmp.eq.s32.totalorder %s42, 1
      %p317 = por %p315, %p316
      %p318 = scmp.ne.s32.totalorder %s309, %s310
      %p319 = scmp.eq.s32.totalorder %s42, 0
      %p320 = por %p318, %p319
      %p321 = scmp.ne.s32.totalorder %s309, %s310
      %p322 = scmp.eq.s32.totalorder %s43, 1
      %p323 = por %p321, %p322
      %p325 = scmp.ne.s32.totalorder %s310, %s324
      %p326 = scmp.eq.s32.totalorder %s43, 0
      %p327 = por %p325, %p326
      %s329 = sadd.s32 %s328, 1
      %p332 = scmp.eq.s32.totalorder %s37, 1
      %p333 = scmp.ne.s32.totalorder %s328, %s330
      %p334 = scmp.eq.s32.totalorder %s37, 0
      %p335 = por %p333, %p334
      %p336 = scmp.ne.s32.totalorder %s328, %s330
      %p337 = scmp.eq.s32.totalorder %s42, 1
      %p338 = por %p336, %p337
      %p339 = scmp.ne.s32.totalorder %s330, %s331
      %p340 = scmp.eq.s32.totalorder %s42, 0
      %p341 = por %p339, %p340
      %p342 = scmp.ne.s32.totalorder %s330, %s331
      %p343 = scmp.eq.s32.totalorder %s43, 1
      %p344 = por %p342, %p343
      %p346 = scmp.ne.s32.totalorder %s331, %s345
      %p347 = scmp.eq.s32.totalorder %s43, 0
      %p348 = por %p346, %p347
      %s350 = sadd.s32 %s349, 1
      %p353 = scmp.eq.s32.totalorder %s37, 1
      %p354 = scmp.ne.s32.totalorder %s349, %s351
      %p355 = scmp.eq.s32.totalorder %s37, 0
      %p356 = por %p354, %p355
      %p357 = scmp.ne.s32.totalorder %s349, %s351
      %p358 = scmp.eq.s32.totalorder %s42, 1
      %p359 = por %p357, %p358
      %p360 = scmp.ne.s32.totalorder %s351, %s352
      %p361 = scmp.eq.s32.totalorder %s42, 0
      %p362 = por %p360, %p361
      %p363 = scmp.ne.s32.totalorder %s351, %s352
      %p364 = scmp.eq.s32.totalorder %s43, 1
      %p365 = por %p363, %p364
      %p367 = scmp.ne.s32.totalorder %s352, %s366
      %p368 = scmp.eq.s32.totalorder %s43, 0
      %p369 = por %p367, %p368
      %s371 = sadd.s32 %s370, 1
      %p374 = scmp.eq.s32.totalorder %s37, 1
      %p375 = scmp.ne.s32.totalorder %s370, %s372
      %p376 = scmp.eq.s32.totalorder %s37, 0
      %p377 = por %p375, %p376
      %p378 = scmp.ne.s32.totalorder %s370, %s372
      %p379 = scmp.eq.s32.totalorder %s42, 1
      %p380 = por %p378, %p379
      %p381 = scmp.ne.s32.totalorder %s372, %s373
      %p382 = scmp.eq.s32.totalorder %s42, 0
      %p383 = por %p381, %p382
      %p384 = scmp.ne.s32.totalorder %s372, %s373
      %p385 = scmp.eq.s32.totalorder %s43, 1
      %p386 = por %p384, %p385
      %p388 = scmp.ne.s32.totalorder %s373, %s387
      %p389 = scmp.eq.s32.totalorder %s43, 0
      %p390 = por %p388, %p389
      %s392 = sadd.s32 %s391, 1
      %p395 = scmp.eq.s32.totalorder %s37, 1
      %p396 = scmp.ne.s32.totalorder %s391, %s393
      %p397 = scmp.eq.s32.totalorder %s37, 0
      %p398 = por %p396, %p397
      %p399 = scmp.ne.s32.totalorder %s391, %s393
      %p400 = scmp.eq.s32.totalorder %s42, 1
      %p401 = por %p399, %p400
      %p402 = scmp.ne.s32.totalorder %s393, %s394
      %p403 = scmp.eq.s32.totalorder %s42, 0
      %p404 = por %p402, %p403
      %p405 = scmp.ne.s32.totalorder %s393, %s394
      %p406 = scmp.eq.s32.totalorder %s43, 1
      %p407 = por %p405, %p406
      %p409 = scmp.ne.s32.totalorder %s394, %s408
      %p410 = scmp.eq.s32.totalorder %s43, 0
      %p411 = por %p409, %p410
      %s413 = sadd.s32 %s412, 1
      %p416 = scmp.eq.s32.totalorder %s37, 1
      %p417 = scmp.ne.s32.totalorder %s412, %s414
      %p418 = scmp.eq.s32.totalorder %s37, 0
      %p419 = por %p417, %p418
      %p420 = scmp.ne.s32.totalorder %s412, %s414
      %p421 = scmp.eq.s32.totalorder %s42, 1
      %p422 = por %p420, %p421
      %p423 = scmp.ne.s32.totalorder %s414, %s415
      %p424 = scmp.eq.s32.totalorder %s42, 0
      %p425 = por %p423, %p424
      %p426 = scmp.ne.s32.totalorder %s414, %s415
      %p427 = scmp.eq.s32.totalorder %s43, 1
      %p428 = por %p426, %p427
      %p430 = scmp.ne.s32.totalorder %s415, %s429
      %p431 = scmp.eq.s32.totalorder %s43, 0
      %p432 = por %p430, %p431
      %s434 = sadd.s32 %s433, 1
      %p437 = scmp.eq.s32.totalorder %s37, 1
      %p438 = scmp.ne.s32.totalorder %s433, %s435
      %p439 = scmp.eq.s32.totalorder %s37, 0
      %p440 = por %p438, %p439
      %p441 = scmp.ne.s32.totalorder %s433, %s435
      %p442 = scmp.eq.s32.totalorder %s42, 1
      %p443 = por %p441, %p442
      %p444 = scmp.ne.s32.totalorder %s435, %s436
      %p445 = scmp.eq.s32.totalorder %s42, 0
      %p446 = por %p444, %p445
      %p447 = scmp.ne.s32.totalorder %s435, %s436
      %p448 = scmp.eq.s32.totalorder %s43, 1
      %p449 = por %p447, %p448
      %p451 = scmp.ne.s32.totalorder %s436, %s450
      %p452 = scmp.eq.s32.totalorder %s43, 0
      %p453 = por %p451, %p452
      %s455 = sadd.s32 %s454, 1
      %p458 = scmp.eq.s32.totalorder %s37, 1
      %p459 = scmp.ne.s32.totalorder %s454, %s456
      %p460 = scmp.eq.s32.totalorder %s37, 0
      %p461 = por %p459, %p460
      %p462 = scmp.ne.s32.totalorder %s454, %s456
      %p463 = scmp.eq.s32.totalorder %s42, 1
      %p464 = por %p462, %p463
      %p465 = scmp.ne.s32.totalorder %s456, %s457
      %p466 = scmp.eq.s32.totalorder %s42, 0
      %p467 = por %p465, %p466
      %p468 = scmp.ne.s32.totalorder %s456, %s457
      %p469 = scmp.eq.s32.totalorder %s43, 1
      %p470 = por %p468, %p469
      %p472 = scmp.ne.s32.totalorder %s457, %s471
      %p473 = scmp.eq.s32.totalorder %s43, 0
      %p474 = por %p472, %p473
      %s476 = sadd.s32 %s475, 1
      %p479 = scmp.eq.s32.totalorder %s37, 1
      %p480 = scmp.ne.s32.totalorder %s475, %s477
      %p481 = scmp.eq.s32.totalorder %s37, 0
      %p482 = por %p480, %p481
      %p483 = scmp.ne.s32.totalorder %s475, %s477
      %p484 = scmp.eq.s32.totalorder %s42, 1
      %p485 = por %p483, %p484
      %p486 = scmp.ne.s32.totalorder %s477, %s478
      %p487 = scmp.eq.s32.totalorder %s42, 0
      %p488 = por %p486, %p487
      %p489 = scmp.ne.s32.totalorder %s477, %s478
      %p490 = scmp.eq.s32.totalorder %s43, 1
      %p491 = por %p489, %p490
      %p493 = scmp.ne.s32.totalorder %s478, %s492
      %p494 = scmp.eq.s32.totalorder %s43, 0
      %p495 = por %p493, %p494
      %s497 = sadd.s32 %s496, 1
      %p500 = scmp.eq.s32.totalorder %s37, 1
      %p501 = scmp.ne.s32.totalorder %s496, %s498
      %p502 = scmp.eq.s32.totalorder %s37, 0
      %p503 = por %p501, %p502
      %p504 = scmp.ne.s32.totalorder %s496, %s498
      %p505 = scmp.eq.s32.totalorder %s42, 1
      %p506 = por %p504, %p505
      %p507 = scmp.ne.s32.totalorder %s498, %s499
      %p508 = scmp.eq.s32.totalorder %s42, 0
      %p509 = por %p507, %p508
      %p510 = scmp.ne.s32.totalorder %s498, %s499
      %p511 = scmp.eq.s32.totalorder %s43, 1
      %p512 = por %p510, %p511
      %p514 = scmp.ne.s32.totalorder %s499, %s513
      %p515 = scmp.eq.s32.totalorder %s43, 0
      %p516 = por %p514, %p515
      %s518 = sadd.s32 %s517, 1
      %p521 = scmp.eq.s32.totalorder %s37, 1
      %p522 = scmp.ne.s32.totalorder %s517, %s519
      %p523 = scmp.eq.s32.totalorder %s37, 0
      %p524 = por %p522, %p523
      %p525 = scmp.ne.s32.totalorder %s517, %s519
      %p526 = scmp.eq.s32.totalorder %s42, 1
      %p527 = por %p525, %p526
      %p528 = scmp.ne.s32.totalorder %s519, %s520
      %p529 = scmp.eq.s32.totalorder %s42, 0
      %p530 = por %p528, %p529
      %p531 = scmp.ne.s32.totalorder %s519, %s520
      %p532 = scmp.eq.s32.totalorder %s43, 1
      %p533 = por %p531, %p532
      %p535 = scmp.ne.s32.totalorder %s520, %s534
      %p536 = scmp.eq.s32.totalorder %s43, 0
      %p537 = por %p535, %p536
      %s539 = sadd.s32 %s538, 1
      %p542 = scmp.eq.s32.totalorder %s37, 1
      %p543 = scmp.ne.s32.totalorder %s538, %s540
      %p544 = scmp.eq.s32.totalorder %s37, 0
      %p545 = por %p543, %p544
      %p546 = scmp.ne.s32.totalorder %s538, %s540
      %p547 = scmp.eq.s32.totalorder %s42, 1
      %p548 = por %p546, %p547
      %p549 = scmp.ne.s32.totalorder %s540, %s541
      %p550 = scmp.eq.s32.totalorder %s42, 0
      %p551 = por %p549, %p550
      %p552 = scmp.ne.s32.totalorder %s540, %s541
      %p553 = scmp.eq.s32.totalorder %s43, 1
      %p554 = por %p552, %p553
      %p556 = scmp.ne.s32.totalorder %s541, %s555
      %p557 = scmp.eq.s32.totalorder %s43, 0
      %p558 = por %p556, %p557
      %s560 = sadd.s32 %s559, 1
      %p563 = scmp.eq.s32.totalorder %s37, 1
      %p564 = scmp.ne.s32.totalorder %s559, %s561
      %p565 = scmp.eq.s32.totalorder %s37, 0
      %p566 = por %p564, %p565
      %p567 = scmp.ne.s32.totalorder %s559, %s561
      %p568 = scmp.eq.s32.totalorder %s42, 1
      %p569 = por %p567, %p568
      %p570 = scmp.ne.s32.totalorder %s561, %s562
      %p571 = scmp.eq.s32.totalorder %s42, 0
      %p572 = por %p570, %p571
      %p573 = scmp.ne.s32.totalorder %s561, %s562
      %p574 = scmp.eq.s32.totalorder %s43, 1
      %p575 = por %p573, %p574
      %p577 = scmp.ne.s32.totalorder %s562, %s576
      %p578 = scmp.eq.s32.totalorder %s43, 0
      %p579 = por %p577, %p578
      %s581 = sadd.s32 %s580, 1
      %p584 = scmp.eq.s32.totalorder %s37, 1
      %p585 = scmp.ne.s32.totalorder %s580, %s582
      %p586 = scmp.eq.s32.totalorder %s37, 0
      %p587 = por %p585, %p586
      %p588 = scmp.ne.s32.totalorder %s580, %s582
      %p589 = scmp.eq.s32.totalorder %s42, 1
      %p590 = por %p588, %p589
      %p591 = scmp.ne.s32.totalorder %s582, %s583
      %p592 = scmp.eq.s32.totalorder %s42, 0
      %p593 = por %p591, %p592
      %p594 = scmp.ne.s32.totalorder %s582, %s583
      %p595 = scmp.eq.s32.totalorder %s43, 1
      %p596 = por %p594, %p595
      %p598 = scmp.ne.s32.totalorder %s583, %s597
      %p599 = scmp.eq.s32.totalorder %s43, 0
      %p600 = por %p598, %p599
      %s602 = sadd.s32 %s601, 1
      %p605 = scmp.eq.s32.totalorder %s37, 1
      %p606 = scmp.ne.s32.totalorder %s601, %s603
      %p607 = scmp.eq.s32.totalorder %s37, 0
      %p608 = por %p606, %p607
      %p609 = scmp.ne.s32.totalorder %s601, %s603
      %p610 = scmp.eq.s32.totalorder %s42, 1
      %p611 = por %p609, %p610
      %p612 = scmp.ne.s32.totalorder %s603, %s604
      %p613 = scmp.eq.s32.totalorder %s42, 0
      %p614 = por %p612, %p613
      %p615 = scmp.ne.s32.totalorder %s603, %s604
      %p616 = scmp.eq.s32.totalorder %s43, 1
      %p617 = por %p615, %p616
      %p619 = scmp.ne.s32.totalorder %s604, %s618
      %p620 = scmp.eq.s32.totalorder %s43, 0
      %p621 = por %p619, %p620
      %s623 = sadd.s32 %s622, 1
      %p626 = scmp.eq.s32.totalorder %s37, 1
      %p627 = scmp.ne.s32.totalorder %s622, %s624
      %p628 = scmp.eq.s32.totalorder %s37, 0
      %p629 = por %p627, %p628
      %p630 = scmp.ne.s32.totalorder %s622, %s624
      %p631 = scmp.eq.s32.totalorder %s42, 1
      %p632 = por %p630, %p631
      %p633 = scmp.ne.s32.totalorder %s624, %s625
      %p634 = scmp.eq.s32.totalorder %s42, 0
      %p635 = por %p633, %p634
      %p636 = scmp.ne.s32.totalorder %s624, %s625
      %p637 = scmp.eq.s32.totalorder %s43, 1
      %p638 = por %p636, %p637
      %p640 = scmp.ne.s32.totalorder %s625, %s639
      %p641 = scmp.eq.s32.totalorder %s43, 0
      %p642 = por %p640, %p641
      %s643 = ssub.s32 %s37, %s44
      %p644 = scmp.eq.s32.totalorder %s643, 0
      %s646 = sadd.s32 %s645, 1
      %s647 = scalar_select %p644, %s645, %s646
      %p650 = pneg %p644
      %p651 = scmp.eq.s32.totalorder %s37, 1
      %p652 = por %p650, %p651
      %p653 = scmp.ne.s32.totalorder %s645, %s648
      %p654 = scmp.eq.s32.totalorder %s37, 0
      %p655 = por %p653, %p654
      %p656 = scmp.ne.s32.totalorder %s645, %s648
      %p657 = scmp.eq.s32.totalorder %s42, 1
      %p658 = por %p656, %p657
      %p659 = scmp.ne.s32.totalorder %s648, %s649
      %p660 = scmp.eq.s32.totalorder %s42, 0
      %p661 = por %p659, %p660
      %p662 = scmp.ne.s32.totalorder %s648, %s649
      %p663 = scmp.eq.s32.totalorder %s43, 1
      %p664 = por %p662, %p663
      %p666 = scmp.ne.s32.totalorder %s649, %s665
      %p667 = scmp.eq.s32.totalorder %s43, 0
      %p668 = por %p666, %p667
      %p669 = scmp.le.s32.totalorder 1, %s37
      %p670 = scmp.lt.s32.totalorder %s37, 3
      %p671 = pnand %p669, %p670
      %p672 = pneg %p671
      // Predicated region
      $region9: #{tpu_custom_call.1} parent=5 // pred_check
        _
      $region10: #{tpu_custom_call.1} parent=5 // pred_check_branch
        %674 = sbr.rel (%p671) target = $region12
      $region11: #{tpu_custom_call.1} parent=5 // pred_region
        %s675 = ssub.s32 %s37, 1
        // Predicated region
        $region13: #{tpu_custom_call.1} parent=11 // pred_check
          %p676 = pneg %p110
        $region14: #{tpu_custom_call.1} parent=11 // pred_check_branch
          %678 = sbr.rel (%p676) target = $region16
        $region15: #{tpu_custom_call.1} parent=11 // pred_region
          _
        $region16: #{tpu_custom_call.1} parent=11 // pred_fallthru
          _
        // Predicated region
        $region17: #{tpu_custom_call.1} parent=11 // pred_check
          %p679 = pneg %p131
        $region18: #{tpu_custom_call.1} parent=11 // pred_check_branch
          %681 = sbr.rel (%p679) target = $region20
        $region19: #{tpu_custom_call.1} parent=11 // pred_region
          _
        $region20: #{tpu_custom_call.1} parent=11 // pred_fallthru
          _
        // Predicated region
        $region21: #{tpu_custom_call.1} parent=11 // pred_check
          %p682 = pneg %p152
        $region22: #{tpu_custom_call.1} parent=11 // pred_check_branch
          %684 = sbr.rel (%p682) target = $region24
        $region23: #{tpu_custom_call.1} parent=11 // pred_region
          _
        $region24: #{tpu_custom_call.1} parent=11 // pred_fallthru
          _
        // Predicated region
        $region25: #{tpu_custom_call.1} parent=11 // pred_check
          %p685 = pneg %p173
        $region26: #{tpu_custom_call.1} parent=11 // pred_check_branch
          %687 = sbr.rel (%p685) target = $region28
        $region27: #{tpu_custom_call.1} parent=11 // pred_region
          _
        $region28: #{tpu_custom_call.1} parent=11 // pred_fallthru
          _
        // Predicated region
        $region29: #{tpu_custom_call.1} parent=11 // pred_check
          %p688 = pneg %p194
        $region30: #{tpu_custom_call.1} parent=11 // pred_check_branch
          %690 = sbr.rel (%p688) target = $region32
        $region31: #{tpu_custom_call.1} parent=11 // pred_region
          _
        $region32: #{tpu_custom_call.1} parent=11 // pred_fallthru
          _
        // Predicated region
        $region33: #{tpu_custom_call.1} parent=11 // pred_check
          %p691 = pneg %p215
        $region34: #{tpu_custom_call.1} parent=11 // pred_check_branch
          %693 = sbr.rel (%p691) target = $region36
        $region35: #{tpu_custom_call.1} parent=11 // pred_region
          _
        $region36: #{tpu_custom_call.1} parent=11 // pred_fallthru
          _
        // Predicated region
        $region37: #{tpu_custom_call.1} parent=11 // pred_check
          %p694 = pneg %p236
        $region38: #{tpu_custom_call.1} parent=11 // pred_check_branch
          %696 = sbr.rel (%p694) target = $region40
        $region39: #{tpu_custom_call.1} parent=11 // pred_region
          _
        $region40: #{tpu_custom_call.1} parent=11 // pred_fallthru
          _
        // Predicated region
        $region41: #{tpu_custom_call.1} parent=11 // pred_check
          %p697 = pneg %p257
        $region42: #{tpu_custom_call.1} parent=11 // pred_check_branch
          %699 = sbr.rel (%p697) target = $region44
        $region43: #{tpu_custom_call.1} parent=11 // pred_region
          _
        $region44: #{tpu_custom_call.1} parent=11 // pred_fallthru
          _
        // Predicated region
        $region45: #{tpu_custom_call.1} parent=11 // pred_check
          %p700 = pneg %p278
        $region46: #{tpu_custom_call.1} parent=11 // pred_check_branch
          %702 = sbr.rel (%p700) target = $region48
        $region47: #{tpu_custom_call.1} parent=11 // pred_region
          _
        $region48: #{tpu_custom_call.1} parent=11 // pred_fallthru
          _
        // Predicated region
        $region49: #{tpu_custom_call.1} parent=11 // pred_check
          %p703 = pneg %p299
        $region50: #{tpu_custom_call.1} parent=11 // pred_check_branch
          %705 = sbr.rel (%p703) target = $region52
        $region51: #{tpu_custom_call.1} parent=11 // pred_region
          _
        $region52: #{tpu_custom_call.1} parent=11 // pred_fallthru
          _
        // Predicated region
        $region53: #{tpu_custom_call.1} parent=11 // pred_check
          %p706 = pneg %p320
        $region54: #{tpu_custom_call.1} parent=11 // pred_check_branch
          %708 = sbr.rel (%p706) target = $region56
        $region55: #{tpu_custom_call.1} parent=11 // pred_region
          _
        $region56: #{tpu_custom_call.1} parent=11 // pred_fallthru
          _
        // Predicated region
        $region57: #{tpu_custom_call.1} parent=11 // pred_check
          %p709 = pneg %p341
        $region58: #{tpu_custom_call.1} parent=11 // pred_check_branch
          %711 = sbr.rel (%p709) target = $region60
        $region59: #{tpu_custom_call.1} parent=11 // pred_region
          _
        $region60: #{tpu_custom_call.1} parent=11 // pred_fallthru
          _
        // Predicated region
        $region61: #{tpu_custom_call.1} parent=11 // pred_check
          %p712 = pneg %p362
        $region62: #{tpu_custom_call.1} parent=11 // pred_check_branch
          %714 = sbr.rel (%p712) target = $region64
        $region63: #{tpu_custom_call.1} parent=11 // pred_region
          _
        $region64: #{tpu_custom_call.1} parent=11 // pred_fallthru
          _
        // Predicated region
        $region65: #{tpu_custom_call.1} parent=11 // pred_check
          %p715 = pneg %p383
        $region66: #{tpu_custom_call.1} parent=11 // pred_check_branch
          %717 = sbr.rel (%p715) target = $region68
        $region67: #{tpu_custom_call.1} parent=11 // pred_region
          _
        $region68: #{tpu_custom_call.1} parent=11 // pred_fallthru
          _
        // Predicated region
        $region69: #{tpu_custom_call.1} parent=11 // pred_check
          %p718 = pneg %p404
        $region70: #{tpu_custom_call.1} parent=11 // pred_check_branch
          %720 = sbr.rel (%p718) target = $region72
        $region71: #{tpu_custom_call.1} parent=11 // pred_region
          _
        $region72: #{tpu_custom_call.1} parent=11 // pred_fallthru
          _
        // Predicated region
        $region73: #{tpu_custom_call.1} parent=11 // pred_check
          %p721 = pneg %p425
        $region74: #{tpu_custom_call.1} parent=11 // pred_check_branch
          %723 = sbr.rel (%p721) target = $region76
        $region75: #{tpu_custom_call.1} parent=11 // pred_region
          _
        $region76: #{tpu_custom_call.1} parent=11 // pred_fallthru
          _
        // Predicated region
        $region77: #{tpu_custom_call.1} parent=11 // pred_check
          %p724 = pneg %p446
        $region78: #{tpu_custom_call.1} parent=11 // pred_check_branch
          %726 = sbr.rel (%p724) target = $region80
        $region79: #{tpu_custom_call.1} parent=11 // pred_region
          _
        $region80: #{tpu_custom_call.1} parent=11 // pred_fallthru
          _
        // Predicated region
        $region81: #{tpu_custom_call.1} parent=11 // pred_check
          %p727 = pneg %p467
        $region82: #{tpu_custom_call.1} parent=11 // pred_check_branch
          %729 = sbr.rel (%p727) target = $region84
        $region83: #{tpu_custom_call.1} parent=11 // pred_region
          _
        $region84: #{tpu_custom_call.1} parent=11 // pred_fallthru
          _
        // Predicated region
        $region85: #{tpu_custom_call.1} parent=11 // pred_check
          %p730 = pneg %p488
        $region86: #{tpu_custom_call.1} parent=11 // pred_check_branch
          %732 = sbr.rel (%p730) target = $region88
        $region87: #{tpu_custom_call.1} parent=11 // pred_region
          _
        $region88: #{tpu_custom_call.1} parent=11 // pred_fallthru
          _
        // Predicated region
        $region89: #{tpu_custom_call.1} parent=11 // pred_check
          %p733 = pneg %p509
        $region90: #{tpu_custom_call.1} parent=11 // pred_check_branch
          %735 = sbr.rel (%p733) target = $region92
        $region91: #{tpu_custom_call.1} parent=11 // pred_region
          _
        $region92: #{tpu_custom_call.1} parent=11 // pred_fallthru
          _
        // Predicated region
        $region93: #{tpu_custom_call.1} parent=11 // pred_check
          %p736 = pneg %p530
        $region94: #{tpu_custom_call.1} parent=11 // pred_check_branch
          %738 = sbr.rel (%p736) target = $region96
        $region95: #{tpu_custom_call.1} parent=11 // pred_region
          _
        $region96: #{tpu_custom_call.1} parent=11 // pred_fallthru
          _
        // Predicated region
        $region97: #{tpu_custom_call.1} parent=11 // pred_check
          %p739 = pneg %p551
        $region98: #{tpu_custom_call.1} parent=11 // pred_check_branch
          %741 = sbr.rel (%p739) target = $region100
        $region99: #{tpu_custom_call.1} parent=11 // pred_region
          _
        $region100: #{tpu_custom_call.1} parent=11 // pred_fallthru
          _
        // Predicated region
        $region101: #{tpu_custom_call.1} parent=11 // pred_check
          %p742 = pneg %p572
        $region102: #{tpu_custom_call.1} parent=11 // pred_check_branch
          %744 = sbr.rel (%p742) target = $region104
        $region103: #{tpu_custom_call.1} parent=11 // pred_region
          _
        $region104: #{tpu_custom_call.1} parent=11 // pred_fallthru
          _
        // Predicated region
        $region105: #{tpu_custom_call.1} parent=11 // pred_check
          %p745 = pneg %p593
        $region106: #{tpu_custom_call.1} parent=11 // pred_check_branch
          %747 = sbr.rel (%p745) target = $region108
        $region107: #{tpu_custom_call.1} parent=11 // pred_region
          _
        $region108: #{tpu_custom_call.1} parent=11 // pred_fallthru
          _
        // Predicated region
        $region109: #{tpu_custom_call.1} parent=11 // pred_check
          %p748 = pneg %p614
        $region110: #{tpu_custom_call.1} parent=11 // pred_check_branch
          %750 = sbr.rel (%p748) target = $region112
        $region111: #{tpu_custom_call.1} parent=11 // pred_region
          _
        $region112: #{tpu_custom_call.1} parent=11 // pred_fallthru
          _
        // Predicated region
        $region113: #{tpu_custom_call.1} parent=11 // pred_check
          %p751 = pneg %p635
        $region114: #{tpu_custom_call.1} parent=11 // pred_check_branch
          %753 = sbr.rel (%p751) target = $region116
        $region115: #{tpu_custom_call.1} parent=11 // pred_region
          _
        $region116: #{tpu_custom_call.1} parent=11 // pred_fallthru
          _
      $region12: #{tpu_custom_call.1} parent=5 // pred_fallthru
        _
      %p754 = scmp.lt.s32.totalorder %s37, 2
      // Predicated region
      $region117: #{tpu_custom_call.1} parent=5 // pred_check
        %p755 = pneg %p754
      $region118: #{tpu_custom_call.1} parent=5 // pred_check_branch
        %757 = sbr.rel (%p755) target = $region120
      $region119: #{tpu_custom_call.1} parent=5 // pred_region
        // Predicated region
        $region121: #{tpu_custom_call.1} parent=119 // pred_check
          %p758 = pneg %p57
        $region122: #{tpu_custom_call.1} parent=119 // pred_check_branch
          %760 = sbr.rel (%p758) target = $region124
        $region123: #{tpu_custom_call.1} parent=119 // pred_region
          %s761 = smul.u32 2, %s37
          %p762 = scmp.lt.s32.totalorder %s761, 3
          %s763 = scalar_select %p762, %s761, 3
          %s764 = smul.addr %s763, 8
          %s765 = scalar_lea.vmem %s0, %s764
          %s766 = smul.u32 2, %s37
        $region124: #{tpu_custom_call.1} parent=119 // pred_fallthru
          _
        // Predicated region
        $region125: #{tpu_custom_call.1} parent=119 // pred_check
          %p767 = pneg %p83
        $region126: #{tpu_custom_call.1} parent=119 // pred_check_branch
          %769 = sbr.rel (%p767) target = $region128
        $region127: #{tpu_custom_call.1} parent=119 // pred_region
          %s770 = smul.u32 4, %s37
          %p771 = scmp.lt.s32.totalorder %s770, 7
          %s772 = scalar_select %p771, %s770, 7
          %s773 = smul.addr %s772, 8
          %s774 = scalar_lea.vmem %s1, %s773
          %s775 = smul.u32 4, %s37
        $region128: #{tpu_custom_call.1} parent=119 // pred_fallthru
          _
      $region120: #{tpu_custom_call.1} parent=5 // pred_fallthru
        _
      %p776 = scmp.le.s32.totalorder 1, %s37
      %p777 = scmp.lt.s32.totalorder %s37, 3
      %p778 = pnand %p776, %p777
      %p779 = pneg %p778
      // Predicated region
      $region129: #{tpu_custom_call.1} parent=5 // pred_check
        _
      $region130: #{tpu_custom_call.1} parent=5 // pred_check_branch
        %781 = sbr.rel (%p778) target = $region132
      $region131: #{tpu_custom_call.1} parent=5 // pred_region
        %s782 = ssub.s32 %s37, 1
        %s783 = smul.u32 2, %s42
        %p784 = scmp.lt.s32.totalorder %s783, 3
        %s785 = scalar_select %p784, %s783, 3
        %s786 = smul.addr %s785, 8
        %s787 = scalar_lea.vmem %s0, %s786
        %p788 = pneg %p63
        %p789 = pneg %p60
        %s790 = smul.u32 4, %s42
        %p791 = scmp.lt.s32.totalorder %s790, 7
        %s792 = scalar_select %p791, %s790, 7
        %s793 = smul.addr %s792, 8
        %s794 = scalar_lea.vmem %s1, %s793
        %p795 = pneg %p89
        %p796 = pneg %p86
        %p797 = pneg %p110
        %p798 = pneg %p107
        %p799 = pneg %p131
        %p800 = pneg %p128
        %p801 = pneg %p152
        %p802 = pneg %p149
        %p803 = pneg %p173
        %p804 = pneg %p170
        %p805 = pneg %p194
        %p806 = pneg %p191
        %p807 = pneg %p215
        %p808 = pneg %p212
        %p809 = pneg %p236
        %p810 = pneg %p233
        %p811 = pneg %p257
        %p812 = pneg %p254
        %p813 = pneg %p278
        %p814 = pneg %p275
        %p815 = pneg %p299
        %p816 = pneg %p296
        %p817 = pneg %p320
        %p818 = pneg %p317
        %p819 = pneg %p341
        %p820 = pneg %p338
        %p821 = pneg %p362
        %p822 = pneg %p359
        %p823 = pneg %p383
        %p824 = pneg %p380
        %p825 = pneg %p404
        %p826 = pneg %p401
        %p827 = pneg %p425
        %p828 = pneg %p422
        %p829 = pneg %p446
        %p830 = pneg %p443
        %p831 = pneg %p467
        %p832 = pneg %p464
        %p833 = pneg %p488
        %p834 = pneg %p485
        %p835 = pneg %p509
        %p836 = pneg %p506
        %p837 = pneg %p530
        %p838 = pneg %p527
        %p839 = pneg %p551
        %p840 = pneg %p548
        %p841 = pneg %p572
        %p842 = pneg %p569
        %p843 = pneg %p593
        %p844 = pneg %p590
        %p845 = pneg %p614
        %p846 = pneg %p611
        %p847 = pneg %p635
        %p848 = pneg %p632
        %p849 = pneg %p661
        %p850 = pneg %p658
        %s851 = sand.u32 %s648, 1
        %s852 = scalar_lea.sflag [#allocation3], %s851
        %s853 = sand.u32 %s648, 1
        %s854 = smul.addr %s853, 16
        %s855 = scalar_lea.vmem [#allocation2], %s854
        %s856 = smul.u32 2, %s42
        %p857 = scmp.lt.s32.totalorder %s856, 3
        %s858 = scalar_select %p857, %s856, 3
        %s859 = smul.addr %s858, 8
        %s860 = scalar_lea.vmem %s0, %s859
        %s861 = smul.u32 2, %s42
        %s862 = smul.u32 4, %s42
        %p863 = scmp.lt.s32.totalorder %s862, 7
        %s864 = scalar_select %p863, %s862, 7
        %s865 = smul.addr %s864, 8
        %s866 = scalar_lea.vmem %s1, %s865
        %s867 = smul.u32 4, %s42
        %s868 = smul.u32 2, %s42
        %v869 = vld [vmem:[%s860] sm:$0xff]
        %v870 = vld [vmem:[%s860 + $0x8] sm:$0xff]
        %v871 = vld [vmem:[%s866] sm:$0xff]
        %v872 = vld [vmem:[%s866 + $0x8] sm:$0xff]
        %v873 = vld [vmem:[%s866 + $0x10] sm:$0xff]
        %v874 = vld [vmem:[%s866 + $0x18] sm:$0xff]
        %v875 = vld [vmem:[%s2] sm:$0xff]
        %v876 = vld [vmem:[%s2 + $0x8] sm:$0xff]
        %v877 = vld [vmem:[%s4] sm:$0xff]
        %v878 = vld [vmem:[%s4 + $0x8] sm:$0xff]
        %v879 = vld [vmem:[%s4 + $0x10] sm:$0xff]
        %v880 = vld [vmem:[%s4 + $0x18] sm:$0xff]
        %v881 = vld [vmem:[%s4 + $0x20] sm:$0xff]
        %v882 = vld [vmem:[%s4 + $0x28] sm:$0xff]
        %v883 = vld [vmem:[%s4 + $0x30] sm:$0xff]
        %v884 = vld [vmem:[%s4 + $0x38] sm:$0xff]
        %v885 = vld [vmem:[%s4 + $0x40] sm:$0xff]
        %v886 = vld [vmem:[%s4 + $0x48] sm:$0xff]
        %v887 = vld [vmem:[%s4 + $0x50] sm:$0xff]
        %v888 = vld [vmem:[%s4 + $0x58] sm:$0xff]
        %v889 = vld [vmem:[%s4 + $0x60] sm:$0xff]
        %v890 = vld [vmem:[%s4 + $0x68] sm:$0xff]
        %v891 = vld [vmem:[%s4 + $0x70] sm:$0xff]
        %v892 = vld [vmem:[%s4 + $0x78] sm:$0xff]
        %v893 = vld [vmem:[%s7] sm:$0x1]
        %v895 = vlaneseq
        %v896 = vshrl.u32 %v895, 7
        %v897 = vsub.s32 0, %v896
        %v898 = vrot.slane %v893, %v897
        %900 = vmatprep.subr.mxu0 0.0
        %901 = vmatpush1.msra.mxu0 %v877
        %902 = vmatprep.subr.mxu0 0.0
        %903 = vmatpush1.msra.mxu0 %v878
        %904 = vmatprep.subr.mxu0 0.0
        %905 = vmatpush1.msra.mxu0 %v879
        %906 = vmatprep.subr.mxu0 0.0
        %907 = vmatpush1.msra.mxu0 %v880
        %908 = vmatprep.subr.mxu0 0.0
        %909 = vmatpush1.msra.mxu0 %v881
        %910 = vmatprep.subr.mxu0 0.0
        %911 = vmatpush1.msra.mxu0 %v882
        %912 = vmatprep.subr.mxu0 0.0
        %913 = vmatpush1.msra.mxu0 %v883
        %914 = vmatprep.subr.mxu0 0.0
        %915 = vmatpush1.msra.mxu0 %v884
        %916 = vmatprep.subr.mxu0 0.0
        %917 = vmatpush1.msra.mxu0 %v885
        %918 = vmatprep.subr.mxu0 0.0
        %919 = vmatpush1.msra.mxu0 %v886
        %920 = vmatprep.subr.mxu0 0.0
        %921 = vmatpush1.msra.mxu0 %v887
        %922 = vmatprep.subr.mxu0 0.0
        %923 = vmatpush1.msra.mxu0 %v888
        %924 = vmatprep.subr.mxu0 0.0
        %925 = vmatpush1.msra.mxu0 %v889
        %926 = vmatprep.subr.mxu0 0.0
        %927 = vmatpush1.msra.mxu0 %v890
        %928 = vmatprep.subr.mxu0 0.0
        %929 = vmatpush1.msra.mxu0 %v891
        %930 = vmatprep.subr.mxu0 0.0
        %931 = vmatpush1.msra.mxu0 %v892
        %932 = vmatprep.subr.mxu0 0.0
        %933 = vmatpush1.msra.mxu0 0.0
        %934 = vmatprep.subr.mxu0 0.0
        %935 = vmatpush1.msra.mxu0 0.0
        %936 = vmatprep.subr.mxu0 0.0
        %937 = vmatpush1.msra.mxu0 0.0
        %938 = vmatprep.subr.mxu0 0.0
        %939 = vmatpush1.msra.mxu0 0.0
        %940 = vmatprep.subr.mxu0 0.0
        %941 = vmatpush1.msra.mxu0 0.0
        %942 = vmatprep.subr.mxu0 0.0
        %943 = vmatpush1.msra.mxu0 0.0
        %944 = vmatprep.subr.mxu0 0.0
        %945 = vmatpush1.msra.mxu0 0.0
        %946 = vmatprep.subr.mxu0 0.0
        %947 = vmatpush1.msra.mxu0 0.0
        %948 = vmatprep.subr.mxu0 0.0
        %949 = vmatpush1.msra.mxu0 0.0
        %950 = vmatprep.subr.mxu0 0.0
        %951 = vmatpush1.msra.mxu0 0.0
        %952 = vmatprep.subr.mxu0 0.0
        %953 = vmatpush1.msra.mxu0 0.0
        %954 = vmatprep.subr.mxu0 0.0
        %955 = vmatpush1.msra.mxu0 0.0
        %956 = vmatprep.subr.mxu0 0.0
        %957 = vmatpush1.msra.mxu0 0.0
        %958 = vmatprep.subr.mxu0 0.0
        %959 = vmatpush1.msra.mxu0 0.0
        %960 = vmatprep.subr.mxu0 0.0
        %961 = vmatpush1.msra.mxu0 0.0
        %962 = vmatprep.subr.mxu0 0.0
        %963 = vmatpush1.msra.mxu0 0.0
        %964 = vmatprep.mubr.f32.mxu0 0.0
        %965 = vmatmul.mubr.f32.gmra.mrb[0].mxu0 %v869
        %v966 = vpop.f32.mrb[0].mxu0
        %v967 = vadd.f32 %v898, %v966
        %v968 = vpop.f32.mrb[0].mxu0
        %969 = vmatprep.mubr.f32.mxu0 0.0
        %970 = vmatmul.mubr.f32.gmra.mrb[0].mxu0 %v870
        %v971 = vpop.f32.mrb[0].mxu0
        %v972 = vadd.f32 %v898, %v971
        %v973 = vpop.f32.mrb[0].mxu0
        %974 = vdwg.mxu0
        %v975 = vld [vmem:[%s5] sm:$0xff]
        %v976 = vld [vmem:[%s5 + $0x8] sm:$0xff]
        %v977 = vld [vmem:[%s5 + $0x10] sm:$0xff]
        %v978 = vld [vmem:[%s5 + $0x18] sm:$0xff]
        %v979 = vld [vmem:[%s5 + $0x20] sm:$0xff]
        %v980 = vld [vmem:[%s5 + $0x28] sm:$0xff]
        %v981 = vld [vmem:[%s5 + $0x30] sm:$0xff]
        %v982 = vld [vmem:[%s5 + $0x38] sm:$0xff]
        %v983 = vld [vmem:[%s5 + $0x40] sm:$0xff]
        %v984 = vld [vmem:[%s5 + $0x48] sm:$0xff]
        %v985 = vld [vmem:[%s5 + $0x50] sm:$0xff]
        %v986 = vld [vmem:[%s5 + $0x58] sm:$0xff]
        %v987 = vld [vmem:[%s5 + $0x60] sm:$0xff]
        %v988 = vld [vmem:[%s5 + $0x68] sm:$0xff]
        %v989 = vld [vmem:[%s5 + $0x70] sm:$0xff]
        %v990 = vld [vmem:[%s5 + $0x78] sm:$0xff]
        %v991 = vld [vmem:[%s8] sm:$0x1]
        %v993 = vlaneseq
        %v994 = vshrl.u32 %v993, 7
        %v995 = vsub.s32 0, %v994
        %v996 = vrot.slane %v991, %v995
        %998 = vmatprep.subr.mxu0 0.0
        %999 = vmatpush1.msra.mxu0 %v975
        %1000 = vmatprep.subr.mxu0 0.0
        %1001 = vmatpush1.msra.mxu0 %v976
        %1002 = vmatprep.subr.mxu0 0.0
        %1003 = vmatpush1.msra.mxu0 %v977
        %1004 = vmatprep.subr.mxu0 0.0
        %1005 = vmatpush1.msra.mxu0 %v978
        %1006 = vmatprep.subr.mxu0 0.0
        %1007 = vmatpush1.msra.mxu0 %v979
        %1008 = vmatprep.subr.mxu0 0.0
        %1009 = vmatpush1.msra.mxu0 %v980
        %1010 = vmatprep.subr.mxu0 0.0
        %1011 = vmatpush1.msra.mxu0 %v981
        %1012 = vmatprep.subr.mxu0 0.0
        %1013 = vmatpush1.msra.mxu0 %v982
        %1014 = vmatprep.subr.mxu0 0.0
        %1015 = vmatpush1.msra.mxu0 %v983
        %1016 = vmatprep.subr.mxu0 0.0
        %1017 = vmatpush1.msra.mxu0 %v984
        %1018 = vmatprep.subr.mxu0 0.0
        %1019 = vmatpush1.msra.mxu0 %v985
        %1020 = vmatprep.subr.mxu0 0.0
        %1021 = vmatpush1.msra.mxu0 %v986
        %1022 = vmatprep.subr.mxu0 0.0
        %1023 = vmatpush1.msra.mxu0 %v987
        %1024 = vmatprep.subr.mxu0 0.0
        %1025 = vmatpush1.msra.mxu0 %v988
        %1026 = vmatprep.subr.mxu0 0.0
        %1027 = vmatpush1.msra.mxu0 %v989
        %1028 = vmatprep.subr.mxu0 0.0
        %1029 = vmatpush1.msra.mxu0 %v990
        %1030 = vmatprep.subr.mxu0 0.0
        %1031 = vmatpush1.msra.mxu0 0.0
        %1032 = vmatprep.subr.mxu0 0.0
        %1033 = vmatpush1.msra.mxu0 0.0
        %1034 = vmatprep.subr.mxu0 0.0
        %1035 = vmatpush1.msra.mxu0 0.0
        %1036 = vmatprep.subr.mxu0 0.0
        %1037 = vmatpush1.msra.mxu0 0.0
        %1038 = vmatprep.subr.mxu0 0.0
        %1039 = vmatpush1.msra.mxu0 0.0
        %1040 = vmatprep.subr.mxu0 0.0
        %1041 = vmatpush1.msra.mxu0 0.0
        %1042 = vmatprep.subr.mxu0 0.0
        %1043 = vmatpush1.msra.mxu0 0.0
        %1044 = vmatprep.subr.mxu0 0.0
        %1045 = vmatpush1.msra.mxu0 0.0
        %1046 = vmatprep.subr.mxu0 0.0
        %1047 = vmatpush1.msra.mxu0 0.0
        %1048 = vmatprep.subr.mxu0 0.0
        %1049 = vmatpush1.msra.mxu0 0.0
        %1050 = vmatprep.subr.mxu0 0.0
        %1051 = vmatpush1.msra.mxu0 0.0
        %1052 = vmatprep.subr.mxu0 0.0
        %1053 = vmatpush1.msra.mxu0 0.0
        %1054 = vmatprep.subr.mxu0 0.0
        %1055 = vmatpush1.msra.mxu0 0.0
        %1056 = vmatprep.subr.mxu0 0.0
        %1057 = vmatpush1.msra.mxu0 0.0
        %1058 = vmatprep.subr.mxu0 0.0
        %1059 = vmatpush1.msra.mxu0 0.0
        %1060 = vmatprep.subr.mxu0 0.0
        %1061 = vmatpush1.msra.mxu0 0.0
        %1062 = vmatprep.mubr.f32.mxu0 0.0
        %1063 = vmatmul.mubr.f32.gmra.mrb[0].mxu0 %v869
        %v1064 = vpop.f32.mrb[0].mxu0
        %v1065 = vadd.f32 %v996, %v1064
        %v1066 = vpop.f32.mrb[0].mxu0
        %1067 = vmatprep.mubr.f32.mxu0 0.0
        %1068 = vmatmul.mubr.f32.gmra.mrb[0].mxu0 %v870
        %v1069 = vpop.f32.mrb[0].mxu0
        %v1070 = vadd.f32 %v996, %v1069
        %v1071 = vpop.f32.mrb[0].mxu0
        %1072 = vdwg.mxu0
        %v1073 = vld [vmem:[%s6] sm:$0xff]
        %v1074 = vld [vmem:[%s6 + $0x8] sm:$0xff]
        %v1075 = vld [vmem:[%s6 + $0x10] sm:$0xff]
        %v1076 = vld [vmem:[%s6 + $0x18] sm:$0xff]
        %v1077 = vld [vmem:[%s6 + $0x20] sm:$0xff]
        %v1078 = vld [vmem:[%s6 + $0x28] sm:$0xff]
        %v1079 = vld [vmem:[%s6 + $0x30] sm:$0xff]
        %v1080 = vld [vmem:[%s6 + $0x38] sm:$0xff]
        %v1081 = vld [vmem:[%s6 + $0x40] sm:$0xff]
        %v1082 = vld [vmem:[%s6 + $0x48] sm:$0xff]
        %v1083 = vld [vmem:[%s6 + $0x50] sm:$0xff]
        %v1084 = vld [vmem:[%s6 + $0x58] sm:$0xff]
        %v1085 = vld [vmem:[%s6 + $0x60] sm:$0xff]
        %v1086 = vld [vmem:[%s6 + $0x68] sm:$0xff]
        %v1087 = vld [vmem:[%s6 + $0x70] sm:$0xff]
        %v1088 = vld [vmem:[%s6 + $0x78] sm:$0xff]
        %v1089 = vld [vmem:[%s9] sm:$0x1]
        %v1091 = vlaneseq
        %v1092 = vshrl.u32 %v1091, 7
        %v1093 = vsub.s32 0, %v1092
        %v1094 = vrot.slane %v1089, %v1093
        %1096 = vmatprep.subr.mxu0 0.0
        %1097 = vmatpush1.msra.mxu0 %v1073
        %1098 = vmatprep.subr.mxu0 0.0
        %1099 = vmatpush1.msra.mxu0 %v1074
        %1100 = vmatprep.subr.mxu0 0.0
        %1101 = vmatpush1.msra.mxu0 %v1075
        %1102 = vmatprep.subr.mxu0 0.0
        %1103 = vmatpush1.msra.mxu0 %v1076
        %1104 = vmatprep.subr.mxu0 0.0
        %1105 = vmatpush1.msra.mxu0 %v1077
        %1106 = vmatprep.subr.mxu0 0.0
        %1107 = vmatpush1.msra.mxu0 %v1078
        %1108 = vmatprep.subr.mxu0 0.0
        %1109 = vmatpush1.msra.mxu0 %v1079
        %1110 = vmatprep.subr.mxu0 0.0
        %1111 = vmatpush1.msra.mxu0 %v1080
        %1112 = vmatprep.subr.mxu0 0.0
        %1113 = vmatpush1.msra.mxu0 %v1081
        %1114 = vmatprep.subr.mxu0 0.0
        %1115 = vmatpush1.msra.mxu0 %v1082
        %1116 = vmatprep.subr.mxu0 0.0
        %1117 = vmatpush1.msra.mxu0 %v1083
        %1118 = vmatprep.subr.mxu0 0.0
        %1119 = vmatpush1.msra.mxu0 %v1084
        %1120 = vmatprep.subr.mxu0 0.0
        %1121 = vmatpush1.msra.mxu0 %v1085
        %1122 = vmatprep.subr.mxu0 0.0
        %1123 = vmatpush1.msra.mxu0 %v1086
        %1124 = vmatprep.subr.mxu0 0.0
        %1125 = vmatpush1.msra.mxu0 %v1087
        %1126 = vmatprep.subr.mxu0 0.0
        %1127 = vmatpush1.msra.mxu0 %v1088
        %1128 = vmatprep.subr.mxu0 0.0
        %1129 = vmatpush1.msra.mxu0 0.0
        %1130 = vmatprep.subr.mxu0 0.0
        %1131 = vmatpush1.msra.mxu0 0.0
        %1132 = vmatprep.subr.mxu0 0.0
        %1133 = vmatpush1.msra.mxu0 0.0
        %1134 = vmatprep.subr.mxu0 0.0
        %1135 = vmatpush1.msra.mxu0 0.0
        %1136 = vmatprep.subr.mxu0 0.0
        %1137 = vmatpush1.msra.mxu0 0.0
        %1138 = vmatprep.subr.mxu0 0.0
        %1139 = vmatpush1.msra.mxu0 0.0
        %1140 = vmatprep.subr.mxu0 0.0
        %1141 = vmatpush1.msra.mxu0 0.0
        %1142 = vmatprep.subr.mxu0 0.0
        %1143 = vmatpush1.msra.mxu0 0.0
        %1144 = vmatprep.subr.mxu0 0.0
        %1145 = vmatpush1.msra.mxu0 0.0
        %1146 = vmatprep.subr.mxu0 0.0
        %1147 = vmatpush1.msra.mxu0 0.0
        %1148 = vmatprep.subr.mxu0 0.0
        %1149 = vmatpush1.msra.mxu0 0.0
        %1150 = vmatprep.subr.mxu0 0.0
        %1151 = vmatpush1.msra.mxu0 0.0
        %1152 = vmatprep.subr.mxu0 0.0
        %1153 = vmatpush1.msra.mxu0 0.0
        %1154 = vmatprep.subr.mxu0 0.0
        %1155 = vmatpush1.msra.mxu0 0.0
        %1156 = vmatprep.subr.mxu0 0.0
        %1157 = vmatpush1.msra.mxu0 0.0
        %1158 = vmatprep.subr.mxu0 0.0
        %1159 = vmatpush1.msra.mxu0 0.0
        %1160 = vmatprep.mubr.f32.mxu0 0.0
        %1161 = vmatmul.mubr.f32.gmra.mrb[0].mxu0 %v869
        %v1162 = vpop.f32.mrb[0].mxu0
        %v1163 = vadd.f32 %v1094, %v1162
        %v1164 = vpop.f32.mrb[0].mxu0
        %1165 = vmatprep.mubr.f32.mxu0 0.0
        %1166 = vmatmul.mubr.f32.gmra.mrb[0].mxu0 %v870
        %v1167 = vpop.f32.mrb[0].mxu0
        %v1168 = vadd.f32 %v1094, %v1167
        %v1169 = vpop.f32.mrb[0].mxu0
        %1170 = vdwg.mxu0
        %vm1171 = vcmask 261120
        %v1173 = vsel %vm1171, %v967, 0
        %v1176 = vsel %vm1171, %v972, 0
        %v1179 = vsel %vm1171, %v1065, 0
        %v1182 = vsel %vm1171, %v1070, 0
        %1184 = vmatprep.subr.mxu0 0.0
        %1185 = vmatpush1.xpose.msra.mxu0 %v1179
        %1186 = vmatprep.subr.mxu0 0.0
        %1187 = vmatpush1.xpose.msra.mxu0 %v1182
        %1188 = vmatprep.subr.mxu0 0.0
        %1189 = vmatpush1.xpose.msra.mxu0 0.0
        %1190 = vmatprep.subr.mxu0 0.0
        %1191 = vmatpush1.xpose.msra.mxu0 0.0
        %1192 = vmatprep.subr.mxu0 0.0
        %1193 = vmatpush1.xpose.msra.mxu0 0.0
        %1194 = vmatprep.subr.mxu0 0.0
        %1195 = vmatpush1.xpose.msra.mxu0 0.0
        %1196 = vmatprep.subr.mxu0 0.0
        %1197 = vmatpush1.xpose.msra.mxu0 0.0
        %1198 = vmatprep.subr.mxu0 0.0
        %1199 = vmatpush1.xpose.msra.mxu0 0.0
        %1200 = vmatprep.subr.mxu0 0.0
        %1201 = vmatpush1.xpose.msra.mxu0 0.0
        %1202 = vmatprep.subr.mxu0 0.0
        %1203 = vmatpush1.xpose.msra.mxu0 0.0
        %1204 = vmatprep.subr.mxu0 0.0
        %1205 = vmatpush1.xpose.msra.mxu0 0.0
        %1206 = vmatprep.subr.mxu0 0.0
        %1207 = vmatpush1.xpose.msra.mxu0 0.0
        %1208 = vmatprep.subr.mxu0 0.0
        %1209 = vmatpush1.xpose.msra.mxu0 0.0
        %1210 = vmatprep.subr.mxu0 0.0
        %1211 = vmatpush1.xpose.msra.mxu0 0.0
        %1212 = vmatprep.subr.mxu0 0.0
        %1213 = vmatpush1.xpose.msra.mxu0 0.0
        %1214 = vmatprep.subr.mxu0 0.0
        %1215 = vmatpush1.xpose.msra.mxu0 0.0
        %1216 = vmatprep.subr.mxu0 0.0
        %1217 = vmatpush1.xpose.msra.mxu0 0.0
        %1218 = vmatprep.subr.mxu0 0.0
        %1219 = vmatpush1.xpose.msra.mxu0 0.0
        %1220 = vmatprep.subr.mxu0 0.0
        %1221 = vmatpush1.xpose.msra.mxu0 0.0
        %1222 = vmatprep.subr.mxu0 0.0
        %1223 = vmatpush1.xpose.msra.mxu0 0.0
        %1224 = vmatprep.subr.mxu0 0.0
        %1225 = vmatpush1.xpose.msra.mxu0 0.0
        %1226 = vmatprep.subr.mxu0 0.0
        %1227 = vmatpush1.xpose.msra.mxu0 0.0
        %1228 = vmatprep.subr.mxu0 0.0
        %1229 = vmatpush1.xpose.msra.mxu0 0.0
        %1230 = vmatprep.subr.mxu0 0.0
        %1231 = vmatpush1.xpose.msra.mxu0 0.0
        %1232 = vmatprep.subr.mxu0 0.0
        %1233 = vmatpush1.xpose.msra.mxu0 0.0
        %1234 = vmatprep.subr.mxu0 0.0
        %1235 = vmatpush1.xpose.msra.mxu0 0.0
        %1236 = vmatprep.subr.mxu0 0.0
        %1237 = vmatpush1.xpose.msra.mxu0 0.0
        %1238 = vmatprep.subr.mxu0 0.0
        %1239 = vmatpush1.xpose.msra.mxu0 0.0
        %1240 = vmatprep.subr.mxu0 0.0
        %1241 = vmatpush1.xpose.msra.mxu0 0.0
        %1242 = vmatprep.subr.mxu0 0.0
        %1243 = vmatpush1.xpose.msra.mxu0 0.0
        %1244 = vmatprep.subr.mxu0 0.0
        %1245 = vmatpush1.xpose.msra.mxu0 0.0
        %1246 = vmatprep.subr.mxu0 0.0
        %1247 = vmatpush1.xpose.msra.mxu0 0.0
        %1248 = vmatprep.mubr.f32.mxu0 0.0
        %1249 = vmatmul.mubr.f32.gmra.mrb[0].mxu0 %v1173
        %v1250 = vpop.f32.mrb[0].mxu0
        %v1251 = vadd.f32 %v875, %v1250
        %v1252 = vpop.f32.mrb[0].mxu0
        %1253 = vmatprep.mubr.f32.mxu0 0.0
        %1254 = vmatmul.mubr.f32.gmra.mrb[0].mxu0 %v1176
        %v1255 = vpop.f32.mrb[0].mxu0
        %v1256 = vadd.f32 %v876, %v1255
        %v1257 = vpop.f32.mrb[0].mxu0
        %1258 = vdwg.mxu0
        %vm1259 = vcmask 130048
        %v1260 = vsel %vm1259, %v1251, -inf
        %1261 = vmax.xlane.f32.xlu0 %v1260
        %v1262 = vpop.xlane.xlu0 %1261
        %v1263 = vsel %vm1259, %v1256, -inf
        %1264 = vmax.xlane.f32.xlu0 %v1263
        %v1265 = vpop.xlane.xlu0 %1264
        %v1266 = vsub.f32 %v1251, %v1262
        %v1267 = vsub.f32 %v1256, %v1265
        %v1268 = vmul.f32 %v1266, 1.442695
        %v1269 = vpow.pop %v1268
        %v1270 = vmul.f32 %v1267, 1.442695
        %v1271 = vpow.pop %v1270
        %v1272 = vsel %vm1259, %v1269, 0.0
        %1273 = vadd.xlane.f32.xlu0 %v1272
        %v1274 = vpop.xlane.xlu0 %1273
        %v1275 = vsel %vm1259, %v1271, 0.0
        %1276 = vadd.xlane.f32.xlu0 %v1275
        %v1277 = vpop.xlane.xlu0 %1276
        %v1278 = vrcp.pop %v1274
        %v1279 = vmul.f32 %v1269, %v1278
        %v1280 = vrcp.pop %v1277
        %v1281 = vmul.f32 %v1271, %v1280
        %v1283 = vsel %vm1259, %v1279, 0
        %v1286 = vsel %vm1259, %v1281, 0
        %1288 = vmatprep.subr.mxu0 0.0
        %1289 = vmatpush1.msra.mxu0 %v1163
        %1290 = vmatprep.subr.mxu0 0.0
        %1291 = vmatpush1.msra.mxu0 %v1168
        %1292 = vmatprep.subr.mxu0 0.0
        %1293 = vmatpush1.msra.mxu0 0.0
        %1294 = vmatprep.subr.mxu0 0.0
        %1295 = vmatpush1.msra.mxu0 0.0
        %1296 = vmatprep.subr.mxu0 0.0
        %1297 = vmatpush1.msra.mxu0 0.0
        %1298 = vmatprep.subr.mxu0 0.0
        %1299 = vmatpush1.msra.mxu0 0.0
        %1300 = vmatprep.subr.mxu0 0.0
        %1301 = vmatpush1.msra.mxu0 0.0
        %1302 = vmatprep.subr.mxu0 0.0
        %1303 = vmatpush1.msra.mxu0 0.0
        %1304 = vmatprep.subr.mxu0 0.0
        %1305 = vmatpush1.msra.mxu0 0.0
        %1306 = vmatprep.subr.mxu0 0.0
        %1307 = vmatpush1.msra.mxu0 0.0
        %1308 = vmatprep.subr.mxu0 0.0
        %1309 = vmatpush1.msra.mxu0 0.0
        %1310 = vmatprep.subr.mxu0 0.0
        %1311 = vmatpush1.msra.mxu0 0.0
        %1312 = vmatprep.subr.mxu0 0.0
        %1313 = vmatpush1.msra.mxu0 0.0
        %1314 = vmatprep.subr.mxu0 0.0
        %1315 = vmatpush1.msra.mxu0 0.0
        %1316 = vmatprep.subr.mxu0 0.0
        %1317 = vmatpush1.msra.mxu0 0.0
        %1318 = vmatprep.subr.mxu0 0.0
        %1319 = vmatpush1.msra.mxu0 0.0
        %1320 = vmatprep.subr.mxu0 0.0
        %1321 = vmatpush1.msra.mxu0 0.0
        %1322 = vmatprep.subr.mxu0 0.0
        %1323 = vmatpush1.msra.mxu0 0.0
        %1324 = vmatprep.subr.mxu0 0.0
        %1325 = vmatpush1.msra.mxu0 0.0
        %1326 = vmatprep.subr.mxu0 0.0
        %1327 = vmatpush1.msra.mxu0 0.0
        %1328 = vmatprep.subr.mxu0 0.0
        %1329 = vmatpush1.msra.mxu0 0.0
        %1330 = vmatprep.subr.mxu0 0.0
        %1331 = vmatpush1.msra.mxu0 0.0
        %1332 = vmatprep.subr.mxu0 0.0
        %1333 = vmatpush1.msra.mxu0 0.0
        %1334 = vmatprep.subr.mxu0 0.0
        %1335 = vmatpush1.msra.mxu0 0.0
        %1336 = vmatprep.subr.mxu0 0.0
        %1337 = vmatpush1.msra.mxu0 0.0
        %1338 = vmatprep.subr.mxu0 0.0
        %1339 = vmatpush1.msra.mxu0 0.0
        %1340 = vmatprep.subr.mxu0 0.0
        %1341 = vmatpush1.msra.mxu0 0.0
        %1342 = vmatprep.subr.mxu0 0.0
        %1343 = vmatpush1.msra.mxu0 0.0
        %1344 = vmatprep.subr.mxu0 0.0
        %1345 = vmatpush1.msra.mxu0 0.0
        %1346 = vmatprep.subr.mxu0 0.0
        %1347 = vmatpush1.msra.mxu0 0.0
        %1348 = vmatprep.subr.mxu0 0.0
        %1349 = vmatpush1.msra.mxu0 0.0
        %1350 = vmatprep.subr.mxu0 0.0
        %1351 = vmatpush1.msra.mxu0 0.0
        %1352 = vmatprep.mubr.f32.mxu0 0.0
        %1353 = vmatmul.mubr.f32.gmra.mrb[0].mxu0 %v1283
        %v1354 = vpop.f32.mrb[0].mxu0
        %v1355 = vadd.f32 0.0, %v1354
        %v1356 = vpop.f32.mrb[0].mxu0
        %1357 = vmatprep.mubr.f32.mxu0 0.0
        %1358 = vmatmul.mubr.f32.gmra.mrb[0].mxu0 %v1286
        %v1359 = vpop.f32.mrb[0].mxu0
        %v1360 = vadd.f32 0.0, %v1359
        %v1361 = vpop.f32.mrb[0].mxu0
        %1362 = vdwg.mxu0
        %v1363 = vld [vmem:[%s10] sm:$0xff]
        %v1364 = vld [vmem:[%s10 + $0x8] sm:$0xff]
        %v1365 = vld [vmem:[%s10 + $0x10] sm:$0xff]
        %v1366 = vld [vmem:[%s10 + $0x18] sm:$0xff]
        %s1367 = scalar_lea.vmem %s4, 128
        %v1368 = vld [vmem:[%s1367] sm:$0xff]
        %v1369 = vld [vmem:[%s1367 + $0x8] sm:$0xff]
        %v1370 = vld [vmem:[%s1367 + $0x10] sm:$0xff]
        %v1371 = vld [vmem:[%s1367 + $0x18] sm:$0xff]
        %v1372 = vld [vmem:[%s1367 + $0x20] sm:$0xff]
        %v1373 = vld [vmem:[%s1367 + $0x28] sm:$0xff]
        %v1374 = vld [vmem:[%s1367 + $0x30] sm:$0xff]
        %v1375 = vld [vmem:[%s1367 + $0x38] sm:$0xff]
        %v1376 = vld [vmem:[%s1367 + $0x40] sm:$0xff]
        %v1377 = vld [vmem:[%s1367 + $0x48] sm:$0xff]
        %v1378 = vld [vmem:[%s1367 + $0x50] sm:$0xff]
        %v1379 = vld [vmem:[%s1367 + $0x58] sm:$0xff]
        %v1380 = vld [vmem:[%s1367 + $0x60] sm:$0xff]
        %v1381 = vld [vmem:[%s1367 + $0x68] sm:$0xff]
        %v1382 = vld [vmem:[%s1367 + $0x70] sm:$0xff]
        %v1383 = vld [vmem:[%s1367 + $0x78] sm:$0xff]
        %s1384 = scalar_lea.vmem %s7, 1
        %v1385 = vld [vmem:[%s1384] sm:$0x1]
        %v1387 = vlaneseq
        %v1388 = vshrl.u32 %v1387, 7
        %v1389 = vsub.s32 0, %v1388
        %v1390 = vrot.slane %v1385, %v1389
        %1392 = vmatprep.subr.mxu0 0.0
        %1393 = vmatpush1.msra.mxu0 %v1368
        %1394 = vmatprep.subr.mxu0 0.0
        %1395 = vmatpush1.msra.mxu0 %v1369
        %1396 = vmatprep.subr.mxu0 0.0
        %1397 = vmatpush1.msra.mxu0 %v1370
        %1398 = vmatprep.subr.mxu0 0.0
        %1399 = vmatpush1.msra.mxu0 %v1371
        %1400 = vmatprep.subr.mxu0 0.0
        %1401 = vmatpush1.msra.mxu0 %v1372
        %1402 = vmatprep.subr.mxu0 0.0
        %1403 = vmatpush1.msra.mxu0 %v1373
        %1404 = vmatprep.subr.mxu0 0.0
        %1405 = vmatpush1.msra.mxu0 %v1374
        %1406 = vmatprep.subr.mxu0 0.0
        %1407 = vmatpush1.msra.mxu0 %v1375
        %1408 = vmatprep.subr.mxu0 0.0
        %1409 = vmatpush1.msra.mxu0 %v1376
        %1410 = vmatprep.subr.mxu0 0.0
        %1411 = vmatpush1.msra.mxu0 %v1377
        %1412 = vmatprep.subr.mxu0 0.0
        %1413 = vmatpush1.msra.mxu0 %v1378
        %1414 = vmatprep.subr.mxu0 0.0
        %1415 = vmatpush1.msra.mxu0 %v1379
        %1416 = vmatprep.subr.mxu0 0.0
        %1417 = vmatpush1.msra.mxu0 %v1380
        %1418 = vmatprep.subr.mxu0 0.0
        %1419 = vmatpush1.msra.mxu0 %v1381
        %1420 = vmatprep.subr.mxu0 0.0
        %1421 = vmatpush1.msra.mxu0 %v1382
        %1422 = vmatprep.subr.mxu0 0.0
        %1423 = vmatpush1.msra.mxu0 %v1383
        %1424 = vmatprep.subr.mxu0 0.0
        %1425 = vmatpush1.msra.mxu0 0.0
        %1426 = vmatprep.subr.mxu0 0.0
        %1427 = vmatpush1.msra.mxu0 0.0
        %1428 = vmatprep.subr.mxu0 0.0
        %1429 = vmatpush1.msra.mxu0 0.0
        %1430 = vmatprep.subr.mxu0 0.0
        %1431 = vmatpush1.msra.mxu0 0.0
        %1432 = vmatprep.subr.mxu0 0.0
        %1433 = vmatpush1.msra.mxu0 0.0
        %1434 = vmatprep.subr.mxu0 0.0
        %1435 = vmatpush1.msra.mxu0 0.0
        %1436 = vmatprep.subr.mxu0 0.0
        %1437 = vmatpush1.msra.mxu0 0.0
        %1438 = vmatprep.subr.mxu0 0.0
        %1439 = vmatpush1.msra.mxu0 0.0
        %1440 = vmatprep.subr.mxu0 0.0
        %1441 = vmatpush1.msra.mxu0 0.0
        %1442 = vmatprep.subr.mxu0 0.0
        %1443 = vmatpush1.msra.mxu0 0.0
        %1444 = vmatprep.subr.mxu0 0.0
        %1445 = vmatpush1.msra.mxu0 0.0
        %1446 = vmatprep.subr.mxu0 0.0
        %1447 = vmatpush1.msra.mxu0 0.0
        %1448 = vmatprep.subr.mxu0 0.0
        %1449 = vmatpush1.msra.mxu0 0.0
        %1450 = vmatprep.subr.mxu0 0.0
        %1451 = vmatpush1.msra.mxu0 0.0
        %1452 = vmatprep.subr.mxu0 0.0
        %1453 = vmatpush1.msra.mxu0 0.0
        %1454 = vmatprep.subr.mxu0 0.0
        %1455 = vmatpush1.msra.mxu0 0.0
        %1456 = vmatprep.mubr.f32.mxu0 0.0
        %1457 = vmatmul.mubr.f32.gmra.mrb[0].mxu0 %v869
        %v1458 = vpop.f32.mrb[0].mxu0
        %v1459 = vadd.f32 %v1390, %v1458
        %v1460 = vpop.f32.mrb[0].mxu0
        %1461 = vmatprep.mubr.f32.mxu0 0.0
        %1462 = vmatmul.mubr.f32.gmra.mrb[0].mxu0 %v870
        %v1463 = vpop.f32.mrb[0].mxu0
        %v1464 = vadd.f32 %v1390, %v1463
        %v1465 = vpop.f32.mrb[0].mxu0
        %1466 = vdwg.mxu0
        %s1467 = scalar_lea.vmem %s5, 128
        %v1468 = vld [vmem:[%s1467] sm:$0xff]
        %v1469 = vld [vmem:[%s1467 + $0x8] sm:$0xff]
        %v1470 = vld [vmem:[%s1467 + $0x10] sm:$0xff]
        %v1471 = vld [vmem:[%s1467 + $0x18] sm:$0xff]
        %v1472 = vld [vmem:[%s1467 + $0x20] sm:$0xff]
        %v1473 = vld [vmem:[%s1467 + $0x28] sm:$0xff]
        %v1474 = vld [vmem:[%s1467 + $0x30] sm:$0xff]
        %v1475 = vld [vmem:[%s1467 + $0x38] sm:$0xff]
        %v1476 = vld [vmem:[%s1467 + $0x40] sm:$0xff]
        %v1477 = vld [vmem:[%s1467 + $0x48] sm:$0xff]
        %v1478 = vld [vmem:[%s1467 + $0x50] sm:$0xff]
        %v1479 = vld [vmem:[%s1467 + $0x58] sm:$0xff]
        %v1480 = vld [vmem:[%s1467 + $0x60] sm:$0xff]
        %v1481 = vld [vmem:[%s1467 + $0x68] sm:$0xff]
        %v1482 = vld [vmem:[%s1467 + $0x70] sm:$0xff]
        %v1483 = vld [vmem:[%s1467 + $0x78] sm:$0xff]
        %s1484 = scalar_lea.vmem %s8, 1
        %v1485 = vld [vmem:[%s1484] sm:$0x1]
        %v1487 = vlaneseq
        %v1488 = vshrl.u32 %v1487, 7
        %v1489 = vsub.s32 0, %v1488
        %v1490 = vrot.slane %v1485, %v1489
        %1492 = vmatprep.subr.mxu0 0.0
        %1493 = vmatpush1.msra.mxu0 %v1468
        %1494 = vmatprep.subr.mxu0 0.0
        %1495 = vmatpush1.msra.mxu0 %v1469
        %1496 = vmatprep.subr.mxu0 0.0
        %1497 = vmatpush1.msra.mxu0 %v1470
        %1498 = vmatprep.subr.mxu0 0.0
        %1499 = vmatpush1.msra.mxu0 %v1471
        %1500 = vmatprep.subr.mxu0 0.0
        %1501 = vmatpush1.msra.mxu0 %v1472
        %1502 = vmatprep.subr.mxu0 0.0
        %1503 = vmatpush1.msra.mxu0 %v1473
        %1504 = vmatprep.subr.mxu0 0.0
        %1505 = vmatpush1.msra.mxu0 %v1474
        %1506 = vmatprep.subr.mxu0 0.0
        %1507 = vmatpush1.msra.mxu0 %v1475
        %1508 = vmatprep.subr.mxu0 0.0
        %1509 = vmatpush1.msra.mxu0 %v1476
        %1510 = vmatprep.subr.mxu0 0.0
        %1511 = vmatpush1.msra.mxu0 %v1477
        %1512 = vmatprep.subr.mxu0 0.0
        %1513 = vmatpush1.msra.mxu0 %v1478
        %1514 = vmatprep.subr.mxu0 0.0
        %1515 = vmatpush1.msra.mxu0 %v1479
        %1516 = vmatprep.subr.mxu0 0.0
        %1517 = vmatpush1.msra.mxu0 %v1480
        %1518 = vmatprep.subr.mxu0 0.0
        %1519 = vmatpush1.msra.mxu0 %v1481
        %1520 = vmatprep.subr.mxu0 0.0
        %1521 = vmatpush1.msra.mxu0 %v1482
        %1522 = vmatprep.subr.mxu0 0.0
        %1523 = vmatpush1.msra.mxu0 %v1483
        %1524 = vmatprep.subr.mxu0 0.0
        %1525 = vmatpush1.msra.mxu0 0.0
        %1526 = vmatprep.subr.mxu0 0.0
        %1527 = vmatpush1.msra.mxu0 0.0
        %1528 = vmatprep.subr.mxu0 0.0
        %1529 = vmatpush1.msra.mxu0 0.0
        %1530 = vmatprep.subr.mxu0 0.0
        %1531 = vmatpush1.msra.mxu0 0.0
        %1532 = vmatprep.subr.mxu0 0.0
        %1533 = vmatpush1.msra.mxu0 0.0
        %1534 = vmatprep.subr.mxu0 0.0
        %1535 = vmatpush1.msra.mxu0 0.0
        %1536 = vmatprep.subr.mxu0 0.0
        %1537 = vmatpush1.msra.mxu0 0.0
        %1538 = vmatprep.subr.mxu0 0.0
        %1539 = vmatpush1.msra.mxu0 0.0
        %1540 = vmatprep.subr.mxu0 0.0
        %1541 = vmatpush1.msra.mxu0 0.0
        %1542 = vmatprep.subr.mxu0 0.0
        %1543 = vmatpush1.msra.mxu0 0.0
        %1544 = vmatprep.subr.mxu0 0.0
        %1545 = vmatpush1.msra.mxu0 0.0
        %1546 = vmatprep.subr.mxu0 0.0
        %1547 = vmatpush1.msra.mxu0 0.0
        %1548 = vmatprep.subr.mxu0 0.0
        %1549 = vmatpush1.msra.mxu0 0.0
        %1550 = vmatprep.subr.mxu0 0.0
        %1551 = vmatpush1.msra.mxu0 0.0
        %1552 = vmatprep.subr.mxu0 0.0
        %1553 = vmatpush1.msra.mxu0 0.0
        %1554 = vmatprep.subr.mxu0 0.0
        %1555 = vmatpush1.msra.mxu0 0.0
        %1556 = vmatprep.mubr.f32.mxu0 0.0
        %1557 = vmatmul.mubr.f32.gmra.mrb[0].mxu0 %v869
        %v1558 = vpop.f32.mrb[0].mxu0
        %v1559 = vadd.f32 %v1490, %v1558
        %v1560 = vpop.f32.mrb[0].mxu0
        %1561 = vmatprep.mubr.f32.mxu0 0.0
        %1562 = vmatmul.mubr.f32.gmra.mrb[0].mxu0 %v870
        %v1563 = vpop.f32.mrb[0].mxu0
        %v1564 = vadd.f32 %v1490, %v1563
        %v1565 = vpop.f32.mrb[0].mxu0
        %1566 = vdwg.mxu0
        %s1567 = scalar_lea.vmem %s6, 128
        %v1568 = vld [vmem:[%s1567] sm:$0xff]
        %v1569 = vld [vmem:[%s1567 + $0x8] sm:$0xff]
        %v1570 = vld [vmem:[%s1567 + $0x10] sm:$0xff]
        %v1571 = vld [vmem:[%s1567 + $0x18] sm:$0xff]
        %v1572 = vld [vmem:[%s1567 + $0x20] sm:$0xff]
        %v1573 = vld [vmem:[%s1567 + $0x28] sm:$0xff]
        %v1574 = vld [vmem:[%s1567 + $0x30] sm:$0xff]
        %v1575 = vld [vmem:[%s1567 + $0x38] sm:$0xff]
        %v1576 = vld [vmem:[%s1567 + $0x40] sm:$0xff]
        %v1577 = vld [vmem:[%s1567 + $0x48] sm:$0xff]
        %v1578 = vld [vmem:[%s1567 + $0x50] sm:$0xff]
        %v1579 = vld [vmem:[%s1567 + $0x58] sm:$0xff]
        %v1580 = vld [vmem:[%s1567 + $0x60] sm:$0xff]
        %v1581 = vld [vmem:[%s1567 + $0x68] sm:$0xff]
        %v1582 = vld [vmem:[%s1567 + $0x70] sm:$0xff]
        %v1583 = vld [vmem:[%s1567 + $0x78] sm:$0xff]
        %s1584 = scalar_lea.vmem %s9, 1
        %v1585 = vld [vmem:[%s1584] sm:$0x1]
        %v1587 = vlaneseq
        %v1588 = vshrl.u32 %v1587, 7
        %v1589 = vsub.s32 0, %v1588
        %v1590 = vrot.slane %v1585, %v1589
        %1592 = vmatprep.subr.mxu0 0.0
        %1593 = vmatpush1.msra.mxu0 %v1568
        %1594 = vmatprep.subr.mxu0 0.0
        %1595 = vmatpush1.msra.mxu0 %v1569
        %1596 = vmatprep.subr.mxu0 0.0
        %1597 = vmatpush1.msra.mxu0 %v1570
        %1598 = vmatprep.subr.mxu0 0.0
        %1599 = vmatpush1.msra.mxu0 %v1571
        %1600 = vmatprep.subr.mxu0 0.0
        %1601 = vmatpush1.msra.mxu0 %v1572
        %1602 = vmatprep.subr.mxu0 0.0
        %1603 = vmatpush1.msra.mxu0 %v1573
        %1604 = vmatprep.subr.mxu0 0.0
        %1605 = vmatpush1.msra.mxu0 %v1574
        %1606 = vmatprep.subr.mxu0 0.0
        %1607 = vmatpush1.msra.mxu0 %v1575
        %1608 = vmatprep.subr.mxu0 0.0
        %1609 = vmatpush1.msra.mxu0 %v1576
        %1610 = vmatprep.subr.mxu0 0.0
        %1611 = vmatpush1.msra.mxu0 %v1577
        %1612 = vmatprep.subr.mxu0 0.0
        %1613 = vmatpush1.msra.mxu0 %v1578
        %1614 = vmatprep.subr.mxu0 0.0
        %1615 = vmatpush1.msra.mxu0 %v1579
        %1616 = vmatprep.subr.mxu0 0.0
        %1617 = vmatpush1.msra.mxu0 %v1580
        %1618 = vmatprep.subr.mxu0 0.0
        %1619 = vmatpush1.msra.mxu0 %v1581
        %1620 = vmatprep.subr.mxu0 0.0
        %1621 = vmatpush1.msra.mxu0 %v1582
        %1622 = vmatprep.subr.mxu0 0.0
        %1623 = vmatpush1.msra.mxu0 %v1583
        %1624 = vmatprep.subr.mxu0 0.0
        %1625 = vmatpush1.msra.mxu0 0.0
        %1626 = vmatprep.subr.mxu0 0.0
        %1627 = vmatpush1.msra.mxu0 0.0
        %1628 = vmatprep.subr.mxu0 0.0
        %1629 = vmatpush1.msra.mxu0 0.0
        %1630 = vmatprep.subr.mxu0 0.0
        %1631 = vmatpush1.msra.mxu0 0.0
        %1632 = vmatprep.subr.mxu0 0.0
        %1633 = vmatpush1.msra.mxu0 0.0
        %1634 = vmatprep.subr.mxu0 0.0
        %1635 = vmatpush1.msra.mxu0 0.0
        %1636 = vmatprep.subr.mxu0 0.0
        %1637 = vmatpush1.msra.mxu0 0.0
        %1638 = vmatprep.subr.mxu0 0.0
        %1639 = vmatpush1.msra.mxu0 0.0
        %1640 = vmatprep.subr.mxu0 0.0
        %1641 = vmatpush1.msra.mxu0 0.0
        %1642 = vmatprep.subr.mxu0 0.0
        %1643 = vmatpush1.msra.mxu0 0.0
        %1644 = vmatprep.subr.mxu0 0.0
        %1645 = vmatpush1.msra.mxu0 0.0
        %1646 = vmatprep.subr.mxu0 0.0
        %1647 = vmatpush1.msra.mxu0 0.0
        %1648 = vmatprep.subr.mxu0 0.0
        %1649 = vmatpush1.msra.mxu0 0.0
        %1650 = vmatprep.subr.mxu0 0.0
        %1651 = vmatpush1.msra.mxu0 0.0
        %1652 = vmatprep.subr.mxu0 0.0
        %1653 = vmatpush1.msra.mxu0 0.0
        %1654 = vmatprep.subr.mxu0 0.0
        %1655 = vmatpush1.msra.mxu0 0.0
        %1656 = vmatprep.mubr.f32.mxu0 0.0
        %1657 = vmatmul.mubr.f32.gmra.mrb[0].mxu0 %v869
        %v1658 = vpop.f32.mrb[0].mxu0
        %v1659 = vadd.f32 %v1590, %v1658
        %v1660 = vpop.f32.mrb[0].mxu0
        %1661 = vmatprep.mubr.f32.mxu0 0.0
        %1662 = vmatmul.mubr.f32.gmra.mrb[0].mxu0 %v870
        %v1663 = vpop.f32.mrb[0].mxu0
        %v1664 = vadd.f32 %v1590, %v1663
        %v1665 = vpop.f32.mrb[0].mxu0
        %1666 = vdwg.mxu0
        %v1668 = vsel %vm1171, %v1459, 0
        %v1671 = vsel %vm1171, %v1464, 0
        %v1674 = vsel %vm1171, %v1559, 0
        %v1677 = vsel %vm1171, %v1564, 0
        %1679 = vmatprep.subr.mxu0 0.0
        %1680 = vmatpush1.xpose.msra.mxu0 %v1674
        %1681 = vmatprep.subr.mxu0 0.0
        %1682 = vmatpush1.xpose.msra.mxu0 %v1677
        %1683 = vmatprep.subr.mxu0 0.0
        %1684 = vmatpush1.xpose.msra.mxu0 0.0
        %1685 = vmatprep.subr.mxu0 0.0
        %1686 = vmatpush1.xpose.msra.mxu0 0.0
        %1687 = vmatprep.subr.mxu0 0.0
        %1688 = vmatpush1.xpose.msra.mxu0 0.0
        %1689 = vmatprep.subr.mxu0 0.0
        %1690 = vmatpush1.xpose.msra.mxu0 0.0
        %1691 = vmatprep.subr.mxu0 0.0
        %1692 = vmatpush1.xpose.msra.mxu0 0.0
        %1693 = vmatprep.subr.mxu0 0.0
        %1694 = vmatpush1.xpose.msra.mxu0 0.0
        %1695 = vmatprep.subr.mxu0 0.0
        %1696 = vmatpush1.xpose.msra.mxu0 0.0
        %1697 = vmatprep.subr.mxu0 0.0
        %1698 = vmatpush1.xpose.msra.mxu0 0.0
        %1699 = vmatprep.subr.mxu0 0.0
        %1700 = vmatpush1.xpose.msra.mxu0 0.0
        %1701 = vmatprep.subr.mxu0 0.0
        %1702 = vmatpush1.xpose.msra.mxu0 0.0
        %1703 = vmatprep.subr.mxu0 0.0
        %1704 = vmatpush1.xpose.msra.mxu0 0.0
        %1705 = vmatprep.subr.mxu0 0.0
        %1706 = vmatpush1.xpose.msra.mxu0 0.0
        %1707 = vmatprep.subr.mxu0 0.0
        %1708 = vmatpush1.xpose.msra.mxu0 0.0
        %1709 = vmatprep.subr.mxu0 0.0
        %1710 = vmatpush1.xpose.msra.mxu0 0.0
        %1711 = vmatprep.subr.mxu0 0.0
        %1712 = vmatpush1.xpose.msra.mxu0 0.0
        %1713 = vmatprep.subr.mxu0 0.0
        %1714 = vmatpush1.xpose.msra.mxu0 0.0
        %1715 = vmatprep.subr.mxu0 0.0
        %1716 = vmatpush1.xpose.msra.mxu0 0.0
        %1717 = vmatprep.subr.mxu0 0.0
        %1718 = vmatpush1.xpose.msra.mxu0 0.0
        %1719 = vmatprep.subr.mxu0 0.0
        %1720 = vmatpush1.xpose.msra.mxu0 0.0
        %1721 = vmatprep.subr.mxu0 0.0
        %1722 = vmatpush1.xpose.msra.mxu0 0.0
        %1723 = vmatprep.subr.mxu0 0.0
        %1724 = vmatpush1.xpose.msra.mxu0 0.0
        %1725 = vmatprep.subr.mxu0 0.0
        %1726 = vmatpush1.xpose.msra.mxu0 0.0
        %1727 = vmatprep.subr.mxu0 0.0
        %1728 = vmatpush1.xpose.msra.mxu0 0.0
        %1729 = vmatprep.subr.mxu0 0.0
        %1730 = vmatpush1.xpose.msra.mxu0 0.0
        %1731 = vmatprep.subr.mxu0 0.0
        %1732 = vmatpush1.xpose.msra.mxu0 0.0
        %1733 = vmatprep.subr.mxu0 0.0
        %1734 = vmatpush1.xpose.msra.mxu0 0.0
        %1735 = vmatprep.subr.mxu0 0.0
        %1736 = vmatpush1.xpose.msra.mxu0 0.0
        %1737 = vmatprep.subr.mxu0 0.0
        %1738 = vmatpush1.xpose.msra.mxu0 0.0
        %1739 = vmatprep.subr.mxu0 0.0
        %1740 = vmatpush1.xpose.msra.mxu0 0.0
        %1741 = vmatprep.subr.mxu0 0.0
        %1742 = vmatpush1.xpose.msra.mxu0 0.0
        %1743 = vmatprep.mubr.f32.mxu0 0.0
        %1744 = vmatmul.mubr.f32.gmra.mrb[0].mxu0 %v1668
        %v1745 = vpop.f32.mrb[0].mxu0
        %v1746 = vadd.f32 %v875, %v1745
        %v1747 = vpop.f32.mrb[0].mxu0
        %1748 = vmatprep.mubr.f32.mxu0 0.0
        %1749 = vmatmul.mubr.f32.gmra.mrb[0].mxu0 %v1671
        %v1750 = vpop.f32.mrb[0].mxu0
        %v1751 = vadd.f32 %v876, %v1750
        %v1752 = vpop.f32.mrb[0].mxu0
        %1753 = vdwg.mxu0
        %v1754 = vsel %vm1259, %v1746, -inf
        %1755 = vmax.xlane.f32.xlu0 %v1754
        %v1756 = vpop.xlane.xlu0 %1755
        %v1757 = vsel %vm1259, %v1751, -inf
        %1758 = vmax.xlane.f32.xlu0 %v1757
        %v1759 = vpop.xlane.xlu0 %1758
        %v1760 = vsub.f32 %v1746, %v1756
        %v1761 = vsub.f32 %v1751, %v1759
        %v1762 = vmul.f32 %v1760, 1.442695
        %v1763 = vpow.pop %v1762
        %v1764 = vmul.f32 %v1761, 1.442695
        %v1765 = vpow.pop %v1764
        %v1766 = vsel %vm1259, %v1763, 0.0
        %1767 = vadd.xlane.f32.xlu0 %v1766
        %v1768 = vpop.xlane.xlu0 %1767
        %v1769 = vsel %vm1259, %v1765, 0.0
        %1770 = vadd.xlane.f32.xlu0 %v1769
        %v1771 = vpop.xlane.xlu0 %1770
        %v1772 = vrcp.pop %v1768
        %v1773 = vmul.f32 %v1763, %v1772
        %v1774 = vrcp.pop %v1771
        %v1775 = vmul.f32 %v1765, %v1774
        %v1777 = vsel %vm1259, %v1773, 0
        %v1780 = vsel %vm1259, %v1775, 0
        %1782 = vmatprep.subr.mxu0 0.0
        %1783 = vmatpush1.msra.mxu0 %v1659
        %1784 = vmatprep.subr.mxu0 0.0
        %1785 = vmatpush1.msra.mxu0 %v1664
        %1786 = vmatprep.subr.mxu0 0.0
        %1787 = vmatpush1.msra.mxu0 0.0
        %1788 = vmatprep.subr.mxu0 0.0
        %1789 = vmatpush1.msra.mxu0 0.0
        %1790 = vmatprep.subr.mxu0 0.0
        %1791 = vmatpush1.msra.mxu0 0.0
        %1792 = vmatprep.subr.mxu0 0.0
        %1793 = vmatpush1.msra.mxu0 0.0
        %1794 = vmatprep.subr.mxu0 0.0
        %1795 = vmatpush1.msra.mxu0 0.0
        %1796 = vmatprep.subr.mxu0 0.0
        %1797 = vmatpush1.msra.mxu0 0.0
        %1798 = vmatprep.subr.mxu0 0.0
        %1799 = vmatpush1.msra.mxu0 0.0
        %1800 = vmatprep.subr.mxu0 0.0
        %1801 = vmatpush1.msra.mxu0 0.0
        %1802 = vmatprep.subr.mxu0 0.0
        %1803 = vmatpush1.msra.mxu0 0.0
        %1804 = vmatprep.subr.mxu0 0.0
        %1805 = vmatpush1.msra.mxu0 0.0
        %1806 = vmatprep.subr.mxu0 0.0
        %1807 = vmatpush1.msra.mxu0 0.0
        %1808 = vmatprep.subr.mxu0 0.0
        %1809 = vmatpush1.msra.mxu0 0.0
        %1810 = vmatprep.subr.mxu0 0.0
        %1811 = vmatpush1.msra.mxu0 0.0
        %1812 = vmatprep.subr.mxu0 0.0
        %1813 = vmatpush1.msra.mxu0 0.0
        %1814 = vmatprep.subr.mxu0 0.0
        %1815 = vmatpush1.msra.mxu0 0.0
        %1816 = vmatprep.subr.mxu0 0.0
        %1817 = vmatpush1.msra.mxu0 0.0
        %1818 = vmatprep.subr.mxu0 0.0
        %1819 = vmatpush1.msra.mxu0 0.0
        %1820 = vmatprep.subr.mxu0 0.0
        %1821 = vmatpush1.msra.mxu0 0.0
        %1822 = vmatprep.subr.mxu0 0.0
        %1823 = vmatpush1.msra.mxu0 0.0
        %1824 = vmatprep.subr.mxu0 0.0
        %1825 = vmatpush1.msra.mxu0 0.0
        %1826 = vmatprep.subr.mxu0 0.0
        %1827 = vmatpush1.msra.mxu0 0.0
        %1828 = vmatprep.subr.mxu0 0.0
        %1829 = vmatpush1.msra.mxu0 0.0
        %1830 = vmatprep.subr.mxu0 0.0
        %1831 = vmatpush1.msra.mxu0 0.0
        %1832 = vmatprep.subr.mxu0 0.0
        %1833 = vmatpush1.msra.mxu0 0.0
        %1834 = vmatprep.subr.mxu0 0.0
        %1835 = vmatpush1.msra.mxu0 0.0
        %1836 = vmatprep.subr.mxu0 0.0
        %1837 = vmatpush1.msra.mxu0 0.0
        %1838 = vmatprep.subr.mxu0 0.0
        %1839 = vmatpush1.msra.mxu0 0.0
        %1840 = vmatprep.subr.mxu0 0.0
        %1841 = vmatpush1.msra.mxu0 0.0
        %1842 = vmatprep.subr.mxu0 0.0
        %1843 = vmatpush1.msra.mxu0 0.0
        %1844 = vmatprep.subr.mxu0 0.0
        %1845 = vmatpush1.msra.mxu0 0.0
        %1846 = vmatprep.mubr.f32.mxu0 0.0
        %1847 = vmatmul.mubr.f32.gmra.mrb[0].mxu0 %v1777
        %v1848 = vpop.f32.mrb[0].mxu0
        %v1849 = vadd.f32 0.0, %v1848
        %v1850 = vpop.f32.mrb[0].mxu0
        %1851 = vmatprep.mubr.f32.mxu0 0.0
        %1852 = vmatmul.mubr.f32.gmra.mrb[0].mxu0 %v1780
        %v1853 = vpop.f32.mrb[0].mxu0
        %v1854 = vadd.f32 0.0, %v1853
        %v1855 = vpop.f32.mrb[0].mxu0
        %1856 = vdwg.mxu0
        %s1857 = scalar_lea.vmem %s10, 32
        %v1858 = vld [vmem:[%s1857] sm:$0xff]
        %v1859 = vld [vmem:[%s1857 + $0x8] sm:$0xff]
        %v1860 = vld [vmem:[%s1857 + $0x10] sm:$0xff]
        %v1861 = vld [vmem:[%s1857 + $0x18] sm:$0xff]
        %v1863 = vsel %vm1171, %v1849, 0
        %v1866 = vsel %vm1171, %v1854, 0
        %1868 = vmatprep.subr.mxu0 0.0
        %1869 = vmatpush1.msra.mxu0 %v1858
        %1870 = vmatprep.subr.mxu0 0.0
        %1871 = vmatpush1.msra.mxu0 %v1859
        %1872 = vmatprep.subr.mxu0 0.0
        %1873 = vmatpush1.msra.mxu0 %v1860
        %1874 = vmatprep.subr.mxu0 0.0
        %1875 = vmatpush1.msra.mxu0 %v1861
        %1876 = vmatprep.subr.mxu0 0.0
        %1877 = vmatpush1.msra.mxu0 0.0
        %1878 = vmatprep.subr.mxu0 0.0
        %1879 = vmatpush1.msra.mxu0 0.0
        %1880 = vmatprep.subr.mxu0 0.0
        %1881 = vmatpush1.msra.mxu0 0.0
        %1882 = vmatprep.subr.mxu0 0.0
        %1883 = vmatpush1.msra.mxu0 0.0
        %1884 = vmatprep.subr.mxu0 0.0
        %1885 = vmatpush1.msra.mxu0 0.0
        %1886 = vmatprep.subr.mxu0 0.0
        %1887 = vmatpush1.msra.mxu0 0.0
        %1888 = vmatprep.subr.mxu0 0.0
        %1889 = vmatpush1.msra.mxu0 0.0
        %1890 = vmatprep.subr.mxu0 0.0
        %1891 = vmatpush1.msra.mxu0 0.0
        %1892 = vmatprep.subr.mxu0 0.0
        %1893 = vmatpush1.msra.mxu0 0.0
        %1894 = vmatprep.subr.mxu0 0.0
        %1895 = vmatpush1.msra.mxu0 0.0
        %1896 = vmatprep.subr.mxu0 0.0
        %1897 = vmatpush1.msra.mxu0 0.0
        %1898 = vmatprep.subr.mxu0 0.0
        %1899 = vmatpush1.msra.mxu0 0.0
        %1900 = vmatprep.subr.mxu0 0.0
        %1901 = vmatpush1.msra.mxu0 0.0
        %1902 = vmatprep.subr.mxu0 0.0
        %1903 = vmatpush1.msra.mxu0 0.0
        %1904 = vmatprep.subr.mxu0 0.0
        %1905 = vmatpush1.msra.mxu0 0.0
        %1906 = vmatprep.subr.mxu0 0.0
        %1907 = vmatpush1.msra.mxu0 0.0
        %1908 = vmatprep.subr.mxu0 0.0
        %1909 = vmatpush1.msra.mxu0 0.0
        %1910 = vmatprep.subr.mxu0 0.0
        %1911 = vmatpush1.msra.mxu0 0.0
        %1912 = vmatprep.subr.mxu0 0.0
        %1913 = vmatpush1.msra.mxu0 0.0
        %1914 = vmatprep.subr.mxu0 0.0
        %1915 = vmatpush1.msra.mxu0 0.0
        %1916 = vmatprep.subr.mxu0 0.0
        %1917 = vmatpush1.msra.mxu0 0.0
        %1918 = vmatprep.subr.mxu0 0.0
        %1919 = vmatpush1.msra.mxu0 0.0
        %1920 = vmatprep.subr.mxu0 0.0
        %1921 = vmatpush1.msra.mxu0 0.0
        %1922 = vmatprep.subr.mxu0 0.0
        %1923 = vmatpush1.msra.mxu0 0.0
        %1924 = vmatprep.subr.mxu0 0.0
        %1925 = vmatpush1.msra.mxu0 0.0
        %1926 = vmatprep.subr.mxu0 0.0
        %1927 = vmatpush1.msra.mxu0 0.0
        %1928 = vmatprep.subr.mxu0 0.0
        %1929 = vmatpush1.msra.mxu0 0.0
        %1930 = vmatprep.subr.mxu0 0.0
        %1931 = vmatpush1.msra.mxu0 0.0
        %1932 = vmatprep.mubr.f32.mxu0 0.0
        %1933 = vmatmul.mubr.f32.gmra.mrb[0].mxu0 %v1863
        %v1934 = vpop.f32.mrb[0].mxu0
        %v1935 = vadd.f32 0.0, %v1934
        %v1936 = vpop.f32.mrb[0].mxu0
        %1937 = vmatprep.mubr.f32.mxu0 0.0
        %1938 = vmatmul.mubr.f32.gmra.mrb[0].mxu0 %v1866
        %v1939 = vpop.f32.mrb[0].mxu0
        %v1940 = vadd.f32 0.0, %v1939
        %v1941 = vpop.f32.mrb[0].mxu0
        %1942 = vdwg.mxu0
        %v1944 = vsel %vm1171, %v1355, 0
        %v1947 = vsel %vm1171, %v1360, 0
        %1949 = vmatprep.subr.mxu0 0.0
        %1950 = vmatpush1.msra.mxu0 %v1363
        %1951 = vmatprep.subr.mxu0 0.0
        %1952 = vmatpush1.msra.mxu0 %v1364
        %1953 = vmatprep.subr.mxu0 0.0
        %1954 = vmatpush1.msra.mxu0 %v1365
        %1955 = vmatprep.subr.mxu0 0.0
        %1956 = vmatpush1.msra.mxu0 %v1366
        %1957 = vmatprep.subr.mxu0 0.0
        %1958 = vmatpush1.msra.mxu0 0.0
        %1959 = vmatprep.subr.mxu0 0.0
        %1960 = vmatpush1.msra.mxu0 0.0
        %1961 = vmatprep.subr.mxu0 0.0
        %1962 = vmatpush1.msra.mxu0 0.0
        %1963 = vmatprep.subr.mxu0 0.0
        %1964 = vmatpush1.msra.mxu0 0.0
        %1965 = vmatprep.subr.mxu0 0.0
        %1966 = vmatpush1.msra.mxu0 0.0
        %1967 = vmatprep.subr.mxu0 0.0
        %1968 = vmatpush1.msra.mxu0 0.0
        %1969 = vmatprep.subr.mxu0 0.0
        %1970 = vmatpush1.msra.mxu0 0.0
        %1971 = vmatprep.subr.mxu0 0.0
        %1972 = vmatpush1.msra.mxu0 0.0
        %1973 = vmatprep.subr.mxu0 0.0
        %1974 = vmatpush1.msra.mxu0 0.0
        %1975 = vmatprep.subr.mxu0 0.0
        %1976 = vmatpush1.msra.mxu0 0.0
        %1977 = vmatprep.subr.mxu0 0.0
        %1978 = vmatpush1.msra.mxu0 0.0
        %1979 = vmatprep.subr.mxu0 0.0
        %1980 = vmatpush1.msra.mxu0 0.0
        %1981 = vmatprep.subr.mxu0 0.0
        %1982 = vmatpush1.msra.mxu0 0.0
        %1983 = vmatprep.subr.mxu0 0.0
        %1984 = vmatpush1.msra.mxu0 0.0
        %1985 = vmatprep.subr.mxu0 0.0
        %1986 = vmatpush1.msra.mxu0 0.0
        %1987 = vmatprep.subr.mxu0 0.0
        %1988 = vmatpush1.msra.mxu0 0.0
        %1989 = vmatprep.subr.mxu0 0.0
        %1990 = vmatpush1.msra.mxu0 0.0
        %1991 = vmatprep.subr.mxu0 0.0
        %1992 = vmatpush1.msra.mxu0 0.0
        %1993 = vmatprep.subr.mxu0 0.0
        %1994 = vmatpush1.msra.mxu0 0.0
        %1995 = vmatprep.subr.mxu0 0.0
        %1996 = vmatpush1.msra.mxu0 0.0
        %1997 = vmatprep.subr.mxu0 0.0
        %1998 = vmatpush1.msra.mxu0 0.0
        %1999 = vmatprep.subr.mxu0 0.0
        %2000 = vmatpush1.msra.mxu0 0.0
        %2001 = vmatprep.subr.mxu0 0.0
        %2002 = vmatpush1.msra.mxu0 0.0
        %2003 = vmatprep.subr.mxu0 0.0
        %2004 = vmatpush1.msra.mxu0 0.0
        %2005 = vmatprep.subr.mxu0 0.0
        %2006 = vmatpush1.msra.mxu0 0.0
        %2007 = vmatprep.subr.mxu0 0.0
        %2008 = vmatpush1.msra.mxu0 0.0
        %2009 = vmatprep.subr.mxu0 0.0
        %2010 = vmatpush1.msra.mxu0 0.0
        %2011 = vmatprep.subr.mxu0 0.0
        %2012 = vmatpush1.msra.mxu0 0.0
        %2013 = vmatprep.mubr.f32.mxu0 0.0
        %2014 = vmatmul.mubr.f32.gmra.mrb[0].mxu0 %v1944
        %v2015 = vpop.f32.mrb[0].mxu0
        %v2016 = vadd.f32 %v1935, %v2015
        %v2017 = vpop.f32.mrb[0].mxu0
        %2018 = vmatprep.mubr.f32.mxu0 0.0
        %2019 = vmatmul.mubr.f32.gmra.mrb[0].mxu0 %v1947
        %v2020 = vpop.f32.mrb[0].mxu0
        %v2021 = vadd.f32 %v1940, %v2020
        %v2022 = vpop.f32.mrb[0].mxu0
        %2023 = vdwg.mxu0
        %s2024 = scalar_lea.vmem %s4, 256
        %v2025 = vld [vmem:[%s2024] sm:$0xff]
        %v2026 = vld [vmem:[%s2024 + $0x8] sm:$0xff]
        %v2027 = vld [vmem:[%s2024 + $0x10] sm:$0xff]
        %v2028 = vld [vmem:[%s2024 + $0x18] sm:$0xff]
        %v2029 = vld [vmem:[%s2024 + $0x20] sm:$0xff]
        %v2030 = vld [vmem:[%s2024 + $0x28] sm:$0xff]
        %v2031 = vld [vmem:[%s2024 + $0x30] sm:$0xff]
        %v2032 = vld [vmem:[%s2024 + $0x38] sm:$0xff]
        %v2033 = vld [vmem:[%s2024 + $0x40] sm:$0xff]
        %v2034 = vld [vmem:[%s2024 + $0x48] sm:$0xff]
        %v2035 = vld [vmem:[%s2024 + $0x50] sm:$0xff]
        %v2036 = vld [vmem:[%s2024 + $0x58] sm:$0xff]
        %v2037 = vld [vmem:[%s2024 + $0x60] sm:$0xff]
        %v2038 = vld [vmem:[%s2024 + $0x68] sm:$0xff]
        %v2039 = vld [vmem:[%s2024 + $0x70] sm:$0xff]
        %v2040 = vld [vmem:[%s2024 + $0x78] sm:$0xff]
        %s2041 = scalar_lea.vmem %s7, 2
        %v2042 = vld [vmem:[%s2041] sm:$0x1]
        %v2044 = vlaneseq
        %v2045 = vshrl.u32 %v2044, 7
        %v2046 = vsub.s32 0, %v2045
        %v2047 = vrot.slane %v2042, %v2046
        %2049 = vmatprep.subr.mxu0 0.0
        %2050 = vmatpush1.msra.mxu0 %v2025
        %2051 = vmatprep.subr.mxu0 0.0
        %2052 = vmatpush1.msra.mxu0 %v2026
        %2053 = vmatprep.subr.mxu0 0.0
        %2054 = vmatpush1.msra.mxu0 %v2027
        %2055 = vmatprep.subr.mxu0 0.0
        %2056 = vmatpush1.msra.mxu0 %v2028
        %2057 = vmatprep.subr.mxu0 0.0
        %2058 = vmatpush1.msra.mxu0 %v2029
        %2059 = vmatprep.subr.mxu0 0.0
        %2060 = vmatpush1.msra.mxu0 %v2030
        %2061 = vmatprep.subr.mxu0 0.0
        %2062 = vmatpush1.msra.mxu0 %v2031
        %2063 = vmatprep.subr.mxu0 0.0
        %2064 = vmatpush1.msra.mxu0 %v2032
        %2065 = vmatprep.subr.mxu0 0.0
        %2066 = vmatpush1.msra.mxu0 %v2033
        %2067 = vmatprep.subr.mxu0 0.0
        %2068 = vmatpush1.msra.mxu0 %v2034
        %2069 = vmatprep.subr.mxu0 0.0
        %2070 = vmatpush1.msra.mxu0 %v2035
        %2071 = vmatprep.subr.mxu0 0.0
        %2072 = vmatpush1.msra.mxu0 %v2036
        %2073 = vmatprep.subr.mxu0 0.0
        %2074 = vmatpush1.msra.mxu0 %v2037
        %2075 = vmatprep.subr.mxu0 0.0
        %2076 = vmatpush1.msra.mxu0 %v2038
        %2077 = vmatprep.subr.mxu0 0.0
        %2078 = vmatpush1.msra.mxu0 %v2039
        %2079 = vmatprep.subr.mxu0 0.0
        %2080 = vmatpush1.msra.mxu0 %v2040
        %2081 = vmatprep.subr.mxu0 0.0
        %2082 = vmatpush1.msra.mxu0 0.0
        %2083 = vmatprep.subr.mxu0 0.0
        %2084 = vmatpush1.msra.mxu0 0.0
        %2085 = vmatprep.subr.mxu0 0.0
        %2086 = vmatpush1.msra.mxu0 0.0
        %2087 = vmatprep.subr.mxu0 0.0
        %2088 = vmatpush1.msra.mxu0 0.0
        %2089 = vmatprep.subr.mxu0 0.0
        %2090 = vmatpush1.msra.mxu0 0.0
        %2091 = vmatprep.subr.mxu0 0.0
        %2092 = vmatpush1.msra.mxu0 0.0
        %2093 = vmatprep.subr.mxu0 0.0
        %2094 = vmatpush1.msra.mxu0 0.0
        %2095 = vmatprep.subr.mxu0 0.0
        %2096 = vmatpush1.msra.mxu0 0.0
        %2097 = vmatprep.subr.mxu0 0.0
        %2098 = vmatpush1.msra.mxu0 0.0
        %2099 = vmatprep.subr.mxu0 0.0
        %2100 = vmatpush1.msra.mxu0 0.0
        %2101 = vmatprep.subr.mxu0 0.0
        %2102 = vmatpush1.msra.mxu0 0.0
        %2103 = vmatprep.subr.mxu0 0.0
        %2104 = vmatpush1.msra.mxu0 0.0
        %2105 = vmatprep.subr.mxu0 0.0
        %2106 = vmatpush1.msra.mxu0 0.0
        %2107 = vmatprep.subr.mxu0 0.0
        %2108 = vmatpush1.msra.mxu0 0.0
        %2109 = vmatprep.subr.mxu0 0.0
        %2110 = vmatpush1.msra.mxu0 0.0
        %2111 = vmatprep.subr.mxu0 0.0
        %2112 = vmatpush1.msra.mxu0 0.0
        %2113 = vmatprep.mubr.f32.mxu0 0.0
        %2114 = vmatmul.mubr.f32.gmra.mrb[0].mxu0 %v869
        %v2115 = vpop.f32.mrb[0].mxu0
        %v2116 = vadd.f32 %v2047, %v2115
        %v2117 = vpop.f32.mrb[0].mxu0
        %2118 = vmatprep.mubr.f32.mxu0 0.0
        %2119 = vmatmul.mubr.f32.gmra.mrb[0].mxu0 %v870
        %v2120 = vpop.f32.mrb[0].mxu0
        %v2121 = vadd.f32 %v2047, %v2120
        %v2122 = vpop.f32.mrb[0].mxu0
        %2123 = vdwg.mxu0
        %s2124 = scalar_lea.vmem %s5, 256
        %v2125 = vld [vmem:[%s2124] sm:$0xff]
        %v2126 = vld [vmem:[%s2124 + $0x8] sm:$0xff]
        %v2127 = vld [vmem:[%s2124 + $0x10] sm:$0xff]
        %v2128 = vld [vmem:[%s2124 + $0x18] sm:$0xff]
        %v2129 = vld [vmem:[%s2124 + $0x20] sm:$0xff]
        %v2130 = vld [vmem:[%s2124 + $0x28] sm:$0xff]
        %v2131 = vld [vmem:[%s2124 + $0x30] sm:$0xff]
        %v2132 = vld [vmem:[%s2124 + $0x38] sm:$0xff]
        %v2133 = vld [vmem:[%s2124 + $0x40] sm:$0xff]
        %v2134 = vld [vmem:[%s2124 + $0x48] sm:$0xff]
        %v2135 = vld [vmem:[%s2124 + $0x50] sm:$0xff]
        %v2136 = vld [vmem:[%s2124 + $0x58] sm:$0xff]
        %v2137 = vld [vmem:[%s2124 + $0x60] sm:$0xff]
        %v2138 = vld [vmem:[%s2124 + $0x68] sm:$0xff]
        %v2139 = vld [vmem:[%s2124 + $0x70] sm:$0xff]
        %v2140 = vld [vmem:[%s2124 + $0x78] sm:$0xff]
        %s2141 = scalar_lea.vmem %s8, 2
        %v2142 = vld [vmem:[%s2141] sm:$0x1]
        %v2144 = vlaneseq
        %v2145 = vshrl.u32 %v2144, 7
        %v2146 = vsub.s32 0, %v2145
        %v2147 = vrot.slane %v2142, %v2146
        %2149 = vmatprep.subr.mxu0 0.0
        %2150 = vmatpush1.msra.mxu0 %v2125
        %2151 = vmatprep.subr.mxu0 0.0
        %2152 = vmatpush1.msra.mxu0 %v2126
        %2153 = vmatprep.subr.mxu0 0.0
        %2154 = vmatpush1.msra.mxu0 %v2127
        %2155 = vmatprep.subr.mxu0 0.0
        %2156 = vmatpush1.msra.mxu0 %v2128
        %2157 = vmatprep.subr.mxu0 0.0
        %2158 = vmatpush1.msra.mxu0 %v2129
        %2159 = vmatprep.subr.mxu0 0.0
        %2160 = vmatpush1.msra.mxu0 %v2130
        %2161 = vmatprep.subr.mxu0 0.0
        %2162 = vmatpush1.msra.mxu0 %v2131
        %2163 = vmatprep.subr.mxu0 0.0
        %2164 = vmatpush1.msra.mxu0 %v2132
        %2165 = vmatprep.subr.mxu0 0.0
        %2166 = vmatpush1.msra.mxu0 %v2133
        %2167 = vmatprep.subr.mxu0 0.0
        %2168 = vmatpush1.msra.mxu0 %v2134
        %2169 = vmatprep.subr.mxu0 0.0
        %2170 = vmatpush1.msra.mxu0 %v2135
        %2171 = vmatprep.subr.mxu0 0.0
        %2172 = vmatpush1.msra.mxu0 %v2136
        %2173 = vmatprep.subr.mxu0 0.0
        %2174 = vmatpush1.msra.mxu0 %v2137
        %2175 = vmatprep.subr.mxu0 0.0
        %2176 = vmatpush1.msra.mxu0 %v2138
        %2177 = vmatprep.subr.mxu0 0.0
        %2178 = vmatpush1.msra.mxu0 %v2139
        %2179 = vmatprep.subr.mxu0 0.0
        %2180 = vmatpush1.msra.mxu0 %v2140
        %2181 = vmatprep.subr.mxu0 0.0
        %2182 = vmatpush1.msra.mxu0 0.0
        %2183 = vmatprep.subr.mxu0 0.0
        %2184 = vmatpush1.msra.mxu0 0.0
        %2185 = vmatprep.subr.mxu0 0.0
        %2186 = vmatpush1.msra.mxu0 0.0
        %2187 = vmatprep.subr.mxu0 0.0
        %2188 = vmatpush1.msra.mxu0 0.0
        %2189 = vmatprep.subr.mxu0 0.0
        %2190 = vmatpush1.msra.mxu0 0.0
        %2191 = vmatprep.subr.mxu0 0.0
        %2192 = vmatpush1.msra.mxu0 0.0
        %2193 = vmatprep.subr.mxu0 0.0
        %2194 = vmatpush1.msra.mxu0 0.0
        %2195 = vmatprep.subr.mxu0 0.0
        %2196 = vmatpush1.msra.mxu0 0.0
        %2197 = vmatprep.subr.mxu0 0.0
        %2198 = vmatpush1.msra.mxu0 0.0
        %2199 = vmatprep.subr.mxu0 0.0
        %2200 = vmatpush1.msra.mxu0 0.0
        %2201 = vmatprep.subr.mxu0 0.0
        %2202 = vmatpush1.msra.mxu0 0.0
        %2203 = vmatprep.subr.mxu0 0.0
        %2204 = vmatpush1.msra.mxu0 0.0
        %2205 = vmatprep.subr.mxu0 0.0
        %2206 = vmatpush1.msra.mxu0 0.0
        %2207 = vmatprep.subr.mxu0 0.0
        %2208 = vmatpush1.msra.mxu0 0.0
        %2209 = vmatprep.subr.mxu0 0.0
        %2210 = vmatpush1.msra.mxu0 0.0
        %2211 = vmatprep.subr.mxu0 0.0
        %2212 = vmatpush1.msra.mxu0 0.0
        %2213 = vmatprep.mubr.f32.mxu0 0.0
        %2214 = vmatmul.mubr.f32.gmra.mrb[0].mxu0 %v869
        %v2215 = vpop.f32.mrb[0].mxu0
        %v2216 = vadd.f32 %v2147, %v2215
        %v2217 = vpop.f32.mrb[0].mxu0
        %2218 = vmatprep.mubr.f32.mxu0 0.0
        %2219 = vmatmul.mubr.f32.gmra.mrb[0].mxu0 %v870
        %v2220 = vpop.f32.mrb[0].mxu0
        %v2221 = vadd.f32 %v2147, %v2220
        %v2222 = vpop.f32.mrb[0].mxu0
        %2223 = vdwg.mxu0
        %s2224 = scalar_lea.vmem %s6, 256
        %v2225 = vld [vmem:[%s2224] sm:$0xff]
        %v2226 = vld [vmem:[%s2224 + $0x8] sm:$0xff]
        %v2227 = vld [vmem:[%s2224 + $0x10] sm:$0xff]
        %v2228 = vld [vmem:[%s2224 + $0x18] sm:$0xff]
        %v2229 = vld [vmem:[%s2224 + $0x20] sm:$0xff]
        %v2230 = vld [vmem:[%s2224 + $0x28] sm:$0xff]
        %v2231 = vld [vmem:[%s2224 + $0x30] sm:$0xff]
        %v2232 = vld [vmem:[%s2224 + $0x38] sm:$0xff]
        %v2233 = vld [vmem:[%s2224 + $0x40] sm:$0xff]
        %v2234 = vld [vmem:[%s2224 + $0x48] sm:$0xff]
        %v2235 = vld [vmem:[%s2224 + $0x50] sm:$0xff]
        %v2236 = vld [vmem:[%s2224 + $0x58] sm:$0xff]
        %v2237 = vld [vmem:[%s2224 + $0x60] sm:$0xff]
        %v2238 = vld [vmem:[%s2224 + $0x68] sm:$0xff]
        %v2239 = vld [vmem:[%s2224 + $0x70] sm:$0xff]
        %v2240 = vld [vmem:[%s2224 + $0x78] sm:$0xff]
        %s2241 = scalar_lea.vmem %s9, 2
        %v2242 = vld [vmem:[%s2241] sm:$0x1]
        %v2244 = vlaneseq
        %v2245 = vshrl.u32 %v2244, 7
        %v2246 = vsub.s32 0, %v2245
        %v2247 = vrot.slane %v2242, %v2246
        %2249 = vmatprep.subr.mxu0 0.0
        %2250 = vmatpush1.msra.mxu0 %v2225
        %2251 = vmatprep.subr.mxu0 0.0
        %2252 = vmatpush1.msra.mxu0 %v2226
        %2253 = vmatprep.subr.mxu0 0.0
        %2254 = vmatpush1.msra.mxu0 %v2227
        %2255 = vmatprep.subr.mxu0 0.0
        %2256 = vmatpush1.msra.mxu0 %v2228
        %2257 = vmatprep.subr.mxu0 0.0
        %2258 = vmatpush1.msra.mxu0 %v2229
        %2259 = vmatprep.subr.mxu0 0.0
        %2260 = vmatpush1.msra.mxu0 %v2230
        %2261 = vmatprep.subr.mxu0 0.0
        %2262 = vmatpush1.msra.mxu0 %v2231
        %2263 = vmatprep.subr.mxu0 0.0
        %2264 = vmatpush1.msra.mxu0 %v2232
        %2265 = vmatprep.subr.mxu0 0.0
        %2266 = vmatpush1.msra.mxu0 %v2233
        %2267 = vmatprep.subr.mxu0 0.0
        %2268 = vmatpush1.msra.mxu0 %v2234
        %2269 = vmatprep.subr.mxu0 0.0
        %2270 = vmatpush1.msra.mxu0 %v2235
        %2271 = vmatprep.subr.mxu0 0.0
        %2272 = vmatpush1.msra.mxu0 %v2236
        %2273 = vmatprep.subr.mxu0 0.0
        %2274 = vmatpush1.msra.mxu0 %v2237
        %2275 = vmatprep.subr.mxu0 0.0
        %2276 = vmatpush1.msra.mxu0 %v2238
        %2277 = vmatprep.subr.mxu0 0.0
        %2278 = vmatpush1.msra.mxu0 %v2239
        %2279 = vmatprep.subr.mxu0 0.0
        %2280 = vmatpush1.msra.mxu0 %v2240
        %2281 = vmatprep.subr.mxu0 0.0
        %2282 = vmatpush1.msra.mxu0 0.0
        %2283 = vmatprep.subr.mxu0 0.0
        %2284 = vmatpush1.msra.mxu0 0.0
        %2285 = vmatprep.subr.mxu0 0.0
        %2286 = vmatpush1.msra.mxu0 0.0
        %2287 = vmatprep.subr.mxu0 0.0
        %2288 = vmatpush1.msra.mxu0 0.0
        %2289 = vmatprep.subr.mxu0 0.0
        %2290 = vmatpush1.msra.mxu0 0.0
        %2291 = vmatprep.subr.mxu0 0.0
        %2292 = vmatpush1.msra.mxu0 0.0
        %2293 = vmatprep.subr.mxu0 0.0
        %2294 = vmatpush1.msra.mxu0 0.0
        %2295 = vmatprep.subr.mxu0 0.0
        %2296 = vmatpush1.msra.mxu0 0.0
        %2297 = vmatprep.subr.mxu0 0.0
        %2298 = vmatpush1.msra.mxu0 0.0
        %2299 = vmatprep.subr.mxu0 0.0
        %2300 = vmatpush1.msra.mxu0 0.0
        %2301 = vmatprep.subr.mxu0 0.0
        %2302 = vmatpush1.msra.mxu0 0.0
        %2303 = vmatprep.subr.mxu0 0.0
        %2304 = vmatpush1.msra.mxu0 0.0
        %2305 = vmatprep.subr.mxu0 0.0
        %2306 = vmatpush1.msra.mxu0 0.0
        %2307 = vmatprep.subr.mxu0 0.0
        %2308 = vmatpush1.msra.mxu0 0.0
        %2309 = vmatprep.subr.mxu0 0.0
        %2310 = vmatpush1.msra.mxu0 0.0
        %2311 = vmatprep.subr.mxu0 0.0
        %2312 = vmatpush1.msra.mxu0 0.0
        %2313 = vmatprep.mubr.f32.mxu0 0.0
        %2314 = vmatmul.mubr.f32.gmra.mrb[0].mxu0 %v869
        %v2315 = vpop.f32.mrb[0].mxu0
        %v2316 = vadd.f32 %v2247, %v2315
        %v2317 = vpop.f32.mrb[0].mxu0
        %2318 = vmatprep.mubr.f32.mxu0 0.0
        %2319 = vmatmul.mubr.f32.gmra.mrb[0].mxu0 %v870
        %v2320 = vpop.f32.mrb[0].mxu0
        %v2321 = vadd.f32 %v2247, %v2320
        %v2322 = vpop.f32.mrb[0].mxu0
        %2323 = vdwg.mxu0
        %v2325 = vsel %vm1171, %v2116, 0
        %v2328 = vsel %vm1171, %v2121, 0
        %v2331 = vsel %vm1171, %v2216, 0
        %v2334 = vsel %vm1171, %v2221, 0
        %2336 = vmatprep.subr.mxu0 0.0
        %2337 = vmatpush1.xpose.msra.mxu0 %v2331
        %2338 = vmatprep.subr.mxu0 0.0
        %2339 = vmatpush1.xpose.msra.mxu0 %v2334
        %2340 = vmatprep.subr.mxu0 0.0
        %2341 = vmatpush1.xpose.msra.mxu0 0.0
        %2342 = vmatprep.subr.mxu0 0.0
        %2343 = vmatpush1.xpose.msra.mxu0 0.0
        %2344 = vmatprep.subr.mxu0 0.0
        %2345 = vmatpush1.xpose.msra.mxu0 0.0
        %2346 = vmatprep.subr.mxu0 0.0
        %2347 = vmatpush1.xpose.msra.mxu0 0.0
        %2348 = vmatprep.subr.mxu0 0.0
        %2349 = vmatpush1.xpose.msra.mxu0 0.0
        %2350 = vmatprep.subr.mxu0 0.0
        %2351 = vmatpush1.xpose.msra.mxu0 0.0
        %2352 = vmatprep.subr.mxu0 0.0
        %2353 = vmatpush1.xpose.msra.mxu0 0.0
        %2354 = vmatprep.subr.mxu0 0.0
        %2355 = vmatpush1.xpose.msra.mxu0 0.0
        %2356 = vmatprep.subr.mxu0 0.0
        %2357 = vmatpush1.xpose.msra.mxu0 0.0
        %2358 = vmatprep.subr.mxu0 0.0
        %2359 = vmatpush1.xpose.msra.mxu0 0.0
        %2360 = vmatprep.subr.mxu0 0.0
        %2361 = vmatpush1.xpose.msra.mxu0 0.0
        %2362 = vmatprep.subr.mxu0 0.0
        %2363 = vmatpush1.xpose.msra.mxu0 0.0
        %2364 = vmatprep.subr.mxu0 0.0
        %2365 = vmatpush1.xpose.msra.mxu0 0.0
        %2366 = vmatprep.subr.mxu0 0.0
        %2367 = vmatpush1.xpose.msra.mxu0 0.0
        %2368 = vmatprep.subr.mxu0 0.0
        %2369 = vmatpush1.xpose.msra.mxu0 0.0
        %2370 = vmatprep.subr.mxu0 0.0
        %2371 = vmatpush1.xpose.msra.mxu0 0.0
        %2372 = vmatprep.subr.mxu0 0.0
        %2373 = vmatpush1.xpose.msra.mxu0 0.0
        %2374 = vmatprep.subr.mxu0 0.0
        %2375 = vmatpush1.xpose.msra.mxu0 0.0
        %2376 = vmatprep.subr.mxu0 0.0
        %2377 = vmatpush1.xpose.msra.mxu0 0.0
        %2378 = vmatprep.subr.mxu0 0.0
        %2379 = vmatpush1.xpose.msra.mxu0 0.0
        %2380 = vmatprep.subr.mxu0 0.0
        %2381 = vmatpush1.xpose.msra.mxu0 0.0
        %2382 = vmatprep.subr.mxu0 0.0
        %2383 = vmatpush1.xpose.msra.mxu0 0.0
        %2384 = vmatprep.subr.mxu0 0.0
        %2385 = vmatpush1.xpose.msra.mxu0 0.0
        %2386 = vmatprep.subr.mxu0 0.0
        %2387 = vmatpush1.xpose.msra.mxu0 0.0
        %2388 = vmatprep.subr.mxu0 0.0
        %2389 = vmatpush1.xpose.msra.mxu0 0.0
        %2390 = vmatprep.subr.mxu0 0.0
        %2391 = vmatpush1.xpose.msra.mxu0 0.0
        %2392 = vmatprep.subr.mxu0 0.0
        %2393 = vmatpush1.xpose.msra.mxu0 0.0
        %2394 = vmatprep.subr.mxu0 0.0
        %2395 = vmatpush1.xpose.msra.mxu0 0.0
        %2396 = vmatprep.subr.mxu0 0.0
        %2397 = vmatpush1.xpose.msra.mxu0 0.0
        %2398 = vmatprep.subr.mxu0 0.0
        %2399 = vmatpush1.xpose.msra.mxu0 0.0
        %2400 = vmatprep.mubr.f32.mxu0 0.0
        %2401 = vmatmul.mubr.f32.gmra.mrb[0].mxu0 %v2325
        %v2402 = vpop.f32.mrb[0].mxu0
        %v2403 = vadd.f32 %v875, %v2402
        %v2404 = vpop.f32.mrb[0].mxu0
        %2405 = vmatprep.mubr.f32.mxu0 0.0
        %2406 = vmatmul.mubr.f32.gmra.mrb[0].mxu0 %v2328
        %v2407 = vpop.f32.mrb[0].mxu0
        %v2408 = vadd.f32 %v876, %v2407
        %v2409 = vpop.f32.mrb[0].mxu0
        %2410 = vdwg.mxu0
        %v2411 = vsel %vm1259, %v2403, -inf
        %2412 = vmax.xlane.f32.xlu0 %v2411
        %v2413 = vpop.xlane.xlu0 %2412
        %v2414 = vsel %vm1259, %v2408, -inf
        %2415 = vmax.xlane.f32.xlu0 %v2414
        %v2416 = vpop.xlane.xlu0 %2415
        %v2417 = vsub.f32 %v2403, %v2413
        %v2418 = vsub.f32 %v2408, %v2416
        %v2419 = vmul.f32 %v2417, 1.442695
        %v2420 = vpow.pop %v2419
        %v2421 = vmul.f32 %v2418, 1.442695
        %v2422 = vpow.pop %v2421
        %v2423 = vsel %vm1259, %v2420, 0.0
        %2424 = vadd.xlane.f32.xlu0 %v2423
        %v2425 = vpop.xlane.xlu0 %2424
        %v2426 = vsel %vm1259, %v2422, 0.0
        %2427 = vadd.xlane.f32.xlu0 %v2426
        %v2428 = vpop.xlane.xlu0 %2427
        %v2429 = vrcp.pop %v2425
        %v2430 = vmul.f32 %v2420, %v2429
        %v2431 = vrcp.pop %v2428
        %v2432 = vmul.f32 %v2422, %v2431
        %v2434 = vsel %vm1259, %v2430, 0
        %v2437 = vsel %vm1259, %v2432, 0
        %2439 = vmatprep.subr.mxu0 0.0
        %2440 = vmatpush1.msra.mxu0 %v2316
        %2441 = vmatprep.subr.mxu0 0.0
        %2442 = vmatpush1.msra.mxu0 %v2321
        %2443 = vmatprep.subr.mxu0 0.0
        %2444 = vmatpush1.msra.mxu0 0.0
        %2445 = vmatprep.subr.mxu0 0.0
        %2446 = vmatpush1.msra.mxu0 0.0
        %2447 = vmatprep.subr.mxu0 0.0
        %2448 = vmatpush1.msra.mxu0 0.0
        %2449 = vmatprep.subr.mxu0 0.0
        %2450 = vmatpush1.msra.mxu0 0.0
        %2451 = vmatprep.subr.mxu0 0.0
        %2452 = vmatpush1.msra.mxu0 0.0
        %2453 = vmatprep.subr.mxu0 0.0
        %2454 = vmatpush1.msra.mxu0 0.0
        %2455 = vmatprep.subr.mxu0 0.0
        %2456 = vmatpush1.msra.mxu0 0.0
        %2457 = vmatprep.subr.mxu0 0.0
        %2458 = vmatpush1.msra.mxu0 0.0
        %2459 = vmatprep.subr.mxu0 0.0
        %2460 = vmatpush1.msra.mxu0 0.0
        %2461 = vmatprep.subr.mxu0 0.0
        %2462 = vmatpush1.msra.mxu0 0.0
        %2463 = vmatprep.subr.mxu0 0.0
        %2464 = vmatpush1.msra.mxu0 0.0
        %2465 = vmatprep.subr.mxu0 0.0
        %2466 = vmatpush1.msra.mxu0 0.0
        %2467 = vmatprep.subr.mxu0 0.0
        %2468 = vmatpush1.msra.mxu0 0.0
        %2469 = vmatprep.subr.mxu0 0.0
        %2470 = vmatpush1.msra.mxu0 0.0
        %2471 = vmatprep.subr.mxu0 0.0
        %2472 = vmatpush1.msra.mxu0 0.0
        %2473 = vmatprep.subr.mxu0 0.0
        %2474 = vmatpush1.msra.mxu0 0.0
        %2475 = vmatprep.subr.mxu0 0.0
        %2476 = vmatpush1.msra.mxu0 0.0
        %2477 = vmatprep.subr.mxu0 0.0
        %2478 = vmatpush1.msra.mxu0 0.0
        %2479 = vmatprep.subr.mxu0 0.0
        %2480 = vmatpush1.msra.mxu0 0.0
        %2481 = vmatprep.subr.mxu0 0.0
        %2482 = vmatpush1.msra.mxu0 0.0
        %2483 = vmatprep.subr.mxu0 0.0
        %2484 = vmatpush1.msra.mxu0 0.0
        %2485 = vmatprep.subr.mxu0 0.0
        %2486 = vmatpush1.msra.mxu0 0.0
        %2487 = vmatprep.subr.mxu0 0.0
        %2488 = vmatpush1.msra.mxu0 0.0
        %2489 = vmatprep.subr.mxu0 0.0
        %2490 = vmatpush1.msra.mxu0 0.0
        %2491 = vmatprep.subr.mxu0 0.0
        %2492 = vmatpush1.msra.mxu0 0.0
        %2493 = vmatprep.subr.mxu0 0.0
        %2494 = vmatpush1.msra.mxu0 0.0
        %2495 = vmatprep.subr.mxu0 0.0
        %2496 = vmatpush1.msra.mxu0 0.0
        %2497 = vmatprep.subr.mxu0 0.0
        %2498 = vmatpush1.msra.mxu0 0.0
        %2499 = vmatprep.subr.mxu0 0.0
        %2500 = vmatpush1.msra.mxu0 0.0
        %2501 = vmatprep.subr.mxu0 0.0
        %2502 = vmatpush1.msra.mxu0 0.0
        %2503 = vmatprep.mubr.f32.mxu0 0.0
        %2504 = vmatmul.mubr.f32.gmra.mrb[0].mxu0 %v2434
        %v2505 = vpop.f32.mrb[0].mxu0
        %v2506 = vadd.f32 0.0, %v2505
        %v2507 = vpop.f32.mrb[0].mxu0
        %2508 = vmatprep.mubr.f32.mxu0 0.0
        %2509 = vmatmul.mubr.f32.gmra.mrb[0].mxu0 %v2437
        %v2510 = vpop.f32.mrb[0].mxu0
        %v2511 = vadd.f32 0.0, %v2510
        %v2512 = vpop.f32.mrb[0].mxu0
        %2513 = vdwg.mxu0
        %s2514 = scalar_lea.vmem %s10, 64
        %v2515 = vld [vmem:[%s2514] sm:$0xff]
        %v2516 = vld [vmem:[%s2514 + $0x8] sm:$0xff]
        %v2517 = vld [vmem:[%s2514 + $0x10] sm:$0xff]
        %v2518 = vld [vmem:[%s2514 + $0x18] sm:$0xff]
        %v2520 = vsel %vm1171, %v2506, 0
        %v2523 = vsel %vm1171, %v2511, 0
        %2525 = vmatprep.subr.mxu0 0.0
        %2526 = vmatpush1.msra.mxu0 %v2515
        %2527 = vmatprep.subr.mxu0 0.0
        %2528 = vmatpush1.msra.mxu0 %v2516
        %2529 = vmatprep.subr.mxu0 0.0
        %2530 = vmatpush1.msra.mxu0 %v2517
        %2531 = vmatprep.subr.mxu0 0.0
        %2532 = vmatpush1.msra.mxu0 %v2518
        %2533 = vmatprep.subr.mxu0 0.0
        %2534 = vmatpush1.msra.mxu0 0.0
        %2535 = vmatprep.subr.mxu0 0.0
        %2536 = vmatpush1.msra.mxu0 0.0
        %2537 = vmatprep.subr.mxu0 0.0
        %2538 = vmatpush1.msra.mxu0 0.0
        %2539 = vmatprep.subr.mxu0 0.0
        %2540 = vmatpush1.msra.mxu0 0.0
        %2541 = vmatprep.subr.mxu0 0.0
        %2542 = vmatpush1.msra.mxu0 0.0
        %2543 = vmatprep.subr.mxu0 0.0
        %2544 = vmatpush1.msra.mxu0 0.0
        %2545 = vmatprep.subr.mxu0 0.0
        %2546 = vmatpush1.msra.mxu0 0.0
        %2547 = vmatprep.subr.mxu0 0.0
        %2548 = vmatpush1.msra.mxu0 0.0
        %2549 = vmatprep.subr.mxu0 0.0
        %2550 = vmatpush1.msra.mxu0 0.0
        %2551 = vmatprep.subr.mxu0 0.0
        %2552 = vmatpush1.msra.mxu0 0.0
        %2553 = vmatprep.subr.mxu0 0.0
        %2554 = vmatpush1.msra.mxu0 0.0
        %2555 = vmatprep.subr.mxu0 0.0
        %2556 = vmatpush1.msra.mxu0 0.0
        %2557 = vmatprep.subr.mxu0 0.0
        %2558 = vmatpush1.msra.mxu0 0.0
        %2559 = vmatprep.subr.mxu0 0.0
        %2560 = vmatpush1.msra.mxu0 0.0
        %2561 = vmatprep.subr.mxu0 0.0
        %2562 = vmatpush1.msra.mxu0 0.0
        %2563 = vmatprep.subr.mxu0 0.0
        %2564 = vmatpush1.msra.mxu0 0.0
        %2565 = vmatprep.subr.mxu0 0.0
        %2566 = vmatpush1.msra.mxu0 0.0
        %2567 = vmatprep.subr.mxu0 0.0
        %2568 = vmatpush1.msra.mxu0 0.0
        %2569 = vmatprep.subr.mxu0 0.0
        %2570 = vmatpush1.msra.mxu0 0.0
        %2571 = vmatprep.subr.mxu0 0.0
        %2572 = vmatpush1.msra.mxu0 0.0
        %2573 = vmatprep.subr.mxu0 0.0
        %2574 = vmatpush1.msra.mxu0 0.0
        %2575 = vmatprep.subr.mxu0 0.0
        %2576 = vmatpush1.msra.mxu0 0.0
        %2577 = vmatprep.subr.mxu0 0.0
        %2578 = vmatpush1.msra.mxu0 0.0
        %2579 = vmatprep.subr.mxu0 0.0
        %2580 = vmatpush1.msra.mxu0 0.0
        %2581 = vmatprep.subr.mxu0 0.0
        %2582 = vmatpush1.msra.mxu0 0.0
        %2583 = vmatprep.subr.mxu0 0.0
        %2584 = vmatpush1.msra.mxu0 0.0
        %2585 = vmatprep.subr.mxu0 0.0
        %2586 = vmatpush1.msra.mxu0 0.0
        %2587 = vmatprep.subr.mxu0 0.0
        %2588 = vmatpush1.msra.mxu0 0.0
        %2589 = vmatprep.mubr.f32.mxu0 0.0
        %2590 = vmatmul.mubr.f32.gmra.mrb[0].mxu0 %v2520
        %v2591 = vpop.f32.mrb[0].mxu0
        %v2592 = vadd.f32 0.0, %v2591
        %v2593 = vpop.f32.mrb[0].mxu0
        %2594 = vmatprep.mubr.f32.mxu0 0.0
        %2595 = vmatmul.mubr.f32.gmra.mrb[0].mxu0 %v2523
        %v2596 = vpop.f32.mrb[0].mxu0
        %v2597 = vadd.f32 0.0, %v2596
        %v2598 = vpop.f32.mrb[0].mxu0
        %2599 = vdwg.mxu0
        %v2600 = vadd.f32 %v2016, %v2592
        %v2601 = vadd.f32 %v2021, %v2597
        %s2602 = scalar_lea.vmem %s4, 384
        %v2603 = vld [vmem:[%s2602] sm:$0xff]
        %v2604 = vld [vmem:[%s2602 + $0x8] sm:$0xff]
        %v2605 = vld [vmem:[%s2602 + $0x10] sm:$0xff]
        %v2606 = vld [vmem:[%s2602 + $0x18] sm:$0xff]
        %v2607 = vld [vmem:[%s2602 + $0x20] sm:$0xff]
        %v2608 = vld [vmem:[%s2602 + $0x28] sm:$0xff]
        %v2609 = vld [vmem:[%s2602 + $0x30] sm:$0xff]
        %v2610 = vld [vmem:[%s2602 + $0x38] sm:$0xff]
        %v2611 = vld [vmem:[%s2602 + $0x40] sm:$0xff]
        %v2612 = vld [vmem:[%s2602 + $0x48] sm:$0xff]
        %v2613 = vld [vmem:[%s2602 + $0x50] sm:$0xff]
        %v2614 = vld [vmem:[%s2602 + $0x58] sm:$0xff]
        %v2615 = vld [vmem:[%s2602 + $0x60] sm:$0xff]
        %v2616 = vld [vmem:[%s2602 + $0x68] sm:$0xff]
        %v2617 = vld [vmem:[%s2602 + $0x70] sm:$0xff]
        %v2618 = vld [vmem:[%s2602 + $0x78] sm:$0xff]
        %s2619 = scalar_lea.vmem %s7, 3
        %v2620 = vld [vmem:[%s2619] sm:$0x1]
        %v2622 = vlaneseq
        %v2623 = vshrl.u32 %v2622, 7
        %v2624 = vsub.s32 0, %v2623
        %v2625 = vrot.slane %v2620, %v2624
        %2627 = vmatprep.subr.mxu0 0.0
        %2628 = vmatpush1.msra.mxu0 %v2603
        %2629 = vmatprep.subr.mxu0 0.0
        %2630 = vmatpush1.msra.mxu0 %v2604
        %2631 = vmatprep.subr.mxu0 0.0
        %2632 = vmatpush1.msra.mxu0 %v2605
        %2633 = vmatprep.subr.mxu0 0.0
        %2634 = vmatpush1.msra.mxu0 %v2606
        %2635 = vmatprep.subr.mxu0 0.0
        %2636 = vmatpush1.msra.mxu0 %v2607
        %2637 = vmatprep.subr.mxu0 0.0
        %2638 = vmatpush1.msra.mxu0 %v2608
        %2639 = vmatprep.subr.mxu0 0.0
        %2640 = vmatpush1.msra.mxu0 %v2609
        %2641 = vmatprep.subr.mxu0 0.0
        %2642 = vmatpush1.msra.mxu0 %v2610
        %2643 = vmatprep.subr.mxu0 0.0
        %2644 = vmatpush1.msra.mxu0 %v2611
        %2645 = vmatprep.subr.mxu0 0.0
        %2646 = vmatpush1.msra.mxu0 %v2612
        %2647 = vmatprep.subr.mxu0 0.0
        %2648 = vmatpush1.msra.mxu0 %v2613
        %2649 = vmatprep.subr.mxu0 0.0
        %2650 = vmatpush1.msra.mxu0 %v2614
        %2651 = vmatprep.subr.mxu0 0.0
        %2652 = vmatpush1.msra.mxu0 %v2615
        %2653 = vmatprep.subr.mxu0 0.0
        %2654 = vmatpush1.msra.mxu0 %v2616
        %2655 = vmatprep.subr.mxu0 0.0
        %2656 = vmatpush1.msra.mxu0 %v2617
        %2657 = vmatprep.subr.mxu0 0.0
        %2658 = vmatpush1.msra.mxu0 %v2618
        %2659 = vmatprep.subr.mxu0 0.0
        %2660 = vmatpush1.msra.mxu0 0.0
        %2661 = vmatprep.subr.mxu0 0.0
        %2662 = vmatpush1.msra.mxu0 0.0
        %2663 = vmatprep.subr.mxu0 0.0
        %2664 = vmatpush1.msra.mxu0 0.0
        %2665 = vmatprep.subr.mxu0 0.0
        %2666 = vmatpush1.msra.mxu0 0.0
        %2667 = vmatprep.subr.mxu0 0.0
        %2668 = vmatpush1.msra.mxu0 0.0
        %2669 = vmatprep.subr.mxu0 0.0
        %2670 = vmatpush1.msra.mxu0 0.0
        %2671 = vmatprep.subr.mxu0 0.0
        %2672 = vmatpush1.msra.mxu0 0.0
        %2673 = vmatprep.subr.mxu0 0.0
        %2674 = vmatpush1.msra.mxu0 0.0
        %2675 = vmatprep.subr.mxu0 0.0
        %2676 = vmatpush1.msra.mxu0 0.0
        %2677 = vmatprep.subr.mxu0 0.0
        %2678 = vmatpush1.msra.mxu0 0.0
        %2679 = vmatprep.subr.mxu0 0.0
        %2680 = vmatpush1.msra.mxu0 0.0
        %2681 = vmatprep.subr.mxu0 0.0
        %2682 = vmatpush1.msra.mxu0 0.0
        %2683 = vmatprep.subr.mxu0 0.0
        %2684 = vmatpush1.msra.mxu0 0.0
        %2685 = vmatprep.subr.mxu0 0.0
        %2686 = vmatpush1.msra.mxu0 0.0
        %2687 = vmatprep.subr.mxu0 0.0
        %2688 = vmatpush1.msra.mxu0 0.0
        %2689 = vmatprep.subr.mxu0 0.0
        %2690 = vmatpush1.msra.mxu0 0.0
        %2691 = vmatprep.mubr.f32.mxu0 0.0
        %2692 = vmatmul.mubr.f32.gmra.mrb[0].mxu0 %v869
        %v2693 = vpop.f32.mrb[0].mxu0
        %v2694 = vadd.f32 %v2625, %v2693
        %v2695 = vpop.f32.mrb[0].mxu0
        %2696 = vmatprep.mubr.f32.mxu0 0.0
        %2697 = vmatmul.mubr.f32.gmra.mrb[0].mxu0 %v870
        %v2698 = vpop.f32.mrb[0].mxu0
        %v2699 = vadd.f32 %v2625, %v2698
        %v2700 = vpop.f32.mrb[0].mxu0
        %2701 = vdwg.mxu0
        %s2702 = scalar_lea.vmem %s5, 384
        %v2703 = vld [vmem:[%s2702] sm:$0xff]
        %v2704 = vld [vmem:[%s2702 + $0x8] sm:$0xff]
        %v2705 = vld [vmem:[%s2702 + $0x10] sm:$0xff]
        %v2706 = vld [vmem:[%s2702 + $0x18] sm:$0xff]
        %v2707 = vld [vmem:[%s2702 + $0x20] sm:$0xff]
        %v2708 = vld [vmem:[%s2702 + $0x28] sm:$0xff]
        %v2709 = vld [vmem:[%s2702 + $0x30] sm:$0xff]
        %v2710 = vld [vmem:[%s2702 + $0x38] sm:$0xff]
        %v2711 = vld [vmem:[%s2702 + $0x40] sm:$0xff]
        %v2712 = vld [vmem:[%s2702 + $0x48] sm:$0xff]
        %v2713 = vld [vmem:[%s2702 + $0x50] sm:$0xff]
        %v2714 = vld [vmem:[%s2702 + $0x58] sm:$0xff]
        %v2715 = vld [vmem:[%s2702 + $0x60] sm:$0xff]
        %v2716 = vld [vmem:[%s2702 + $0x68] sm:$0xff]
        %v2717 = vld [vmem:[%s2702 + $0x70] sm:$0xff]
        %v2718 = vld [vmem:[%s2702 + $0x78] sm:$0xff]
        %s2719 = scalar_lea.vmem %s8, 3
        %v2720 = vld [vmem:[%s2719] sm:$0x1]
        %v2722 = vlaneseq
        %v2723 = vshrl.u32 %v2722, 7
        %v2724 = vsub.s32 0, %v2723
        %v2725 = vrot.slane %v2720, %v2724
        %2727 = vmatprep.subr.mxu0 0.0
        %2728 = vmatpush1.msra.mxu0 %v2703
        %2729 = vmatprep.subr.mxu0 0.0
        %2730 = vmatpush1.msra.mxu0 %v2704
        %2731 = vmatprep.subr.mxu0 0.0
        %2732 = vmatpush1.msra.mxu0 %v2705
        %2733 = vmatprep.subr.mxu0 0.0
        %2734 = vmatpush1.msra.mxu0 %v2706
        %2735 = vmatprep.subr.mxu0 0.0
        %2736 = vmatpush1.msra.mxu0 %v2707
        %2737 = vmatprep.subr.mxu0 0.0
        %2738 = vmatpush1.msra.mxu0 %v2708
        %2739 = vmatprep.subr.mxu0 0.0
        %2740 = vmatpush1.msra.mxu0 %v2709
        %2741 = vmatprep.subr.mxu0 0.0
        %2742 = vmatpush1.msra.mxu0 %v2710
        %2743 = vmatprep.subr.mxu0 0.0
        %2744 = vmatpush1.msra.mxu0 %v2711
        %2745 = vmatprep.subr.mxu0 0.0
        %2746 = vmatpush1.msra.mxu0 %v2712
        %2747 = vmatprep.subr.mxu0 0.0
        %2748 = vmatpush1.msra.mxu0 %v2713
        %2749 = vmatprep.subr.mxu0 0.0
        %2750 = vmatpush1.msra.mxu0 %v2714
        %2751 = vmatprep.subr.mxu0 0.0
        %2752 = vmatpush1.msra.mxu0 %v2715
        %2753 = vmatprep.subr.mxu0 0.0
        %2754 = vmatpush1.msra.mxu0 %v2716
        %2755 = vmatprep.subr.mxu0 0.0
        %2756 = vmatpush1.msra.mxu0 %v2717
        %2757 = vmatprep.subr.mxu0 0.0
        %2758 = vmatpush1.msra.mxu0 %v2718
        %2759 = vmatprep.subr.mxu0 0.0
        %2760 = vmatpush1.msra.mxu0 0.0
        %2761 = vmatprep.subr.mxu0 0.0
        %2762 = vmatpush1.msra.mxu0 0.0
        %2763 = vmatprep.subr.mxu0 0.0
        %2764 = vmatpush1.msra.mxu0 0.0
        %2765 = vmatprep.subr.mxu0 0.0
        %2766 = vmatpush1.msra.mxu0 0.0
        %2767 = vmatprep.subr.mxu0 0.0
        %2768 = vmatpush1.msra.mxu0 0.0
        %2769 = vmatprep.subr.mxu0 0.0
        %2770 = vmatpush1.msra.mxu0 0.0
        %2771 = vmatprep.subr.mxu0 0.0
        %2772 = vmatpush1.msra.mxu0 0.0
        %2773 = vmatprep.subr.mxu0 0.0
        %2774 = vmatpush1.msra.mxu0 0.0
        %2775 = vmatprep.subr.mxu0 0.0
        %2776 = vmatpush1.msra.mxu0 0.0
        %2777 = vmatprep.subr.mxu0 0.0
        %2778 = vmatpush1.msra.mxu0 0.0
        %2779 = vmatprep.subr.mxu0 0.0
        %2780 = vmatpush1.msra.mxu0 0.0
        %2781 = vmatprep.subr.mxu0 0.0
        %2782 = vmatpush1.msra.mxu0 0.0
        %2783 = vmatprep.subr.mxu0 0.0
        %2784 = vmatpush1.msra.mxu0 0.0
        %2785 = vmatprep.subr.mxu0 0.0
        %2786 = vmatpush1.msra.mxu0 0.0
        %2787 = vmatprep.subr.mxu0 0.0
        %2788 = vmatpush1.msra.mxu0 0.0
        %2789 = vmatprep.subr.mxu0 0.0
        %2790 = vmatpush1.msra.mxu0 0.0
        %2791 = vmatprep.mubr.f32.mxu0 0.0
        %2792 = vmatmul.mubr.f32.gmra.mrb[0].mxu0 %v869
        %v2793 = vpop.f32.mrb[0].mxu0
        %v2794 = vadd.f32 %v2725, %v2793
        %v2795 = vpop.f32.mrb[0].mxu0
        %2796 = vmatprep.mubr.f32.mxu0 0.0
        %2797 = vmatmul.mubr.f32.gmra.mrb[0].mxu0 %v870
        %v2798 = vpop.f32.mrb[0].mxu0
        %v2799 = vadd.f32 %v2725, %v2798
        %v2800 = vpop.f32.mrb[0].mxu0
        %2801 = vdwg.mxu0
        %s2802 = scalar_lea.vmem %s6, 384
        %v2803 = vld [vmem:[%s2802] sm:$0xff]
        %v2804 = vld [vmem:[%s2802 + $0x8] sm:$0xff]
        %v2805 = vld [vmem:[%s2802 + $0x10] sm:$0xff]
        %v2806 = vld [vmem:[%s2802 + $0x18] sm:$0xff]
        %v2807 = vld [vmem:[%s2802 + $0x20] sm:$0xff]
        %v2808 = vld [vmem:[%s2802 + $0x28] sm:$0xff]
        %v2809 = vld [vmem:[%s2802 + $0x30] sm:$0xff]
        %v2810 = vld [vmem:[%s2802 + $0x38] sm:$0xff]
        %v2811 = vld [vmem:[%s2802 + $0x40] sm:$0xff]
        %v2812 = vld [vmem:[%s2802 + $0x48] sm:$0xff]
        %v2813 = vld [vmem:[%s2802 + $0x50] sm:$0xff]
        %v2814 = vld [vmem:[%s2802 + $0x58] sm:$0xff]
        %v2815 = vld [vmem:[%s2802 + $0x60] sm:$0xff]
        %v2816 = vld [vmem:[%s2802 + $0x68] sm:$0xff]
        %v2817 = vld [vmem:[%s2802 + $0x70] sm:$0xff]
        %v2818 = vld [vmem:[%s2802 + $0x78] sm:$0xff]
        %s2819 = scalar_lea.vmem %s9, 3
        %v2820 = vld [vmem:[%s2819] sm:$0x1]
        %v2822 = vlaneseq
        %v2823 = vshrl.u32 %v2822, 7
        %v2824 = vsub.s32 0, %v2823
        %v2825 = vrot.slane %v2820, %v2824
        %2827 = vmatprep.subr.mxu0 0.0
        %2828 = vmatpush1.msra.mxu0 %v2803
        %2829 = vmatprep.subr.mxu0 0.0
        %2830 = vmatpush1.msra.mxu0 %v2804
        %2831 = vmatprep.subr.mxu0 0.0
        %2832 = vmatpush1.msra.mxu0 %v2805
        %2833 = vmatprep.subr.mxu0 0.0
        %2834 = vmatpush1.msra.mxu0 %v2806
        %2835 = vmatprep.subr.mxu0 0.0
        %2836 = vmatpush1.msra.mxu0 %v2807
        %2837 = vmatprep.subr.mxu0 0.0
        %2838 = vmatpush1.msra.mxu0 %v2808
        %2839 = vmatprep.subr.mxu0 0.0
        %2840 = vmatpush1.msra.mxu0 %v2809
        %2841 = vmatprep.subr.mxu0 0.0
        %2842 = vmatpush1.msra.mxu0 %v2810
        %2843 = vmatprep.subr.mxu0 0.0
        %2844 = vmatpush1.msra.mxu0 %v2811
        %2845 = vmatprep.subr.mxu0 0.0
        %2846 = vmatpush1.msra.mxu0 %v2812
        %2847 = vmatprep.subr.mxu0 0.0
        %2848 = vmatpush1.msra.mxu0 %v2813
        %2849 = vmatprep.subr.mxu0 0.0
        %2850 = vmatpush1.msra.mxu0 %v2814
        %2851 = vmatprep.subr.mxu0 0.0
        %2852 = vmatpush1.msra.mxu0 %v2815
        %2853 = vmatprep.subr.mxu0 0.0
        %2854 = vmatpush1.msra.mxu0 %v2816
        %2855 = vmatprep.subr.mxu0 0.0
        %2856 = vmatpush1.msra.mxu0 %v2817
        %2857 = vmatprep.subr.mxu0 0.0
        %2858 = vmatpush1.msra.mxu0 %v2818
        %2859 = vmatprep.subr.mxu0 0.0
        %2860 = vmatpush1.msra.mxu0 0.0
        %2861 = vmatprep.subr.mxu0 0.0
        %2862 = vmatpush1.msra.mxu0 0.0
        %2863 = vmatprep.subr.mxu0 0.0
        %2864 = vmatpush1.msra.mxu0 0.0
        %2865 = vmatprep.subr.mxu0 0.0
        %2866 = vmatpush1.msra.mxu0 0.0
        %2867 = vmatprep.subr.mxu0 0.0
        %2868 = vmatpush1.msra.mxu0 0.0
        %2869 = vmatprep.subr.mxu0 0.0
        %2870 = vmatpush1.msra.mxu0 0.0
        %2871 = vmatprep.subr.mxu0 0.0
        %2872 = vmatpush1.msra.mxu0 0.0
        %2873 = vmatprep.subr.mxu0 0.0
        %2874 = vmatpush1.msra.mxu0 0.0
        %2875 = vmatprep.subr.mxu0 0.0
        %2876 = vmatpush1.msra.mxu0 0.0
        %2877 = vmatprep.subr.mxu0 0.0
        %2878 = vmatpush1.msra.mxu0 0.0
        %2879 = vmatprep.subr.mxu0 0.0
        %2880 = vmatpush1.msra.mxu0 0.0
        %2881 = vmatprep.subr.mxu0 0.0
        %2882 = vmatpush1.msra.mxu0 0.0
        %2883 = vmatprep.subr.mxu0 0.0
        %2884 = vmatpush1.msra.mxu0 0.0
        %2885 = vmatprep.subr.mxu0 0.0
        %2886 = vmatpush1.msra.mxu0 0.0
        %2887 = vmatprep.subr.mxu0 0.0
        %2888 = vmatpush1.msra.mxu0 0.0
        %2889 = vmatprep.subr.mxu0 0.0
        %2890 = vmatpush1.msra.mxu0 0.0
        %2891 = vmatprep.mubr.f32.mxu0 0.0
        %2892 = vmatmul.mubr.f32.gmra.mrb[0].mxu0 %v869
        %v2893 = vpop.f32.mrb[0].mxu0
        %v2894 = vadd.f32 %v2825, %v2893
        %v2895 = vpop.f32.mrb[0].mxu0
        %2896 = vmatprep.mubr.f32.mxu0 0.0
        %2897 = vmatmul.mubr.f32.gmra.mrb[0].mxu0 %v870
        %v2898 = vpop.f32.mrb[0].mxu0
        %v2899 = vadd.f32 %v2825, %v2898
        %v2900 = vpop.f32.mrb[0].mxu0
        %2901 = vdwg.mxu0
        %v2903 = vsel %vm1171, %v2694, 0
        %v2906 = vsel %vm1171, %v2699, 0
        %v2909 = vsel %vm1171, %v2794, 0
        %v2912 = vsel %vm1171, %v2799, 0
        %2914 = vmatprep.subr.mxu0 0.0
        %2915 = vmatpush1.xpose.msra.mxu0 %v2909
        %2916 = vmatprep.subr.mxu0 0.0
        %2917 = vmatpush1.xpose.msra.mxu0 %v2912
        %2918 = vmatprep.subr.mxu0 0.0
        %2919 = vmatpush1.xpose.msra.mxu0 0.0
        %2920 = vmatprep.subr.mxu0 0.0
        %2921 = vmatpush1.xpose.msra.mxu0 0.0
        %2922 = vmatprep.subr.mxu0 0.0
        %2923 = vmatpush1.xpose.msra.mxu0 0.0
        %2924 = vmatprep.subr.mxu0 0.0
        %2925 = vmatpush1.xpose.msra.mxu0 0.0
        %2926 = vmatprep.subr.mxu0 0.0
        %2927 = vmatpush1.xpose.msra.mxu0 0.0
        %2928 = vmatprep.subr.mxu0 0.0
        %2929 = vmatpush1.xpose.msra.mxu0 0.0
        %2930 = vmatprep.subr.mxu0 0.0
        %2931 = vmatpush1.xpose.msra.mxu0 0.0
        %2932 = vmatprep.subr.mxu0 0.0
        %2933 = vmatpush1.xpose.msra.mxu0 0.0
        %2934 = vmatprep.subr.mxu0 0.0
        %2935 = vmatpush1.xpose.msra.mxu0 0.0
        %2936 = vmatprep.subr.mxu0 0.0
        %2937 = vmatpush1.xpose.msra.mxu0 0.0
        %2938 = vmatprep.subr.mxu0 0.0
        %2939 = vmatpush1.xpose.msra.mxu0 0.0
        %2940 = vmatprep.subr.mxu0 0.0
        %2941 = vmatpush1.xpose.msra.mxu0 0.0
        %2942 = vmatprep.subr.mxu0 0.0
        %2943 = vmatpush1.xpose.msra.mxu0 0.0
        %2944 = vmatprep.subr.mxu0 0.0
        %2945 = vmatpush1.xpose.msra.mxu0 0.0
        %2946 = vmatprep.subr.mxu0 0.0
        %2947 = vmatpush1.xpose.msra.mxu0 0.0
        %2948 = vmatprep.subr.mxu0 0.0
        %2949 = vmatpush1.xpose.msra.mxu0 0.0
        %2950 = vmatprep.subr.mxu0 0.0
        %2951 = vmatpush1.xpose.msra.mxu0 0.0
        %2952 = vmatprep.subr.mxu0 0.0
        %2953 = vmatpush1.xpose.msra.mxu0 0.0
        %2954 = vmatprep.subr.mxu0 0.0
        %2955 = vmatpush1.xpose.msra.mxu0 0.0
        %2956 = vmatprep.subr.mxu0 0.0
        %2957 = vmatpush1.xpose.msra.mxu0 0.0
        %2958 = vmatprep.subr.mxu0 0.0
        %2959 = vmatpush1.xpose.msra.mxu0 0.0
        %2960 = vmatprep.subr.mxu0 0.0
        %2961 = vmatpush1.xpose.msra.mxu0 0.0
        %2962 = vmatprep.subr.mxu0 0.0
        %2963 = vmatpush1.xpose.msra.mxu0 0.0
        %2964 = vmatprep.subr.mxu0 0.0
        %2965 = vmatpush1.xpose.msra.mxu0 0.0
        %2966 = vmatprep.subr.mxu0 0.0
        %2967 = vmatpush1.xpose.msra.mxu0 0.0
        %2968 = vmatprep.subr.mxu0 0.0
        %2969 = vmatpush1.xpose.msra.mxu0 0.0
        %2970 = vmatprep.subr.mxu0 0.0
        %2971 = vmatpush1.xpose.msra.mxu0 0.0
        %2972 = vmatprep.subr.mxu0 0.0
        %2973 = vmatpush1.xpose.msra.mxu0 0.0
        %2974 = vmatprep.subr.mxu0 0.0
        %2975 = vmatpush1.xpose.msra.mxu0 0.0
        %2976 = vmatprep.subr.mxu0 0.0
        %2977 = vmatpush1.xpose.msra.mxu0 0.0
        %2978 = vmatprep.mubr.f32.mxu0 0.0
        %2979 = vmatmul.mubr.f32.gmra.mrb[0].mxu0 %v2903
        %v2980 = vpop.f32.mrb[0].mxu0
        %v2981 = vadd.f32 %v875, %v2980
        %v2982 = vpop.f32.mrb[0].mxu0
        %2983 = vmatprep.mubr.f32.mxu0 0.0
        %2984 = vmatmul.mubr.f32.gmra.mrb[0].mxu0 %v2906
        %v2985 = vpop.f32.mrb[0].mxu0
        %v2986 = vadd.f32 %v876, %v2985
        %v2987 = vpop.f32.mrb[0].mxu0
        %2988 = vdwg.mxu0
        %v2989 = vsel %vm1259, %v2981, -inf
        %2990 = vmax.xlane.f32.xlu0 %v2989
        %v2991 = vpop.xlane.xlu0 %2990
        %v2992 = vsel %vm1259, %v2986, -inf
        %2993 = vmax.xlane.f32.xlu0 %v2992
        %v2994 = vpop.xlane.xlu0 %2993
        %v2995 = vsub.f32 %v2981, %v2991
        %v2996 = vsub.f32 %v2986, %v2994
        %v2997 = vmul.f32 %v2995, 1.442695
        %v2998 = vpow.pop %v2997
        %v2999 = vmul.f32 %v2996, 1.442695
        %v3000 = vpow.pop %v2999
        %v3001 = vsel %vm1259, %v2998, 0.0
        %3002 = vadd.xlane.f32.xlu0 %v3001
        %v3003 = vpop.xlane.xlu0 %3002
        %v3004 = vsel %vm1259, %v3000, 0.0
        %3005 = vadd.xlane.f32.xlu0 %v3004
        %v3006 = vpop.xlane.xlu0 %3005
        %v3007 = vrcp.pop %v3003
        %v3008 = vmul.f32 %v2998, %v3007
        %v3009 = vrcp.pop %v3006
        %v3010 = vmul.f32 %v3000, %v3009
        %v3012 = vsel %vm1259, %v3008, 0
        %v3015 = vsel %vm1259, %v3010, 0
        %3017 = vmatprep.subr.mxu0 0.0
        %3018 = vmatpush1.msra.mxu0 %v2894
        %3019 = vmatprep.subr.mxu0 0.0
        %3020 = vmatpush1.msra.mxu0 %v2899
        %3021 = vmatprep.subr.mxu0 0.0
        %3022 = vmatpush1.msra.mxu0 0.0
        %3023 = vmatprep.subr.mxu0 0.0
        %3024 = vmatpush1.msra.mxu0 0.0
        %3025 = vmatprep.subr.mxu0 0.0
        %3026 = vmatpush1.msra.mxu0 0.0
        %3027 = vmatprep.subr.mxu0 0.0
        %3028 = vmatpush1.msra.mxu0 0.0
        %3029 = vmatprep.subr.mxu0 0.0
        %3030 = vmatpush1.msra.mxu0 0.0
        %3031 = vmatprep.subr.mxu0 0.0
        %3032 = vmatpush1.msra.mxu0 0.0
        %3033 = vmatprep.subr.mxu0 0.0
        %3034 = vmatpush1.msra.mxu0 0.0
        %3035 = vmatprep.subr.mxu0 0.0
        %3036 = vmatpush1.msra.mxu0 0.0
        %3037 = vmatprep.subr.mxu0 0.0
        %3038 = vmatpush1.msra.mxu0 0.0
        %3039 = vmatprep.subr.mxu0 0.0
        %3040 = vmatpush1.msra.mxu0 0.0
        %3041 = vmatprep.subr.mxu0 0.0
        %3042 = vmatpush1.msra.mxu0 0.0
        %3043 = vmatprep.subr.mxu0 0.0
        %3044 = vmatpush1.msra.mxu0 0.0
        %3045 = vmatprep.subr.mxu0 0.0
        %3046 = vmatpush1.msra.mxu0 0.0
        %3047 = vmatprep.subr.mxu0 0.0
        %3048 = vmatpush1.msra.mxu0 0.0
        %3049 = vmatprep.subr.mxu0 0.0
        %3050 = vmatpush1.msra.mxu0 0.0
        %3051 = vmatprep.subr.mxu0 0.0
        %3052 = vmatpush1.msra.mxu0 0.0
        %3053 = vmatprep.subr.mxu0 0.0
        %3054 = vmatpush1.msra.mxu0 0.0
        %3055 = vmatprep.subr.mxu0 0.0
        %3056 = vmatpush1.msra.mxu0 0.0
        %3057 = vmatprep.subr.mxu0 0.0
        %3058 = vmatpush1.msra.mxu0 0.0
        %3059 = vmatprep.subr.mxu0 0.0
        %3060 = vmatpush1.msra.mxu0 0.0
        %3061 = vmatprep.subr.mxu0 0.0
        %3062 = vmatpush1.msra.mxu0 0.0
        %3063 = vmatprep.subr.mxu0 0.0
        %3064 = vmatpush1.msra.mxu0 0.0
        %3065 = vmatprep.subr.mxu0 0.0
        %3066 = vmatpush1.msra.mxu0 0.0
        %3067 = vmatprep.subr.mxu0 0.0
        %3068 = vmatpush1.msra.mxu0 0.0
        %3069 = vmatprep.subr.mxu0 0.0
        %3070 = vmatpush1.msra.mxu0 0.0
        %3071 = vmatprep.subr.mxu0 0.0
        %3072 = vmatpush1.msra.mxu0 0.0
        %3073 = vmatprep.subr.mxu0 0.0
        %3074 = vmatpush1.msra.mxu0 0.0
        %3075 = vmatprep.subr.mxu0 0.0
        %3076 = vmatpush1.msra.mxu0 0.0
        %3077 = vmatprep.subr.mxu0 0.0
        %3078 = vmatpush1.msra.mxu0 0.0
        %3079 = vmatprep.subr.mxu0 0.0
        %3080 = vmatpush1.msra.mxu0 0.0
        %3081 = vmatprep.mubr.f32.mxu0 0.0
        %3082 = vmatmul.mubr.f32.gmra.mrb[0].mxu0 %v3012
        %v3083 = vpop.f32.mrb[0].mxu0
        %v3084 = vadd.f32 0.0, %v3083
        %v3085 = vpop.f32.mrb[0].mxu0
        %3086 = vmatprep.mubr.f32.mxu0 0.0
        %3087 = vmatmul.mubr.f32.gmra.mrb[0].mxu0 %v3015
        %v3088 = vpop.f32.mrb[0].mxu0
        %v3089 = vadd.f32 0.0, %v3088
        %v3090 = vpop.f32.mrb[0].mxu0
        %3091 = vdwg.mxu0
        %s3092 = scalar_lea.vmem %s10, 96
        %v3093 = vld [vmem:[%s3092] sm:$0xff]
        %v3094 = vld [vmem:[%s3092 + $0x8] sm:$0xff]
        %v3095 = vld [vmem:[%s3092 + $0x10] sm:$0xff]
        %v3096 = vld [vmem:[%s3092 + $0x18] sm:$0xff]
        %v3098 = vsel %vm1171, %v3084, 0
        %v3101 = vsel %vm1171, %v3089, 0
        %3103 = vmatprep.subr.mxu0 0.0
        %3104 = vmatpush1.msra.mxu0 %v3093
        %3105 = vmatprep.subr.mxu0 0.0
        %3106 = vmatpush1.msra.mxu0 %v3094
        %3107 = vmatprep.subr.mxu0 0.0
        %3108 = vmatpush1.msra.mxu0 %v3095
        %3109 = vmatprep.subr.mxu0 0.0
        %3110 = vmatpush1.msra.mxu0 %v3096
        %3111 = vmatprep.subr.mxu0 0.0
        %3112 = vmatpush1.msra.mxu0 0.0
        %3113 = vmatprep.subr.mxu0 0.0
        %3114 = vmatpush1.msra.mxu0 0.0
        %3115 = vmatprep.subr.mxu0 0.0
        %3116 = vmatpush1.msra.mxu0 0.0
        %3117 = vmatprep.subr.mxu0 0.0
        %3118 = vmatpush1.msra.mxu0 0.0
        %3119 = vmatprep.subr.mxu0 0.0
        %3120 = vmatpush1.msra.mxu0 0.0
        %3121 = vmatprep.subr.mxu0 0.0
        %3122 = vmatpush1.msra.mxu0 0.0
        %3123 = vmatprep.subr.mxu0 0.0
        %3124 = vmatpush1.msra.mxu0 0.0
        %3125 = vmatprep.subr.mxu0 0.0
        %3126 = vmatpush1.msra.mxu0 0.0
        %3127 = vmatprep.subr.mxu0 0.0
        %3128 = vmatpush1.msra.mxu0 0.0
        %3129 = vmatprep.subr.mxu0 0.0
        %3130 = vmatpush1.msra.mxu0 0.0
        %3131 = vmatprep.subr.mxu0 0.0
        %3132 = vmatpush1.msra.mxu0 0.0
        %3133 = vmatprep.subr.mxu0 0.0
        %3134 = vmatpush1.msra.mxu0 0.0
        %3135 = vmatprep.subr.mxu0 0.0
        %3136 = vmatpush1.msra.mxu0 0.0
        %3137 = vmatprep.subr.mxu0 0.0
        %3138 = vmatpush1.msra.mxu0 0.0
        %3139 = vmatprep.subr.mxu0 0.0
        %3140 = vmatpush1.msra.mxu0 0.0
        %3141 = vmatprep.subr.mxu0 0.0
        %3142 = vmatpush1.msra.mxu0 0.0
        %3143 = vmatprep.subr.mxu0 0.0
        %3144 = vmatpush1.msra.mxu0 0.0
        %3145 = vmatprep.subr.mxu0 0.0
        %3146 = vmatpush1.msra.mxu0 0.0
        %3147 = vmatprep.subr.mxu0 0.0
        %3148 = vmatpush1.msra.mxu0 0.0
        %3149 = vmatprep.subr.mxu0 0.0
        %3150 = vmatpush1.msra.mxu0 0.0
        %3151 = vmatprep.subr.mxu0 0.0
        %3152 = vmatpush1.msra.mxu0 0.0
        %3153 = vmatprep.subr.mxu0 0.0
        %3154 = vmatpush1.msra.mxu0 0.0
        %3155 = vmatprep.subr.mxu0 0.0
        %3156 = vmatpush1.msra.mxu0 0.0
        %3157 = vmatprep.subr.mxu0 0.0
        %3158 = vmatpush1.msra.mxu0 0.0
        %3159 = vmatprep.subr.mxu0 0.0
        %3160 = vmatpush1.msra.mxu0 0.0
        %3161 = vmatprep.subr.mxu0 0.0
        %3162 = vmatpush1.msra.mxu0 0.0
        %3163 = vmatprep.subr.mxu0 0.0
        %3164 = vmatpush1.msra.mxu0 0.0
        %3165 = vmatprep.subr.mxu0 0.0
        %3166 = vmatpush1.msra.mxu0 0.0
        %3167 = vmatprep.mubr.f32.mxu0 0.0
        %3168 = vmatmul.mubr.f32.gmra.mrb[0].mxu0 %v3098
        %v3169 = vpop.f32.mrb[0].mxu0
        %v3170 = vadd.f32 0.0, %v3169
        %v3171 = vpop.f32.mrb[0].mxu0
        %3172 = vmatprep.mubr.f32.mxu0 0.0
        %3173 = vmatmul.mubr.f32.gmra.mrb[0].mxu0 %v3101
        %v3174 = vpop.f32.mrb[0].mxu0
        %v3175 = vadd.f32 0.0, %v3174
        %v3176 = vpop.f32.mrb[0].mxu0
        %3177 = vdwg.mxu0
        %v3178 = vadd.f32 %v2600, %v3170
        %v3179 = vadd.f32 %v2601, %v3175
        %v3180 = vld [vmem:[%s11] sm:$0x1]
        %v3182 = vlaneseq
        %v3183 = vshrl.u32 %v3182, 7
        %v3184 = vsub.s32 0, %v3183
        %v3185 = vrot.slane %v3180, %v3184
        %v3187 = vadd.f32 %v3178, %v3185
        %v3188 = vadd.f32 %v3179, %v3185
        %v3189 = vadd.f32 %v869, %v3187
        %v3190 = vadd.f32 %v870, %v3188
        %v3191 = vld [vmem:[%s24] sm:$0x1]
        %v3192 = vld [vmem:[%s25] sm:$0x1]
        %3193 = vadd.xlane.f32.xlu0 %v3189
        %v3194 = vpop.xlane.xlu0 %3193
        %3195 = vadd.xlane.f32.xlu0 %v3190
        %v3196 = vpop.xlane.xlu0 %3195
        %v3197 = vrcp.pop 128.0
        %v3198 = vmul.f32 %v3194, %v3197
        %v3199 = vmul.f32 %v3196, %v3197
        %v3200 = vsub.f32 %v3189, %v3198
        %v3201 = vsub.f32 %v3190, %v3199
        %v3202 = vmul.f32 %v3200, %v3200
        %v3203 = vmul.f32 %v3201, %v3201
        %3204 = vadd.xlane.f32.xlu0 %v3202
        %v3205 = vpop.xlane.xlu0 %3204
        %3206 = vadd.xlane.f32.xlu0 %v3203
        %v3207 = vpop.xlane.xlu0 %3206
        %v3208 = vmul.f32 %v3205, %v3197
        %v3209 = vmul.f32 %v3207, %v3197
        %v3210 = vadd.f32 %v3208, 1e-06
        %v3211 = vadd.f32 %v3209, 1e-06
        %v3212 = vrsqrt.pop %v3210
        %v3213 = vrsqrt.pop %v3211
        %v3214 = vmul.f32 %v3200, %v3212
        %v3215 = vmul.f32 %v3201, %v3213
        %v3217 = vlaneseq
        %v3218 = vshrl.u32 %v3217, 7
        %v3219 = vsub.s32 0, %v3218
        %v3220 = vrot.slane %v3191, %v3219
        %v3222 = vmul.f32 %v3214, %v3220
        %v3223 = vmul.f32 %v3215, %v3220
        %v3225 = vlaneseq
        %v3226 = vshrl.u32 %v3225, 7
        %v3227 = vsub.s32 0, %v3226
        %v3228 = vrot.slane %v3192, %v3227
        %v3230 = vadd.f32 %v3222, %v3228
        %v3231 = vadd.f32 %v3223, %v3228
        %v3232 = vld [vmem:[%s3] sm:$0xff]
        %v3233 = vld [vmem:[%s3 + $0x8] sm:$0xff]
        %v3234 = vld [vmem:[%s12] sm:$0xff]
        %v3235 = vld [vmem:[%s12 + $0x8] sm:$0xff]
        %v3236 = vld [vmem:[%s12 + $0x10] sm:$0xff]
        %v3237 = vld [vmem:[%s12 + $0x18] sm:$0xff]
        %v3238 = vld [vmem:[%s12 + $0x20] sm:$0xff]
        %v3239 = vld [vmem:[%s12 + $0x28] sm:$0xff]
        %v3240 = vld [vmem:[%s12 + $0x30] sm:$0xff]
        %v3241 = vld [vmem:[%s12 + $0x38] sm:$0xff]
        %v3242 = vld [vmem:[%s12 + $0x40] sm:$0xff]
        %v3243 = vld [vmem:[%s12 + $0x48] sm:$0xff]
        %v3244 = vld [vmem:[%s12 + $0x50] sm:$0xff]
        %v3245 = vld [vmem:[%s12 + $0x58] sm:$0xff]
        %v3246 = vld [vmem:[%s12 + $0x60] sm:$0xff]
        %v3247 = vld [vmem:[%s12 + $0x68] sm:$0xff]
        %v3248 = vld [vmem:[%s12 + $0x70] sm:$0xff]
        %v3249 = vld [vmem:[%s12 + $0x78] sm:$0xff]
        %v3250 = vld [vmem:[%s15] sm:$0x1]
        %v3252 = vlaneseq
        %v3253 = vshrl.u32 %v3252, 7
        %v3254 = vsub.s32 0, %v3253
        %v3255 = vrot.slane %v3250, %v3254
        %3257 = vmatprep.subr.mxu0 0.0
        %3258 = vmatpush1.msra.mxu0 %v3234
        %3259 = vmatprep.subr.mxu0 0.0
        %3260 = vmatpush1.msra.mxu0 %v3235
        %3261 = vmatprep.subr.mxu0 0.0
        %3262 = vmatpush1.msra.mxu0 %v3236
        %3263 = vmatprep.subr.mxu0 0.0
        %3264 = vmatpush1.msra.mxu0 %v3237
        %3265 = vmatprep.subr.mxu0 0.0
        %3266 = vmatpush1.msra.mxu0 %v3238
        %3267 = vmatprep.subr.mxu0 0.0
        %3268 = vmatpush1.msra.mxu0 %v3239
        %3269 = vmatprep.subr.mxu0 0.0
        %3270 = vmatpush1.msra.mxu0 %v3240
        %3271 = vmatprep.subr.mxu0 0.0
        %3272 = vmatpush1.msra.mxu0 %v3241
        %3273 = vmatprep.subr.mxu0 0.0
        %3274 = vmatpush1.msra.mxu0 %v3242
        %3275 = vmatprep.subr.mxu0 0.0
        %3276 = vmatpush1.msra.mxu0 %v3243
        %3277 = vmatprep.subr.mxu0 0.0
        %3278 = vmatpush1.msra.mxu0 %v3244
        %3279 = vmatprep.subr.mxu0 0.0
        %3280 = vmatpush1.msra.mxu0 %v3245
        %3281 = vmatprep.subr.mxu0 0.0
        %3282 = vmatpush1.msra.mxu0 %v3246
        %3283 = vmatprep.subr.mxu0 0.0
        %3284 = vmatpush1.msra.mxu0 %v3247
        %3285 = vmatprep.subr.mxu0 0.0
        %3286 = vmatpush1.msra.mxu0 %v3248
        %3287 = vmatprep.subr.mxu0 0.0
        %3288 = vmatpush1.msra.mxu0 %v3249
        %3289 = vmatprep.subr.mxu0 0.0
        %3290 = vmatpush1.msra.mxu0 0.0
        %3291 = vmatprep.subr.mxu0 0.0
        %3292 = vmatpush1.msra.mxu0 0.0
        %3293 = vmatprep.subr.mxu0 0.0
        %3294 = vmatpush1.msra.mxu0 0.0
        %3295 = vmatprep.subr.mxu0 0.0
        %3296 = vmatpush1.msra.mxu0 0.0
        %3297 = vmatprep.subr.mxu0 0.0
        %3298 = vmatpush1.msra.mxu0 0.0
        %3299 = vmatprep.subr.mxu0 0.0
        %3300 = vmatpush1.msra.mxu0 0.0
        %3301 = vmatprep.subr.mxu0 0.0
        %3302 = vmatpush1.msra.mxu0 0.0
        %3303 = vmatprep.subr.mxu0 0.0
        %3304 = vmatpush1.msra.mxu0 0.0
        %3305 = vmatprep.subr.mxu0 0.0
        %3306 = vmatpush1.msra.mxu0 0.0
        %3307 = vmatprep.subr.mxu0 0.0
        %3308 = vmatpush1.msra.mxu0 0.0
        %3309 = vmatprep.subr.mxu0 0.0
        %3310 = vmatpush1.msra.mxu0 0.0
        %3311 = vmatprep.subr.mxu0 0.0
        %3312 = vmatpush1.msra.mxu0 0.0
        %3313 = vmatprep.subr.mxu0 0.0
        %3314 = vmatpush1.msra.mxu0 0.0
        %3315 = vmatprep.subr.mxu0 0.0
        %3316 = vmatpush1.msra.mxu0 0.0
        %3317 = vmatprep.subr.mxu0 0.0
        %3318 = vmatpush1.msra.mxu0 0.0
        %3319 = vmatprep.subr.mxu0 0.0
        %3320 = vmatpush1.msra.mxu0 0.0
        %3321 = vmatprep.mubr.f32.mxu0 0.0
        %3322 = vmatmul.mubr.f32.gmra.mrb[0].mxu0 %v3230
        %v3323 = vpop.f32.mrb[0].mxu0
        %v3324 = vadd.f32 %v3255, %v3323
        %v3325 = vpop.f32.mrb[0].mxu0
        %3326 = vmatprep.mubr.f32.mxu0 0.0
        %3327 = vmatmul.mubr.f32.gmra.mrb[0].mxu0 %v3231
        %v3328 = vpop.f32.mrb[0].mxu0
        %v3329 = vadd.f32 %v3255, %v3328
        %v3330 = vpop.f32.mrb[0].mxu0
        %3331 = vdwg.mxu0
        %v3332 = vld [vmem:[%s13] sm:$0xff]
        %v3333 = vld [vmem:[%s13 + $0x8] sm:$0xff]
        %v3334 = vld [vmem:[%s13 + $0x10] sm:$0xff]
        %v3335 = vld [vmem:[%s13 + $0x18] sm:$0xff]
        %v3336 = vld [vmem:[%s13 + $0x20] sm:$0xff]
        %v3337 = vld [vmem:[%s13 + $0x28] sm:$0xff]
        %v3338 = vld [vmem:[%s13 + $0x30] sm:$0xff]
        %v3339 = vld [vmem:[%s13 + $0x38] sm:$0xff]
        %v3340 = vld [vmem:[%s13 + $0x40] sm:$0xff]
        %v3341 = vld [vmem:[%s13 + $0x48] sm:$0xff]
        %v3342 = vld [vmem:[%s13 + $0x50] sm:$0xff]
        %v3343 = vld [vmem:[%s13 + $0x58] sm:$0xff]
        %v3344 = vld [vmem:[%s13 + $0x60] sm:$0xff]
        %v3345 = vld [vmem:[%s13 + $0x68] sm:$0xff]
        %v3346 = vld [vmem:[%s13 + $0x70] sm:$0xff]
        %v3347 = vld [vmem:[%s13 + $0x78] sm:$0xff]
        %v3348 = vld [vmem:[%s16] sm:$0x1]
        %v3350 = vlaneseq
        %v3351 = vshrl.u32 %v3350, 7
        %v3352 = vsub.s32 0, %v3351
        %v3353 = vrot.slane %v3348, %v3352
        %3355 = vmatprep.subr.mxu0 0.0
        %3356 = vmatpush1.msra.mxu0 %v3332
        %3357 = vmatprep.subr.mxu0 0.0
        %3358 = vmatpush1.msra.mxu0 %v3333
        %3359 = vmatprep.subr.mxu0 0.0
        %3360 = vmatpush1.msra.mxu0 %v3334
        %3361 = vmatprep.subr.mxu0 0.0
        %3362 = vmatpush1.msra.mxu0 %v3335
        %3363 = vmatprep.subr.mxu0 0.0
        %3364 = vmatpush1.msra.mxu0 %v3336
        %3365 = vmatprep.subr.mxu0 0.0
        %3366 = vmatpush1.msra.mxu0 %v3337
        %3367 = vmatprep.subr.mxu0 0.0
        %3368 = vmatpush1.msra.mxu0 %v3338
        %3369 = vmatprep.subr.mxu0 0.0
        %3370 = vmatpush1.msra.mxu0 %v3339
        %3371 = vmatprep.subr.mxu0 0.0
        %3372 = vmatpush1.msra.mxu0 %v3340
        %3373 = vmatprep.subr.mxu0 0.0
        %3374 = vmatpush1.msra.mxu0 %v3341
        %3375 = vmatprep.subr.mxu0 0.0
        %3376 = vmatpush1.msra.mxu0 %v3342
        %3377 = vmatprep.subr.mxu0 0.0
        %3378 = vmatpush1.msra.mxu0 %v3343
        %3379 = vmatprep.subr.mxu0 0.0
        %3380 = vmatpush1.msra.mxu0 %v3344
        %3381 = vmatprep.subr.mxu0 0.0
        %3382 = vmatpush1.msra.mxu0 %v3345
        %3383 = vmatprep.subr.mxu0 0.0
        %3384 = vmatpush1.msra.mxu0 %v3346
        %3385 = vmatprep.subr.mxu0 0.0
        %3386 = vmatpush1.msra.mxu0 %v3347
        %3387 = vmatprep.subr.mxu0 0.0
        %3388 = vmatpush1.msra.mxu0 0.0
        %3389 = vmatprep.subr.mxu0 0.0
        %3390 = vmatpush1.msra.mxu0 0.0
        %3391 = vmatprep.subr.mxu0 0.0
        %3392 = vmatpush1.msra.mxu0 0.0
        %3393 = vmatprep.subr.mxu0 0.0
        %3394 = vmatpush1.msra.mxu0 0.0
        %3395 = vmatprep.subr.mxu0 0.0
        %3396 = vmatpush1.msra.mxu0 0.0
        %3397 = vmatprep.subr.mxu0 0.0
        %3398 = vmatpush1.msra.mxu0 0.0
        %3399 = vmatprep.subr.mxu0 0.0
        %3400 = vmatpush1.msra.mxu0 0.0
        %3401 = vmatprep.subr.mxu0 0.0
        %3402 = vmatpush1.msra.mxu0 0.0
        %3403 = vmatprep.subr.mxu0 0.0
        %3404 = vmatpush1.msra.mxu0 0.0
        %3405 = vmatprep.subr.mxu0 0.0
        %3406 = vmatpush1.msra.mxu0 0.0
        %3407 = vmatprep.subr.mxu0 0.0
        %3408 = vmatpush1.msra.mxu0 0.0
        %3409 = vmatprep.subr.mxu0 0.0
        %3410 = vmatpush1.msra.mxu0 0.0
        %3411 = vmatprep.subr.mxu0 0.0
        %3412 = vmatpush1.msra.mxu0 0.0
        %3413 = vmatprep.subr.mxu0 0.0
        %3414 = vmatpush1.msra.mxu0 0.0
        %3415 = vmatprep.subr.mxu0 0.0
        %3416 = vmatpush1.msra.mxu0 0.0
        %3417 = vmatprep.subr.mxu0 0.0
        %3418 = vmatpush1.msra.mxu0 0.0
        %3419 = vmatprep.mubr.f32.mxu0 0.0
        %3420 = vmatmul.mubr.f32.gmra.mrb[0].mxu0 %v871
        %v3421 = vpop.f32.mrb[0].mxu0
        %v3422 = vadd.f32 %v3353, %v3421
        %v3423 = vpop.f32.mrb[0].mxu0
        %3424 = vmatprep.mubr.f32.mxu0 0.0
        %3425 = vmatmul.mubr.f32.gmra.mrb[0].mxu0 %v872
        %v3426 = vpop.f32.mrb[0].mxu0
        %v3427 = vadd.f32 %v3353, %v3426
        %v3428 = vpop.f32.mrb[0].mxu0
        %3429 = vmatprep.mubr.f32.mxu0 0.0
        %3430 = vmatmul.mubr.f32.gmra.mrb[0].mxu0 %v873
        %v3431 = vpop.f32.mrb[0].mxu0
        %v3432 = vadd.f32 %v3353, %v3431
        %v3433 = vpop.f32.mrb[0].mxu0
        %3434 = vmatprep.mubr.f32.mxu0 0.0
        %3435 = vmatmul.mubr.f32.gmra.mrb[0].mxu0 %v874
        %v3436 = vpop.f32.mrb[0].mxu0
        %v3437 = vadd.f32 %v3353, %v3436
        %v3438 = vpop.f32.mrb[0].mxu0
        %3439 = vdwg.mxu0
        %v3440 = vld [vmem:[%s14] sm:$0xff]
        %v3441 = vld [vmem:[%s14 + $0x8] sm:$0xff]
        %v3442 = vld [vmem:[%s14 + $0x10] sm:$0xff]
        %v3443 = vld [vmem:[%s14 + $0x18] sm:$0xff]
        %v3444 = vld [vmem:[%s14 + $0x20] sm:$0xff]
        %v3445 = vld [vmem:[%s14 + $0x28] sm:$0xff]
        %v3446 = vld [vmem:[%s14 + $0x30] sm:$0xff]
        %v3447 = vld [vmem:[%s14 + $0x38] sm:$0xff]
        %v3448 = vld [vmem:[%s14 + $0x40] sm:$0xff]
        %v3449 = vld [vmem:[%s14 + $0x48] sm:$0xff]
        %v3450 = vld [vmem:[%s14 + $0x50] sm:$0xff]
        %v3451 = vld [vmem:[%s14 + $0x58] sm:$0xff]
        %v3452 = vld [vmem:[%s14 + $0x60] sm:$0xff]
        %v3453 = vld [vmem:[%s14 + $0x68] sm:$0xff]
        %v3454 = vld [vmem:[%s14 + $0x70] sm:$0xff]
        %v3455 = vld [vmem:[%s14 + $0x78] sm:$0xff]
        %v3456 = vld [vmem:[%s17] sm:$0x1]
        %v3458 = vlaneseq
        %v3459 = vshrl.u32 %v3458, 7
        %v3460 = vsub.s32 0, %v3459
        %v3461 = vrot.slane %v3456, %v3460
        %3463 = vmatprep.subr.mxu0 0.0
        %3464 = vmatpush1.msra.mxu0 %v3440
        %3465 = vmatprep.subr.mxu0 0.0
        %3466 = vmatpush1.msra.mxu0 %v3441
        %3467 = vmatprep.subr.mxu0 0.0
        %3468 = vmatpush1.msra.mxu0 %v3442
        %3469 = vmatprep.subr.mxu0 0.0
        %3470 = vmatpush1.msra.mxu0 %v3443
        %3471 = vmatprep.subr.mxu0 0.0
        %3472 = vmatpush1.msra.mxu0 %v3444
        %3473 = vmatprep.subr.mxu0 0.0
        %3474 = vmatpush1.msra.mxu0 %v3445
        %3475 = vmatprep.subr.mxu0 0.0
        %3476 = vmatpush1.msra.mxu0 %v3446
        %3477 = vmatprep.subr.mxu0 0.0
        %3478 = vmatpush1.msra.mxu0 %v3447
        %3479 = vmatprep.subr.mxu0 0.0
        %3480 = vmatpush1.msra.mxu0 %v3448
        %3481 = vmatprep.subr.mxu0 0.0
        %3482 = vmatpush1.msra.mxu0 %v3449
        %3483 = vmatprep.subr.mxu0 0.0
        %3484 = vmatpush1.msra.mxu0 %v3450
        %3485 = vmatprep.subr.mxu0 0.0
        %3486 = vmatpush1.msra.mxu0 %v3451
        %3487 = vmatprep.subr.mxu0 0.0
        %3488 = vmatpush1.msra.mxu0 %v3452
        %3489 = vmatprep.subr.mxu0 0.0
        %3490 = vmatpush1.msra.mxu0 %v3453
        %3491 = vmatprep.subr.mxu0 0.0
        %3492 = vmatpush1.msra.mxu0 %v3454
        %3493 = vmatprep.subr.mxu0 0.0
        %3494 = vmatpush1.msra.mxu0 %v3455
        %3495 = vmatprep.subr.mxu0 0.0
        %3496 = vmatpush1.msra.mxu0 0.0
        %3497 = vmatprep.subr.mxu0 0.0
        %3498 = vmatpush1.msra.mxu0 0.0
        %3499 = vmatprep.subr.mxu0 0.0
        %3500 = vmatpush1.msra.mxu0 0.0
        %3501 = vmatprep.subr.mxu0 0.0
        %3502 = vmatpush1.msra.mxu0 0.0
        %3503 = vmatprep.subr.mxu0 0.0
        %3504 = vmatpush1.msra.mxu0 0.0
        %3505 = vmatprep.subr.mxu0 0.0
        %3506 = vmatpush1.msra.mxu0 0.0
        %3507 = vmatprep.subr.mxu0 0.0
        %3508 = vmatpush1.msra.mxu0 0.0
        %3509 = vmatprep.subr.mxu0 0.0
        %3510 = vmatpush1.msra.mxu0 0.0
        %3511 = vmatprep.subr.mxu0 0.0
        %3512 = vmatpush1.msra.mxu0 0.0
        %3513 = vmatprep.subr.mxu0 0.0
        %3514 = vmatpush1.msra.mxu0 0.0
        %3515 = vmatprep.subr.mxu0 0.0
        %3516 = vmatpush1.msra.mxu0 0.0
        %3517 = vmatprep.subr.mxu0 0.0
        %3518 = vmatpush1.msra.mxu0 0.0
        %3519 = vmatprep.subr.mxu0 0.0
        %3520 = vmatpush1.msra.mxu0 0.0
        %3521 = vmatprep.subr.mxu0 0.0
        %3522 = vmatpush1.msra.mxu0 0.0
        %3523 = vmatprep.subr.mxu0 0.0
        %3524 = vmatpush1.msra.mxu0 0.0
        %3525 = vmatprep.subr.mxu0 0.0
        %3526 = vmatpush1.msra.mxu0 0.0
        %3527 = vmatprep.mubr.f32.mxu0 0.0
        %3528 = vmatmul.mubr.f32.gmra.mrb[0].mxu0 %v871
        %v3529 = vpop.f32.mrb[0].mxu0
        %v3530 = vadd.f32 %v3461, %v3529
        %v3531 = vpop.f32.mrb[0].mxu0
        %3532 = vmatprep.mubr.f32.mxu0 0.0
        %3533 = vmatmul.mubr.f32.gmra.mrb[0].mxu0 %v872
        %v3534 = vpop.f32.mrb[0].mxu0
        %v3535 = vadd.f32 %v3461, %v3534
        %v3536 = vpop.f32.mrb[0].mxu0
        %3537 = vmatprep.mubr.f32.mxu0 0.0
        %3538 = vmatmul.mubr.f32.gmra.mrb[0].mxu0 %v873
        %v3539 = vpop.f32.mrb[0].mxu0
        %v3540 = vadd.f32 %v3461, %v3539
        %v3541 = vpop.f32.mrb[0].mxu0
        %3542 = vmatprep.mubr.f32.mxu0 0.0
        %3543 = vmatmul.mubr.f32.gmra.mrb[0].mxu0 %v874
        %v3544 = vpop.f32.mrb[0].mxu0
        %v3545 = vadd.f32 %v3461, %v3544
        %v3546 = vpop.f32.mrb[0].mxu0
        %3547 = vdwg.mxu0
        %v3549 = vsel %vm1171, %v3324, 0
        %v3552 = vsel %vm1171, %v3329, 0
        %v3555 = vsel %vm1171, %v3422, 0
        %v3558 = vsel %vm1171, %v3427, 0
        %v3561 = vsel %vm1171, %v3432, 0
        %v3564 = vsel %vm1171, %v3437, 0
        %3566 = vmatprep.subr.mxu0 0.0
        %3567 = vmatpush1.xpose.msra.mxu0 %v3555
        %3568 = vmatprep.subr.mxu0 0.0
        %3569 = vmatpush1.xpose.msra.mxu0 %v3558
        %3570 = vmatprep.subr.mxu0 0.0
        %3571 = vmatpush1.xpose.msra.mxu0 %v3561
        %3572 = vmatprep.subr.mxu0 0.0
        %3573 = vmatpush1.xpose.msra.mxu0 %v3564
        %3574 = vmatprep.subr.mxu0 0.0
        %3575 = vmatpush1.xpose.msra.mxu0 0.0
        %3576 = vmatprep.subr.mxu0 0.0
        %3577 = vmatpush1.xpose.msra.mxu0 0.0
        %3578 = vmatprep.subr.mxu0 0.0
        %3579 = vmatpush1.xpose.msra.mxu0 0.0
        %3580 = vmatprep.subr.mxu0 0.0
        %3581 = vmatpush1.xpose.msra.mxu0 0.0
        %3582 = vmatprep.subr.mxu0 0.0
        %3583 = vmatpush1.xpose.msra.mxu0 0.0
        %3584 = vmatprep.subr.mxu0 0.0
        %3585 = vmatpush1.xpose.msra.mxu0 0.0
        %3586 = vmatprep.subr.mxu0 0.0
        %3587 = vmatpush1.xpose.msra.mxu0 0.0
        %3588 = vmatprep.subr.mxu0 0.0
        %3589 = vmatpush1.xpose.msra.mxu0 0.0
        %3590 = vmatprep.subr.mxu0 0.0
        %3591 = vmatpush1.xpose.msra.mxu0 0.0
        %3592 = vmatprep.subr.mxu0 0.0
        %3593 = vmatpush1.xpose.msra.mxu0 0.0
        %3594 = vmatprep.subr.mxu0 0.0
        %3595 = vmatpush1.xpose.msra.mxu0 0.0
        %3596 = vmatprep.subr.mxu0 0.0
        %3597 = vmatpush1.xpose.msra.mxu0 0.0
        %3598 = vmatprep.subr.mxu0 0.0
        %3599 = vmatpush1.xpose.msra.mxu0 0.0
        %3600 = vmatprep.subr.mxu0 0.0
        %3601 = vmatpush1.xpose.msra.mxu0 0.0
        %3602 = vmatprep.subr.mxu0 0.0
        %3603 = vmatpush1.xpose.msra.mxu0 0.0
        %3604 = vmatprep.subr.mxu0 0.0
        %3605 = vmatpush1.xpose.msra.mxu0 0.0
        %3606 = vmatprep.subr.mxu0 0.0
        %3607 = vmatpush1.xpose.msra.mxu0 0.0
        %3608 = vmatprep.subr.mxu0 0.0
        %3609 = vmatpush1.xpose.msra.mxu0 0.0
        %3610 = vmatprep.subr.mxu0 0.0
        %3611 = vmatpush1.xpose.msra.mxu0 0.0
        %3612 = vmatprep.subr.mxu0 0.0
        %3613 = vmatpush1.xpose.msra.mxu0 0.0
        %3614 = vmatprep.subr.mxu0 0.0
        %3615 = vmatpush1.xpose.msra.mxu0 0.0
        %3616 = vmatprep.subr.mxu0 0.0
        %3617 = vmatpush1.xpose.msra.mxu0 0.0
        %3618 = vmatprep.subr.mxu0 0.0
        %3619 = vmatpush1.xpose.msra.mxu0 0.0
        %3620 = vmatprep.subr.mxu0 0.0
        %3621 = vmatpush1.xpose.msra.mxu0 0.0
        %3622 = vmatprep.subr.mxu0 0.0
        %3623 = vmatpush1.xpose.msra.mxu0 0.0
        %3624 = vmatprep.subr.mxu0 0.0
        %3625 = vmatpush1.xpose.msra.mxu0 0.0
        %3626 = vmatprep.subr.mxu0 0.0
        %3627 = vmatpush1.xpose.msra.mxu0 0.0
        %3628 = vmatprep.subr.mxu0 0.0
        %3629 = vmatpush1.xpose.msra.mxu0 0.0
        %3630 = vmatprep.mubr.f32.mxu0 0.0
        %3631 = vmatmul.mubr.f32.gmra.mrb[0].mxu0 %v3549
        %v3632 = vpop.f32.mrb[0].mxu0
        %v3633 = vadd.f32 %v3232, %v3632
        %v3634 = vpop.f32.mrb[0].mxu0
        %3635 = vmatprep.mubr.f32.mxu0 0.0
        %3636 = vmatmul.mubr.f32.gmra.mrb[0].mxu0 %v3552
        %v3637 = vpop.f32.mrb[0].mxu0
        %v3638 = vadd.f32 %v3233, %v3637
        %v3639 = vpop.f32.mrb[0].mxu0
        %3640 = vdwg.mxu0
        %v3641 = vsel %vm1171, %v3633, -inf
        %3642 = vmax.xlane.f32.xlu0 %v3641
        %v3643 = vpop.xlane.xlu0 %3642
        %v3644 = vsel %vm1171, %v3638, -inf
        %3645 = vmax.xlane.f32.xlu0 %v3644
        %v3646 = vpop.xlane.xlu0 %3645
        %v3647 = vsub.f32 %v3633, %v3643
        %v3648 = vsub.f32 %v3638, %v3646
        %v3649 = vmul.f32 %v3647, 1.442695
        %v3650 = vpow.pop %v3649
        %v3651 = vmul.f32 %v3648, 1.442695
        %v3652 = vpow.pop %v3651
        %v3653 = vsel %vm1171, %v3650, 0.0
        %3654 = vadd.xlane.f32.xlu0 %v3653
        %v3655 = vpop.xlane.xlu0 %3654
        %v3656 = vsel %vm1171, %v3652, 0.0
        %3657 = vadd.xlane.f32.xlu0 %v3656
        %v3658 = vpop.xlane.xlu0 %3657
        %v3659 = vrcp.pop %v3655
        %v3660 = vmul.f32 %v3650, %v3659
        %v3661 = vrcp.pop %v3658
        %v3662 = vmul.f32 %v3652, %v3661
        %v3664 = vsel %vm1171, %v3660, 0
        %v3667 = vsel %vm1171, %v3662, 0
        %3669 = vmatprep.subr.mxu0 0.0
        %3670 = vmatpush1.msra.mxu0 %v3530
        %3671 = vmatprep.subr.mxu0 0.0
        %3672 = vmatpush1.msra.mxu0 %v3535
        %3673 = vmatprep.subr.mxu0 0.0
        %3674 = vmatpush1.msra.mxu0 %v3540
        %3675 = vmatprep.subr.mxu0 0.0
        %3676 = vmatpush1.msra.mxu0 %v3545
        %3677 = vmatprep.subr.mxu0 0.0
        %3678 = vmatpush1.msra.mxu0 0.0
        %3679 = vmatprep.subr.mxu0 0.0
        %3680 = vmatpush1.msra.mxu0 0.0
        %3681 = vmatprep.subr.mxu0 0.0
        %3682 = vmatpush1.msra.mxu0 0.0
        %3683 = vmatprep.subr.mxu0 0.0
        %3684 = vmatpush1.msra.mxu0 0.0
        %3685 = vmatprep.subr.mxu0 0.0
        %3686 = vmatpush1.msra.mxu0 0.0
        %3687 = vmatprep.subr.mxu0 0.0
        %3688 = vmatpush1.msra.mxu0 0.0
        %3689 = vmatprep.subr.mxu0 0.0
        %3690 = vmatpush1.msra.mxu0 0.0
        %3691 = vmatprep.subr.mxu0 0.0
        %3692 = vmatpush1.msra.mxu0 0.0
        %3693 = vmatprep.subr.mxu0 0.0
        %3694 = vmatpush1.msra.mxu0 0.0
        %3695 = vmatprep.subr.mxu0 0.0
        %3696 = vmatpush1.msra.mxu0 0.0
        %3697 = vmatprep.subr.mxu0 0.0
        %3698 = vmatpush1.msra.mxu0 0.0
        %3699 = vmatprep.subr.mxu0 0.0
        %3700 = vmatpush1.msra.mxu0 0.0
        %3701 = vmatprep.subr.mxu0 0.0
        %3702 = vmatpush1.msra.mxu0 0.0
        %3703 = vmatprep.subr.mxu0 0.0
        %3704 = vmatpush1.msra.mxu0 0.0
        %3705 = vmatprep.subr.mxu0 0.0
        %3706 = vmatpush1.msra.mxu0 0.0
        %3707 = vmatprep.subr.mxu0 0.0
        %3708 = vmatpush1.msra.mxu0 0.0
        %3709 = vmatprep.subr.mxu0 0.0
        %3710 = vmatpush1.msra.mxu0 0.0
        %3711 = vmatprep.subr.mxu0 0.0
        %3712 = vmatpush1.msra.mxu0 0.0
        %3713 = vmatprep.subr.mxu0 0.0
        %3714 = vmatpush1.msra.mxu0 0.0
        %3715 = vmatprep.subr.mxu0 0.0
        %3716 = vmatpush1.msra.mxu0 0.0
        %3717 = vmatprep.subr.mxu0 0.0
        %3718 = vmatpush1.msra.mxu0 0.0
        %3719 = vmatprep.subr.mxu0 0.0
        %3720 = vmatpush1.msra.mxu0 0.0
        %3721 = vmatprep.subr.mxu0 0.0
        %3722 = vmatpush1.msra.mxu0 0.0
        %3723 = vmatprep.subr.mxu0 0.0
        %3724 = vmatpush1.msra.mxu0 0.0
        %3725 = vmatprep.subr.mxu0 0.0
        %3726 = vmatpush1.msra.mxu0 0.0
        %3727 = vmatprep.subr.mxu0 0.0
        %3728 = vmatpush1.msra.mxu0 0.0
        %3729 = vmatprep.subr.mxu0 0.0
        %3730 = vmatpush1.msra.mxu0 0.0
        %3731 = vmatprep.subr.mxu0 0.0
        %3732 = vmatpush1.msra.mxu0 0.0
        %3733 = vmatprep.mubr.f32.mxu0 0.0
        %3734 = vmatmul.mubr.f32.gmra.mrb[0].mxu0 %v3664
        %v3735 = vpop.f32.mrb[0].mxu0
        %v3736 = vadd.f32 0.0, %v3735
        %v3737 = vpop.f32.mrb[0].mxu0
        %3738 = vmatprep.mubr.f32.mxu0 0.0
        %3739 = vmatmul.mubr.f32.gmra.mrb[0].mxu0 %v3667
        %v3740 = vpop.f32.mrb[0].mxu0
        %v3741 = vadd.f32 0.0, %v3740
        %v3742 = vpop.f32.mrb[0].mxu0
        %3743 = vdwg.mxu0
        %v3744 = vld [vmem:[%s18] sm:$0xff]
        %v3745 = vld [vmem:[%s18 + $0x8] sm:$0xff]
        %v3746 = vld [vmem:[%s18 + $0x10] sm:$0xff]
        %v3747 = vld [vmem:[%s18 + $0x18] sm:$0xff]
        %s3748 = scalar_lea.vmem %s12, 128
        %v3749 = vld [vmem:[%s3748] sm:$0xff]
        %v3750 = vld [vmem:[%s3748 + $0x8] sm:$0xff]
        %v3751 = vld [vmem:[%s3748 + $0x10] sm:$0xff]
        %v3752 = vld [vmem:[%s3748 + $0x18] sm:$0xff]
        %v3753 = vld [vmem:[%s3748 + $0x20] sm:$0xff]
        %v3754 = vld [vmem:[%s3748 + $0x28] sm:$0xff]
        %v3755 = vld [vmem:[%s3748 + $0x30] sm:$0xff]
        %v3756 = vld [vmem:[%s3748 + $0x38] sm:$0xff]
        %v3757 = vld [vmem:[%s3748 + $0x40] sm:$0xff]
        %v3758 = vld [vmem:[%s3748 + $0x48] sm:$0xff]
        %v3759 = vld [vmem:[%s3748 + $0x50] sm:$0xff]
        %v3760 = vld [vmem:[%s3748 + $0x58] sm:$0xff]
        %v3761 = vld [vmem:[%s3748 + $0x60] sm:$0xff]
        %v3762 = vld [vmem:[%s3748 + $0x68] sm:$0xff]
        %v3763 = vld [vmem:[%s3748 + $0x70] sm:$0xff]
        %v3764 = vld [vmem:[%s3748 + $0x78] sm:$0xff]
        %s3765 = scalar_lea.vmem %s15, 1
        %v3766 = vld [vmem:[%s3765] sm:$0x1]
        %v3768 = vlaneseq
        %v3769 = vshrl.u32 %v3768, 7
        %v3770 = vsub.s32 0, %v3769
        %v3771 = vrot.slane %v3766, %v3770
        %3773 = vmatprep.subr.mxu0 0.0
        %3774 = vmatpush1.msra.mxu0 %v3749
        %3775 = vmatprep.subr.mxu0 0.0
        %3776 = vmatpush1.msra.mxu0 %v3750
        %3777 = vmatprep.subr.mxu0 0.0
        %3778 = vmatpush1.msra.mxu0 %v3751
        %3779 = vmatprep.subr.mxu0 0.0
        %3780 = vmatpush1.msra.mxu0 %v3752
        %3781 = vmatprep.subr.mxu0 0.0
        %3782 = vmatpush1.msra.mxu0 %v3753
        %3783 = vmatprep.subr.mxu0 0.0
        %3784 = vmatpush1.msra.mxu0 %v3754
        %3785 = vmatprep.subr.mxu0 0.0
        %3786 = vmatpush1.msra.mxu0 %v3755
        %3787 = vmatprep.subr.mxu0 0.0
        %3788 = vmatpush1.msra.mxu0 %v3756
        %3789 = vmatprep.subr.mxu0 0.0
        %3790 = vmatpush1.msra.mxu0 %v3757
        %3791 = vmatprep.subr.mxu0 0.0
        %3792 = vmatpush1.msra.mxu0 %v3758
        %3793 = vmatprep.subr.mxu0 0.0
        %3794 = vmatpush1.msra.mxu0 %v3759
        %3795 = vmatprep.subr.mxu0 0.0
        %3796 = vmatpush1.msra.mxu0 %v3760
        %3797 = vmatprep.subr.mxu0 0.0
        %3798 = vmatpush1.msra.mxu0 %v3761
        %3799 = vmatprep.subr.mxu0 0.0
        %3800 = vmatpush1.msra.mxu0 %v3762
        %3801 = vmatprep.subr.mxu0 0.0
        %3802 = vmatpush1.msra.mxu0 %v3763
        %3803 = vmatprep.subr.mxu0 0.0
        %3804 = vmatpush1.msra.mxu0 %v3764
        %3805 = vmatprep.subr.mxu0 0.0
        %3806 = vmatpush1.msra.mxu0 0.0
        %3807 = vmatprep.subr.mxu0 0.0
        %3808 = vmatpush1.msra.mxu0 0.0
        %3809 = vmatprep.subr.mxu0 0.0
        %3810 = vmatpush1.msra.mxu0 0.0
        %3811 = vmatprep.subr.mxu0 0.0
        %3812 = vmatpush1.msra.mxu0 0.0
        %3813 = vmatprep.subr.mxu0 0.0
        %3814 = vmatpush1.msra.mxu0 0.0
        %3815 = vmatprep.subr.mxu0 0.0
        %3816 = vmatpush1.msra.mxu0 0.0
        %3817 = vmatprep.subr.mxu0 0.0
        %3818 = vmatpush1.msra.mxu0 0.0
        %3819 = vmatprep.subr.mxu0 0.0
        %3820 = vmatpush1.msra.mxu0 0.0
        %3821 = vmatprep.subr.mxu0 0.0
        %3822 = vmatpush1.msra.mxu0 0.0
        %3823 = vmatprep.subr.mxu0 0.0
        %3824 = vmatpush1.msra.mxu0 0.0
        %3825 = vmatprep.subr.mxu0 0.0
        %3826 = vmatpush1.msra.mxu0 0.0
        %3827 = vmatprep.subr.mxu0 0.0
        %3828 = vmatpush1.msra.mxu0 0.0
        %3829 = vmatprep.subr.mxu0 0.0
        %3830 = vmatpush1.msra.mxu0 0.0
        %3831 = vmatprep.subr.mxu0 0.0
        %3832 = vmatpush1.msra.mxu0 0.0
        %3833 = vmatprep.subr.mxu0 0.0
        %3834 = vmatpush1.msra.mxu0 0.0
        %3835 = vmatprep.subr.mxu0 0.0
        %3836 = vmatpush1.msra.mxu0 0.0
        %3837 = vmatprep.mubr.f32.mxu0 0.0
        %3838 = vmatmul.mubr.f32.gmra.mrb[0].mxu0 %v3230
        %v3839 = vpop.f32.mrb[0].mxu0
        %v3840 = vadd.f32 %v3771, %v3839
        %v3841 = vpop.f32.mrb[0].mxu0
        %3842 = vmatprep.mubr.f32.mxu0 0.0
        %3843 = vmatmul.mubr.f32.gmra.mrb[0].mxu0 %v3231
        %v3844 = vpop.f32.mrb[0].mxu0
        %v3845 = vadd.f32 %v3771, %v3844
        %v3846 = vpop.f32.mrb[0].mxu0
        %3847 = vdwg.mxu0
        %s3848 = scalar_lea.vmem %s13, 128
        %v3849 = vld [vmem:[%s3848] sm:$0xff]
        %v3850 = vld [vmem:[%s3848 + $0x8] sm:$0xff]
        %v3851 = vld [vmem:[%s3848 + $0x10] sm:$0xff]
        %v3852 = vld [vmem:[%s3848 + $0x18] sm:$0xff]
        %v3853 = vld [vmem:[%s3848 + $0x20] sm:$0xff]
        %v3854 = vld [vmem:[%s3848 + $0x28] sm:$0xff]
        %v3855 = vld [vmem:[%s3848 + $0x30] sm:$0xff]
        %v3856 = vld [vmem:[%s3848 + $0x38] sm:$0xff]
        %v3857 = vld [vmem:[%s3848 + $0x40] sm:$0xff]
        %v3858 = vld [vmem:[%s3848 + $0x48] sm:$0xff]
        %v3859 = vld [vmem:[%s3848 + $0x50] sm:$0xff]
        %v3860 = vld [vmem:[%s3848 + $0x58] sm:$0xff]
        %v3861 = vld [vmem:[%s3848 + $0x60] sm:$0xff]
        %v3862 = vld [vmem:[%s3848 + $0x68] sm:$0xff]
        %v3863 = vld [vmem:[%s3848 + $0x70] sm:$0xff]
        %v3864 = vld [vmem:[%s3848 + $0x78] sm:$0xff]
        %s3865 = scalar_lea.vmem %s16, 1
        %v3866 = vld [vmem:[%s3865] sm:$0x1]
        %v3868 = vlaneseq
        %v3869 = vshrl.u32 %v3868, 7
        %v3870 = vsub.s32 0, %v3869
        %v3871 = vrot.slane %v3866, %v3870
        %3873 = vmatprep.subr.mxu0 0.0
        %3874 = vmatpush1.msra.mxu0 %v3849
        %3875 = vmatprep.subr.mxu0 0.0
        %3876 = vmatpush1.msra.mxu0 %v3850
        %3877 = vmatprep.subr.mxu0 0.0
        %3878 = vmatpush1.msra.mxu0 %v3851
        %3879 = vmatprep.subr.mxu0 0.0
        %3880 = vmatpush1.msra.mxu0 %v3852
        %3881 = vmatprep.subr.mxu0 0.0
        %3882 = vmatpush1.msra.mxu0 %v3853
        %3883 = vmatprep.subr.mxu0 0.0
        %3884 = vmatpush1.msra.mxu0 %v3854
        %3885 = vmatprep.subr.mxu0 0.0
        %3886 = vmatpush1.msra.mxu0 %v3855
        %3887 = vmatprep.subr.mxu0 0.0
        %3888 = vmatpush1.msra.mxu0 %v3856
        %3889 = vmatprep.subr.mxu0 0.0
        %3890 = vmatpush1.msra.mxu0 %v3857
        %3891 = vmatprep.subr.mxu0 0.0
        %3892 = vmatpush1.msra.mxu0 %v3858
        %3893 = vmatprep.subr.mxu0 0.0
        %3894 = vmatpush1.msra.mxu0 %v3859
        %3895 = vmatprep.subr.mxu0 0.0
        %3896 = vmatpush1.msra.mxu0 %v3860
        %3897 = vmatprep.subr.mxu0 0.0
        %3898 = vmatpush1.msra.mxu0 %v3861
        %3899 = vmatprep.subr.mxu0 0.0
        %3900 = vmatpush1.msra.mxu0 %v3862
        %3901 = vmatprep.subr.mxu0 0.0
        %3902 = vmatpush1.msra.mxu0 %v3863
        %3903 = vmatprep.subr.mxu0 0.0
        %3904 = vmatpush1.msra.mxu0 %v3864
        %3905 = vmatprep.subr.mxu0 0.0
        %3906 = vmatpush1.msra.mxu0 0.0
        %3907 = vmatprep.subr.mxu0 0.0
        %3908 = vmatpush1.msra.mxu0 0.0
        %3909 = vmatprep.subr.mxu0 0.0
        %3910 = vmatpush1.msra.mxu0 0.0
        %3911 = vmatprep.subr.mxu0 0.0
        %3912 = vmatpush1.msra.mxu0 0.0
        %3913 = vmatprep.subr.mxu0 0.0
        %3914 = vmatpush1.msra.mxu0 0.0
        %3915 = vmatprep.subr.mxu0 0.0
        %3916 = vmatpush1.msra.mxu0 0.0
        %3917 = vmatprep.subr.mxu0 0.0
        %3918 = vmatpush1.msra.mxu0 0.0
        %3919 = vmatprep.subr.mxu0 0.0
        %3920 = vmatpush1.msra.mxu0 0.0
        %3921 = vmatprep.subr.mxu0 0.0
        %3922 = vmatpush1.msra.mxu0 0.0
        %3923 = vmatprep.subr.mxu0 0.0
        %3924 = vmatpush1.msra.mxu0 0.0
        %3925 = vmatprep.subr.mxu0 0.0
        %3926 = vmatpush1.msra.mxu0 0.0
        %3927 = vmatprep.subr.mxu0 0.0
        %3928 = vmatpush1.msra.mxu0 0.0
        %3929 = vmatprep.subr.mxu0 0.0
        %3930 = vmatpush1.msra.mxu0 0.0
        %3931 = vmatprep.subr.mxu0 0.0
        %3932 = vmatpush1.msra.mxu0 0.0
        %3933 = vmatprep.subr.mxu0 0.0
        %3934 = vmatpush1.msra.mxu0 0.0
        %3935 = vmatprep.subr.mxu0 0.0
        %3936 = vmatpush1.msra.mxu0 0.0
        %3937 = vmatprep.mubr.f32.mxu0 0.0
        %3938 = vmatmul.mubr.f32.gmra.mrb[0].mxu0 %v871
        %v3939 = vpop.f32.mrb[0].mxu0
        %v3940 = vadd.f32 %v3871, %v3939
        %v3941 = vpop.f32.mrb[0].mxu0
        %3942 = vmatprep.mubr.f32.mxu0 0.0
        %3943 = vmatmul.mubr.f32.gmra.mrb[0].mxu0 %v872
        %v3944 = vpop.f32.mrb[0].mxu0
        %v3945 = vadd.f32 %v3871, %v3944
        %v3946 = vpop.f32.mrb[0].mxu0
        %3947 = vmatprep.mubr.f32.mxu0 0.0
        %3948 = vmatmul.mubr.f32.gmra.mrb[0].mxu0 %v873
        %v3949 = vpop.f32.mrb[0].mxu0
        %v3950 = vadd.f32 %v3871, %v3949
        %v3951 = vpop.f32.mrb[0].mxu0
        %3952 = vmatprep.mubr.f32.mxu0 0.0
        %3953 = vmatmul.mubr.f32.gmra.mrb[0].mxu0 %v874
        %v3954 = vpop.f32.mrb[0].mxu0
        %v3955 = vadd.f32 %v3871, %v3954
        %v3956 = vpop.f32.mrb[0].mxu0
        %3957 = vdwg.mxu0
        %s3958 = scalar_lea.vmem %s14, 128
        %v3959 = vld [vmem:[%s3958] sm:$0xff]
        %v3960 = vld [vmem:[%s3958 + $0x8] sm:$0xff]
        %v3961 = vld [vmem:[%s3958 + $0x10] sm:$0xff]
        %v3962 = vld [vmem:[%s3958 + $0x18] sm:$0xff]
        %v3963 = vld [vmem:[%s3958 + $0x20] sm:$0xff]
        %v3964 = vld [vmem:[%s3958 + $0x28] sm:$0xff]
        %v3965 = vld [vmem:[%s3958 + $0x30] sm:$0xff]
        %v3966 = vld [vmem:[%s3958 + $0x38] sm:$0xff]
        %v3967 = vld [vmem:[%s3958 + $0x40] sm:$0xff]
        %v3968 = vld [vmem:[%s3958 + $0x48] sm:$0xff]
        %v3969 = vld [vmem:[%s3958 + $0x50] sm:$0xff]
        %v3970 = vld [vmem:[%s3958 + $0x58] sm:$0xff]
        %v3971 = vld [vmem:[%s3958 + $0x60] sm:$0xff]
        %v3972 = vld [vmem:[%s3958 + $0x68] sm:$0xff]
        %v3973 = vld [vmem:[%s3958 + $0x70] sm:$0xff]
        %v3974 = vld [vmem:[%s3958 + $0x78] sm:$0xff]
        %s3975 = scalar_lea.vmem %s17, 1
        %v3976 = vld [vmem:[%s3975] sm:$0x1]
        %v3978 = vlaneseq
        %v3979 = vshrl.u32 %v3978, 7
        %v3980 = vsub.s32 0, %v3979
        %v3981 = vrot.slane %v3976, %v3980
        %3983 = vmatprep.subr.mxu0 0.0
        %3984 = vmatpush1.msra.mxu0 %v3959
        %3985 = vmatprep.subr.mxu0 0.0
        %3986 = vmatpush1.msra.mxu0 %v3960
        %3987 = vmatprep.subr.mxu0 0.0
        %3988 = vmatpush1.msra.mxu0 %v3961
        %3989 = vmatprep.subr.mxu0 0.0
        %3990 = vmatpush1.msra.mxu0 %v3962
        %3991 = vmatprep.subr.mxu0 0.0
        %3992 = vmatpush1.msra.mxu0 %v3963
        %3993 = vmatprep.subr.mxu0 0.0
        %3994 = vmatpush1.msra.mxu0 %v3964
        %3995 = vmatprep.subr.mxu0 0.0
        %3996 = vmatpush1.msra.mxu0 %v3965
        %3997 = vmatprep.subr.mxu0 0.0
        %3998 = vmatpush1.msra.mxu0 %v3966
        %3999 = vmatprep.subr.mxu0 0.0
        %4000 = vmatpush1.msra.mxu0 %v3967
        %4001 = vmatprep.subr.mxu0 0.0
        %4002 = vmatpush1.msra.mxu0 %v3968
        %4003 = vmatprep.subr.mxu0 0.0
        %4004 = vmatpush1.msra.mxu0 %v3969
        %4005 = vmatprep.subr.mxu0 0.0
        %4006 = vmatpush1.msra.mxu0 %v3970
        %4007 = vmatprep.subr.mxu0 0.0
        %4008 = vmatpush1.msra.mxu0 %v3971
        %4009 = vmatprep.subr.mxu0 0.0
        %4010 = vmatpush1.msra.mxu0 %v3972
        %4011 = vmatprep.subr.mxu0 0.0
        %4012 = vmatpush1.msra.mxu0 %v3973
        %4013 = vmatprep.subr.mxu0 0.0
        %4014 = vmatpush1.msra.mxu0 %v3974
        %4015 = vmatprep.subr.mxu0 0.0
        %4016 = vmatpush1.msra.mxu0 0.0
        %4017 = vmatprep.subr.mxu0 0.0
        %4018 = vmatpush1.msra.mxu0 0.0
        %4019 = vmatprep.subr.mxu0 0.0
        %4020 = vmatpush1.msra.mxu0 0.0
        %4021 = vmatprep.subr.mxu0 0.0
        %4022 = vmatpush1.msra.mxu0 0.0
        %4023 = vmatprep.subr.mxu0 0.0
        %4024 = vmatpush1.msra.mxu0 0.0
        %4025 = vmatprep.subr.mxu0 0.0
        %4026 = vmatpush1.msra.mxu0 0.0
        %4027 = vmatprep.subr.mxu0 0.0
        %4028 = vmatpush1.msra.mxu0 0.0
        %4029 = vmatprep.subr.mxu0 0.0
        %4030 = vmatpush1.msra.mxu0 0.0
        %4031 = vmatprep.subr.mxu0 0.0
        %4032 = vmatpush1.msra.mxu0 0.0
        %4033 = vmatprep.subr.mxu0 0.0
        %4034 = vmatpush1.msra.mxu0 0.0
        %4035 = vmatprep.subr.mxu0 0.0
        %4036 = vmatpush1.msra.mxu0 0.0
        %4037 = vmatprep.subr.mxu0 0.0
        %4038 = vmatpush1.msra.mxu0 0.0
        %4039 = vmatprep.subr.mxu0 0.0
        %4040 = vmatpush1.msra.mxu0 0.0
        %4041 = vmatprep.subr.mxu0 0.0
        %4042 = vmatpush1.msra.mxu0 0.0
        %4043 = vmatprep.subr.mxu0 0.0
        %4044 = vmatpush1.msra.mxu0 0.0
        %4045 = vmatprep.subr.mxu0 0.0
        %4046 = vmatpush1.msra.mxu0 0.0
        %4047 = vmatprep.mubr.f32.mxu0 0.0
        %4048 = vmatmul.mubr.f32.gmra.mrb[0].mxu0 %v871
        %v4049 = vpop.f32.mrb[0].mxu0
        %v4050 = vadd.f32 %v3981, %v4049
        %v4051 = vpop.f32.mrb[0].mxu0
        %4052 = vmatprep.mubr.f32.mxu0 0.0
        %4053 = vmatmul.mubr.f32.gmra.mrb[0].mxu0 %v872
        %v4054 = vpop.f32.mrb[0].mxu0
        %v4055 = vadd.f32 %v3981, %v4054
        %v4056 = vpop.f32.mrb[0].mxu0
        %4057 = vmatprep.mubr.f32.mxu0 0.0
        %4058 = vmatmul.mubr.f32.gmra.mrb[0].mxu0 %v873
        %v4059 = vpop.f32.mrb[0].mxu0
        %v4060 = vadd.f32 %v3981, %v4059
        %v4061 = vpop.f32.mrb[0].mxu0
        %4062 = vmatprep.mubr.f32.mxu0 0.0
        %4063 = vmatmul.mubr.f32.gmra.mrb[0].mxu0 %v874
        %v4064 = vpop.f32.mrb[0].mxu0
        %v4065 = vadd.f32 %v3981, %v4064
        %v4066 = vpop.f32.mrb[0].mxu0
        %4067 = vdwg.mxu0
        %v4069 = vsel %vm1171, %v3840, 0
        %v4072 = vsel %vm1171, %v3845, 0
        %v4075 = vsel %vm1171, %v3940, 0
        %v4078 = vsel %vm1171, %v3945, 0
        %v4081 = vsel %vm1171, %v3950, 0
        %v4084 = vsel %vm1171, %v3955, 0
        %4086 = vmatprep.subr.mxu0 0.0
        %4087 = vmatpush1.xpose.msra.mxu0 %v4075
        %4088 = vmatprep.subr.mxu0 0.0
        %4089 = vmatpush1.xpose.msra.mxu0 %v4078
        %4090 = vmatprep.subr.mxu0 0.0
        %4091 = vmatpush1.xpose.msra.mxu0 %v4081
        %4092 = vmatprep.subr.mxu0 0.0
        %4093 = vmatpush1.xpose.msra.mxu0 %v4084
        %4094 = vmatprep.subr.mxu0 0.0
        %4095 = vmatpush1.xpose.msra.mxu0 0.0
        %4096 = vmatprep.subr.mxu0 0.0
        %4097 = vmatpush1.xpose.msra.mxu0 0.0
        %4098 = vmatprep.subr.mxu0 0.0
        %4099 = vmatpush1.xpose.msra.mxu0 0.0
        %4100 = vmatprep.subr.mxu0 0.0
        %4101 = vmatpush1.xpose.msra.mxu0 0.0
        %4102 = vmatprep.subr.mxu0 0.0
        %4103 = vmatpush1.xpose.msra.mxu0 0.0
        %4104 = vmatprep.subr.mxu0 0.0
        %4105 = vmatpush1.xpose.msra.mxu0 0.0
        %4106 = vmatprep.subr.mxu0 0.0
        %4107 = vmatpush1.xpose.msra.mxu0 0.0
        %4108 = vmatprep.subr.mxu0 0.0
        %4109 = vmatpush1.xpose.msra.mxu0 0.0
        %4110 = vmatprep.subr.mxu0 0.0
        %4111 = vmatpush1.xpose.msra.mxu0 0.0
        %4112 = vmatprep.subr.mxu0 0.0
        %4113 = vmatpush1.xpose.msra.mxu0 0.0
        %4114 = vmatprep.subr.mxu0 0.0
        %4115 = vmatpush1.xpose.msra.mxu0 0.0
        %4116 = vmatprep.subr.mxu0 0.0
        %4117 = vmatpush1.xpose.msra.mxu0 0.0
        %4118 = vmatprep.subr.mxu0 0.0
        %4119 = vmatpush1.xpose.msra.mxu0 0.0
        %4120 = vmatprep.subr.mxu0 0.0
        %4121 = vmatpush1.xpose.msra.mxu0 0.0
        %4122 = vmatprep.subr.mxu0 0.0
        %4123 = vmatpush1.xpose.msra.mxu0 0.0
        %4124 = vmatprep.subr.mxu0 0.0
        %4125 = vmatpush1.xpose.msra.mxu0 0.0
        %4126 = vmatprep.subr.mxu0 0.0
        %4127 = vmatpush1.xpose.msra.mxu0 0.0
        %4128 = vmatprep.subr.mxu0 0.0
        %4129 = vmatpush1.xpose.msra.mxu0 0.0
        %4130 = vmatprep.subr.mxu0 0.0
        %4131 = vmatpush1.xpose.msra.mxu0 0.0
        %4132 = vmatprep.subr.mxu0 0.0
        %4133 = vmatpush1.xpose.msra.mxu0 0.0
        %4134 = vmatprep.subr.mxu0 0.0
        %4135 = vmatpush1.xpose.msra.mxu0 0.0
        %4136 = vmatprep.subr.mxu0 0.0
        %4137 = vmatpush1.xpose.msra.mxu0 0.0
        %4138 = vmatprep.subr.mxu0 0.0
        %4139 = vmatpush1.xpose.msra.mxu0 0.0
        %4140 = vmatprep.subr.mxu0 0.0
        %4141 = vmatpush1.xpose.msra.mxu0 0.0
        %4142 = vmatprep.subr.mxu0 0.0
        %4143 = vmatpush1.xpose.msra.mxu0 0.0
        %4144 = vmatprep.subr.mxu0 0.0
        %4145 = vmatpush1.xpose.msra.mxu0 0.0
        %4146 = vmatprep.subr.mxu0 0.0
        %4147 = vmatpush1.xpose.msra.mxu0 0.0
        %4148 = vmatprep.subr.mxu0 0.0
        %4149 = vmatpush1.xpose.msra.mxu0 0.0
        %4150 = vmatprep.mubr.f32.mxu0 0.0
        %4151 = vmatmul.mubr.f32.gmra.mrb[0].mxu0 %v4069
        %v4152 = vpop.f32.mrb[0].mxu0
        %v4153 = vadd.f32 %v3232, %v4152
        %v4154 = vpop.f32.mrb[0].mxu0
        %4155 = vmatprep.mubr.f32.mxu0 0.0
        %4156 = vmatmul.mubr.f32.gmra.mrb[0].mxu0 %v4072
        %v4157 = vpop.f32.mrb[0].mxu0
        %v4158 = vadd.f32 %v3233, %v4157
        %v4159 = vpop.f32.mrb[0].mxu0
        %4160 = vdwg.mxu0
        %v4161 = vsel %vm1171, %v4153, -inf
        %4162 = vmax.xlane.f32.xlu0 %v4161
        %v4163 = vpop.xlane.xlu0 %4162
        %v4164 = vsel %vm1171, %v4158, -inf
        %4165 = vmax.xlane.f32.xlu0 %v4164
        %v4166 = vpop.xlane.xlu0 %4165
        %v4167 = vsub.f32 %v4153, %v4163
        %v4168 = vsub.f32 %v4158, %v4166
        %v4169 = vmul.f32 %v4167, 1.442695
        %v4170 = vpow.pop %v4169
        %v4171 = vmul.f32 %v4168, 1.442695
        %v4172 = vpow.pop %v4171
        %v4173 = vsel %vm1171, %v4170, 0.0
        %4174 = vadd.xlane.f32.xlu0 %v4173
        %v4175 = vpop.xlane.xlu0 %4174
        %v4176 = vsel %vm1171, %v4172, 0.0
        %4177 = vadd.xlane.f32.xlu0 %v4176
        %v4178 = vpop.xlane.xlu0 %4177
        %v4179 = vrcp.pop %v4175
        %v4180 = vmul.f32 %v4170, %v4179
        %v4181 = vrcp.pop %v4178
        %v4182 = vmul.f32 %v4172, %v4181
        %v4184 = vsel %vm1171, %v4180, 0
        %v4187 = vsel %vm1171, %v4182, 0
        %4189 = vmatprep.subr.mxu0 0.0
        %4190 = vmatpush1.msra.mxu0 %v4050
        %4191 = vmatprep.subr.mxu0 0.0
        %4192 = vmatpush1.msra.mxu0 %v4055
        %4193 = vmatprep.subr.mxu0 0.0
        %4194 = vmatpush1.msra.mxu0 %v4060
        %4195 = vmatprep.subr.mxu0 0.0
        %4196 = vmatpush1.msra.mxu0 %v4065
        %4197 = vmatprep.subr.mxu0 0.0
        %4198 = vmatpush1.msra.mxu0 0.0
        %4199 = vmatprep.subr.mxu0 0.0
        %4200 = vmatpush1.msra.mxu0 0.0
        %4201 = vmatprep.subr.mxu0 0.0
        %4202 = vmatpush1.msra.mxu0 0.0
        %4203 = vmatprep.subr.mxu0 0.0
        %4204 = vmatpush1.msra.mxu0 0.0
        %4205 = vmatprep.subr.mxu0 0.0
        %4206 = vmatpush1.msra.mxu0 0.0
        %4207 = vmatprep.subr.mxu0 0.0
        %4208 = vmatpush1.msra.mxu0 0.0
        %4209 = vmatprep.subr.mxu0 0.0
        %4210 = vmatpush1.msra.mxu0 0.0
        %4211 = vmatprep.subr.mxu0 0.0
        %4212 = vmatpush1.msra.mxu0 0.0
        %4213 = vmatprep.subr.mxu0 0.0
        %4214 = vmatpush1.msra.mxu0 0.0
        %4215 = vmatprep.subr.mxu0 0.0
        %4216 = vmatpush1.msra.mxu0 0.0
        %4217 = vmatprep.subr.mxu0 0.0
        %4218 = vmatpush1.msra.mxu0 0.0
        %4219 = vmatprep.subr.mxu0 0.0
        %4220 = vmatpush1.msra.mxu0 0.0
        %4221 = vmatprep.subr.mxu0 0.0
        %4222 = vmatpush1.msra.mxu0 0.0
        %4223 = vmatprep.subr.mxu0 0.0
        %4224 = vmatpush1.msra.mxu0 0.0
        %4225 = vmatprep.subr.mxu0 0.0
        %4226 = vmatpush1.msra.mxu0 0.0
        %4227 = vmatprep.subr.mxu0 0.0
        %4228 = vmatpush1.msra.mxu0 0.0
        %4229 = vmatprep.subr.mxu0 0.0
        %4230 = vmatpush1.msra.mxu0 0.0
        %4231 = vmatprep.subr.mxu0 0.0
        %4232 = vmatpush1.msra.mxu0 0.0
        %4233 = vmatprep.subr.mxu0 0.0
        %4234 = vmatpush1.msra.mxu0 0.0
        %4235 = vmatprep.subr.mxu0 0.0
        %4236 = vmatpush1.msra.mxu0 0.0
        %4237 = vmatprep.subr.mxu0 0.0
        %4238 = vmatpush1.msra.mxu0 0.0
        %4239 = vmatprep.subr.mxu0 0.0
        %4240 = vmatpush1.msra.mxu0 0.0
        %4241 = vmatprep.subr.mxu0 0.0
        %4242 = vmatpush1.msra.mxu0 0.0
        %4243 = vmatprep.subr.mxu0 0.0
        %4244 = vmatpush1.msra.mxu0 0.0
        %4245 = vmatprep.subr.mxu0 0.0
        %4246 = vmatpush1.msra.mxu0 0.0
        %4247 = vmatprep.subr.mxu0 0.0
        %4248 = vmatpush1.msra.mxu0 0.0
        %4249 = vmatprep.subr.mxu0 0.0
        %4250 = vmatpush1.msra.mxu0 0.0
        %4251 = vmatprep.subr.mxu0 0.0
        %4252 = vmatpush1.msra.mxu0 0.0
        %4253 = vmatprep.mubr.f32.mxu0 0.0
        %4254 = vmatmul.mubr.f32.gmra.mrb[0].mxu0 %v4184
        %v4255 = vpop.f32.mrb[0].mxu0
        %v4256 = vadd.f32 0.0, %v4255
        %v4257 = vpop.f32.mrb[0].mxu0
        %4258 = vmatprep.mubr.f32.mxu0 0.0
        %4259 = vmatmul.mubr.f32.gmra.mrb[0].mxu0 %v4187
        %v4260 = vpop.f32.mrb[0].mxu0
        %v4261 = vadd.f32 0.0, %v4260
        %v4262 = vpop.f32.mrb[0].mxu0
        %4263 = vdwg.mxu0
        %s4264 = scalar_lea.vmem %s18, 32
        %v4265 = vld [vmem:[%s4264] sm:$0xff]
        %v4266 = vld [vmem:[%s4264 + $0x8] sm:$0xff]
        %v4267 = vld [vmem:[%s4264 + $0x10] sm:$0xff]
        %v4268 = vld [vmem:[%s4264 + $0x18] sm:$0xff]
        %v4270 = vsel %vm1171, %v4256, 0
        %v4273 = vsel %vm1171, %v4261, 0
        %4275 = vmatprep.subr.mxu0 0.0
        %4276 = vmatpush1.msra.mxu0 %v4265
        %4277 = vmatprep.subr.mxu0 0.0
        %4278 = vmatpush1.msra.mxu0 %v4266
        %4279 = vmatprep.subr.mxu0 0.0
        %4280 = vmatpush1.msra.mxu0 %v4267
        %4281 = vmatprep.subr.mxu0 0.0
        %4282 = vmatpush1.msra.mxu0 %v4268
        %4283 = vmatprep.subr.mxu0 0.0
        %4284 = vmatpush1.msra.mxu0 0.0
        %4285 = vmatprep.subr.mxu0 0.0
        %4286 = vmatpush1.msra.mxu0 0.0
        %4287 = vmatprep.subr.mxu0 0.0
        %4288 = vmatpush1.msra.mxu0 0.0
        %4289 = vmatprep.subr.mxu0 0.0
        %4290 = vmatpush1.msra.mxu0 0.0
        %4291 = vmatprep.subr.mxu0 0.0
        %4292 = vmatpush1.msra.mxu0 0.0
        %4293 = vmatprep.subr.mxu0 0.0
        %4294 = vmatpush1.msra.mxu0 0.0
        %4295 = vmatprep.subr.mxu0 0.0
        %4296 = vmatpush1.msra.mxu0 0.0
        %4297 = vmatprep.subr.mxu0 0.0
        %4298 = vmatpush1.msra.mxu0 0.0
        %4299 = vmatprep.subr.mxu0 0.0
        %4300 = vmatpush1.msra.mxu0 0.0
        %4301 = vmatprep.subr.mxu0 0.0
        %4302 = vmatpush1.msra.mxu0 0.0
        %4303 = vmatprep.subr.mxu0 0.0
        %4304 = vmatpush1.msra.mxu0 0.0
        %4305 = vmatprep.subr.mxu0 0.0
        %4306 = vmatpush1.msra.mxu0 0.0
        %4307 = vmatprep.subr.mxu0 0.0
        %4308 = vmatpush1.msra.mxu0 0.0
        %4309 = vmatprep.subr.mxu0 0.0
        %4310 = vmatpush1.msra.mxu0 0.0
        %4311 = vmatprep.subr.mxu0 0.0
        %4312 = vmatpush1.msra.mxu0 0.0
        %4313 = vmatprep.subr.mxu0 0.0
        %4314 = vmatpush1.msra.mxu0 0.0
        %4315 = vmatprep.subr.mxu0 0.0
        %4316 = vmatpush1.msra.mxu0 0.0
        %4317 = vmatprep.subr.mxu0 0.0
        %4318 = vmatpush1.msra.mxu0 0.0
        %4319 = vmatprep.subr.mxu0 0.0
        %4320 = vmatpush1.msra.mxu0 0.0
        %4321 = vmatprep.subr.mxu0 0.0
        %4322 = vmatpush1.msra.mxu0 0.0
        %4323 = vmatprep.subr.mxu0 0.0
        %4324 = vmatpush1.msra.mxu0 0.0
        %4325 = vmatprep.subr.mxu0 0.0
        %4326 = vmatpush1.msra.mxu0 0.0
        %4327 = vmatprep.subr.mxu0 0.0
        %4328 = vmatpush1.msra.mxu0 0.0
        %4329 = vmatprep.subr.mxu0 0.0
        %4330 = vmatpush1.msra.mxu0 0.0
        %4331 = vmatprep.subr.mxu0 0.0
        %4332 = vmatpush1.msra.mxu0 0.0
        %4333 = vmatprep.subr.mxu0 0.0
        %4334 = vmatpush1.msra.mxu0 0.0
        %4335 = vmatprep.subr.mxu0 0.0
        %4336 = vmatpush1.msra.mxu0 0.0
        %4337 = vmatprep.subr.mxu0 0.0
        %4338 = vmatpush1.msra.mxu0 0.0
        %4339 = vmatprep.mubr.f32.mxu0 0.0
        %4340 = vmatmul.mubr.f32.gmra.mrb[0].mxu0 %v4270
        %v4341 = vpop.f32.mrb[0].mxu0
        %v4342 = vadd.f32 0.0, %v4341
        %v4343 = vpop.f32.mrb[0].mxu0
        %4344 = vmatprep.mubr.f32.mxu0 0.0
        %4345 = vmatmul.mubr.f32.gmra.mrb[0].mxu0 %v4273
        %v4346 = vpop.f32.mrb[0].mxu0
        %v4347 = vadd.f32 0.0, %v4346
        %v4348 = vpop.f32.mrb[0].mxu0
        %4349 = vdwg.mxu0
        %v4351 = vsel %vm1171, %v3736, 0
        %v4354 = vsel %vm1171, %v3741, 0
        %4356 = vmatprep.subr.mxu0 0.0
        %4357 = vmatpush1.msra.mxu0 %v3744
        %4358 = vmatprep.subr.mxu0 0.0
        %4359 = vmatpush1.msra.mxu0 %v3745
        %4360 = vmatprep.subr.mxu0 0.0
        %4361 = vmatpush1.msra.mxu0 %v3746
        %4362 = vmatprep.subr.mxu0 0.0
        %4363 = vmatpush1.msra.mxu0 %v3747
        %4364 = vmatprep.subr.mxu0 0.0
        %4365 = vmatpush1.msra.mxu0 0.0
        %4366 = vmatprep.subr.mxu0 0.0
        %4367 = vmatpush1.msra.mxu0 0.0
        %4368 = vmatprep.subr.mxu0 0.0
        %4369 = vmatpush1.msra.mxu0 0.0
        %4370 = vmatprep.subr.mxu0 0.0
        %4371 = vmatpush1.msra.mxu0 0.0
        %4372 = vmatprep.subr.mxu0 0.0
        %4373 = vmatpush1.msra.mxu0 0.0
        %4374 = vmatprep.subr.mxu0 0.0
        %4375 = vmatpush1.msra.mxu0 0.0
        %4376 = vmatprep.subr.mxu0 0.0
        %4377 = vmatpush1.msra.mxu0 0.0
        %4378 = vmatprep.subr.mxu0 0.0
        %4379 = vmatpush1.msra.mxu0 0.0
        %4380 = vmatprep.subr.mxu0 0.0
        %4381 = vmatpush1.msra.mxu0 0.0
        %4382 = vmatprep.subr.mxu0 0.0
        %4383 = vmatpush1.msra.mxu0 0.0
        %4384 = vmatprep.subr.mxu0 0.0
        %4385 = vmatpush1.msra.mxu0 0.0
        %4386 = vmatprep.subr.mxu0 0.0
        %4387 = vmatpush1.msra.mxu0 0.0
        %4388 = vmatprep.subr.mxu0 0.0
        %4389 = vmatpush1.msra.mxu0 0.0
        %4390 = vmatprep.subr.mxu0 0.0
        %4391 = vmatpush1.msra.mxu0 0.0
        %4392 = vmatprep.subr.mxu0 0.0
        %4393 = vmatpush1.msra.mxu0 0.0
        %4394 = vmatprep.subr.mxu0 0.0
        %4395 = vmatpush1.msra.mxu0 0.0
        %4396 = vmatprep.subr.mxu0 0.0
        %4397 = vmatpush1.msra.mxu0 0.0
        %4398 = vmatprep.subr.mxu0 0.0
        %4399 = vmatpush1.msra.mxu0 0.0
        %4400 = vmatprep.subr.mxu0 0.0
        %4401 = vmatpush1.msra.mxu0 0.0
        %4402 = vmatprep.subr.mxu0 0.0
        %4403 = vmatpush1.msra.mxu0 0.0
        %4404 = vmatprep.subr.mxu0 0.0
        %4405 = vmatpush1.msra.mxu0 0.0
        %4406 = vmatprep.subr.mxu0 0.0
        %4407 = vmatpush1.msra.mxu0 0.0
        %4408 = vmatprep.subr.mxu0 0.0
        %4409 = vmatpush1.msra.mxu0 0.0
        %4410 = vmatprep.subr.mxu0 0.0
        %4411 = vmatpush1.msra.mxu0 0.0
        %4412 = vmatprep.subr.mxu0 0.0
        %4413 = vmatpush1.msra.mxu0 0.0
        %4414 = vmatprep.subr.mxu0 0.0
        %4415 = vmatpush1.msra.mxu0 0.0
        %4416 = vmatprep.subr.mxu0 0.0
        %4417 = vmatpush1.msra.mxu0 0.0
        %4418 = vmatprep.subr.mxu0 0.0
        %4419 = vmatpush1.msra.mxu0 0.0
        %4420 = vmatprep.mubr.f32.mxu0 0.0
        %4421 = vmatmul.mubr.f32.gmra.mrb[0].mxu0 %v4351
        %v4422 = vpop.f32.mrb[0].mxu0
        %v4423 = vadd.f32 %v4342, %v4422
        %v4424 = vpop.f32.mrb[0].mxu0
        %4425 = vmatprep.mubr.f32.mxu0 0.0
        %4426 = vmatmul.mubr.f32.gmra.mrb[0].mxu0 %v4354
        %v4427 = vpop.f32.mrb[0].mxu0
        %v4428 = vadd.f32 %v4347, %v4427
        %v4429 = vpop.f32.mrb[0].mxu0
        %4430 = vdwg.mxu0
        %s4431 = scalar_lea.vmem %s12, 256
        %v4432 = vld [vmem:[%s4431] sm:$0xff]
        %v4433 = vld [vmem:[%s4431 + $0x8] sm:$0xff]
        %v4434 = vld [vmem:[%s4431 + $0x10] sm:$0xff]
        %v4435 = vld [vmem:[%s4431 + $0x18] sm:$0xff]
        %v4436 = vld [vmem:[%s4431 + $0x20] sm:$0xff]
        %v4437 = vld [vmem:[%s4431 + $0x28] sm:$0xff]
        %v4438 = vld [vmem:[%s4431 + $0x30] sm:$0xff]
        %v4439 = vld [vmem:[%s4431 + $0x38] sm:$0xff]
        %v4440 = vld [vmem:[%s4431 + $0x40] sm:$0xff]
        %v4441 = vld [vmem:[%s4431 + $0x48] sm:$0xff]
        %v4442 = vld [vmem:[%s4431 + $0x50] sm:$0xff]
        %v4443 = vld [vmem:[%s4431 + $0x58] sm:$0xff]
        %v4444 = vld [vmem:[%s4431 + $0x60] sm:$0xff]
        %v4445 = vld [vmem:[%s4431 + $0x68] sm:$0xff]
        %v4446 = vld [vmem:[%s4431 + $0x70] sm:$0xff]
        %v4447 = vld [vmem:[%s4431 + $0x78] sm:$0xff]
        %s4448 = scalar_lea.vmem %s15, 2
        %v4449 = vld [vmem:[%s4448] sm:$0x1]
        %v4451 = vlaneseq
        %v4452 = vshrl.u32 %v4451, 7
        %v4453 = vsub.s32 0, %v4452
        %v4454 = vrot.slane %v4449, %v4453
        %4456 = vmatprep.subr.mxu0 0.0
        %4457 = vmatpush1.msra.mxu0 %v4432
        %4458 = vmatprep.subr.mxu0 0.0
        %4459 = vmatpush1.msra.mxu0 %v4433
        %4460 = vmatprep.subr.mxu0 0.0
        %4461 = vmatpush1.msra.mxu0 %v4434
        %4462 = vmatprep.subr.mxu0 0.0
        %4463 = vmatpush1.msra.mxu0 %v4435
        %4464 = vmatprep.subr.mxu0 0.0
        %4465 = vmatpush1.msra.mxu0 %v4436
        %4466 = vmatprep.subr.mxu0 0.0
        %4467 = vmatpush1.msra.mxu0 %v4437
        %4468 = vmatprep.subr.mxu0 0.0
        %4469 = vmatpush1.msra.mxu0 %v4438
        %4470 = vmatprep.subr.mxu0 0.0
        %4471 = vmatpush1.msra.mxu0 %v4439
        %4472 = vmatprep.subr.mxu0 0.0
        %4473 = vmatpush1.msra.mxu0 %v4440
        %4474 = vmatprep.subr.mxu0 0.0
        %4475 = vmatpush1.msra.mxu0 %v4441
        %4476 = vmatprep.subr.mxu0 0.0
        %4477 = vmatpush1.msra.mxu0 %v4442
        %4478 = vmatprep.subr.mxu0 0.0
        %4479 = vmatpush1.msra.mxu0 %v4443
        %4480 = vmatprep.subr.mxu0 0.0
        %4481 = vmatpush1.msra.mxu0 %v4444
        %4482 = vmatprep.subr.mxu0 0.0
        %4483 = vmatpush1.msra.mxu0 %v4445
        %4484 = vmatprep.subr.mxu0 0.0
        %4485 = vmatpush1.msra.mxu0 %v4446
        %4486 = vmatprep.subr.mxu0 0.0
        %4487 = vmatpush1.msra.mxu0 %v4447
        %4488 = vmatprep.subr.mxu0 0.0
        %4489 = vmatpush1.msra.mxu0 0.0
        %4490 = vmatprep.subr.mxu0 0.0
        %4491 = vmatpush1.msra.mxu0 0.0
        %4492 = vmatprep.subr.mxu0 0.0
        %4493 = vmatpush1.msra.mxu0 0.0
        %4494 = vmatprep.subr.mxu0 0.0
        %4495 = vmatpush1.msra.mxu0 0.0
        %4496 = vmatprep.subr.mxu0 0.0
        %4497 = vmatpush1.msra.mxu0 0.0
        %4498 = vmatprep.subr.mxu0 0.0
        %4499 = vmatpush1.msra.mxu0 0.0
        %4500 = vmatprep.subr.mxu0 0.0
        %4501 = vmatpush1.msra.mxu0 0.0
        %4502 = vmatprep.subr.mxu0 0.0
        %4503 = vmatpush1.msra.mxu0 0.0
        %4504 = vmatprep.subr.mxu0 0.0
        %4505 = vmatpush1.msra.mxu0 0.0
        %4506 = vmatprep.subr.mxu0 0.0
        %4507 = vmatpush1.msra.mxu0 0.0
        %4508 = vmatprep.subr.mxu0 0.0
        %4509 = vmatpush1.msra.mxu0 0.0
        %4510 = vmatprep.subr.mxu0 0.0
        %4511 = vmatpush1.msra.mxu0 0.0
        %4512 = vmatprep.subr.mxu0 0.0
        %4513 = vmatpush1.msra.mxu0 0.0
        %4514 = vmatprep.subr.mxu0 0.0
        %4515 = vmatpush1.msra.mxu0 0.0
        %4516 = vmatprep.subr.mxu0 0.0
        %4517 = vmatpush1.msra.mxu0 0.0
        %4518 = vmatprep.subr.mxu0 0.0
        %4519 = vmatpush1.msra.mxu0 0.0
        %4520 = vmatprep.mubr.f32.mxu0 0.0
        %4521 = vmatmul.mubr.f32.gmra.mrb[0].mxu0 %v3230
        %v4522 = vpop.f32.mrb[0].mxu0
        %v4523 = vadd.f32 %v4454, %v4522
        %v4524 = vpop.f32.mrb[0].mxu0
        %4525 = vmatprep.mubr.f32.mxu0 0.0
        %4526 = vmatmul.mubr.f32.gmra.mrb[0].mxu0 %v3231
        %v4527 = vpop.f32.mrb[0].mxu0
        %v4528 = vadd.f32 %v4454, %v4527
        %v4529 = vpop.f32.mrb[0].mxu0
        %4530 = vdwg.mxu0
        %s4531 = scalar_lea.vmem %s13, 256
        %v4532 = vld [vmem:[%s4531] sm:$0xff]
        %v4533 = vld [vmem:[%s4531 + $0x8] sm:$0xff]
        %v4534 = vld [vmem:[%s4531 + $0x10] sm:$0xff]
        %v4535 = vld [vmem:[%s4531 + $0x18] sm:$0xff]
        %v4536 = vld [vmem:[%s4531 + $0x20] sm:$0xff]
        %v4537 = vld [vmem:[%s4531 + $0x28] sm:$0xff]
        %v4538 = vld [vmem:[%s4531 + $0x30] sm:$0xff]
        %v4539 = vld [vmem:[%s4531 + $0x38] sm:$0xff]
        %v4540 = vld [vmem:[%s4531 + $0x40] sm:$0xff]
        %v4541 = vld [vmem:[%s4531 + $0x48] sm:$0xff]
        %v4542 = vld [vmem:[%s4531 + $0x50] sm:$0xff]
        %v4543 = vld [vmem:[%s4531 + $0x58] sm:$0xff]
        %v4544 = vld [vmem:[%s4531 + $0x60] sm:$0xff]
        %v4545 = vld [vmem:[%s4531 + $0x68] sm:$0xff]
        %v4546 = vld [vmem:[%s4531 + $0x70] sm:$0xff]
        %v4547 = vld [vmem:[%s4531 + $0x78] sm:$0xff]
        %s4548 = scalar_lea.vmem %s16, 2
        %v4549 = vld [vmem:[%s4548] sm:$0x1]
        %v4551 = vlaneseq
        %v4552 = vshrl.u32 %v4551, 7
        %v4553 = vsub.s32 0, %v4552
        %v4554 = vrot.slane %v4549, %v4553
        %4556 = vmatprep.subr.mxu0 0.0
        %4557 = vmatpush1.msra.mxu0 %v4532
        %4558 = vmatprep.subr.mxu0 0.0
        %4559 = vmatpush1.msra.mxu0 %v4533
        %4560 = vmatprep.subr.mxu0 0.0
        %4561 = vmatpush1.msra.mxu0 %v4534
        %4562 = vmatprep.subr.mxu0 0.0
        %4563 = vmatpush1.msra.mxu0 %v4535
        %4564 = vmatprep.subr.mxu0 0.0
        %4565 = vmatpush1.msra.mxu0 %v4536
        %4566 = vmatprep.subr.mxu0 0.0
        %4567 = vmatpush1.msra.mxu0 %v4537
        %4568 = vmatprep.subr.mxu0 0.0
        %4569 = vmatpush1.msra.mxu0 %v4538
        %4570 = vmatprep.subr.mxu0 0.0
        %4571 = vmatpush1.msra.mxu0 %v4539
        %4572 = vmatprep.subr.mxu0 0.0
        %4573 = vmatpush1.msra.mxu0 %v4540
        %4574 = vmatprep.subr.mxu0 0.0
        %4575 = vmatpush1.msra.mxu0 %v4541
        %4576 = vmatprep.subr.mxu0 0.0
        %4577 = vmatpush1.msra.mxu0 %v4542
        %4578 = vmatprep.subr.mxu0 0.0
        %4579 = vmatpush1.msra.mxu0 %v4543
        %4580 = vmatprep.subr.mxu0 0.0
        %4581 = vmatpush1.msra.mxu0 %v4544
        %4582 = vmatprep.subr.mxu0 0.0
        %4583 = vmatpush1.msra.mxu0 %v4545
        %4584 = vmatprep.subr.mxu0 0.0
        %4585 = vmatpush1.msra.mxu0 %v4546
        %4586 = vmatprep.subr.mxu0 0.0
        %4587 = vmatpush1.msra.mxu0 %v4547
        %4588 = vmatprep.subr.mxu0 0.0
        %4589 = vmatpush1.msra.mxu0 0.0
        %4590 = vmatprep.subr.mxu0 0.0
        %4591 = vmatpush1.msra.mxu0 0.0
        %4592 = vmatprep.subr.mxu0 0.0
        %4593 = vmatpush1.msra.mxu0 0.0
        %4594 = vmatprep.subr.mxu0 0.0
        %4595 = vmatpush1.msra.mxu0 0.0
        %4596 = vmatprep.subr.mxu0 0.0
        %4597 = vmatpush1.msra.mxu0 0.0
        %4598 = vmatprep.subr.mxu0 0.0
        %4599 = vmatpush1.msra.mxu0 0.0
        %4600 = vmatprep.subr.mxu0 0.0
        %4601 = vmatpush1.msra.mxu0 0.0
        %4602 = vmatprep.subr.mxu0 0.0
        %4603 = vmatpush1.msra.mxu0 0.0
        %4604 = vmatprep.subr.mxu0 0.0
        %4605 = vmatpush1.msra.mxu0 0.0
        %4606 = vmatprep.subr.mxu0 0.0
        %4607 = vmatpush1.msra.mxu0 0.0
        %4608 = vmatprep.subr.mxu0 0.0
        %4609 = vmatpush1.msra.mxu0 0.0
        %4610 = vmatprep.subr.mxu0 0.0
        %4611 = vmatpush1.msra.mxu0 0.0
        %4612 = vmatprep.subr.mxu0 0.0
        %4613 = vmatpush1.msra.mxu0 0.0
        %4614 = vmatprep.subr.mxu0 0.0
        %4615 = vmatpush1.msra.mxu0 0.0
        %4616 = vmatprep.subr.mxu0 0.0
        %4617 = vmatpush1.msra.mxu0 0.0
        %4618 = vmatprep.subr.mxu0 0.0
        %4619 = vmatpush1.msra.mxu0 0.0
        %4620 = vmatprep.mubr.f32.mxu0 0.0
        %4621 = vmatmul.mubr.f32.gmra.mrb[0].mxu0 %v871
        %v4622 = vpop.f32.mrb[0].mxu0
        %v4623 = vadd.f32 %v4554, %v4622
        %v4624 = vpop.f32.mrb[0].mxu0
        %4625 = vmatprep.mubr.f32.mxu0 0.0
        %4626 = vmatmul.mubr.f32.gmra.mrb[0].mxu0 %v872
        %v4627 = vpop.f32.mrb[0].mxu0
        %v4628 = vadd.f32 %v4554, %v4627
        %v4629 = vpop.f32.mrb[0].mxu0
        %4630 = vmatprep.mubr.f32.mxu0 0.0
        %4631 = vmatmul.mubr.f32.gmra.mrb[0].mxu0 %v873
        %v4632 = vpop.f32.mrb[0].mxu0
        %v4633 = vadd.f32 %v4554, %v4632
        %v4634 = vpop.f32.mrb[0].mxu0
        %4635 = vmatprep.mubr.f32.mxu0 0.0
        %4636 = vmatmul.mubr.f32.gmra.mrb[0].mxu0 %v874
        %v4637 = vpop.f32.mrb[0].mxu0
        %v4638 = vadd.f32 %v4554, %v4637
        %v4639 = vpop.f32.mrb[0].mxu0
        %4640 = vdwg.mxu0
        %s4641 = scalar_lea.vmem %s14, 256
        %v4642 = vld [vmem:[%s4641] sm:$0xff]
        %v4643 = vld [vmem:[%s4641 + $0x8] sm:$0xff]
        %v4644 = vld [vmem:[%s4641 + $0x10] sm:$0xff]
        %v4645 = vld [vmem:[%s4641 + $0x18] sm:$0xff]
        %v4646 = vld [vmem:[%s4641 + $0x20] sm:$0xff]
        %v4647 = vld [vmem:[%s4641 + $0x28] sm:$0xff]
        %v4648 = vld [vmem:[%s4641 + $0x30] sm:$0xff]
        %v4649 = vld [vmem:[%s4641 + $0x38] sm:$0xff]
        %v4650 = vld [vmem:[%s4641 + $0x40] sm:$0xff]
        %v4651 = vld [vmem:[%s4641 + $0x48] sm:$0xff]
        %v4652 = vld [vmem:[%s4641 + $0x50] sm:$0xff]
        %v4653 = vld [vmem:[%s4641 + $0x58] sm:$0xff]
        %v4654 = vld [vmem:[%s4641 + $0x60] sm:$0xff]
        %v4655 = vld [vmem:[%s4641 + $0x68] sm:$0xff]
        %v4656 = vld [vmem:[%s4641 + $0x70] sm:$0xff]
        %v4657 = vld [vmem:[%s4641 + $0x78] sm:$0xff]
        %s4658 = scalar_lea.vmem %s17, 2
        %v4659 = vld [vmem:[%s4658] sm:$0x1]
        %v4661 = vlaneseq
        %v4662 = vshrl.u32 %v4661, 7
        %v4663 = vsub.s32 0, %v4662
        %v4664 = vrot.slane %v4659, %v4663
        %4666 = vmatprep.subr.mxu0 0.0
        %4667 = vmatpush1.msra.mxu0 %v4642
        %4668 = vmatprep.subr.mxu0 0.0
        %4669 = vmatpush1.msra.mxu0 %v4643
        %4670 = vmatprep.subr.mxu0 0.0
        %4671 = vmatpush1.msra.mxu0 %v4644
        %4672 = vmatprep.subr.mxu0 0.0
        %4673 = vmatpush1.msra.mxu0 %v4645
        %4674 = vmatprep.subr.mxu0 0.0
        %4675 = vmatpush1.msra.mxu0 %v4646
        %4676 = vmatprep.subr.mxu0 0.0
        %4677 = vmatpush1.msra.mxu0 %v4647
        %4678 = vmatprep.subr.mxu0 0.0
        %4679 = vmatpush1.msra.mxu0 %v4648
        %4680 = vmatprep.subr.mxu0 0.0
        %4681 = vmatpush1.msra.mxu0 %v4649
        %4682 = vmatprep.subr.mxu0 0.0
        %4683 = vmatpush1.msra.mxu0 %v4650
        %4684 = vmatprep.subr.mxu0 0.0
        %4685 = vmatpush1.msra.mxu0 %v4651
        %4686 = vmatprep.subr.mxu0 0.0
        %4687 = vmatpush1.msra.mxu0 %v4652
        %4688 = vmatprep.subr.mxu0 0.0
        %4689 = vmatpush1.msra.mxu0 %v4653
        %4690 = vmatprep.subr.mxu0 0.0
        %4691 = vmatpush1.msra.mxu0 %v4654
        %4692 = vmatprep.subr.mxu0 0.0
        %4693 = vmatpush1.msra.mxu0 %v4655
        %4694 = vmatprep.subr.mxu0 0.0
        %4695 = vmatpush1.msra.mxu0 %v4656
        %4696 = vmatprep.subr.mxu0 0.0
        %4697 = vmatpush1.msra.mxu0 %v4657
        %4698 = vmatprep.subr.mxu0 0.0
        %4699 = vmatpush1.msra.mxu0 0.0
        %4700 = vmatprep.subr.mxu0 0.0
        %4701 = vmatpush1.msra.mxu0 0.0
        %4702 = vmatprep.subr.mxu0 0.0
        %4703 = vmatpush1.msra.mxu0 0.0
        %4704 = vmatprep.subr.mxu0 0.0
        %4705 = vmatpush1.msra.mxu0 0.0
        %4706 = vmatprep.subr.mxu0 0.0
        %4707 = vmatpush1.msra.mxu0 0.0
        %4708 = vmatprep.subr.mxu0 0.0
        %4709 = vmatpush1.msra.mxu0 0.0
        %4710 = vmatprep.subr.mxu0 0.0
        %4711 = vmatpush1.msra.mxu0 0.0
        %4712 = vmatprep.subr.mxu0 0.0
        %4713 = vmatpush1.msra.mxu0 0.0
        %4714 = vmatprep.subr.mxu0 0.0
        %4715 = vmatpush1.msra.mxu0 0.0
        %4716 = vmatprep.subr.mxu0 0.0
        %4717 = vmatpush1.msra.mxu0 0.0
        %4718 = vmatprep.subr.mxu0 0.0
        %4719 = vmatpush1.msra.mxu0 0.0
        %4720 = vmatprep.subr.mxu0 0.0
        %4721 = vmatpush1.msra.mxu0 0.0
        %4722 = vmatprep.subr.mxu0 0.0
        %4723 = vmatpush1.msra.mxu0 0.0
        %4724 = vmatprep.subr.mxu0 0.0
        %4725 = vmatpush1.msra.mxu0 0.0
        %4726 = vmatprep.subr.mxu0 0.0
        %4727 = vmatpush1.msra.mxu0 0.0
        %4728 = vmatprep.subr.mxu0 0.0
        %4729 = vmatpush1.msra.mxu0 0.0
        %4730 = vmatprep.mubr.f32.mxu0 0.0
        %4731 = vmatmul.mubr.f32.gmra.mrb[0].mxu0 %v871
        %v4732 = vpop.f32.mrb[0].mxu0
        %v4733 = vadd.f32 %v4664, %v4732
        %v4734 = vpop.f32.mrb[0].mxu0
        %4735 = vmatprep.mubr.f32.mxu0 0.0
        %4736 = vmatmul.mubr.f32.gmra.mrb[0].mxu0 %v872
        %v4737 = vpop.f32.mrb[0].mxu0
        %v4738 = vadd.f32 %v4664, %v4737
        %v4739 = vpop.f32.mrb[0].mxu0
        %4740 = vmatprep.mubr.f32.mxu0 0.0
        %4741 = vmatmul.mubr.f32.gmra.mrb[0].mxu0 %v873
        %v4742 = vpop.f32.mrb[0].mxu0
        %v4743 = vadd.f32 %v4664, %v4742
        %v4744 = vpop.f32.mrb[0].mxu0
        %4745 = vmatprep.mubr.f32.mxu0 0.0
        %4746 = vmatmul.mubr.f32.gmra.mrb[0].mxu0 %v874
        %v4747 = vpop.f32.mrb[0].mxu0
        %v4748 = vadd.f32 %v4664, %v4747
        %v4749 = vpop.f32.mrb[0].mxu0
        %4750 = vdwg.mxu0
        %v4752 = vsel %vm1171, %v4523, 0
        %v4755 = vsel %vm1171, %v4528, 0
        %v4758 = vsel %vm1171, %v4623, 0
        %v4761 = vsel %vm1171, %v4628, 0
        %v4764 = vsel %vm1171, %v4633, 0
        %v4767 = vsel %vm1171, %v4638, 0
        %4769 = vmatprep.subr.mxu0 0.0
        %4770 = vmatpush1.xpose.msra.mxu0 %v4758
        %4771 = vmatprep.subr.mxu0 0.0
        %4772 = vmatpush1.xpose.msra.mxu0 %v4761
        %4773 = vmatprep.subr.mxu0 0.0
        %4774 = vmatpush1.xpose.msra.mxu0 %v4764
        %4775 = vmatprep.subr.mxu0 0.0
        %4776 = vmatpush1.xpose.msra.mxu0 %v4767
        %4777 = vmatprep.subr.mxu0 0.0
        %4778 = vmatpush1.xpose.msra.mxu0 0.0
        %4779 = vmatprep.subr.mxu0 0.0
        %4780 = vmatpush1.xpose.msra.mxu0 0.0
        %4781 = vmatprep.subr.mxu0 0.0
        %4782 = vmatpush1.xpose.msra.mxu0 0.0
        %4783 = vmatprep.subr.mxu0 0.0
        %4784 = vmatpush1.xpose.msra.mxu0 0.0
        %4785 = vmatprep.subr.mxu0 0.0
        %4786 = vmatpush1.xpose.msra.mxu0 0.0
        %4787 = vmatprep.subr.mxu0 0.0
        %4788 = vmatpush1.xpose.msra.mxu0 0.0
        %4789 = vmatprep.subr.mxu0 0.0
        %4790 = vmatpush1.xpose.msra.mxu0 0.0
        %4791 = vmatprep.subr.mxu0 0.0
        %4792 = vmatpush1.xpose.msra.mxu0 0.0
        %4793 = vmatprep.subr.mxu0 0.0
        %4794 = vmatpush1.xpose.msra.mxu0 0.0
        %4795 = vmatprep.subr.mxu0 0.0
        %4796 = vmatpush1.xpose.msra.mxu0 0.0
        %4797 = vmatprep.subr.mxu0 0.0
        %4798 = vmatpush1.xpose.msra.mxu0 0.0
        %4799 = vmatprep.subr.mxu0 0.0
        %4800 = vmatpush1.xpose.msra.mxu0 0.0
        %4801 = vmatprep.subr.mxu0 0.0
        %4802 = vmatpush1.xpose.msra.mxu0 0.0
        %4803 = vmatprep.subr.mxu0 0.0
        %4804 = vmatpush1.xpose.msra.mxu0 0.0
        %4805 = vmatprep.subr.mxu0 0.0
        %4806 = vmatpush1.xpose.msra.mxu0 0.0
        %4807 = vmatprep.subr.mxu0 0.0
        %4808 = vmatpush1.xpose.msra.mxu0 0.0
        %4809 = vmatprep.subr.mxu0 0.0
        %4810 = vmatpush1.xpose.msra.mxu0 0.0
        %4811 = vmatprep.subr.mxu0 0.0
        %4812 = vmatpush1.xpose.msra.mxu0 0.0
        %4813 = vmatprep.subr.mxu0 0.0
        %4814 = vmatpush1.xpose.msra.mxu0 0.0
        %4815 = vmatprep.subr.mxu0 0.0
        %4816 = vmatpush1.xpose.msra.mxu0 0.0
        %4817 = vmatprep.subr.mxu0 0.0
        %4818 = vmatpush1.xpose.msra.mxu0 0.0
        %4819 = vmatprep.subr.mxu0 0.0
        %4820 = vmatpush1.xpose.msra.mxu0 0.0
        %4821 = vmatprep.subr.mxu0 0.0
        %4822 = vmatpush1.xpose.msra.mxu0 0.0
        %4823 = vmatprep.subr.mxu0 0.0
        %4824 = vmatpush1.xpose.msra.mxu0 0.0
        %4825 = vmatprep.subr.mxu0 0.0
        %4826 = vmatpush1.xpose.msra.mxu0 0.0
        %4827 = vmatprep.subr.mxu0 0.0
        %4828 = vmatpush1.xpose.msra.mxu0 0.0
        %4829 = vmatprep.subr.mxu0 0.0
        %4830 = vmatpush1.xpose.msra.mxu0 0.0
        %4831 = vmatprep.subr.mxu0 0.0
        %4832 = vmatpush1.xpose.msra.mxu0 0.0
        %4833 = vmatprep.mubr.f32.mxu0 0.0
        %4834 = vmatmul.mubr.f32.gmra.mrb[0].mxu0 %v4752
        %v4835 = vpop.f32.mrb[0].mxu0
        %v4836 = vadd.f32 %v3232, %v4835
        %v4837 = vpop.f32.mrb[0].mxu0
        %4838 = vmatprep.mubr.f32.mxu0 0.0
        %4839 = vmatmul.mubr.f32.gmra.mrb[0].mxu0 %v4755
        %v4840 = vpop.f32.mrb[0].mxu0
        %v4841 = vadd.f32 %v3233, %v4840
        %v4842 = vpop.f32.mrb[0].mxu0
        %4843 = vdwg.mxu0
        %v4844 = vsel %vm1171, %v4836, -inf
        %4845 = vmax.xlane.f32.xlu0 %v4844
        %v4846 = vpop.xlane.xlu0 %4845
        %v4847 = vsel %vm1171, %v4841, -inf
        %4848 = vmax.xlane.f32.xlu0 %v4847
        %v4849 = vpop.xlane.xlu0 %4848
        %v4850 = vsub.f32 %v4836, %v4846
        %v4851 = vsub.f32 %v4841, %v4849
        %v4852 = vmul.f32 %v4850, 1.442695
        %v4853 = vpow.pop %v4852
        %v4854 = vmul.f32 %v4851, 1.442695
        %v4855 = vpow.pop %v4854
        %v4856 = vsel %vm1171, %v4853, 0.0
        %4857 = vadd.xlane.f32.xlu0 %v4856
        %v4858 = vpop.xlane.xlu0 %4857
        %v4859 = vsel %vm1171, %v4855, 0.0
        %4860 = vadd.xlane.f32.xlu0 %v4859
        %v4861 = vpop.xlane.xlu0 %4860
        %v4862 = vrcp.pop %v4858
        %v4863 = vmul.f32 %v4853, %v4862
        %v4864 = vrcp.pop %v4861
        %v4865 = vmul.f32 %v4855, %v4864
        %v4867 = vsel %vm1171, %v4863, 0
        %v4870 = vsel %vm1171, %v4865, 0
        %4872 = vmatprep.subr.mxu0 0.0
        %4873 = vmatpush1.msra.mxu0 %v4733
        %4874 = vmatprep.subr.mxu0 0.0
        %4875 = vmatpush1.msra.mxu0 %v4738
        %4876 = vmatprep.subr.mxu0 0.0
        %4877 = vmatpush1.msra.mxu0 %v4743
        %4878 = vmatprep.subr.mxu0 0.0
        %4879 = vmatpush1.msra.mxu0 %v4748
        %4880 = vmatprep.subr.mxu0 0.0
        %4881 = vmatpush1.msra.mxu0 0.0
        %4882 = vmatprep.subr.mxu0 0.0
        %4883 = vmatpush1.msra.mxu0 0.0
        %4884 = vmatprep.subr.mxu0 0.0
        %4885 = vmatpush1.msra.mxu0 0.0
        %4886 = vmatprep.subr.mxu0 0.0
        %4887 = vmatpush1.msra.mxu0 0.0
        %4888 = vmatprep.subr.mxu0 0.0
        %4889 = vmatpush1.msra.mxu0 0.0
        %4890 = vmatprep.subr.mxu0 0.0
        %4891 = vmatpush1.msra.mxu0 0.0
        %4892 = vmatprep.subr.mxu0 0.0
        %4893 = vmatpush1.msra.mxu0 0.0
        %4894 = vmatprep.subr.mxu0 0.0
        %4895 = vmatpush1.msra.mxu0 0.0
        %4896 = vmatprep.subr.mxu0 0.0
        %4897 = vmatpush1.msra.mxu0 0.0
        %4898 = vmatprep.subr.mxu0 0.0
        %4899 = vmatpush1.msra.mxu0 0.0
        %4900 = vmatprep.subr.mxu0 0.0
        %4901 = vmatpush1.msra.mxu0 0.0
        %4902 = vmatprep.subr.mxu0 0.0
        %4903 = vmatpush1.msra.mxu0 0.0
        %4904 = vmatprep.subr.mxu0 0.0
        %4905 = vmatpush1.msra.mxu0 0.0
        %4906 = vmatprep.subr.mxu0 0.0
        %4907 = vmatpush1.msra.mxu0 0.0
        %4908 = vmatprep.subr.mxu0 0.0
        %4909 = vmatpush1.msra.mxu0 0.0
        %4910 = vmatprep.subr.mxu0 0.0
        %4911 = vmatpush1.msra.mxu0 0.0
        %4912 = vmatprep.subr.mxu0 0.0
        %4913 = vmatpush1.msra.mxu0 0.0
        %4914 = vmatprep.subr.mxu0 0.0
        %4915 = vmatpush1.msra.mxu0 0.0
        %4916 = vmatprep.subr.mxu0 0.0
        %4917 = vmatpush1.msra.mxu0 0.0
        %4918 = vmatprep.subr.mxu0 0.0
        %4919 = vmatpush1.msra.mxu0 0.0
        %4920 = vmatprep.subr.mxu0 0.0
        %4921 = vmatpush1.msra.mxu0 0.0
        %4922 = vmatprep.subr.mxu0 0.0
        %4923 = vmatpush1.msra.mxu0 0.0
        %4924 = vmatprep.subr.mxu0 0.0
        %4925 = vmatpush1.msra.mxu0 0.0
        %4926 = vmatprep.subr.mxu0 0.0
        %4927 = vmatpush1.msra.mxu0 0.0
        %4928 = vmatprep.subr.mxu0 0.0
        %4929 = vmatpush1.msra.mxu0 0.0
        %4930 = vmatprep.subr.mxu0 0.0
        %4931 = vmatpush1.msra.mxu0 0.0
        %4932 = vmatprep.subr.mxu0 0.0
        %4933 = vmatpush1.msra.mxu0 0.0
        %4934 = vmatprep.subr.mxu0 0.0
        %4935 = vmatpush1.msra.mxu0 0.0
        %4936 = vmatprep.mubr.f32.mxu0 0.0
        %4937 = vmatmul.mubr.f32.gmra.mrb[0].mxu0 %v4867
        %v4938 = vpop.f32.mrb[0].mxu0
        %v4939 = vadd.f32 0.0, %v4938
        %v4940 = vpop.f32.mrb[0].mxu0
        %4941 = vmatprep.mubr.f32.mxu0 0.0
        %4942 = vmatmul.mubr.f32.gmra.mrb[0].mxu0 %v4870
        %v4943 = vpop.f32.mrb[0].mxu0
        %v4944 = vadd.f32 0.0, %v4943
        %v4945 = vpop.f32.mrb[0].mxu0
        %4946 = vdwg.mxu0
        %s4947 = scalar_lea.vmem %s18, 64
        %v4948 = vld [vmem:[%s4947] sm:$0xff]
        %v4949 = vld [vmem:[%s4947 + $0x8] sm:$0xff]
        %v4950 = vld [vmem:[%s4947 + $0x10] sm:$0xff]
        %v4951 = vld [vmem:[%s4947 + $0x18] sm:$0xff]
        %v4953 = vsel %vm1171, %v4939, 0
        %v4956 = vsel %vm1171, %v4944, 0
        %4958 = vmatprep.subr.mxu0 0.0
        %4959 = vmatpush1.msra.mxu0 %v4948
        %4960 = vmatprep.subr.mxu0 0.0
        %4961 = vmatpush1.msra.mxu0 %v4949
        %4962 = vmatprep.subr.mxu0 0.0
        %4963 = vmatpush1.msra.mxu0 %v4950
        %4964 = vmatprep.subr.mxu0 0.0
        %4965 = vmatpush1.msra.mxu0 %v4951
        %4966 = vmatprep.subr.mxu0 0.0
        %4967 = vmatpush1.msra.mxu0 0.0
        %4968 = vmatprep.subr.mxu0 0.0
        %4969 = vmatpush1.msra.mxu0 0.0
        %4970 = vmatprep.subr.mxu0 0.0
        %4971 = vmatpush1.msra.mxu0 0.0
        %4972 = vmatprep.subr.mxu0 0.0
        %4973 = vmatpush1.msra.mxu0 0.0
        %4974 = vmatprep.subr.mxu0 0.0
        %4975 = vmatpush1.msra.mxu0 0.0
        %4976 = vmatprep.subr.mxu0 0.0
        %4977 = vmatpush1.msra.mxu0 0.0
        %4978 = vmatprep.subr.mxu0 0.0
        %4979 = vmatpush1.msra.mxu0 0.0
        %4980 = vmatprep.subr.mxu0 0.0
        %4981 = vmatpush1.msra.mxu0 0.0
        %4982 = vmatprep.subr.mxu0 0.0
        %4983 = vmatpush1.msra.mxu0 0.0
        %4984 = vmatprep.subr.mxu0 0.0
        %4985 = vmatpush1.msra.mxu0 0.0
        %4986 = vmatprep.subr.mxu0 0.0
        %4987 = vmatpush1.msra.mxu0 0.0
        %4988 = vmatprep.subr.mxu0 0.0
        %4989 = vmatpush1.msra.mxu0 0.0
        %4990 = vmatprep.subr.mxu0 0.0
        %4991 = vmatpush1.msra.mxu0 0.0
        %4992 = vmatprep.subr.mxu0 0.0
        %4993 = vmatpush1.msra.mxu0 0.0
        %4994 = vmatprep.subr.mxu0 0.0
        %4995 = vmatpush1.msra.mxu0 0.0
        %4996 = vmatprep.subr.mxu0 0.0
        %4997 = vmatpush1.msra.mxu0 0.0
        %4998 = vmatprep.subr.mxu0 0.0
        %4999 = vmatpush1.msra.mxu0 0.0
        %5000 = vmatprep.subr.mxu0 0.0
        %5001 = vmatpush1.msra.mxu0 0.0
        %5002 = vmatprep.subr.mxu0 0.0
        %5003 = vmatpush1.msra.mxu0 0.0
        %5004 = vmatprep.subr.mxu0 0.0
        %5005 = vmatpush1.msra.mxu0 0.0
        %5006 = vmatprep.subr.mxu0 0.0
        %5007 = vmatpush1.msra.mxu0 0.0
        %5008 = vmatprep.subr.mxu0 0.0
        %5009 = vmatpush1.msra.mxu0 0.0
        %5010 = vmatprep.subr.mxu0 0.0
        %5011 = vmatpush1.msra.mxu0 0.0
        %5012 = vmatprep.subr.mxu0 0.0
        %5013 = vmatpush1.msra.mxu0 0.0
        %5014 = vmatprep.subr.mxu0 0.0
        %5015 = vmatpush1.msra.mxu0 0.0
        %5016 = vmatprep.subr.mxu0 0.0
        %5017 = vmatpush1.msra.mxu0 0.0
        %5018 = vmatprep.subr.mxu0 0.0
        %5019 = vmatpush1.msra.mxu0 0.0
        %5020 = vmatprep.subr.mxu0 0.0
        %5021 = vmatpush1.msra.mxu0 0.0
        %5022 = vmatprep.mubr.f32.mxu0 0.0
        %5023 = vmatmul.mubr.f32.gmra.mrb[0].mxu0 %v4953
        %v5024 = vpop.f32.mrb[0].mxu0
        %v5025 = vadd.f32 0.0, %v5024
        %v5026 = vpop.f32.mrb[0].mxu0
        %5027 = vmatprep.mubr.f32.mxu0 0.0
        %5028 = vmatmul.mubr.f32.gmra.mrb[0].mxu0 %v4956
        %v5029 = vpop.f32.mrb[0].mxu0
        %v5030 = vadd.f32 0.0, %v5029
        %v5031 = vpop.f32.mrb[0].mxu0
        %5032 = vdwg.mxu0
        %v5033 = vadd.f32 %v4423, %v5025
        %v5034 = vadd.f32 %v4428, %v5030
        %s5035 = scalar_lea.vmem %s12, 384
        %v5036 = vld [vmem:[%s5035] sm:$0xff]
        %v5037 = vld [vmem:[%s5035 + $0x8] sm:$0xff]
        %v5038 = vld [vmem:[%s5035 + $0x10] sm:$0xff]
        %v5039 = vld [vmem:[%s5035 + $0x18] sm:$0xff]
        %v5040 = vld [vmem:[%s5035 + $0x20] sm:$0xff]
        %v5041 = vld [vmem:[%s5035 + $0x28] sm:$0xff]
        %v5042 = vld [vmem:[%s5035 + $0x30] sm:$0xff]
        %v5043 = vld [vmem:[%s5035 + $0x38] sm:$0xff]
        %v5044 = vld [vmem:[%s5035 + $0x40] sm:$0xff]
        %v5045 = vld [vmem:[%s5035 + $0x48] sm:$0xff]
        %v5046 = vld [vmem:[%s5035 + $0x50] sm:$0xff]
        %v5047 = vld [vmem:[%s5035 + $0x58] sm:$0xff]
        %v5048 = vld [vmem:[%s5035 + $0x60] sm:$0xff]
        %v5049 = vld [vmem:[%s5035 + $0x68] sm:$0xff]
        %v5050 = vld [vmem:[%s5035 + $0x70] sm:$0xff]
        %v5051 = vld [vmem:[%s5035 + $0x78] sm:$0xff]
        %s5052 = scalar_lea.vmem %s15, 3
        %v5053 = vld [vmem:[%s5052] sm:$0x1]
        %v5055 = vlaneseq
        %v5056 = vshrl.u32 %v5055, 7
        %v5057 = vsub.s32 0, %v5056
        %v5058 = vrot.slane %v5053, %v5057
        %5060 = vmatprep.subr.mxu0 0.0
        %5061 = vmatpush1.msra.mxu0 %v5036
        %5062 = vmatprep.subr.mxu0 0.0
        %5063 = vmatpush1.msra.mxu0 %v5037
        %5064 = vmatprep.subr.mxu0 0.0
        %5065 = vmatpush1.msra.mxu0 %v5038
        %5066 = vmatprep.subr.mxu0 0.0
        %5067 = vmatpush1.msra.mxu0 %v5039
        %5068 = vmatprep.subr.mxu0 0.0
        %5069 = vmatpush1.msra.mxu0 %v5040
        %5070 = vmatprep.subr.mxu0 0.0
        %5071 = vmatpush1.msra.mxu0 %v5041
        %5072 = vmatprep.subr.mxu0 0.0
        %5073 = vmatpush1.msra.mxu0 %v5042
        %5074 = vmatprep.subr.mxu0 0.0
        %5075 = vmatpush1.msra.mxu0 %v5043
        %5076 = vmatprep.subr.mxu0 0.0
        %5077 = vmatpush1.msra.mxu0 %v5044
        %5078 = vmatprep.subr.mxu0 0.0
        %5079 = vmatpush1.msra.mxu0 %v5045
        %5080 = vmatprep.subr.mxu0 0.0
        %5081 = vmatpush1.msra.mxu0 %v5046
        %5082 = vmatprep.subr.mxu0 0.0
        %5083 = vmatpush1.msra.mxu0 %v5047
        %5084 = vmatprep.subr.mxu0 0.0
        %5085 = vmatpush1.msra.mxu0 %v5048
        %5086 = vmatprep.subr.mxu0 0.0
        %5087 = vmatpush1.msra.mxu0 %v5049
        %5088 = vmatprep.subr.mxu0 0.0
        %5089 = vmatpush1.msra.mxu0 %v5050
        %5090 = vmatprep.subr.mxu0 0.0
        %5091 = vmatpush1.msra.mxu0 %v5051
        %5092 = vmatprep.subr.mxu0 0.0
        %5093 = vmatpush1.msra.mxu0 0.0
        %5094 = vmatprep.subr.mxu0 0.0
        %5095 = vmatpush1.msra.mxu0 0.0
        %5096 = vmatprep.subr.mxu0 0.0
        %5097 = vmatpush1.msra.mxu0 0.0
        %5098 = vmatprep.subr.mxu0 0.0
        %5099 = vmatpush1.msra.mxu0 0.0
        %5100 = vmatprep.subr.mxu0 0.0
        %5101 = vmatpush1.msra.mxu0 0.0
        %5102 = vmatprep.subr.mxu0 0.0
        %5103 = vmatpush1.msra.mxu0 0.0
        %5104 = vmatprep.subr.mxu0 0.0
        %5105 = vmatpush1.msra.mxu0 0.0
        %5106 = vmatprep.subr.mxu0 0.0
        %5107 = vmatpush1.msra.mxu0 0.0
        %5108 = vmatprep.subr.mxu0 0.0
        %5109 = vmatpush1.msra.mxu0 0.0
        %5110 = vmatprep.subr.mxu0 0.0
        %5111 = vmatpush1.msra.mxu0 0.0
        %5112 = vmatprep.subr.mxu0 0.0
        %5113 = vmatpush1.msra.mxu0 0.0
        %5114 = vmatprep.subr.mxu0 0.0
        %5115 = vmatpush1.msra.mxu0 0.0
        %5116 = vmatprep.subr.mxu0 0.0
        %5117 = vmatpush1.msra.mxu0 0.0
        %5118 = vmatprep.subr.mxu0 0.0
        %5119 = vmatpush1.msra.mxu0 0.0
        %5120 = vmatprep.subr.mxu0 0.0
        %5121 = vmatpush1.msra.mxu0 0.0
        %5122 = vmatprep.subr.mxu0 0.0
        %5123 = vmatpush1.msra.mxu0 0.0
        %5124 = vmatprep.mubr.f32.mxu0 0.0
        %5125 = vmatmul.mubr.f32.gmra.mrb[0].mxu0 %v3230
        %v5126 = vpop.f32.mrb[0].mxu0
        %v5127 = vadd.f32 %v5058, %v5126
        %v5128 = vpop.f32.mrb[0].mxu0
        %5129 = vmatprep.mubr.f32.mxu0 0.0
        %5130 = vmatmul.mubr.f32.gmra.mrb[0].mxu0 %v3231
        %v5131 = vpop.f32.mrb[0].mxu0
        %v5132 = vadd.f32 %v5058, %v5131
        %v5133 = vpop.f32.mrb[0].mxu0
        %5134 = vdwg.mxu0
        %s5135 = scalar_lea.vmem %s13, 384
        %v5136 = vld [vmem:[%s5135] sm:$0xff]
        %v5137 = vld [vmem:[%s5135 + $0x8] sm:$0xff]
        %v5138 = vld [vmem:[%s5135 + $0x10] sm:$0xff]
        %v5139 = vld [vmem:[%s5135 + $0x18] sm:$0xff]
        %v5140 = vld [vmem:[%s5135 + $0x20] sm:$0xff]
        %v5141 = vld [vmem:[%s5135 + $0x28] sm:$0xff]
        %v5142 = vld [vmem:[%s5135 + $0x30] sm:$0xff]
        %v5143 = vld [vmem:[%s5135 + $0x38] sm:$0xff]
        %v5144 = vld [vmem:[%s5135 + $0x40] sm:$0xff]
        %v5145 = vld [vmem:[%s5135 + $0x48] sm:$0xff]
        %v5146 = vld [vmem:[%s5135 + $0x50] sm:$0xff]
        %v5147 = vld [vmem:[%s5135 + $0x58] sm:$0xff]
        %v5148 = vld [vmem:[%s5135 + $0x60] sm:$0xff]
        %v5149 = vld [vmem:[%s5135 + $0x68] sm:$0xff]
        %v5150 = vld [vmem:[%s5135 + $0x70] sm:$0xff]
        %v5151 = vld [vmem:[%s5135 + $0x78] sm:$0xff]
        %s5152 = scalar_lea.vmem %s16, 3
        %v5153 = vld [vmem:[%s5152] sm:$0x1]
        %v5155 = vlaneseq
        %v5156 = vshrl.u32 %v5155, 7
        %v5157 = vsub.s32 0, %v5156
        %v5158 = vrot.slane %v5153, %v5157
        %5160 = vmatprep.subr.mxu0 0.0
        %5161 = vmatpush1.msra.mxu0 %v5136
        %5162 = vmatprep.subr.mxu0 0.0
        %5163 = vmatpush1.msra.mxu0 %v5137
        %5164 = vmatprep.subr.mxu0 0.0
        %5165 = vmatpush1.msra.mxu0 %v5138
        %5166 = vmatprep.subr.mxu0 0.0
        %5167 = vmatpush1.msra.mxu0 %v5139
        %5168 = vmatprep.subr.mxu0 0.0
        %5169 = vmatpush1.msra.mxu0 %v5140
        %5170 = vmatprep.subr.mxu0 0.0
        %5171 = vmatpush1.msra.mxu0 %v5141
        %5172 = vmatprep.subr.mxu0 0.0
        %5173 = vmatpush1.msra.mxu0 %v5142
        %5174 = vmatprep.subr.mxu0 0.0
        %5175 = vmatpush1.msra.mxu0 %v5143
        %5176 = vmatprep.subr.mxu0 0.0
        %5177 = vmatpush1.msra.mxu0 %v5144
        %5178 = vmatprep.subr.mxu0 0.0
        %5179 = vmatpush1.msra.mxu0 %v5145
        %5180 = vmatprep.subr.mxu0 0.0
        %5181 = vmatpush1.msra.mxu0 %v5146
        %5182 = vmatprep.subr.mxu0 0.0
        %5183 = vmatpush1.msra.mxu0 %v5147
        %5184 = vmatprep.subr.mxu0 0.0
        %5185 = vmatpush1.msra.mxu0 %v5148
        %5186 = vmatprep.subr.mxu0 0.0
        %5187 = vmatpush1.msra.mxu0 %v5149
        %5188 = vmatprep.subr.mxu0 0.0
        %5189 = vmatpush1.msra.mxu0 %v5150
        %5190 = vmatprep.subr.mxu0 0.0
        %5191 = vmatpush1.msra.mxu0 %v5151
        %5192 = vmatprep.subr.mxu0 0.0
        %5193 = vmatpush1.msra.mxu0 0.0
        %5194 = vmatprep.subr.mxu0 0.0
        %5195 = vmatpush1.msra.mxu0 0.0
        %5196 = vmatprep.subr.mxu0 0.0
        %5197 = vmatpush1.msra.mxu0 0.0
        %5198 = vmatprep.subr.mxu0 0.0
        %5199 = vmatpush1.msra.mxu0 0.0
        %5200 = vmatprep.subr.mxu0 0.0
        %5201 = vmatpush1.msra.mxu0 0.0
        %5202 = vmatprep.subr.mxu0 0.0
        %5203 = vmatpush1.msra.mxu0 0.0
        %5204 = vmatprep.subr.mxu0 0.0
        %5205 = vmatpush1.msra.mxu0 0.0
        %5206 = vmatprep.subr.mxu0 0.0
        %5207 = vmatpush1.msra.mxu0 0.0
        %5208 = vmatprep.subr.mxu0 0.0
        %5209 = vmatpush1.msra.mxu0 0.0
        %5210 = vmatprep.subr.mxu0 0.0
        %5211 = vmatpush1.msra.mxu0 0.0
        %5212 = vmatprep.subr.mxu0 0.0
        %5213 = vmatpush1.msra.mxu0 0.0
        %5214 = vmatprep.subr.mxu0 0.0
        %5215 = vmatpush1.msra.mxu0 0.0
        %5216 = vmatprep.subr.mxu0 0.0
        %5217 = vmatpush1.msra.mxu0 0.0
        %5218 = vmatprep.subr.mxu0 0.0
        %5219 = vmatpush1.msra.mxu0 0.0
        %5220 = vmatprep.subr.mxu0 0.0
        %5221 = vmatpush1.msra.mxu0 0.0
        %5222 = vmatprep.subr.mxu0 0.0
        %5223 = vmatpush1.msra.mxu0 0.0
        %5224 = vmatprep.mubr.f32.mxu0 0.0
        %5225 = vmatmul.mubr.f32.gmra.mrb[0].mxu0 %v871
        %v5226 = vpop.f32.mrb[0].mxu0
        %v5227 = vadd.f32 %v5158, %v5226
        %v5228 = vpop.f32.mrb[0].mxu0
        %5229 = vmatprep.mubr.f32.mxu0 0.0
        %5230 = vmatmul.mubr.f32.gmra.mrb[0].mxu0 %v872
        %v5231 = vpop.f32.mrb[0].mxu0
        %v5232 = vadd.f32 %v5158, %v5231
        %v5233 = vpop.f32.mrb[0].mxu0
        %5234 = vmatprep.mubr.f32.mxu0 0.0
        %5235 = vmatmul.mubr.f32.gmra.mrb[0].mxu0 %v873
        %v5236 = vpop.f32.mrb[0].mxu0
        %v5237 = vadd.f32 %v5158, %v5236
        %v5238 = vpop.f32.mrb[0].mxu0
        %5239 = vmatprep.mubr.f32.mxu0 0.0
        %5240 = vmatmul.mubr.f32.gmra.mrb[0].mxu0 %v874
        %v5241 = vpop.f32.mrb[0].mxu0
        %v5242 = vadd.f32 %v5158, %v5241
        %v5243 = vpop.f32.mrb[0].mxu0
        %5244 = vdwg.mxu0
        %s5245 = scalar_lea.vmem %s14, 384
        %v5246 = vld [vmem:[%s5245] sm:$0xff]
        %v5247 = vld [vmem:[%s5245 + $0x8] sm:$0xff]
        %v5248 = vld [vmem:[%s5245 + $0x10] sm:$0xff]
        %v5249 = vld [vmem:[%s5245 + $0x18] sm:$0xff]
        %v5250 = vld [vmem:[%s5245 + $0x20] sm:$0xff]
        %v5251 = vld [vmem:[%s5245 + $0x28] sm:$0xff]
        %v5252 = vld [vmem:[%s5245 + $0x30] sm:$0xff]
        %v5253 = vld [vmem:[%s5245 + $0x38] sm:$0xff]
        %v5254 = vld [vmem:[%s5245 + $0x40] sm:$0xff]
        %v5255 = vld [vmem:[%s5245 + $0x48] sm:$0xff]
        %v5256 = vld [vmem:[%s5245 + $0x50] sm:$0xff]
        %v5257 = vld [vmem:[%s5245 + $0x58] sm:$0xff]
        %v5258 = vld [vmem:[%s5245 + $0x60] sm:$0xff]
        %v5259 = vld [vmem:[%s5245 + $0x68] sm:$0xff]
        %v5260 = vld [vmem:[%s5245 + $0x70] sm:$0xff]
        %v5261 = vld [vmem:[%s5245 + $0x78] sm:$0xff]
        %s5262 = scalar_lea.vmem %s17, 3
        %v5263 = vld [vmem:[%s5262] sm:$0x1]
        %v5265 = vlaneseq
        %v5266 = vshrl.u32 %v5265, 7
        %v5267 = vsub.s32 0, %v5266
        %v5268 = vrot.slane %v5263, %v5267
        %5270 = vmatprep.subr.mxu0 0.0
        %5271 = vmatpush1.msra.mxu0 %v5246
        %5272 = vmatprep.subr.mxu0 0.0
        %5273 = vmatpush1.msra.mxu0 %v5247
        %5274 = vmatprep.subr.mxu0 0.0
        %5275 = vmatpush1.msra.mxu0 %v5248
        %5276 = vmatprep.subr.mxu0 0.0
        %5277 = vmatpush1.msra.mxu0 %v5249
        %5278 = vmatprep.subr.mxu0 0.0
        %5279 = vmatpush1.msra.mxu0 %v5250
        %5280 = vmatprep.subr.mxu0 0.0
        %5281 = vmatpush1.msra.mxu0 %v5251
        %5282 = vmatprep.subr.mxu0 0.0
        %5283 = vmatpush1.msra.mxu0 %v5252
        %5284 = vmatprep.subr.mxu0 0.0
        %5285 = vmatpush1.msra.mxu0 %v5253
        %5286 = vmatprep.subr.mxu0 0.0
        %5287 = vmatpush1.msra.mxu0 %v5254
        %5288 = vmatprep.subr.mxu0 0.0
        %5289 = vmatpush1.msra.mxu0 %v5255
        %5290 = vmatprep.subr.mxu0 0.0
        %5291 = vmatpush1.msra.mxu0 %v5256
        %5292 = vmatprep.subr.mxu0 0.0
        %5293 = vmatpush1.msra.mxu0 %v5257
        %5294 = vmatprep.subr.mxu0 0.0
        %5295 = vmatpush1.msra.mxu0 %v5258
        %5296 = vmatprep.subr.mxu0 0.0
        %5297 = vmatpush1.msra.mxu0 %v5259
        %5298 = vmatprep.subr.mxu0 0.0
        %5299 = vmatpush1.msra.mxu0 %v5260
        %5300 = vmatprep.subr.mxu0 0.0
        %5301 = vmatpush1.msra.mxu0 %v5261
        %5302 = vmatprep.subr.mxu0 0.0
        %5303 = vmatpush1.msra.mxu0 0.0
        %5304 = vmatprep.subr.mxu0 0.0
        %5305 = vmatpush1.msra.mxu0 0.0
        %5306 = vmatprep.subr.mxu0 0.0
        %5307 = vmatpush1.msra.mxu0 0.0
        %5308 = vmatprep.subr.mxu0 0.0
        %5309 = vmatpush1.msra.mxu0 0.0
        %5310 = vmatprep.subr.mxu0 0.0
        %5311 = vmatpush1.msra.mxu0 0.0
        %5312 = vmatprep.subr.mxu0 0.0
        %5313 = vmatpush1.msra.mxu0 0.0
        %5314 = vmatprep.subr.mxu0 0.0
        %5315 = vmatpush1.msra.mxu0 0.0
        %5316 = vmatprep.subr.mxu0 0.0
        %5317 = vmatpush1.msra.mxu0 0.0
        %5318 = vmatprep.subr.mxu0 0.0
        %5319 = vmatpush1.msra.mxu0 0.0
        %5320 = vmatprep.subr.mxu0 0.0
        %5321 = vmatpush1.msra.mxu0 0.0
        %5322 = vmatprep.subr.mxu0 0.0
        %5323 = vmatpush1.msra.mxu0 0.0
        %5324 = vmatprep.subr.mxu0 0.0
        %5325 = vmatpush1.msra.mxu0 0.0
        %5326 = vmatprep.subr.mxu0 0.0
        %5327 = vmatpush1.msra.mxu0 0.0
        %5328 = vmatprep.subr.mxu0 0.0
        %5329 = vmatpush1.msra.mxu0 0.0
        %5330 = vmatprep.subr.mxu0 0.0
        %5331 = vmatpush1.msra.mxu0 0.0
        %5332 = vmatprep.subr.mxu0 0.0
        %5333 = vmatpush1.msra.mxu0 0.0
        %5334 = vmatprep.mubr.f32.mxu0 0.0
        %5335 = vmatmul.mubr.f32.gmra.mrb[0].mxu0 %v871
        %v5336 = vpop.f32.mrb[0].mxu0
        %v5337 = vadd.f32 %v5268, %v5336
        %v5338 = vpop.f32.mrb[0].mxu0
        %5339 = vmatprep.mubr.f32.mxu0 0.0
        %5340 = vmatmul.mubr.f32.gmra.mrb[0].mxu0 %v872
        %v5341 = vpop.f32.mrb[0].mxu0
        %v5342 = vadd.f32 %v5268, %v5341
        %v5343 = vpop.f32.mrb[0].mxu0
        %5344 = vmatprep.mubr.f32.mxu0 0.0
        %5345 = vmatmul.mubr.f32.gmra.mrb[0].mxu0 %v873
        %v5346 = vpop.f32.mrb[0].mxu0
        %v5347 = vadd.f32 %v5268, %v5346
        %v5348 = vpop.f32.mrb[0].mxu0
        %5349 = vmatprep.mubr.f32.mxu0 0.0
        %5350 = vmatmul.mubr.f32.gmra.mrb[0].mxu0 %v874
        %v5351 = vpop.f32.mrb[0].mxu0
        %v5352 = vadd.f32 %v5268, %v5351
        %v5353 = vpop.f32.mrb[0].mxu0
        %5354 = vdwg.mxu0
        %v5356 = vsel %vm1171, %v5127, 0
        %v5359 = vsel %vm1171, %v5132, 0
        %v5362 = vsel %vm1171, %v5227, 0
        %v5365 = vsel %vm1171, %v5232, 0
        %v5368 = vsel %vm1171, %v5237, 0
        %v5371 = vsel %vm1171, %v5242, 0
        %5373 = vmatprep.subr.mxu0 0.0
        %5374 = vmatpush1.xpose.msra.mxu0 %v5362
        %5375 = vmatprep.subr.mxu0 0.0
        %5376 = vmatpush1.xpose.msra.mxu0 %v5365
        %5377 = vmatprep.subr.mxu0 0.0
        %5378 = vmatpush1.xpose.msra.mxu0 %v5368
        %5379 = vmatprep.subr.mxu0 0.0
        %5380 = vmatpush1.xpose.msra.mxu0 %v5371
        %5381 = vmatprep.subr.mxu0 0.0
        %5382 = vmatpush1.xpose.msra.mxu0 0.0
        %5383 = vmatprep.subr.mxu0 0.0
        %5384 = vmatpush1.xpose.msra.mxu0 0.0
        %5385 = vmatprep.subr.mxu0 0.0
        %5386 = vmatpush1.xpose.msra.mxu0 0.0
        %5387 = vmatprep.subr.mxu0 0.0
        %5388 = vmatpush1.xpose.msra.mxu0 0.0
        %5389 = vmatprep.subr.mxu0 0.0
        %5390 = vmatpush1.xpose.msra.mxu0 0.0
        %5391 = vmatprep.subr.mxu0 0.0
        %5392 = vmatpush1.xpose.msra.mxu0 0.0
        %5393 = vmatprep.subr.mxu0 0.0
        %5394 = vmatpush1.xpose.msra.mxu0 0.0
        %5395 = vmatprep.subr.mxu0 0.0
        %5396 = vmatpush1.xpose.msra.mxu0 0.0
        %5397 = vmatprep.subr.mxu0 0.0
        %5398 = vmatpush1.xpose.msra.mxu0 0.0
        %5399 = vmatprep.subr.mxu0 0.0
        %5400 = vmatpush1.xpose.msra.mxu0 0.0
        %5401 = vmatprep.subr.mxu0 0.0
        %5402 = vmatpush1.xpose.msra.mxu0 0.0
        %5403 = vmatprep.subr.mxu0 0.0
        %5404 = vmatpush1.xpose.msra.mxu0 0.0
        %5405 = vmatprep.subr.mxu0 0.0
        %5406 = vmatpush1.xpose.msra.mxu0 0.0
        %5407 = vmatprep.subr.mxu0 0.0
        %5408 = vmatpush1.xpose.msra.mxu0 0.0
        %5409 = vmatprep.subr.mxu0 0.0
        %5410 = vmatpush1.xpose.msra.mxu0 0.0
        %5411 = vmatprep.subr.mxu0 0.0
        %5412 = vmatpush1.xpose.msra.mxu0 0.0
        %5413 = vmatprep.subr.mxu0 0.0
        %5414 = vmatpush1.xpose.msra.mxu0 0.0
        %5415 = vmatprep.subr.mxu0 0.0
        %5416 = vmatpush1.xpose.msra.mxu0 0.0
        %5417 = vmatprep.subr.mxu0 0.0
        %5418 = vmatpush1.xpose.msra.mxu0 0.0
        %5419 = vmatprep.subr.mxu0 0.0
        %5420 = vmatpush1.xpose.msra.mxu0 0.0
        %5421 = vmatprep.subr.mxu0 0.0
        %5422 = vmatpush1.xpose.msra.mxu0 0.0
        %5423 = vmatprep.subr.mxu0 0.0
        %5424 = vmatpush1.xpose.msra.mxu0 0.0
        %5425 = vmatprep.subr.mxu0 0.0
        %5426 = vmatpush1.xpose.msra.mxu0 0.0
        %5427 = vmatprep.subr.mxu0 0.0
        %5428 = vmatpush1.xpose.msra.mxu0 0.0
        %5429 = vmatprep.subr.mxu0 0.0
        %5430 = vmatpush1.xpose.msra.mxu0 0.0
        %5431 = vmatprep.subr.mxu0 0.0
        %5432 = vmatpush1.xpose.msra.mxu0 0.0
        %5433 = vmatprep.subr.mxu0 0.0
        %5434 = vmatpush1.xpose.msra.mxu0 0.0
        %5435 = vmatprep.subr.mxu0 0.0
        %5436 = vmatpush1.xpose.msra.mxu0 0.0
        %5437 = vmatprep.mubr.f32.mxu0 0.0
        %5438 = vmatmul.mubr.f32.gmra.mrb[0].mxu0 %v5356
        %v5439 = vpop.f32.mrb[0].mxu0
        %v5440 = vadd.f32 %v3232, %v5439
        %v5441 = vpop.f32.mrb[0].mxu0
        %5442 = vmatprep.mubr.f32.mxu0 0.0
        %5443 = vmatmul.mubr.f32.gmra.mrb[0].mxu0 %v5359
        %v5444 = vpop.f32.mrb[0].mxu0
        %v5445 = vadd.f32 %v3233, %v5444
        %v5446 = vpop.f32.mrb[0].mxu0
        %5447 = vdwg.mxu0
        %v5448 = vsel %vm1171, %v5440, -inf
        %5449 = vmax.xlane.f32.xlu0 %v5448
        %v5450 = vpop.xlane.xlu0 %5449
        %v5451 = vsel %vm1171, %v5445, -inf
        %5452 = vmax.xlane.f32.xlu0 %v5451
        %v5453 = vpop.xlane.xlu0 %5452
        %v5454 = vsub.f32 %v5440, %v5450
        %v5455 = vsub.f32 %v5445, %v5453
        %v5456 = vmul.f32 %v5454, 1.442695
        %v5457 = vpow.pop %v5456
        %v5458 = vmul.f32 %v5455, 1.442695
        %v5459 = vpow.pop %v5458
        %v5460 = vsel %vm1171, %v5457, 0.0
        %5461 = vadd.xlane.f32.xlu0 %v5460
        %v5462 = vpop.xlane.xlu0 %5461
        %v5463 = vsel %vm1171, %v5459, 0.0
        %5464 = vadd.xlane.f32.xlu0 %v5463
        %v5465 = vpop.xlane.xlu0 %5464
        %v5466 = vrcp.pop %v5462
        %v5467 = vmul.f32 %v5457, %v5466
        %v5468 = vrcp.pop %v5465
        %v5469 = vmul.f32 %v5459, %v5468
        %v5471 = vsel %vm1171, %v5467, 0
        %v5474 = vsel %vm1171, %v5469, 0
        %5476 = vmatprep.subr.mxu0 0.0
        %5477 = vmatpush1.msra.mxu0 %v5337
        %5478 = vmatprep.subr.mxu0 0.0
        %5479 = vmatpush1.msra.mxu0 %v5342
        %5480 = vmatprep.subr.mxu0 0.0
        %5481 = vmatpush1.msra.mxu0 %v5347
        %5482 = vmatprep.subr.mxu0 0.0
        %5483 = vmatpush1.msra.mxu0 %v5352
        %5484 = vmatprep.subr.mxu0 0.0
        %5485 = vmatpush1.msra.mxu0 0.0
        %5486 = vmatprep.subr.mxu0 0.0
        %5487 = vmatpush1.msra.mxu0 0.0
        %5488 = vmatprep.subr.mxu0 0.0
        %5489 = vmatpush1.msra.mxu0 0.0
        %5490 = vmatprep.subr.mxu0 0.0
        %5491 = vmatpush1.msra.mxu0 0.0
        %5492 = vmatprep.subr.mxu0 0.0
        %5493 = vmatpush1.msra.mxu0 0.0
        %5494 = vmatprep.subr.mxu0 0.0
        %5495 = vmatpush1.msra.mxu0 0.0
        %5496 = vmatprep.subr.mxu0 0.0
        %5497 = vmatpush1.msra.mxu0 0.0
        %5498 = vmatprep.subr.mxu0 0.0
        %5499 = vmatpush1.msra.mxu0 0.0
        %5500 = vmatprep.subr.mxu0 0.0
        %5501 = vmatpush1.msra.mxu0 0.0
        %5502 = vmatprep.subr.mxu0 0.0
        %5503 = vmatpush1.msra.mxu0 0.0
        %5504 = vmatprep.subr.mxu0 0.0
        %5505 = vmatpush1.msra.mxu0 0.0
        %5506 = vmatprep.subr.mxu0 0.0
        %5507 = vmatpush1.msra.mxu0 0.0
        %5508 = vmatprep.subr.mxu0 0.0
        %5509 = vmatpush1.msra.mxu0 0.0
        %5510 = vmatprep.subr.mxu0 0.0
        %5511 = vmatpush1.msra.mxu0 0.0
        %5512 = vmatprep.subr.mxu0 0.0
        %5513 = vmatpush1.msra.mxu0 0.0
        %5514 = vmatprep.subr.mxu0 0.0
        %5515 = vmatpush1.msra.mxu0 0.0
        %5516 = vmatprep.subr.mxu0 0.0
        %5517 = vmatpush1.msra.mxu0 0.0
        %5518 = vmatprep.subr.mxu0 0.0
        %5519 = vmatpush1.msra.mxu0 0.0
        %5520 = vmatprep.subr.mxu0 0.0
        %5521 = vmatpush1.msra.mxu0 0.0
        %5522 = vmatprep.subr.mxu0 0.0
        %5523 = vmatpush1.msra.mxu0 0.0
        %5524 = vmatprep.subr.mxu0 0.0
        %5525 = vmatpush1.msra.mxu0 0.0
        %5526 = vmatprep.subr.mxu0 0.0
        %5527 = vmatpush1.msra.mxu0 0.0
        %5528 = vmatprep.subr.mxu0 0.0
        %5529 = vmatpush1.msra.mxu0 0.0
        %5530 = vmatprep.subr.mxu0 0.0
        %5531 = vmatpush1.msra.mxu0 0.0
        %5532 = vmatprep.subr.mxu0 0.0
        %5533 = vmatpush1.msra.mxu0 0.0
        %5534 = vmatprep.subr.mxu0 0.0
        %5535 = vmatpush1.msra.mxu0 0.0
        %5536 = vmatprep.subr.mxu0 0.0
        %5537 = vmatpush1.msra.mxu0 0.0
        %5538 = vmatprep.subr.mxu0 0.0
        %5539 = vmatpush1.msra.mxu0 0.0
        %5540 = vmatprep.mubr.f32.mxu0 0.0
        %5541 = vmatmul.mubr.f32.gmra.mrb[0].mxu0 %v5471
        %v5542 = vpop.f32.mrb[0].mxu0
        %v5543 = vadd.f32 0.0, %v5542
        %v5544 = vpop.f32.mrb[0].mxu0
        %5545 = vmatprep.mubr.f32.mxu0 0.0
        %5546 = vmatmul.mubr.f32.gmra.mrb[0].mxu0 %v5474
        %v5547 = vpop.f32.mrb[0].mxu0
        %v5548 = vadd.f32 0.0, %v5547
        %v5549 = vpop.f32.mrb[0].mxu0
        %5550 = vdwg.mxu0
        %s5551 = scalar_lea.vmem %s18, 96
        %v5552 = vld [vmem:[%s5551] sm:$0xff]
        %v5553 = vld [vmem:[%s5551 + $0x8] sm:$0xff]
        %v5554 = vld [vmem:[%s5551 + $0x10] sm:$0xff]
        %v5555 = vld [vmem:[%s5551 + $0x18] sm:$0xff]
        %v5557 = vsel %vm1171, %v5543, 0
        %v5560 = vsel %vm1171, %v5548, 0
        %5562 = vmatprep.subr.mxu0 0.0
        %5563 = vmatpush1.msra.mxu0 %v5552
        %5564 = vmatprep.subr.mxu0 0.0
        %5565 = vmatpush1.msra.mxu0 %v5553
        %5566 = vmatprep.subr.mxu0 0.0
        %5567 = vmatpush1.msra.mxu0 %v5554
        %5568 = vmatprep.subr.mxu0 0.0
        %5569 = vmatpush1.msra.mxu0 %v5555
        %5570 = vmatprep.subr.mxu0 0.0
        %5571 = vmatpush1.msra.mxu0 0.0
        %5572 = vmatprep.subr.mxu0 0.0
        %5573 = vmatpush1.msra.mxu0 0.0
        %5574 = vmatprep.subr.mxu0 0.0
        %5575 = vmatpush1.msra.mxu0 0.0
        %5576 = vmatprep.subr.mxu0 0.0
        %5577 = vmatpush1.msra.mxu0 0.0
        %5578 = vmatprep.subr.mxu0 0.0
        %5579 = vmatpush1.msra.mxu0 0.0
        %5580 = vmatprep.subr.mxu0 0.0
        %5581 = vmatpush1.msra.mxu0 0.0
        %5582 = vmatprep.subr.mxu0 0.0
        %5583 = vmatpush1.msra.mxu0 0.0
        %5584 = vmatprep.subr.mxu0 0.0
        %5585 = vmatpush1.msra.mxu0 0.0
        %5586 = vmatprep.subr.mxu0 0.0
        %5587 = vmatpush1.msra.mxu0 0.0
        %5588 = vmatprep.subr.mxu0 0.0
        %5589 = vmatpush1.msra.mxu0 0.0
        %5590 = vmatprep.subr.mxu0 0.0
        %5591 = vmatpush1.msra.mxu0 0.0
        %5592 = vmatprep.subr.mxu0 0.0
        %5593 = vmatpush1.msra.mxu0 0.0
        %5594 = vmatprep.subr.mxu0 0.0
        %5595 = vmatpush1.msra.mxu0 0.0
        %5596 = vmatprep.subr.mxu0 0.0
        %5597 = vmatpush1.msra.mxu0 0.0
        %5598 = vmatprep.subr.mxu0 0.0
        %5599 = vmatpush1.msra.mxu0 0.0
        %5600 = vmatprep.subr.mxu0 0.0
        %5601 = vmatpush1.msra.mxu0 0.0
        %5602 = vmatprep.subr.mxu0 0.0
        %5603 = vmatpush1.msra.mxu0 0.0
        %5604 = vmatprep.subr.mxu0 0.0
        %5605 = vmatpush1.msra.mxu0 0.0
        %5606 = vmatprep.subr.mxu0 0.0
        %5607 = vmatpush1.msra.mxu0 0.0
        %5608 = vmatprep.subr.mxu0 0.0
        %5609 = vmatpush1.msra.mxu0 0.0
        %5610 = vmatprep.subr.mxu0 0.0
        %5611 = vmatpush1.msra.mxu0 0.0
        %5612 = vmatprep.subr.mxu0 0.0
        %5613 = vmatpush1.msra.mxu0 0.0
        %5614 = vmatprep.subr.mxu0 0.0
        %5615 = vmatpush1.msra.mxu0 0.0
        %5616 = vmatprep.subr.mxu0 0.0
        %5617 = vmatpush1.msra.mxu0 0.0
        %5618 = vmatprep.subr.mxu0 0.0
        %5619 = vmatpush1.msra.mxu0 0.0
        %5620 = vmatprep.subr.mxu0 0.0
        %5621 = vmatpush1.msra.mxu0 0.0
        %5622 = vmatprep.subr.mxu0 0.0
        %5623 = vmatpush1.msra.mxu0 0.0
        %5624 = vmatprep.subr.mxu0 0.0
        %5625 = vmatpush1.msra.mxu0 0.0
        %5626 = vmatprep.mubr.f32.mxu0 0.0
        %5627 = vmatmul.mubr.f32.gmra.mrb[0].mxu0 %v5557
        %v5628 = vpop.f32.mrb[0].mxu0
        %v5629 = vadd.f32 0.0, %v5628
        %v5630 = vpop.f32.mrb[0].mxu0
        %5631 = vmatprep.mubr.f32.mxu0 0.0
        %5632 = vmatmul.mubr.f32.gmra.mrb[0].mxu0 %v5560
        %v5633 = vpop.f32.mrb[0].mxu0
        %v5634 = vadd.f32 0.0, %v5633
        %v5635 = vpop.f32.mrb[0].mxu0
        %5636 = vdwg.mxu0
        %v5637 = vadd.f32 %v5033, %v5629
        %v5638 = vadd.f32 %v5034, %v5634
        %v5639 = vld [vmem:[%s19] sm:$0x1]
        %v5641 = vlaneseq
        %v5642 = vshrl.u32 %v5641, 7
        %v5643 = vsub.s32 0, %v5642
        %v5644 = vrot.slane %v5639, %v5643
        %v5646 = vadd.f32 %v5637, %v5644
        %v5647 = vadd.f32 %v5638, %v5644
        %v5648 = vadd.f32 %v3230, %v5646
        %v5649 = vadd.f32 %v3231, %v5647
        %v5650 = vld [vmem:[%s26] sm:$0x1]
        %v5651 = vld [vmem:[%s27] sm:$0x1]
        %5652 = vadd.xlane.f32.xlu0 %v5648
        %v5653 = vpop.xlane.xlu0 %5652
        %5654 = vadd.xlane.f32.xlu0 %v5649
        %v5655 = vpop.xlane.xlu0 %5654
        %v5656 = vmul.f32 %v5653, %v3197
        %v5657 = vmul.f32 %v5655, %v3197
        %v5658 = vsub.f32 %v5648, %v5656
        %v5659 = vsub.f32 %v5649, %v5657
        %v5660 = vmul.f32 %v5658, %v5658
        %v5661 = vmul.f32 %v5659, %v5659
        %5662 = vadd.xlane.f32.xlu0 %v5660
        %v5663 = vpop.xlane.xlu0 %5662
        %5664 = vadd.xlane.f32.xlu0 %v5661
        %v5665 = vpop.xlane.xlu0 %5664
        %v5666 = vmul.f32 %v5663, %v3197
        %v5667 = vmul.f32 %v5665, %v3197
        %v5668 = vadd.f32 %v5666, 1e-06
        %v5669 = vadd.f32 %v5667, 1e-06
        %v5670 = vrsqrt.pop %v5668
        %v5671 = vrsqrt.pop %v5669
        %v5672 = vmul.f32 %v5658, %v5670
        %v5673 = vmul.f32 %v5659, %v5671
        %v5675 = vlaneseq
        %v5676 = vshrl.u32 %v5675, 7
        %v5677 = vsub.s32 0, %v5676
        %v5678 = vrot.slane %v5650, %v5677
        %v5680 = vmul.f32 %v5672, %v5678
        %v5681 = vmul.f32 %v5673, %v5678
        %v5683 = vlaneseq
        %v5684 = vshrl.u32 %v5683, 7
        %v5685 = vsub.s32 0, %v5684
        %v5686 = vrot.slane %v5651, %v5685
        %v5688 = vadd.f32 %v5680, %v5686
        %v5689 = vadd.f32 %v5681, %v5686
        %v5690 = vld [vmem:[%s20] sm:$0xff]
        %v5691 = vld [vmem:[%s20 + $0x8] sm:$0xff]
        %v5692 = vld [vmem:[%s20 + $0x10] sm:$0xff]
        %v5693 = vld [vmem:[%s20 + $0x18] sm:$0xff]
        %v5694 = vld [vmem:[%s20 + $0x20] sm:$0xff]
        %v5695 = vld [vmem:[%s20 + $0x28] sm:$0xff]
        %v5696 = vld [vmem:[%s20 + $0x30] sm:$0xff]
        %v5697 = vld [vmem:[%s20 + $0x38] sm:$0xff]
        %v5698 = vld [vmem:[%s20 + $0x40] sm:$0xff]
        %v5699 = vld [vmem:[%s20 + $0x48] sm:$0xff]
        %v5700 = vld [vmem:[%s20 + $0x50] sm:$0xff]
        %v5701 = vld [vmem:[%s20 + $0x58] sm:$0xff]
        %v5702 = vld [vmem:[%s20 + $0x60] sm:$0xff]
        %v5703 = vld [vmem:[%s20 + $0x68] sm:$0xff]
        %v5704 = vld [vmem:[%s20 + $0x70] sm:$0xff]
        %v5705 = vld [vmem:[%s20 + $0x78] sm:$0xff]
        %v5706 = vld [vmem:[%s20 + $0x80] sm:$0xff]
        %v5707 = vld [vmem:[%s20 + $0x88] sm:$0xff]
        %v5708 = vld [vmem:[%s20 + $0x90] sm:$0xff]
        %v5709 = vld [vmem:[%s20 + $0x98] sm:$0xff]
        %v5710 = vld [vmem:[%s20 + $0xa0] sm:$0xff]
        %v5711 = vld [vmem:[%s20 + $0xa8] sm:$0xff]
        %v5712 = vld [vmem:[%s20 + $0xb0] sm:$0xff]
        %v5713 = vld [vmem:[%s20 + $0xb8] sm:$0xff]
        %v5714 = vld [vmem:[%s20 + $0xc0] sm:$0xff]
        %v5715 = vld [vmem:[%s20 + $0xc8] sm:$0xff]
        %v5716 = vld [vmem:[%s20 + $0xd0] sm:$0xff]
        %v5717 = vld [vmem:[%s20 + $0xd8] sm:$0xff]
        %v5718 = vld [vmem:[%s20 + $0xe0] sm:$0xff]
        %v5719 = vld [vmem:[%s20 + $0xe8] sm:$0xff]
        %v5720 = vld [vmem:[%s20 + $0xf0] sm:$0xff]
        %v5721 = vld [vmem:[%s20 + $0xf8] sm:$0xff]
        %v5722 = vld [vmem:[%s21] sm:$0x3]
        %v5724 = vlaneseq
        %v5725 = vshrl.u32 %v5724, 7
        %v5726 = vsub.s32 0, %v5725
        %v5727 = vrot.slane %v5722, %v5726
        %v5728 = vlaneseq
        %v5729 = vshrl.u32 %v5728, 7
        %v5730 = vsub.s32 1, %v5729
        %v5731 = vrot.slane %v5722, %v5730
        %5734 = vmatprep.subr.mxu0 %v5691
        %5735 = vmatpush1.msra.mxu0 %v5690
        %5736 = vmatprep.subr.mxu0 %v5693
        %5737 = vmatpush1.msra.mxu0 %v5692
        %5738 = vmatprep.subr.mxu0 %v5695
        %5739 = vmatpush1.msra.mxu0 %v5694
        %5740 = vmatprep.subr.mxu0 %v5697
        %5741 = vmatpush1.msra.mxu0 %v5696
        %5742 = vmatprep.subr.mxu0 %v5699
        %5743 = vmatpush1.msra.mxu0 %v5698
        %5744 = vmatprep.subr.mxu0 %v5701
        %5745 = vmatpush1.msra.mxu0 %v5700
        %5746 = vmatprep.subr.mxu0 %v5703
        %5747 = vmatpush1.msra.mxu0 %v5702
        %5748 = vmatprep.subr.mxu0 %v5705
        %5749 = vmatpush1.msra.mxu0 %v5704
        %5750 = vmatprep.subr.mxu0 %v5707
        %5751 = vmatpush1.msra.mxu0 %v5706
        %5752 = vmatprep.subr.mxu0 %v5709
        %5753 = vmatpush1.msra.mxu0 %v5708
        %5754 = vmatprep.subr.mxu0 %v5711
        %5755 = vmatpush1.msra.mxu0 %v5710
        %5756 = vmatprep.subr.mxu0 %v5713
        %5757 = vmatpush1.msra.mxu0 %v5712
        %5758 = vmatprep.subr.mxu0 %v5715
        %5759 = vmatpush1.msra.mxu0 %v5714
        %5760 = vmatprep.subr.mxu0 %v5717
        %5761 = vmatpush1.msra.mxu0 %v5716
        %5762 = vmatprep.subr.mxu0 %v5719
        %5763 = vmatpush1.msra.mxu0 %v5718
        %5764 = vmatprep.subr.mxu0 %v5721
        %5765 = vmatpush1.msra.mxu0 %v5720
        %5766 = vmatprep.subr.mxu0 0.0
        %5767 = vmatpush1.msra.mxu0 0.0
        %5768 = vmatprep.subr.mxu0 0.0
        %5769 = vmatpush1.msra.mxu0 0.0
        %5770 = vmatprep.subr.mxu0 0.0
        %5771 = vmatpush1.msra.mxu0 0.0
        %5772 = vmatprep.subr.mxu0 0.0
        %5773 = vmatpush1.msra.mxu0 0.0
        %5774 = vmatprep.subr.mxu0 0.0
        %5775 = vmatpush1.msra.mxu0 0.0
        %5776 = vmatprep.subr.mxu0 0.0
        %5777 = vmatpush1.msra.mxu0 0.0
        %5778 = vmatprep.subr.mxu0 0.0
        %5779 = vmatpush1.msra.mxu0 0.0
        %5780 = vmatprep.subr.mxu0 0.0
        %5781 = vmatpush1.msra.mxu0 0.0
        %5782 = vmatprep.subr.mxu0 0.0
        %5783 = vmatpush1.msra.mxu0 0.0
        %5784 = vmatprep.subr.mxu0 0.0
        %5785 = vmatpush1.msra.mxu0 0.0
        %5786 = vmatprep.subr.mxu0 0.0
        %5787 = vmatpush1.msra.mxu0 0.0
        %5788 = vmatprep.subr.mxu0 0.0
        %5789 = vmatpush1.msra.mxu0 0.0
        %5790 = vmatprep.subr.mxu0 0.0
        %5791 = vmatpush1.msra.mxu0 0.0
        %5792 = vmatprep.subr.mxu0 0.0
        %5793 = vmatpush1.msra.mxu0 0.0
        %5794 = vmatprep.subr.mxu0 0.0
        %5795 = vmatpush1.msra.mxu0 0.0
        %5796 = vmatprep.subr.mxu0 0.0
        %5797 = vmatpush1.msra.mxu0 0.0
        %5798 = vmatprep.mubr.f32.mxu0 0.0
        %5799 = vmatmul.mubr.f32.gmra.mrb[0].mxu0 %v5688
        %v5800 = vpop.f32.mrb[0].mxu0
        %v5801 = vadd.f32 %v5727, %v5800
        %v5802 = vpop.f32.mrb[0].mxu0
        %v5803 = vadd.f32 %v5731, %v5802
        %5804 = vmatprep.mubr.f32.mxu0 0.0
        %5805 = vmatmul.mubr.f32.gmra.mrb[0].mxu0 %v5689
        %v5806 = vpop.f32.mrb[0].mxu0
        %v5807 = vadd.f32 %v5727, %v5806
        %v5808 = vpop.f32.mrb[0].mxu0
        %v5809 = vadd.f32 %v5731, %v5808
        %5810 = vdwg.mxu0
        %v5811 = vmax.f32 %v5801, 0.0
        %v5812 = vmax.f32 %v5803, 0.0
        %v5813 = vmax.f32 %v5807, 0.0
        %v5814 = vmax.f32 %v5809, 0.0
        %v5815 = vld [vmem:[%s22] sm:$0xff]
        %v5816 = vld [vmem:[%s22 + $0x8] sm:$0xff]
        %v5817 = vld [vmem:[%s22 + $0x10] sm:$0xff]
        %v5818 = vld [vmem:[%s22 + $0x18] sm:$0xff]
        %v5819 = vld [vmem:[%s22 + $0x20] sm:$0xff]
        %v5820 = vld [vmem:[%s22 + $0x28] sm:$0xff]
        %v5821 = vld [vmem:[%s22 + $0x30] sm:$0xff]
        %v5822 = vld [vmem:[%s22 + $0x38] sm:$0xff]
        %v5823 = vld [vmem:[%s22 + $0x40] sm:$0xff]
        %v5824 = vld [vmem:[%s22 + $0x48] sm:$0xff]
        %v5825 = vld [vmem:[%s22 + $0x50] sm:$0xff]
        %v5826 = vld [vmem:[%s22 + $0x58] sm:$0xff]
        %v5827 = vld [vmem:[%s22 + $0x60] sm:$0xff]
        %v5828 = vld [vmem:[%s22 + $0x68] sm:$0xff]
        %v5829 = vld [vmem:[%s22 + $0x70] sm:$0xff]
        %v5830 = vld [vmem:[%s22 + $0x78] sm:$0xff]
        %v5831 = vld [vmem:[%s22 + $0x80] sm:$0xff]
        %v5832 = vld [vmem:[%s22 + $0x88] sm:$0xff]
        %v5833 = vld [vmem:[%s22 + $0x90] sm:$0xff]
        %v5834 = vld [vmem:[%s22 + $0x98] sm:$0xff]
        %v5835 = vld [vmem:[%s22 + $0xa0] sm:$0xff]
        %v5836 = vld [vmem:[%s22 + $0xa8] sm:$0xff]
        %v5837 = vld [vmem:[%s22 + $0xb0] sm:$0xff]
        %v5838 = vld [vmem:[%s22 + $0xb8] sm:$0xff]
        %v5839 = vld [vmem:[%s22 + $0xc0] sm:$0xff]
        %v5840 = vld [vmem:[%s22 + $0xc8] sm:$0xff]
        %v5841 = vld [vmem:[%s22 + $0xd0] sm:$0xff]
        %v5842 = vld [vmem:[%s22 + $0xd8] sm:$0xff]
        %v5843 = vld [vmem:[%s22 + $0xe0] sm:$0xff]
        %v5844 = vld [vmem:[%s22 + $0xe8] sm:$0xff]
        %v5845 = vld [vmem:[%s22 + $0xf0] sm:$0xff]
        %v5846 = vld [vmem:[%s22 + $0xf8] sm:$0xff]
        %v5847 = vld [vmem:[%s23] sm:$0x1]
        %v5849 = vlaneseq
        %v5850 = vshrl.u32 %v5849, 7
        %v5851 = vsub.s32 0, %v5850
        %v5852 = vrot.slane %v5847, %v5851
        %5854 = vmatprep.subr.mxu0 0.0
        %5855 = vmatpush1.msra.mxu0 %v5815
        %5856 = vmatprep.subr.mxu0 0.0
        %5857 = vmatpush1.msra.mxu0 %v5816
        %5858 = vmatprep.subr.mxu0 0.0
        %5859 = vmatpush1.msra.mxu0 %v5817
        %5860 = vmatprep.subr.mxu0 0.0
        %5861 = vmatpush1.msra.mxu0 %v5818
        %5862 = vmatprep.subr.mxu0 0.0
        %5863 = vmatpush1.msra.mxu0 %v5819
        %5864 = vmatprep.subr.mxu0 0.0
        %5865 = vmatpush1.msra.mxu0 %v5820
        %5866 = vmatprep.subr.mxu0 0.0
        %5867 = vmatpush1.msra.mxu0 %v5821
        %5868 = vmatprep.subr.mxu0 0.0
        %5869 = vmatpush1.msra.mxu0 %v5822
        %5870 = vmatprep.subr.mxu0 0.0
        %5871 = vmatpush1.msra.mxu0 %v5823
        %5872 = vmatprep.subr.mxu0 0.0
        %5873 = vmatpush1.msra.mxu0 %v5824
        %5874 = vmatprep.subr.mxu0 0.0
        %5875 = vmatpush1.msra.mxu0 %v5825
        %5876 = vmatprep.subr.mxu0 0.0
        %5877 = vmatpush1.msra.mxu0 %v5826
        %5878 = vmatprep.subr.mxu0 0.0
        %5879 = vmatpush1.msra.mxu0 %v5827
        %5880 = vmatprep.subr.mxu0 0.0
        %5881 = vmatpush1.msra.mxu0 %v5828
        %5882 = vmatprep.subr.mxu0 0.0
        %5883 = vmatpush1.msra.mxu0 %v5829
        %5884 = vmatprep.subr.mxu0 0.0
        %5885 = vmatpush1.msra.mxu0 %v5830
        %5886 = vmatprep.subr.mxu0 0.0
        %5887 = vmatpush1.msra.mxu0 %v5831
        %5888 = vmatprep.subr.mxu0 0.0
        %5889 = vmatpush1.msra.mxu0 %v5832
        %5890 = vmatprep.subr.mxu0 0.0
        %5891 = vmatpush1.msra.mxu0 %v5833
        %5892 = vmatprep.subr.mxu0 0.0
        %5893 = vmatpush1.msra.mxu0 %v5834
        %5894 = vmatprep.subr.mxu0 0.0
        %5895 = vmatpush1.msra.mxu0 %v5835
        %5896 = vmatprep.subr.mxu0 0.0
        %5897 = vmatpush1.msra.mxu0 %v5836
        %5898 = vmatprep.subr.mxu0 0.0
        %5899 = vmatpush1.msra.mxu0 %v5837
        %5900 = vmatprep.subr.mxu0 0.0
        %5901 = vmatpush1.msra.mxu0 %v5838
        %5902 = vmatprep.subr.mxu0 0.0
        %5903 = vmatpush1.msra.mxu0 %v5839
        %5904 = vmatprep.subr.mxu0 0.0
        %5905 = vmatpush1.msra.mxu0 %v5840
        %5906 = vmatprep.subr.mxu0 0.0
        %5907 = vmatpush1.msra.mxu0 %v5841
        %5908 = vmatprep.subr.mxu0 0.0
        %5909 = vmatpush1.msra.mxu0 %v5842
        %5910 = vmatprep.subr.mxu0 0.0
        %5911 = vmatpush1.msra.mxu0 %v5843
        %5912 = vmatprep.subr.mxu0 0.0
        %5913 = vmatpush1.msra.mxu0 %v5844
        %5914 = vmatprep.subr.mxu0 0.0
        %5915 = vmatpush1.msra.mxu0 %v5845
        %5916 = vmatprep.subr.mxu0 0.0
        %5917 = vmatpush1.msra.mxu0 %v5846
        %5918 = vmatprep.mubr.f32.mxu0 %v5812
        %5919 = vmatmul.mubr.f32.gmra.mrb[0].mxu0 %v5811
        %v5920 = vpop.f32.mrb[0].mxu0
        %v5921 = vadd.f32 %v5852, %v5920
        %v5922 = vpop.f32.mrb[0].mxu0
        %5923 = vmatprep.mubr.f32.mxu0 %v5814
        %5924 = vmatmul.mubr.f32.gmra.mrb[0].mxu0 %v5813
        %v5925 = vpop.f32.mrb[0].mxu0
        %v5926 = vadd.f32 %v5852, %v5925
        %v5927 = vpop.f32.mrb[0].mxu0
        %5928 = vdwg.mxu0
        %v5929 = vadd.f32 %v5688, %v5921
        %v5930 = vadd.f32 %v5689, %v5926
        %5931 = vadd.xlane.f32.xlu0 %v5929
        %v5932 = vpop.xlane.xlu0 %5931
        %5933 = vadd.xlane.f32.xlu0 %v5930
        %v5934 = vpop.xlane.xlu0 %5933
        %v5935 = vmul.f32 %v5932, %v3197
        %v5936 = vmul.f32 %v5934, %v3197
        %v5937 = vsub.f32 %v5929, %v5935
        %v5938 = vsub.f32 %v5930, %v5936
        %v5939 = vmul.f32 %v5937, %v5937
        %v5940 = vmul.f32 %v5938, %v5938
        %5941 = vadd.xlane.f32.xlu0 %v5939
        %v5942 = vpop.xlane.xlu0 %5941
        %5943 = vadd.xlane.f32.xlu0 %v5940
        %v5944 = vpop.xlane.xlu0 %5943
        %v5945 = vmul.f32 %v5942, %v3197
        %v5946 = vmul.f32 %v5944, %v3197
        %v5947 = vadd.f32 %v5945, 1e-06
        %v5948 = vadd.f32 %v5946, 1e-06
        %v5949 = vrsqrt.pop %v5947
        %v5950 = vrsqrt.pop %v5948
        %v5951 = vmul.f32 %v5937, %v5949
        %v5952 = vmul.f32 %v5938, %v5950
        %v5953 = vmul.f32 %v5951, %v5678
        %v5954 = vmul.f32 %v5952, %v5678
        %v5955 = vadd.f32 %v5953, %v5686
        %v5956 = vadd.f32 %v5954, %v5686
        %5957 = vst [vmem:[%s855] sm:$0xff] %v5955
        %5958 = vst [vmem:[%s855 + $0x8] sm:$0xff] %v5956
        %s5959 = sand.u32 %s648, 1
        %s5960 = scalar_lea.sflag [#allocation3], %s5959
        %s5961 = sand.u32 %s648, 1
        %s5962 = smul.addr %s5961, 16
        %s5963 = scalar_lea.vmem [#allocation2], %s5962
        // Predicated region
        $region133: #{tpu_custom_call.1} parent=131 // pred_check
          %p5964 = pneg %p658
        $region134: #{tpu_custom_call.1} parent=131 // pred_check_branch
          %5966 = sbr.rel (%p5964) target = $region136
        $region135: #{tpu_custom_call.1} parent=131 // pred_region
          %s5967 = smul.u32 2, %s42
          %s5969 = ssub.s32 256, 256
          %5970 = vsyncadd %s5960, %s5969
          %s5971 = smul.addr %s5967, 128
          %s5972 = scalar_lea.hbm %s28, %s5971
          %s5973 = sshll.u32 %s5963, 4
          %s5974 = int_to_ptr.vmem [resolvable:$true] %s5973
          %5979 = dma.vmem_to_hbm [thread:$0]  %s5974, 256, %s5972, %s5960, 128, 128, 8
        $region136: #{tpu_custom_call.1} parent=131 // pred_fallthru
          _
      $region132: #{tpu_custom_call.1} parent=5 // pred_fallthru
        _
      %p5980 = scmp.le.s32.totalorder 2, %s37
      // Predicated region
      $region137: #{tpu_custom_call.1} parent=5 // pred_check
        %p5981 = pneg %p5980
      $region138: #{tpu_custom_call.1} parent=5 // pred_check_branch
        %5983 = sbr.rel (%p5981) target = $region140
      $region139: #{tpu_custom_call.1} parent=5 // pred_region
        %s5984 = ssub.s32 %s37, 2
        // Predicated region
        $region141: #{tpu_custom_call.1} parent=139 // pred_check
          %p5985 = pneg %p664
        $region142: #{tpu_custom_call.1} parent=139 // pred_check_branch
          %5987 = sbr.rel (%p5985) target = $region144
        $region143: #{tpu_custom_call.1} parent=139 // pred_region
          %s5988 = sand.u32 %s649, 1
          %s5989 = scalar_lea.sflag [#allocation3], %s5988
          %s5990 = sand.u32 %s649, 1
          %s5991 = smul.addr %s5990, 16
          %s5992 = scalar_lea.vmem [#allocation2], %s5991
          %5993 = dma.done %s5989, 256
        $region144: #{tpu_custom_call.1} parent=139 // pred_fallthru
          _
      $region140: #{tpu_custom_call.1} parent=5 // pred_fallthru
        _
    $region6: #{tpu_custom_call.1} parent=1 // loop_footer
      %s41 = sadd.s32 1, %s37
    $region7: #{tpu_custom_call.1} parent=1 // loop_footer_branch
      %36 = sbr.rel target = $region3
    $region8: #{tpu_custom_call.1} parent=1 // loop_exit
      _
    %5994 = vsyncpa [#allocation3], 1
    %s5995 = scalar_lea.sflag [#allocation3], 1
    %5996 = vsyncpa %s5995, 1

</llo_original>
